<compile_context>
chip_gen: v6e
topology: v6e:2x2x1
jax: 0.10.0
libtpu: 0.0.40
codegen_flags: <defaults>
</compile_context>

<pallas_src>
import functools
import math

import jax
import jax.numpy as jnp
from jax import lax
from jax.experimental import pallas as pl
from jax.experimental.pallas import tpu as pltpu

_NEG_INF = -1e9
_LN_EPS = 1e-5

# Row tile for token-dim tiling.  512 keeps (2 x input tile) + bf16 resident
# weights + the [tile, d_ff] f32 FFN intermediate under v5e's 16 MiB default and
# well under the explicit 48 MiB budget on v6e/v7x, while being >=512 rows so the
# pipeline reaches ~85% of HBM roofline.
_MAX_ROW_TILE = 512
_VMEM_LIMIT = 48 * 1024 * 1024


def _bf16(x):
    return x.astype(jnp.bfloat16)


def _row_tile(rows):
    return rows if rows <= _MAX_ROW_TILE else _MAX_ROW_TILE


# ----------------------------------------------------------------------------
# pipeline_mode probe: single-buffer constant-index weight BlockSpecs when the
# installed Pallas supports it (halves their resident VMEM on v7x).
# ----------------------------------------------------------------------------
def _probe_copy_kernel(x_ref, o_ref):
    o_ref[...] = x_ref[...]


def _probe_buffered_kwargs():
    try:
        x = jnp.zeros((8, 128), jnp.float32)
        y = pl.pallas_call(
            _probe_copy_kernel,
            out_shape=jax.ShapeDtypeStruct((8, 128), jnp.float32),
            grid=(2,),
            in_specs=[pl.BlockSpec((8, 128), lambda i: (0, 0),
                                   pipeline_mode=pl.Buffered(1))],
            out_specs=pl.BlockSpec((8, 128), lambda i: (0, 0)),
        )(x)
        jax.block_until_ready(y)
        return {"pipeline_mode": pl.Buffered(1)}
    except Exception:
        return {}


_WEIGHT_PIPELINE_KW = _probe_buffered_kwargs()


def _weight_spec(shape, index_map):
    """BlockSpec for grid-constant parameters (weights / biases / LN params)."""
    return pl.BlockSpec(shape, index_map, **_WEIGHT_PIPELINE_KW)


# ----------------------------------------------------------------------------
# Kernels
# ----------------------------------------------------------------------------
def _attn_block_kernel(*refs, nhead, scale, has_bias):
    """One (batch, query-row-tile) step, fully fused:
       q = (xq+pq) Wq, k = (xk+pk) Wk, v = xk Wv  ->  per-head softmax attention
       -> packed output projection -> residual(xq) add -> LayerNorm."""
    if has_bias:
        (xq_ref, pq_ref, xk_ref, pk_ref, bias_ref,
         wq_ref, bq_ref, wk_ref, bk_ref, wv_ref, bv_ref,
         wo_ref, bo_ref, g_ref, b_ref, o_ref) = refs
    else:
        (xq_ref, pq_ref, xk_ref, pk_ref,
         wq_ref, bq_ref, wk_ref, bk_ref, wv_ref, bv_ref,
         wo_ref, bo_ref, g_ref, b_ref, o_ref) = refs
        bias_ref = None

    xq = xq_ref[0]                         # (Tq, D) f32
    q_in = xq + pq_ref[0]
    xk = xk_ref[0]                         # (Lk, D) f32
    k_in = xk + pk_ref[0]

    Tq, D = xq.shape
    hd = D // nhead

    # Projections: bf16 weights resident, bf16 activations at the dot, f32 acc.
    q = jnp.dot(_bf16(q_in), wq_ref[...],
                preferred_element_type=jnp.float32) + bq_ref[...]
    k = jnp.dot(_bf16(k_in), wk_ref[...],
                preferred_element_type=jnp.float32) + bk_ref[...]
    v = jnp.dot(_bf16(xk), wv_ref[...],
                preferred_element_type=jnp.float32) + bv_ref[...]

    # Cast once, hoisted out of the per-head loop (scale folded into q).
    q = _bf16(q * scale)
    k = _bf16(k)
    v = _bf16(v)

    # Per-head attention; score matmul via dot_general on the last axes (no .T).
    # Contexts are concatenated so the output projection runs as a single K=D
    # matmul on the MXU instead of nhead K=head_dim dots.
    ctx_heads = []
    for h in range(nhead):                 # small static nhead; unrolled at trace
        cols = slice(h * hd, (h + 1) * hd)
        s = lax.dot_general(q[:, cols], k[:, cols],
                            (((1,), (1,)), ((), ())),
                            preferred_element_type=jnp.float32)   # (Tq, Lk)
        if has_bias:
            s = s + bias_ref[0]            # (1, Lk) additive key-padding bias
        s = s - jnp.max(s, axis=-1, keepdims=True)
        p = jnp.exp(s)
        p = p * pl.reciprocal(jnp.sum(p, axis=-1, keepdims=True), approx=True)
        ctx_heads.append(jnp.dot(_bf16(p), v[:, cols],
                                 preferred_element_type=jnp.float32))  # (Tq, hd)
    ctx = jnp.concatenate(ctx_heads, axis=-1)                          # (Tq, D)
    out = jnp.dot(_bf16(ctx), wo_ref[...],
                  preferred_element_type=jnp.float32) + bo_ref[...]

    # residual + LayerNorm (post-norm DETR style), fused epilogue.
    y = xq + out
    mu = jnp.mean(y, axis=-1, keepdims=True)
    var = jnp.mean(jnp.square(y - mu), axis=-1, keepdims=True)
    o_ref[0] = (y - mu) * lax.rsqrt(var + _LN_EPS) * g_ref[...] + b_ref[...]


def _ffn_block_kernel(x_ref, w1_ref, b1_ref, w2_ref, b2_ref, g_ref, b_ref, o_ref):
    """Fused Linear->ReLU->Linear->residual->LayerNorm on one row tile.
    The [rows, d_ff] intermediate never leaves VMEM.  Weights are bf16."""
    x = x_ref[...]
    h = jnp.dot(_bf16(x), w1_ref[...],
                preferred_element_type=jnp.float32) + b1_ref[...]
    h = jnp.maximum(h, 0.0)
    y = x + jnp.dot(_bf16(h), w2_ref[...],
                    preferred_element_type=jnp.float32) + b2_ref[...]
    mu = jnp.mean(y, axis=-1, keepdims=True)
    var = jnp.mean(jnp.square(y - mu), axis=-1, keepdims=True)
    o_ref[...] = (y - mu) * lax.rsqrt(var + _LN_EPS) * g_ref[...] + b_ref[...]


def _head_block_kernel(x_ref, g_ref, b_ref, w_ref, s_ref, t_ref, o_ref):
    """Final decoder LayerNorm fused with both clustering heads:
    LN -> ReLU -> Linear(no bias, [D, 2D] bf16) -> BatchNorm(eval) affine."""
    x = x_ref[...]
    mu = jnp.mean(x, axis=-1, keepdims=True)
    var = jnp.mean(jnp.square(x - mu), axis=-1, keepdims=True)
    xn = (x - mu) * lax.rsqrt(var + _LN_EPS) * g_ref[...] + b_ref[...]
    h = jnp.maximum(xn, 0.0)
    y = jnp.dot(_bf16(h), w_ref[...], preferred_element_type=jnp.float32)
    o_ref[...] = y * s_ref[...] + t_ref[...]


def _logits_kernel(a_ref, m_ref, o_ref, mx_ref, *, scale):
    # logits[b] = centroids[b] @ memory[b]^T * scale, contraction over D via
    # dot_general (no transposed tile), plus fused row-max for the top-k.
    s = lax.dot_general(_bf16(a_ref[0]), _bf16(m_ref[0]),
                        (((1,), (1,)), ((), ())),
                        preferred_element_type=jnp.float32) * scale
    o_ref[0] = s
    mx_ref[0] = jnp.max(s, axis=-1, keepdims=True)


# ----------------------------------------------------------------------------
# Wrappers
# ----------------------------------------------------------------------------
def attention_block(attn_p, ln_p, xq, pq, xk, pk, bias, nhead):
    """xq/pq: [B, Lq, D], xk/pk: [B, Lk, D], bias: [B, 1, Lk] additive or None."""
    B, Lq, D = xq.shape
    Lk = xk.shape[1]
    hd = D // nhead
    tq = _row_tile(Lq)
    nq = pl.cdiv(Lq, tq)
    has_bias = bias is not None
    wmap = lambda b, q: (0, 0)

    in_specs = [
        pl.BlockSpec((1, tq, D), lambda b, q: (b, q, 0)),   # xq (query-row tile)
        pl.BlockSpec((1, tq, D), lambda b, q: (b, q, 0)),   # pq
        pl.BlockSpec((1, Lk, D), lambda b, q: (b, 0, 0)),   # xk
        pl.BlockSpec((1, Lk, D), lambda b, q: (b, 0, 0)),   # pk
    ]
    args = [xq, pq, xk, pk]
    if has_bias:
        in_specs.append(pl.BlockSpec((1, 1, Lk), lambda b, q: (b, 0, 0)))
        args.append(bias)
    in_specs += [
        _weight_spec((D, D), wmap), _weight_spec((1, D), wmap),   # wq, bq
        _weight_spec((D, D), wmap), _weight_spec((1, D), wmap),   # wk, bk
        _weight_spec((D, D), wmap), _weight_spec((1, D), wmap),   # wv, bv
        _weight_spec((D, D), wmap), _weight_spec((1, D), wmap),   # wo, bo
        _weight_spec((1, D), wmap), _weight_spec((1, D), wmap),   # ln g, b
    ]
    args += [attn_p["wq"], attn_p["bq"], attn_p["wk"], attn_p["bk"],
             attn_p["wv"], attn_p["bv"], attn_p["wo"], attn_p["bo"],
             ln_p["g"], ln_p["b"]]

    kernel = functools.partial(_attn_block_kernel, nhead=nhead,
                               scale=1.0 / math.sqrt(hd), has_bias=has_bias)
    return pl.pallas_call(
        kernel,
        out_shape=jax.ShapeDtypeStruct((B, Lq, D), jnp.float32),
        grid=(B, nq),
        in_specs=in_specs,
        out_specs=pl.BlockSpec((1, tq, D), lambda b, q: (b, q, 0)),
        compiler_params=pltpu.CompilerParams(
            dimension_semantics=("parallel", "parallel"),
            vmem_limit_bytes=_VMEM_LIMIT),
    )(*args)


def ffn_block(x2d, w1, b1, w2, b2, g, b):
    T, D = x2d.shape
    F = w1.shape[1]
    tm = _row_tile(T)
    wmap = lambda i: (0, 0)
    return pl.pallas_call(
        _ffn_block_kernel,
        out_shape=jax.ShapeDtypeStruct((T, D), jnp.float32),
        grid=(pl.cdiv(T, tm),),
        in_specs=[pl.BlockSpec((tm, D), lambda i: (i, 0)),
                  _weight_spec((D, F), wmap), _weight_spec((1, F), wmap),
                  _weight_spec((F, D), wmap), _weight_spec((1, D), wmap),
                  _weight_spec((1, D), wmap), _weight_spec((1, D), wmap)],
        out_specs=pl.BlockSpec((tm, D), lambda i: (i, 0)),
        compiler_params=pltpu.CompilerParams(
            dimension_semantics=("parallel",),
            vmem_limit_bytes=_VMEM_LIMIT),
    )(x2d, w1, b1, w2, b2, g, b)


def cluster_heads(x2d, ln_g, ln_b, w, scale, shift):
    """Final decoder LayerNorm + both clustering heads in one kernel."""
    T, D = x2d.shape
    N = w.shape[1]
    tm = _row_tile(T)
    wmap = lambda i: (0, 0)
    return pl.pallas_call(
        _head_block_kernel,
        out_shape=jax.ShapeDtypeStruct((T, N), jnp.float32),
        grid=(pl.cdiv(T, tm),),
        in_specs=[pl.BlockSpec((tm, D), lambda i: (i, 0)),
                  _weight_spec((1, D), wmap), _weight_spec((1, D), wmap),
                  _weight_spec((D, N), wmap),
                  _weight_spec((1, N), wmap), _weight_spec((1, N), wmap)],
        out_specs=pl.BlockSpec((tm, N), lambda i: (i, 0)),
        compiler_params=pltpu.CompilerParams(
            dimension_semantics=("parallel",),
            vmem_limit_bytes=_VMEM_LIMIT),
    )(x2d, ln_g, ln_b, w, scale, shift)


def logits_bmm(cen_btc, mem_bsd, scale):
    B, Tq, D = cen_btc.shape
    Sk = mem_bsd.shape[1]
    return pl.pallas_call(
        functools.partial(_logits_kernel, scale=scale),
        out_shape=(jax.ShapeDtypeStruct((B, Tq, Sk), jnp.float32),
                   jax.ShapeDtypeStruct((B, Tq, 1), jnp.float32)),
        grid=(B,),
        in_specs=[pl.BlockSpec((1, Tq, D), lambda i: (i, 0, 0)),
                  pl.BlockSpec((1, Sk, D), lambda i: (i, 0, 0))],
        out_specs=(pl.BlockSpec((1, Tq, Sk), lambda i: (i, 0, 0)),
                   pl.BlockSpec((1, Tq, 1), lambda i: (i, 0, 0))),
        compiler_params=pltpu.CompilerParams(
            dimension_semantics=("parallel",),
            vmem_limit_bytes=_VMEM_LIMIT),
    )(cen_btc, mem_bsd)


# ----------------------------------------------------------------------------
# Full TransformerClustering forward (post-norm, normalize_before=False, eval mode)
# ----------------------------------------------------------------------------
def transformer_clustering_forward(params, src, mask, query_embed, pos_embed,
                                   *, num_clusters, nhead):
    bs, cs, sl = src.shape
    tl = query_embed.shape[0]

    x = jnp.transpose(src, (0, 2, 1))             # [B, sl, D]
    pos = jnp.transpose(pos_embed, (0, 2, 1))     # [B, sl, D]
    qe = jnp.broadcast_to(query_embed[None], (bs, tl, cs))            # [B, tl, D]
    y = jnp.zeros((bs, tl, cs), jnp.float32)                          # tgt = 0
    kp_bias = jnp.where(mask, _NEG_INF, 0.0).astype(jnp.float32)[:, None, :]  # [B,1,sl]

    # Encoder: [self-attn + res + LN] fused, [FFN + res + LN] fused.
    for lp in params["enc"]:
        x = attention_block(lp["self_attn"], lp["norm1"],
                            x, pos, x, pos, kp_bias, nhead)
        x = ffn_block(x.reshape(bs * sl, cs), lp["lin1_w"], lp["lin1_b"],
                      lp["lin2_w"], lp["lin2_b"],
                      lp["norm2"]["g"], lp["norm2"]["b"]).reshape(bs, sl, cs)
    memory = x                                                        # [B, sl, D]

    # Decoder (return_intermediate_dec=False); bias omitted entirely for the
    # unmasked self-attention (no zero-bias DMA).
    for lp in params["dec"]:
        y = attention_block(lp["self_attn"], lp["norm1"],
                            y, qe, y, qe, None, nhead)
        y = attention_block(lp["cross_attn"], lp["norm2"],
                            y, qe, memory, pos, kp_bias, nhead)
        y = ffn_block(y.reshape(bs * tl, cs), lp["lin1_w"], lp["lin1_b"],
                      lp["lin2_w"], lp["lin2_b"],
                      lp["norm3"]["g"], lp["norm3"]["b"]).reshape(bs, tl, cs)

    # Final decoder LayerNorm fused with both clustering heads ([D, 2D] weight).
    heads = cluster_heads(y.reshape(bs * tl, cs),
                          params["dec_norm"]["g"], params["dec_norm"]["b"],
                          params["heads_w"], params["heads_scale"],
                          params["heads_shift"])                       # [B*tl, 2D]
    cen = heads[:, :cs].reshape(bs, tl, cs)                            # [B, tl, D]
    cfe = heads[:, cs:].reshape(bs, tl, cs)

    logits, max_logits = logits_bmm(cen, memory, 1.0 / math.sqrt(cs))  # [B,tl,sl], [B,tl,1]
    max_logits = max_logits[..., 0]                                    # [B, tl]

    # TODO(synk): top-k selection + gather are tiny data-dependent ops; kept in plain JAX.
    _, topk_inds = jax.lax.top_k(max_logits, num_clusters)             # [B, k]

    sel_c = jnp.take_along_axis(cen, topk_inds[:, :, None], axis=1)    # [B, k, D]
    sel_f = jnp.take_along_axis(cfe, topk_inds[:, :, None], axis=1)
    centroids_out = jnp.transpose(sel_c, (0, 2, 1))                    # [B, D, k]
    centroid_feats_out = jnp.transpose(sel_f, (0, 2, 1))               # [B, D, k]
    logits_out = jnp.take_along_axis(logits, topk_inds[:, :, None], axis=1)  # [B, k, sl]
    node_features = jnp.transpose(memory, (0, 2, 1))                   # [B, D, sl]
    return centroids_out, centroid_feats_out, logits_out, node_features


# ----------------------------------------------------------------------------
# Deterministic synthetic parameters (weight matrices stored as bf16 in HBM,
# biases / LayerNorm / BN-affine kept f32).
# ----------------------------------------------------------------------------
def _dense(key, din, dout, scale=0.05):
    kw, kb = jax.random.split(key)
    w = (jax.random.normal(kw, (din, dout), jnp.float32) * scale).astype(jnp.bfloat16)
    b = jax.random.normal(kb, (1, dout), jnp.float32) * scale
    return w, b


def _mha_params(key, d):
    ks = jax.random.split(key, 4)
    wq, bq = _dense(ks[0], d, d)
    wk, bk = _dense(ks[1], d, d)
    wv, bv = _dense(ks[2], d, d)
    wo, bo = _dense(ks[3], d, d)
    return dict(wq=wq, bq=bq, wk=wk, bk=bk, wv=wv, bv=bv, wo=wo, bo=bo)


def _ln_params(d):
    return dict(g=jnp.ones((1, d), jnp.float32), b=jnp.zeros((1, d), jnp.float32))


def init_params(key, d, n_enc, n_dec, d_ff):
    keys = jax.random.split(key, n_enc + n_dec + 1)
    ki = 0
    enc, dec = [], []
    for _ in range(n_enc):
        ks = jax.random.split(keys[ki], 3); ki += 1
        l1w, l1b = _dense(ks[1], d, d_ff)
        l2w, l2b = _dense(ks[2], d_ff, d)
        enc.append(dict(self_attn=_mha_params(ks[0], d),
                        lin1_w=l1w, lin1_b=l1b, lin2_w=l2w, lin2_b=l2b,
                        norm1=_ln_params(d), norm2=_ln_params(d)))
    for _ in range(n_dec):
        ks = jax.random.split(keys[ki], 4); ki += 1
        l1w, l1b = _dense(ks[2], d, d_ff)
        l2w, l2b = _dense(ks[3], d_ff, d)
        dec.append(dict(self_attn=_mha_params(ks[0], d),
                        cross_attn=_mha_params(ks[1], d),
                        lin1_w=l1w, lin1_b=l1b, lin2_w=l2w, lin2_b=l2b,
                        norm1=_ln_params(d), norm2=_ln_params(d), norm3=_ln_params(d)))
    # Clustering heads: Linear(no bias) + BatchNorm1d eval-mode affine
    # (gamma=1, beta=0, running_mean=0, running_var=1, eps=1e-5), fused as [D, 2D].
    ks = jax.random.split(keys[ki], 2)
    cw, _ = _dense(ks[0], d, d)
    fw, _ = _dense(ks[1], d, d)
    eps = 1e-5
    bn_scale = jnp.full((1, d), 1.0 / math.sqrt(1.0 + eps), jnp.float32)
    bn_shift = jnp.zeros((1, d), jnp.float32)
    return dict(enc=enc, dec=dec, dec_norm=_ln_params(d),
                heads_w=jnp.concatenate([cw, fw], axis=1),
                heads_scale=jnp.concatenate([bn_scale, bn_scale], axis=1),
                heads_shift=jnp.concatenate([bn_shift, bn_shift], axis=1))


# ----------------------------------------------------------------------------
if __name__ == "__main__":
    # Small config consistent with the module; d_model=128 keeps every last dim
    # lane-dense (multiple of 128) while staying fast.
    bs, d_model, sl, tl = 2, 128, 16, 8
    nhead, n_enc, n_dec, d_ff, num_clusters = 4, 2, 2, 256, 4

    key = jax.random.PRNGKey(0)
    k_src, k_pos, k_qe, k_par = jax.random.split(key, 4)
    src = jax.random.normal(k_src, (bs, d_model, sl), jnp.float32)
    pos_embed = jax.random.normal(k_pos, (bs, d_model, sl), jnp.float32)
    query_embed = jax.random.normal(k_qe, (tl, d_model), jnp.float32)
    mask = jnp.zeros((bs, sl), bool).at[1, -4:].set(True)  # pad last 4 keys of batch 1

    params = init_params(k_par, d_model, n_enc, n_dec, d_ff)

    fwd = jax.jit(functools.partial(transformer_clustering_forward,
                                    num_clusters=num_clusters, nhead=nhead))
    centroids, centroid_feats, logits, node_features = fwd(
        params, src, mask, query_embed, pos_embed)

    jax.block_until_ready(centroids)
    jax.block_until_ready(centroid_feats)
    jax.block_until_ready(logits)
    jax.block_until_ready(node_features)

    assert centroids.shape == (bs, d_model, num_clusters)
    assert centroid_feats.shape == (bs, d_model, num_clusters)
    assert logits.shape == (bs, num_clusters, sl)
    assert node_features.shape == (bs, d_model, sl)
    assert bool(jnp.all(jnp.isfinite(centroids)))
    assert bool(jnp.all(jnp.isfinite(centroid_feats)))
    assert bool(jnp.all(jnp.isfinite(logits)))
    assert bool(jnp.all(jnp.isfinite(node_features)))
    print("KERNEL_OK")
</pallas_src>

<mosaic_0001>
module attributes {stable_mosaic.version = 11 : i64} {
  func.func @_probe_copy_kernel(%arg0: i32, %arg1: memref<8x128xf32, #tpu.memory_space<vmem>>, %arg2: memref<8x128xf32, #tpu.memory_space<vmem>>) attributes {dimension_semantics = [#tpu.dimension_semantics<arbitrary>], iteration_bounds = array<i64: 2>, scalar_prefetch = 0 : i64, scratch_operands = 0 : i64, tpu.core_type = #tpu.core_type<tc>, window_params = [{pipeline_mode = #tpu.pipeline_mode<synchronous>, transform_indices = @transform_0, window_bounds = array<i64: 8, 128>}, {pipeline_mode = #tpu.pipeline_mode<synchronous>, transform_indices = @transform_1, window_bounds = array<i64: 8, 128>}]} {
    %c0 = arith.constant 0 : index
    %c0_0 = arith.constant 0 : index
    %0 = vector.load %arg1[%c0, %c0_0] : memref<8x128xf32, #tpu.memory_space<vmem>>, vector<8x128xf32>
    %c0_1 = arith.constant 0 : index
    %c0_2 = arith.constant 0 : index
    %1 = vector.load %arg2[%c0_1, %c0_2] : memref<8x128xf32, #tpu.memory_space<vmem>>, vector<8x128xf32>
    tpu.vector_store %arg2[%c0_1, %c0_2], %0 {strides = array<i32>} : memref<8x128xf32, #tpu.memory_space<vmem>>, vector<8x128xf32>,
    return
  }
  func.func @transform_0(%arg0: i32) -> (i32, i32) {
    %c0_i32 = arith.constant 0 : i32
    %c0_i32_0 = arith.constant 0 : i32
    %c0_i32_1 = arith.constant 0 : i32
    return %c0_i32, %c0_i32_0 : i32, i32
  }
  func.func @transform_1(%arg0: i32) -> (i32, i32) {
    %c0_i32 = arith.constant 0 : i32
    %c0_i32_0 = arith.constant 0 : i32
    %c0_i32_1 = arith.constant 0 : i32
    return %c0_i32, %c0_i32_0 : i32, i32
  }
}

module attributes {stable_mosaic.version = 11 : i64} {
  func.func @_attn_block_kernel(%arg0: i32, %arg1: i32, %arg2: memref<1x8x128xf32, #tpu.memory_space<vmem>>, %arg3: memref<1x8x128xf32, #tpu.memory_space<vmem>>, %arg4: memref<1x16x128xf32, #tpu.memory_space<vmem>>, %arg5: memref<1x16x128xf32, #tpu.memory_space<vmem>>, %arg6: memref<1x1x16xf32, #tpu.memory_space<vmem>>, %arg7: memref<128x128xbf16, #tpu.memory_space<vmem>>, %arg8: memref<1x128xf32, #tpu.memory_space<vmem>>, %arg9: memref<128x128xbf16, #tpu.memory_space<vmem>>, %arg10: memref<1x128xf32, #tpu.memory_space<vmem>>, %arg11: memref<128x128xbf16, #tpu.memory_space<vmem>>, %arg12: memref<1x128xf32, #tpu.memory_space<vmem>>, %arg13: memref<128x128xbf16, #tpu.memory_space<vmem>>, %arg14: memref<1x128xf32, #tpu.memory_space<vmem>>, %arg15: memref<1x128xf32, #tpu.memory_space<vmem>>, %arg16: memref<1x128xf32, #tpu.memory_space<vmem>>, %arg17: memref<1x8x128xf32, #tpu.memory_space<vmem>>) attributes {dimension_semantics = [#tpu.dimension_semantics<parallel>, #tpu.dimension_semantics<parallel>], iteration_bounds = array<i64: 2, 1>, scalar_prefetch = 0 : i64, scratch_operands = 0 : i64, tpu.core_type = #tpu.core_type<tc>, window_params = [{transform_indices = @transform_0, window_bounds = array<i64: 1, 8, 128>}, {transform_indices = @transform_1, window_bounds = array<i64: 1, 8, 128>}, {transform_indices = @transform_2, window_bounds = array<i64: 1, 16, 128>}, {transform_indices = @transform_3, window_bounds = array<i64: 1, 16, 128>}, {transform_indices = @transform_4, window_bounds = array<i64: 1, 1, 16>}, {pipeline_mode = #tpu.pipeline_mode<synchronous>, transform_indices = @transform_5, window_bounds = array<i64: 128, 128>}, {pipeline_mode = #tpu.pipeline_mode<synchronous>, transform_indices = @transform_6, window_bounds = array<i64: 1, 128>}, {pipeline_mode = #tpu.pipeline_mode<synchronous>, transform_indices = @transform_7, window_bounds = array<i64: 128, 128>}, {pipeline_mode = #tpu.pipeline_mode<synchronous>, transform_indices = @transform_8, window_bounds = array<i64: 1, 128>}, {pipeline_mode = #tpu.pipeline_mode<synchronous>, transform_indices = @transform_9, window_bounds = array<i64: 128, 128>}, {pipeline_mode = #tpu.pipeline_mode<synchronous>, transform_indices = @transform_10, window_bounds = array<i64: 1, 128>}, {pipeline_mode = #tpu.pipeline_mode<synchronous>, transform_indices = @transform_11, window_bounds = array<i64: 128, 128>}, {pipeline_mode = #tpu.pipeline_mode<synchronous>, transform_indices = @transform_12, window_bounds = array<i64: 1, 128>}, {pipeline_mode = #tpu.pipeline_mode<synchronous>, transform_indices = @transform_13, window_bounds = array<i64: 1, 128>}, {pipeline_mode = #tpu.pipeline_mode<synchronous>, transform_indices = @transform_14, window_bounds = array<i64: 1, 128>}, {transform_indices = @transform_15, window_bounds = array<i64: 1, 8, 128>}]} {
    %c0 = arith.constant 0 : index
    %c0_0 = arith.constant 0 : index
    %c0_1 = arith.constant 0 : index
    %0 = vector.load %arg2[%c0, %c0_0, %c0_1] : memref<1x8x128xf32, #tpu.memory_space<vmem>>, vector<1x8x128xf32>
    %1 = vector.shape_cast %0 : vector<1x8x128xf32> to vector<8x128xf32>
    %c0_2 = arith.constant 0 : index
    %c0_3 = arith.constant 0 : index
    %c0_4 = arith.constant 0 : index
    %2 = vector.load %arg3[%c0_2, %c0_3, %c0_4] : memref<1x8x128xf32, #tpu.memory_space<vmem>>, vector<1x8x128xf32>
    %3 = vector.shape_cast %2 : vector<1x8x128xf32> to vector<8x128xf32>
    %4 = arith.addf %1, %3 : vector<8x128xf32>
    %c0_5 = arith.constant 0 : index
    %c0_6 = arith.constant 0 : index
    %c0_7 = arith.constant 0 : index
    %5 = vector.load %arg4[%c0_5, %c0_6, %c0_7] : memref<1x16x128xf32, #tpu.memory_space<vmem>>, vector<1x16x128xf32>
    %6 = vector.shape_cast %5 : vector<1x16x128xf32> to vector<16x128xf32>
    %c0_8 = arith.constant 0 : index
    %c0_9 = arith.constant 0 : index
    %c0_10 = arith.constant 0 : index
    %7 = vector.load %arg5[%c0_8, %c0_9, %c0_10] : memref<1x16x128xf32, #tpu.memory_space<vmem>>, vector<1x16x128xf32>
    %8 = vector.shape_cast %7 : vector<1x16x128xf32> to vector<16x128xf32>
    %9 = arith.addf %6, %8 : vector<16x128xf32>
    %10 = arith.truncf %4 : vector<8x128xf32> to vector<8x128xbf16>
    %c0_11 = arith.constant 0 : index
    %c0_12 = arith.constant 0 : index
    %11 = vector.load %arg7[%c0_11, %c0_12] : memref<128x128xbf16, #tpu.memory_space<vmem>>, vector<128x128xbf16>
    %cst = arith.constant dense<0.000000e+00> : vector<8x128xf32>
    %12 = tpu.matmul %10, %11, %cst {dimension_numbers = #tpu.dot_dimension_numbers<[1], [0], [0], [1], [0, 0, 1, 1], [], []>} : vector<8x128xbf16>, vector<128x128xbf16>, vector<8x128xf32> -> vector<8x128xf32>
    %c0_13 = arith.constant 0 : index
    %c0_14 = arith.constant 0 : index
    %13 = vector.load %arg8[%c0_13, %c0_14] : memref<1x128xf32, #tpu.memory_space<vmem>>, vector<1x128xf32>
    %14 = vector.broadcast %13 : vector<1x128xf32> to vector<8x128xf32>
    %15 = arith.addf %12, %14 : vector<8x128xf32>
    %16 = arith.truncf %9 : vector<16x128xf32> to vector<16x128xbf16>
    %c0_15 = arith.constant 0 : index
    %c0_16 = arith.constant 0 : index
    %17 = vector.load %arg9[%c0_15, %c0_16] : memref<128x128xbf16, #tpu.memory_space<vmem>>, vector<128x128xbf16>
    %cst_17 = arith.constant dense<0.000000e+00> : vector<16x128xf32>
    %18 = tpu.matmul %16, %17, %cst_17 {dimension_numbers = #tpu.dot_dimension_numbers<[1], [0], [0], [1], [0, 0, 1, 1], [], []>} : vector<16x128xbf16>, vector<128x128xbf16>, vector<16x128xf32> -> vector<16x128xf32>
    %c0_18 = arith.constant 0 : index
    %c0_19 = arith.constant 0 : index
    %19 = vector.load %arg10[%c0_18, %c0_19] : memref<1x128xf32, #tpu.memory_space<vmem>>, vector<1x128xf32>
    %20 = vector.broadcast %19 : vector<1x128xf32> to vector<16x128xf32>
    %21 = arith.addf %18, %20 : vector<16x128xf32>
    %22 = arith.truncf %6 : vector<16x128xf32> to vector<16x128xbf16>
    %c0_20 = arith.constant 0 : index
    %c0_21 = arith.constant 0 : index
    %23 = vector.load %arg11[%c0_20, %c0_21] : memref<128x128xbf16, #tpu.memory_space<vmem>>, vector<128x128xbf16>
    %cst_22 = arith.constant dense<0.000000e+00> : vector<16x128xf32>
    %24 = tpu.matmul %22, %23, %cst_22 {dimension_numbers = #tpu.dot_dimension_numbers<[1], [0], [0], [1], [0, 0, 1, 1], [], []>} : vector<16x128xbf16>, vector<128x128xbf16>, vector<16x128xf32> -> vector<16x128xf32>
    %c0_23 = arith.constant 0 : index
    %c0_24 = arith.constant 0 : index
    %25 = vector.load %arg12[%c0_23, %c0_24] : memref<1x128xf32, #tpu.memory_space<vmem>>, vector<1x128xf32>
    %26 = vector.broadcast %25 : vector<1x128xf32> to vector<16x128xf32>
    %27 = arith.addf %24, %26 : vector<16x128xf32>
    %cst_25 = arith.constant 0.176776692 : f32
    %28 = vector.broadcast %cst_25 : f32 to vector<8x128xf32>
    %29 = arith.mulf %15, %28 : vector<8x128xf32>
    %30 = arith.truncf %29 : vector<8x128xf32> to vector<8x128xbf16>
    %31 = arith.truncf %21 : vector<16x128xf32> to vector<16x128xbf16>
    %32 = arith.truncf %27 : vector<16x128xf32> to vector<16x128xbf16>
    %33 = vector.extract_strided_slice %30 {offsets = [0, 0], sizes = [8, 32], strides = [1, 1]} : vector<8x128xbf16> to vector<8x32xbf16>
    %34 = vector.extract_strided_slice %31 {offsets = [0, 0], sizes = [16, 32], strides = [1, 1]} : vector<16x128xbf16> to vector<16x32xbf16>
    %cst_26 = arith.constant dense<0.000000e+00> : vector<8x16xf32>
    %35 = tpu.matmul %33, %34, %cst_26 {dimension_numbers = #tpu.dot_dimension_numbers<[1], [1], [0], [0], [0, 0, 1, 0], [], []>} : vector<8x32xbf16>, vector<16x32xbf16>, vector<8x16xf32> -> vector<8x16xf32>
    %c0_27 = arith.constant 0 : index
    %c0_28 = arith.constant 0 : index
    %c0_29 = arith.constant 0 : index
    %36 = vector.load %arg6[%c0_27, %c0_28, %c0_29] : memref<1x1x16xf32, #tpu.memory_space<vmem>>, vector<1x1x16xf32>
    %37 = vector.shape_cast %36 : vector<1x1x16xf32> to vector<1x16xf32>
    %38 = vector.broadcast %37 : vector<1x16xf32> to vector<8x16xf32>
    %39 = arith.addf %35, %38 : vector<8x16xf32>
    %cst_30 = arith.constant dense<0xFF800000> : vector<8xf32>
    %40 = vector.multi_reduction <maximumf>, %39, %cst_30 [1] : vector<8x16xf32> to vector<8xf32>
    %41 = vector.shape_cast %40 : vector<8xf32> to vector<8x1xf32>
    %42 = vector.broadcast %41 : vector<8x1xf32> to vector<8x16xf32>
    %43 = arith.subf %39, %42 : vector<8x16xf32>
    %44 = math.exp %43 : vector<8x16xf32>
    %cst_31 = arith.constant dense<0.000000e+00> : vector<8xf32>
    %45 = vector.multi_reduction <add>, %44, %cst_31 [1] : vector<8x16xf32> to vector<8xf32>
    %46 = vector.shape_cast %45 : vector<8xf32> to vector<8x1xf32>
    %47 = tpu.reciprocal %46 {approx = true} : vector<8x1xf32> -> vector<8x1xf32>
    %48 = vector.broadcast %47 : vector<8x1xf32> to vector<8x16xf32>
    %49 = arith.mulf %44, %48 : vector<8x16xf32>
    %50 = arith.truncf %49 : vector<8x16xf32> to vector<8x16xbf16>
    %51 = vector.extract_strided_slice %32 {offsets = [0, 0], sizes = [16, 32], strides = [1, 1]} : vector<16x128xbf16> to vector<16x32xbf16>
    %cst_32 = arith.constant dense<0.000000e+00> : vector<8x32xf32>
    %52 = tpu.matmul %50, %51, %cst_32 {dimension_numbers = #tpu.dot_dimension_numbers<[1], [0], [0], [1], [0, 0, 1, 1], [], []>} : vector<8x16xbf16>, vector<16x32xbf16>, vector<8x32xf32> -> vector<8x32xf32>
    %53 = vector.extract_strided_slice %30 {offsets = [0, 32], sizes = [8, 32], strides = [1, 1]} : vector<8x128xbf16> to vector<8x32xbf16>
    %54 = vector.extract_strided_slice %31 {offsets = [0, 32], sizes = [16, 32], strides = [1, 1]} : vector<16x128xbf16> to vector<16x32xbf16>
    %cst_33 = arith.constant dense<0.000000e+00> : vector<8x16xf32>
    %55 = tpu.matmul %53, %54, %cst_33 {dimension_numbers = #tpu.dot_dimension_numbers<[1], [1], [0], [0], [0, 0, 1, 0], [], []>} : vector<8x32xbf16>, vector<16x32xbf16>, vector<8x16xf32> -> vector<8x16xf32>
    %c0_34 = arith.constant 0 : index
    %c0_35 = arith.constant 0 : index
    %c0_36 = arith.constant 0 : index
    %56 = vector.load %arg6[%c0_34, %c0_35, %c0_36] : memref<1x1x16xf32, #tpu.memory_space<vmem>>, vector<1x1x16xf32>
    %57 = vector.shape_cast %56 : vector<1x1x16xf32> to vector<1x16xf32>
    %58 = vector.broadcast %57 : vector<1x16xf32> to vector<8x16xf32>
    %59 = arith.addf %55, %58 : vector<8x16xf32>
    %cst_37 = arith.constant dense<0xFF800000> : vector<8xf32>
    %60 = vector.multi_reduction <maximumf>, %59, %cst_37 [1] : vector<8x16xf32> to vector<8xf32>
    %61 = vector.shape_cast %60 : vector<8xf32> to vector<8x1xf32>
    %62 = vector.broadcast %61 : vector<8x1xf32> to vector<8x16xf32>
    %63 = arith.subf %59, %62 : vector<8x16xf32>
    %64 = math.exp %63 : vector<8x16xf32>
    %cst_38 = arith.constant dense<0.000000e+00> : vector<8xf32>
    %65 = vector.multi_reduction <add>, %64, %cst_38 [1] : vector<8x16xf32> to vector<8xf32>
    %66 = vector.shape_cast %65 : vector<8xf32> to vector<8x1xf32>
    %67 = tpu.reciprocal %66 {approx = true} : vector<8x1xf32> -> vector<8x1xf32>
    %68 = vector.broadcast %67 : vector<8x1xf32> to vector<8x16xf32>
    %69 = arith.mulf %64, %68 : vector<8x16xf32>
    %70 = arith.truncf %69 : vector<8x16xf32> to vector<8x16xbf16>
    %71 = vector.extract_strided_slice %32 {offsets = [0, 32], sizes = [16, 32], strides = [1, 1]} : vector<16x128xbf16> to vector<16x32xbf16>
    %cst_39 = arith.constant dense<0.000000e+00> : vector<8x32xf32>
    %72 = tpu.matmul %70, %71, %cst_39 {dimension_numbers = #tpu.dot_dimension_numbers<[1], [0], [0], [1], [0, 0, 1, 1], [], []>} : vector<8x16xbf16>, vector<16x32xbf16>, vector<8x32xf32> -> vector<8x32xf32>
    %73 = vector.extract_strided_slice %30 {offsets = [0, 64], sizes = [8, 32], strides = [1, 1]} : vector<8x128xbf16> to vector<8x32xbf16>
    %74 = vector.extract_strided_slice %31 {offsets = [0, 64], sizes = [16, 32], strides = [1, 1]} : vector<16x128xbf16> to vector<16x32xbf16>
    %cst_40 = arith.constant dense<0.000000e+00> : vector<8x16xf32>
    %75 = tpu.matmul %73, %74, %cst_40 {dimension_numbers = #tpu.dot_dimension_numbers<[1], [1], [0], [0], [0, 0, 1, 0], [], []>} : vector<8x32xbf16>, vector<16x32xbf16>, vector<8x16xf32> -> vector<8x16xf32>
    %c0_41 = arith.constant 0 : index
    %c0_42 = arith.constant 0 : index
    %c0_43 = arith.constant 0 : index
    %76 = vector.load %arg6[%c0_41, %c0_42, %c0_43] : memref<1x1x16xf32, #tpu.memory_space<vmem>>, vector<1x1x16xf32>
    %77 = vector.shape_cast %76 : vector<1x1x16xf32> to vector<1x16xf32>
    %78 = vector.broadcast %77 : vector<1x16xf32> to vector<8x16xf32>
    %79 = arith.addf %75, %78 : vector<8x16xf32>
    %cst_44 = arith.constant dense<0xFF800000> : vector<8xf32>
    %80 = vector.multi_reduction <maximumf>, %79, %cst_44 [1] : vector<8x16xf32> to vector<8xf32>
    %81 = vector.shape_cast %80 : vector<8xf32> to vector<8x1xf32>
    %82 = vector.broadcast %81 : vector<8x1xf32> to vector<8x16xf32>
    %83 = arith.subf %79, %82 : vector<8x16xf32>
    %84 = math.exp %83 : vector<8x16xf32>
    %cst_45 = arith.constant dense<0.000000e+00> : vector<8xf32>
    %85 = vector.multi_reduction <add>, %84, %cst_45 [1] : vector<8x16xf32> to vector<8xf32>
    %86 = vector.shape_cast %85 : vector<8xf32> to vector<8x1xf32>
    %87 = tpu.reciprocal %86 {approx = true} : vector<8x1xf32> -> vector<8x1xf32>
    %88 = vector.broadcast %87 : vector<8x1xf32> to vector<8x16xf32>
    %89 = arith.mulf %84, %88 : vector<8x16xf32>
    %90 = arith.truncf %89 : vector<8x16xf32> to vector<8x16xbf16>
    %91 = vector.extract_strided_slice %32 {offsets = [0, 64], sizes = [16, 32], strides = [1, 1]} : vector<16x128xbf16> to vector<16x32xbf16>
    %cst_46 = arith.constant dense<0.000000e+00> : vector<8x32xf32>
    %92 = tpu.matmul %90, %91, %cst_46 {dimension_numbers = #tpu.dot_dimension_numbers<[1], [0], [0], [1], [0, 0, 1, 1], [], []>} : vector<8x16xbf16>, vector<16x32xbf16>, vector<8x32xf32> -> vector<8x32xf32>
    %93 = vector.extract_strided_slice %30 {offsets = [0, 96], sizes = [8, 32], strides = [1, 1]} : vector<8x128xbf16> to vector<8x32xbf16>
    %94 = vector.extract_strided_slice %31 {offsets = [0, 96], sizes = [16, 32], strides = [1, 1]} : vector<16x128xbf16> to vector<16x32xbf16>
    %cst_47 = arith.constant dense<0.000000e+00> : vector<8x16xf32>
    %95 = tpu.matmul %93, %94, %cst_47 {dimension_numbers = #tpu.dot_dimension_numbers<[1], [1], [0], [0], [0, 0, 1, 0], [], []>} : vector<8x32xbf16>, vector<16x32xbf16>, vector<8x16xf32> -> vector<8x16xf32>
    %c0_48 = arith.constant 0 : index
    %c0_49 = arith.constant 0 : index
    %c0_50 = arith.constant 0 : index
    %96 = vector.load %arg6[%c0_48, %c0_49, %c0_50] : memref<1x1x16xf32, #tpu.memory_space<vmem>>, vector<1x1x16xf32>
    %97 = vector.shape_cast %96 : vector<1x1x16xf32> to vector<1x16xf32>
    %98 = vector.broadcast %97 : vector<1x16xf32> to vector<8x16xf32>
    %99 = arith.addf %95, %98 : vector<8x16xf32>
    %cst_51 = arith.constant dense<0xFF800000> : vector<8xf32>
    %100 = vector.multi_reduction <maximumf>, %99, %cst_51 [1] : vector<8x16xf32> to vector<8xf32>
    %101 = vector.shape_cast %100 : vector<8xf32> to vector<8x1xf32>
    %102 = vector.broadcast %101 : vector<8x1xf32> to vector<8x16xf32>
    %103 = arith.subf %99, %102 : vector<8x16xf32>
    %104 = math.exp %103 : vector<8x16xf32>
    %cst_52 = arith.constant dense<0.000000e+00> : vector<8xf32>
    %105 = vector.multi_reduction <add>, %104, %cst_52 [1] : vector<8x16xf32> to vector<8xf32>
    %106 = vector.shape_cast %105 : vector<8xf32> to vector<8x1xf32>
    %107 = tpu.reciprocal %106 {approx = true} : vector<8x1xf32> -> vector<8x1xf32>
    %108 = vector.broadcast %107 : vector<8x1xf32> to vector<8x16xf32>
    %109 = arith.mulf %104, %108 : vector<8x16xf32>
    %110 = arith.truncf %109 : vector<8x16xf32> to vector<8x16xbf16>
    %111 = vector.extract_strided_slice %32 {offsets = [0, 96], sizes = [16, 32], strides = [1, 1]} : vector<16x128xbf16> to vector<16x32xbf16>
    %cst_53 = arith.constant dense<0.000000e+00> : vector<8x32xf32>
    %112 = tpu.matmul %110, %111, %cst_53 {dimension_numbers = #tpu.dot_dimension_numbers<[1], [0], [0], [1], [0, 0, 1, 1], [], []>} : vector<8x16xbf16>, vector<16x32xbf16>, vector<8x32xf32> -> vector<8x32xf32>
    %113 = tpu.concatenate %52, %72, %92, %112 in 1 : vector<8x32xf32>, vector<8x32xf32>, vector<8x32xf32>, vector<8x32xf32> -> vector<8x128xf32>
    %114 = arith.truncf %113 : vector<8x128xf32> to vector<8x128xbf16>
    %c0_54 = arith.constant 0 : index
    %c0_55 = arith.constant 0 : index
    %115 = vector.load %arg13[%c0_54, %c0_55] : memref<128x128xbf16, #tpu.memory_space<vmem>>, vector<128x128xbf16>
    %cst_56 = arith.constant dense<0.000000e+00> : vector<8x128xf32>
    %116 = tpu.matmul %114, %115, %cst_56 {dimension_numbers = #tpu.dot_dimension_numbers<[1], [0], [0], [1], [0, 0, 1, 1], [], []>} : vector<8x128xbf16>, vector<128x128xbf16>, vector<8x128xf32> -> vector<8x128xf32>
    %c0_57 = arith.constant 0 : index
    %c0_58 = arith.constant 0 : index
    %117 = vector.load %arg14[%c0_57, %c0_58] : memref<1x128xf32, #tpu.memory_space<vmem>>, vector<1x128xf32>
    %118 = vector.broadcast %117 : vector<1x128xf32> to vector<8x128xf32>
    %119 = arith.addf %116, %118 : vector<8x128xf32>
    %120 = arith.addf %1, %119 : vector<8x128xf32>
    %cst_59 = arith.constant dense<0.000000e+00> : vector<8xf32>
    %121 = vector.multi_reduction <add>, %120, %cst_59 [1] : vector<8x128xf32> to vector<8xf32>
    %122 = vector.shape_cast %121 : vector<8xf32> to vector<8x1xf32>
    %cst_60 = arith.constant 1.280000e+02 : f32
    %123 = vector.broadcast %cst_60 : f32 to vector<8x1xf32>
    %124 = arith.divf %122, %123 : vector<8x1xf32>
    %125 = vector.broadcast %124 : vector<8x1xf32> to vector<8x128xf32>
    %126 = arith.subf %120, %125 : vector<8x128xf32>
    %127 = arith.mulf %126, %126 : vector<8x128xf32>
    %cst_61 = arith.constant dense<0.000000e+00> : vector<8xf32>
    %128 = vector.multi_reduction <add>, %127, %cst_61 [1] : vector<8x128xf32> to vector<8xf32>
    %129 = vector.shape_cast %128 : vector<8xf32> to vector<8x1xf32>
    %cst_62 = arith.constant 1.280000e+02 : f32
    %130 = vector.broadcast %cst_62 : f32 to vector<8x1xf32>
    %131 = arith.divf %129, %130 : vector<8x1xf32>
    %132 = vector.broadcast %124 : vector<8x1xf32> to vector<8x128xf32>
    %133 = arith.subf %120, %132 : vector<8x128xf32>
    %cst_63 = arith.constant 9.99999974E-6 : f32
    %134 = vector.broadcast %cst_63 : f32 to vector<8x1xf32>
    %135 = arith.addf %131, %134 : vector<8x1xf32>
    %136 = math.rsqrt %135 : vector<8x1xf32>
    %137 = vector.broadcast %136 : vector<8x1xf32> to vector<8x128xf32>
    %138 = arith.mulf %133, %137 : vector<8x128xf32>
    %c0_64 = arith.constant 0 : index
    %c0_65 = arith.constant 0 : index
    %139 = vector.load %arg15[%c0_64, %c0_65] : memref<1x128xf32, #tpu.memory_space<vmem>>, vector<1x128xf32>
    %140 = vector.broadcast %139 : vector<1x128xf32> to vector<8x128xf32>
    %141 = arith.mulf %138, %140 : vector<8x128xf32>
    %c0_66 = arith.constant 0 : index
    %c0_67 = arith.constant 0 : index
    %142 = vector.load %arg16[%c0_66, %c0_67] : memref<1x128xf32, #tpu.memory_space<vmem>>, vector<1x128xf32>
    %143 = vector.broadcast %142 : vector<1x128xf32> to vector<8x128xf32>
    %144 = arith.addf %141, %143 : vector<8x128xf32>
    %c0_68 = arith.constant 0 : index
    %c0_69 = arith.constant 0 : index
    %c0_70 = arith.constant 0 : index
    %145 = vector.load %arg17[%c0_68, %c0_69, %c0_70] : memref<1x8x128xf32, #tpu.memory_space<vmem>>, vector<1x8x128xf32>
    %146 = vector.shape_cast %145 : vector<1x8x128xf32> to vector<8x128xf32>
    %147 = vector.shape_cast %144 : vector<8x128xf32> to vector<1x8x128xf32>
    tpu.vector_store %arg17[%c0_68, %c0_69, %c0_70], %147 {strides = array<i32>} : memref<1x8x128xf32, #tpu.memory_space<vmem>>, vector<1x8x128xf32>,
    return
  }
  func.func @transform_0(%arg0: i32, %arg1: i32) -> (i32, i32, i32) {
    %c0_i32 = arith.constant 0 : i32
    %c0_i32_0 = arith.constant 0 : i32
    return %arg0, %arg1, %c0_i32 : i32, i32, i32
  }
  func.func @transform_1(%arg0: i32, %arg1: i32) -> (i32, i32, i32) {
    %c0_i32 = arith.constant 0 : i32
    %c0_i32_0 = arith.constant 0 : i32
    return %arg0, %arg1, %c0_i32 : i32, i32, i32
  }
  func.func @transform_2(%arg0: i32, %arg1: i32) -> (i32, i32, i32) {
    %c0_i32 = arith.constant 0 : i32
    %c0_i32_0 = arith.constant 0 : i32
    %c0_i32_1 = arith.constant 0 : i32
    return %arg0, %c0_i32, %c0_i32_0 : i32, i32, i32
  }
  func.func @transform_3(%arg0: i32, %arg1: i32) -> (i32, i32, i32) {
    %c0_i32 = arith.constant 0 : i32
    %c0_i32_0 = arith.constant 0 : i32
    %c0_i32_1 = arith.constant 0 : i32
    return %arg0, %c0_i32, %c0_i32_0 : i32, i32, i32
  }
  func.func @transform_4(%arg0: i32, %arg1: i32) -> (i32, i32, i32) {
    %c0_i32 = arith.constant 0 : i32
    %c0_i32_0 = arith.constant 0 : i32
    %c0_i32_1 = arith.constant 0 : i32
    return %arg0, %c0_i32, %c0_i32_0 : i32, i32, i32
  }
  func.func @transform_5(%arg0: i32, %arg1: i32) -> (i32, i32) {
    %c0_i32 = arith.constant 0 : i32
    %c0_i32_0 = arith.constant 0 : i32
    %c0_i32_1 = arith.constant 0 : i32
    return %c0_i32, %c0_i32_0 : i32, i32
  }
  func.func @transform_6(%arg0: i32, %arg1: i32) -> (i32, i32) {
    %c0_i32 = arith.constant 0 : i32
    %c0_i32_0 = arith.constant 0 : i32
    %c0_i32_1 = arith.constant 0 : i32
    return %c0_i32, %c0_i32_0 : i32, i32
  }
  func.func @transform_7(%arg0: i32, %arg1: i32) -> (i32, i32) {
    %c0_i32 = arith.constant 0 : i32
    %c0_i32_0 = arith.constant 0 : i32
    %c0_i32_1 = arith.constant 0 : i32
    return %c0_i32, %c0_i32_0 : i32, i32
  }
  func.func @transform_8(%arg0: i32, %arg1: i32) -> (i32, i32) {
    %c0_i32 = arith.constant 0 : i32
    %c0_i32_0 = arith.constant 0 : i32
    %c0_i32_1 = arith.constant 0 : i32
    return %c0_i32, %c0_i32_0 : i32, i32
  }
  func.func @transform_9(%arg0: i32, %arg1: i32) -> (i32, i32) {
    %c0_i32 = arith.constant 0 : i32
    %c0_i32_0 = arith.constant 0 : i32
    %c0_i32_1 = arith.constant 0 : i32
    return %c0_i32, %c0_i32_0 : i32, i32
  }
  func.func @transform_10(%arg0: i32, %arg1: i32) -> (i32, i32) {
    %c0_i32 = arith.constant 0 : i32
    %c0_i32_0 = arith.constant 0 : i32
    %c0_i32_1 = arith.constant 0 : i32
    return %c0_i32, %c0_i32_0 : i32, i32
  }
  func.func @transform_11(%arg0: i32, %arg1: i32) -> (i32, i32) {
    %c0_i32 = arith.constant 0 : i32
    %c0_i32_0 = arith.constant 0 : i32
    %c0_i32_1 = arith.constant 0 : i32
    return %c0_i32, %c0_i32_0 : i32, i32
  }
  func.func @transform_12(%arg0: i32, %arg1: i32) -> (i32, i32) {
    %c0_i32 = arith.constant 0 : i32
    %c0_i32_0 = arith.constant 0 : i32
    %c0_i32_1 = arith.constant 0 : i32
    return %c0_i32, %c0_i32_0 : i32, i32
  }
  func.func @transform_13(%arg0: i32, %arg1: i32) -> (i32, i32) {
    %c0_i32 = arith.constant 0 : i32
    %c0_i32_0 = arith.constant 0 : i32
    %c0_i32_1 = arith.constant 0 : i32
    return %c0_i32, %c0_i32_0 : i32, i32
  }
  func.func @transform_14(%arg0: i32, %arg1: i32) -> (i32, i32) {
    %c0_i32 = arith.constant 0 : i32
    %c0_i32_0 = arith.constant 0 : i32
    %c0_i32_1 = arith.constant 0 : i32
    return %c0_i32, %c0_i32_0 : i32, i32
  }
  func.func @transform_15(%arg0: i32, %arg1: i32) -> (i32, i32, i32) {
    %c0_i32 = arith.constant 0 : i32
    %c0_i32_0 = arith.constant 0 : i32
    return %arg0, %arg1, %c0_i32 : i32, i32, i32
  }
}

module attributes {stable_mosaic.version = 11 : i64} {
  func.func @_ffn_block_kernel(%arg0: i32, %arg1: memref<32x128xf32, #tpu.memory_space<vmem>>, %arg2: memref<128x256xbf16, #tpu.memory_space<vmem>>, %arg3: memref<1x256xf32, #tpu.memory_space<vmem>>, %arg4: memref<256x128xbf16, #tpu.memory_space<vmem>>, %arg5: memref<1x128xf32, #tpu.memory_space<vmem>>, %arg6: memref<1x128xf32, #tpu.memory_space<vmem>>, %arg7: memref<1x128xf32, #tpu.memory_space<vmem>>, %arg8: memref<32x128xf32, #tpu.memory_space<vmem>>) attributes {dimension_semantics = [#tpu.dimension_semantics<parallel>], iteration_bounds = array<i64: 1>, scalar_prefetch = 0 : i64, scratch_operands = 0 : i64, tpu.core_type = #tpu.core_type<tc>, window_params = [{transform_indices = @transform_0, window_bounds = array<i64: 32, 128>}, {pipeline_mode = #tpu.pipeline_mode<synchronous>, transform_indices = @transform_1, window_bounds = array<i64: 128, 256>}, {pipeline_mode = #tpu.pipeline_mode<synchronous>, transform_indices = @transform_2, window_bounds = array<i64: 1, 256>}, {pipeline_mode = #tpu.pipeline_mode<synchronous>, transform_indices = @transform_3, window_bounds = array<i64: 256, 128>}, {pipeline_mode = #tpu.pipeline_mode<synchronous>, transform_indices = @transform_4, window_bounds = array<i64: 1, 128>}, {pipeline_mode = #tpu.pipeline_mode<synchronous>, transform_indices = @transform_5, window_bounds = array<i64: 1, 128>}, {pipeline_mode = #tpu.pipeline_mode<synchronous>, transform_indices = @transform_6, window_bounds = array<i64: 1, 128>}, {transform_indices = @transform_7, window_bounds = array<i64: 32, 128>}]} {
    %c0 = arith.constant 0 : index
    %c0_0 = arith.constant 0 : index
    %0 = vector.load %arg1[%c0, %c0_0] : memref<32x128xf32, #tpu.memory_space<vmem>>, vector<32x128xf32>
    %1 = arith.truncf %0 : vector<32x128xf32> to vector<32x128xbf16>
    %c0_1 = arith.constant 0 : index
    %c0_2 = arith.constant 0 : index
    %2 = vector.load %arg2[%c0_1, %c0_2] : memref<128x256xbf16, #tpu.memory_space<vmem>>, vector<128x256xbf16>
    %cst = arith.constant dense<0.000000e+00> : vector<32x256xf32>
    %3 = tpu.matmul %1, %2, %cst {dimension_numbers = #tpu.dot_dimension_numbers<[1], [0], [0], [1], [0, 0, 1, 1], [], []>} : vector<32x128xbf16>, vector<128x256xbf16>, vector<32x256xf32> -> vector<32x256xf32>
    %c0_3 = arith.constant 0 : index
    %c0_4 = arith.constant 0 : index
    %4 = vector.load %arg3[%c0_3, %c0_4] : memref<1x256xf32, #tpu.memory_space<vmem>>, vector<1x256xf32>
    %5 = vector.broadcast %4 : vector<1x256xf32> to vector<32x256xf32>
    %6 = arith.addf %3, %5 : vector<32x256xf32>
    %cst_5 = arith.constant 0.000000e+00 : f32
    %7 = vector.broadcast %cst_5 : f32 to vector<32x256xf32>
    %8 = arith.maximumf %6, %7 : vector<32x256xf32>
    %9 = arith.truncf %8 : vector<32x256xf32> to vector<32x256xbf16>
    %c0_6 = arith.constant 0 : index
    %c0_7 = arith.constant 0 : index
    %10 = vector.load %arg4[%c0_6, %c0_7] : memref<256x128xbf16, #tpu.memory_space<vmem>>, vector<256x128xbf16>
    %cst_8 = arith.constant dense<0.000000e+00> : vector<32x128xf32>
    %11 = tpu.matmul %9, %10, %cst_8 {dimension_numbers = #tpu.dot_dimension_numbers<[1], [0], [0], [1], [0, 0, 1, 1], [], []>} : vector<32x256xbf16>, vector<256x128xbf16>, vector<32x128xf32> -> vector<32x128xf32>
    %12 = arith.addf %0, %11 : vector<32x128xf32>
    %c0_9 = arith.constant 0 : index
    %c0_10 = arith.constant 0 : index
    %13 = vector.load %arg5[%c0_9, %c0_10] : memref<1x128xf32, #tpu.memory_space<vmem>>, vector<1x128xf32>
    %14 = vector.broadcast %13 : vector<1x128xf32> to vector<32x128xf32>
    %15 = arith.addf %12, %14 : vector<32x128xf32>
    %cst_11 = arith.constant dense<0.000000e+00> : vector<32xf32>
    %16 = vector.multi_reduction <add>, %15, %cst_11 [1] : vector<32x128xf32> to vector<32xf32>
    %17 = vector.shape_cast %16 : vector<32xf32> to vector<32x1xf32>
    %cst_12 = arith.constant 1.280000e+02 : f32
    %18 = vector.broadcast %cst_12 : f32 to vector<32x1xf32>
    %19 = arith.divf %17, %18 : vector<32x1xf32>
    %20 = vector.broadcast %19 : vector<32x1xf32> to vector<32x128xf32>
    %21 = arith.subf %15, %20 : vector<32x128xf32>
    %22 = arith.mulf %21, %21 : vector<32x128xf32>
    %cst_13 = arith.constant dense<0.000000e+00> : vector<32xf32>
    %23 = vector.multi_reduction <add>, %22, %cst_13 [1] : vector<32x128xf32> to vector<32xf32>
    %24 = vector.shape_cast %23 : vector<32xf32> to vector<32x1xf32>
    %cst_14 = arith.constant 1.280000e+02 : f32
    %25 = vector.broadcast %cst_14 : f32 to vector<32x1xf32>
    %26 = arith.divf %24, %25 : vector<32x1xf32>
    %27 = vector.broadcast %19 : vector<32x1xf32> to vector<32x128xf32>
    %28 = arith.subf %15, %27 : vector<32x128xf32>
    %cst_15 = arith.constant 9.99999974E-6 : f32
    %29 = vector.broadcast %cst_15 : f32 to vector<32x1xf32>
    %30 = arith.addf %26, %29 : vector<32x1xf32>
    %31 = math.rsqrt %30 : vector<32x1xf32>
    %32 = vector.broadcast %31 : vector<32x1xf32> to vector<32x128xf32>
    %33 = arith.mulf %28, %32 : vector<32x128xf32>
    %c0_16 = arith.constant 0 : index
    %c0_17 = arith.constant 0 : index
    %34 = vector.load %arg6[%c0_16, %c0_17] : memref<1x128xf32, #tpu.memory_space<vmem>>, vector<1x128xf32>
    %35 = vector.broadcast %34 : vector<1x128xf32> to vector<32x128xf32>
    %36 = arith.mulf %33, %35 : vector<32x128xf32>
    %c0_18 = arith.constant 0 : index
    %c0_19 = arith.constant 0 : index
    %37 = vector.load %arg7[%c0_18, %c0_19] : memref<1x128xf32, #tpu.memory_space<vmem>>, vector<1x128xf32>
    %38 = vector.broadcast %37 : vector<1x128xf32> to vector<32x128xf32>
    %39 = arith.addf %36, %38 : vector<32x128xf32>
    %c0_20 = arith.constant 0 : index
    %c0_21 = arith.constant 0 : index
    %40 = vector.load %arg8[%c0_20, %c0_21] : memref<32x128xf32, #tpu.memory_space<vmem>>, vector<32x128xf32>
    tpu.vector_store %arg8[%c0_20, %c0_21], %39 {strides = array<i32>} : memref<32x128xf32, #tpu.memory_space<vmem>>, vector<32x128xf32>,
    return
  }
  func.func @transform_0(%arg0: i32) -> (i32, i32) {
    %c0_i32 = arith.constant 0 : i32
    %c0_i32_0 = arith.constant 0 : i32
    return %arg0, %c0_i32 : i32, i32
  }
  func.func @transform_1(%arg0: i32) -> (i32, i32) {
    %c0_i32 = arith.constant 0 : i32
    %c0_i32_0 = arith.constant 0 : i32
    %c0_i32_1 = arith.constant 0 : i32
    return %c0_i32, %c0_i32_0 : i32, i32
  }
  func.func @transform_2(%arg0: i32) -> (i32, i32) {
    %c0_i32 = arith.constant 0 : i32
    %c0_i32_0 = arith.constant 0 : i32
    %c0_i32_1 = arith.constant 0 : i32
    return %c0_i32, %c0_i32_0 : i32, i32
  }
  func.func @transform_3(%arg0: i32) -> (i32, i32) {
    %c0_i32 = arith.constant 0 : i32
    %c0_i32_0 = arith.constant 0 : i32
    %c0_i32_1 = arith.constant 0 : i32
    return %c0_i32, %c0_i32_0 : i32, i32
  }
  func.func @transform_4(%arg0: i32) -> (i32, i32) {
    %c0_i32 = arith.constant 0 : i32
    %c0_i32_0 = arith.constant 0 : i32
    %c0_i32_1 = arith.constant 0 : i32
    return %c0_i32, %c0_i32_0 : i32, i32
  }
  func.func @transform_5(%arg0: i32) -> (i32, i32) {
    %c0_i32 = arith.constant 0 : i32
    %c0_i32_0 = arith.constant 0 : i32
    %c0_i32_1 = arith.constant 0 : i32
    return %c0_i32, %c0_i32_0 : i32, i32
  }
  func.func @transform_6(%arg0: i32) -> (i32, i32) {
    %c0_i32 = arith.constant 0 : i32
    %c0_i32_0 = arith.constant 0 : i32
    %c0_i32_1 = arith.constant 0 : i32
    return %c0_i32, %c0_i32_0 : i32, i32
  }
  func.func @transform_7(%arg0: i32) -> (i32, i32) {
    %c0_i32 = arith.constant 0 : i32
    %c0_i32_0 = arith.constant 0 : i32
    return %arg0, %c0_i32 : i32, i32
  }
}

module attributes {stable_mosaic.version = 11 : i64} {
  func.func @_attn_block_kernel(%arg0: i32, %arg1: i32, %arg2: memref<1x8x128xf32, #tpu.memory_space<vmem>>, %arg3: memref<1x8x128xf32, #tpu.memory_space<vmem>>, %arg4: memref<1x8x128xf32, #tpu.memory_space<vmem>>, %arg5: memref<1x8x128xf32, #tpu.memory_space<vmem>>, %arg6: memref<128x128xbf16, #tpu.memory_space<vmem>>, %arg7: memref<1x128xf32, #tpu.memory_space<vmem>>, %arg8: memref<128x128xbf16, #tpu.memory_space<vmem>>, %arg9: memref<1x128xf32, #tpu.memory_space<vmem>>, %arg10: memref<128x128xbf16, #tpu.memory_space<vmem>>, %arg11: memref<1x128xf32, #tpu.memory_space<vmem>>, %arg12: memref<128x128xbf16, #tpu.memory_space<vmem>>, %arg13: memref<1x128xf32, #tpu.memory_space<vmem>>, %arg14: memref<1x128xf32, #tpu.memory_space<vmem>>, %arg15: memref<1x128xf32, #tpu.memory_space<vmem>>, %arg16: memref<1x8x128xf32, #tpu.memory_space<vmem>>) attributes {dimension_semantics = [#tpu.dimension_semantics<parallel>, #tpu.dimension_semantics<parallel>], iteration_bounds = array<i64: 2, 1>, scalar_prefetch = 0 : i64, scratch_operands = 0 : i64, tpu.core_type = #tpu.core_type<tc>, window_params = [{transform_indices = @transform_0, window_bounds = array<i64: 1, 8, 128>}, {transform_indices = @transform_1, window_bounds = array<i64: 1, 8, 128>}, {transform_indices = @transform_2, window_bounds = array<i64: 1, 8, 128>}, {transform_indices = @transform_3, window_bounds = array<i64: 1, 8, 128>}, {pipeline_mode = #tpu.pipeline_mode<synchronous>, transform_indices = @transform_4, window_bounds = array<i64: 128, 128>}, {pipeline_mode = #tpu.pipeline_mode<synchronous>, transform_indices = @transform_5, window_bounds = array<i64: 1, 128>}, {pipeline_mode = #tpu.pipeline_mode<synchronous>, transform_indices = @transform_6, window_bounds = array<i64: 128, 128>}, {pipeline_mode = #tpu.pipeline_mode<synchronous>, transform_indices = @transform_7, window_bounds = array<i64: 1, 128>}, {pipeline_mode = #tpu.pipeline_mode<synchronous>, transform_indices = @transform_8, window_bounds = array<i64: 128, 128>}, {pipeline_mode = #tpu.pipeline_mode<synchronous>, transform_indices = @transform_9, window_bounds = array<i64: 1, 128>}, {pipeline_mode = #tpu.pipeline_mode<synchronous>, transform_indices = @transform_10, window_bounds = array<i64: 128, 128>}, {pipeline_mode = #tpu.pipeline_mode<synchronous>, transform_indices = @transform_11, window_bounds = array<i64: 1, 128>}, {pipeline_mode = #tpu.pipeline_mode<synchronous>, transform_indices = @transform_12, window_bounds = array<i64: 1, 128>}, {pipeline_mode = #tpu.pipeline_mode<synchronous>, transform_indices = @transform_13, window_bounds = array<i64: 1, 128>}, {transform_indices = @transform_14, window_bounds = array<i64: 1, 8, 128>}]} {
    %c0 = arith.constant 0 : index
    %c0_0 = arith.constant 0 : index
    %c0_1 = arith.constant 0 : index
    %0 = vector.load %arg2[%c0, %c0_0, %c0_1] : memref<1x8x128xf32, #tpu.memory_space<vmem>>, vector<1x8x128xf32>
    %1 = vector.shape_cast %0 : vector<1x8x128xf32> to vector<8x128xf32>
    %c0_2 = arith.constant 0 : index
    %c0_3 = arith.constant 0 : index
    %c0_4 = arith.constant 0 : index
    %2 = vector.load %arg3[%c0_2, %c0_3, %c0_4] : memref<1x8x128xf32, #tpu.memory_space<vmem>>, vector<1x8x128xf32>
    %3 = vector.shape_cast %2 : vector<1x8x128xf32> to vector<8x128xf32>
    %4 = arith.addf %1, %3 : vector<8x128xf32>
    %c0_5 = arith.constant 0 : index
    %c0_6 = arith.constant 0 : index
    %c0_7 = arith.constant 0 : index
    %5 = vector.load %arg4[%c0_5, %c0_6, %c0_7] : memref<1x8x128xf32, #tpu.memory_space<vmem>>, vector<1x8x128xf32>
    %6 = vector.shape_cast %5 : vector<1x8x128xf32> to vector<8x128xf32>
    %c0_8 = arith.constant 0 : index
    %c0_9 = arith.constant 0 : index
    %c0_10 = arith.constant 0 : index
    %7 = vector.load %arg5[%c0_8, %c0_9, %c0_10] : memref<1x8x128xf32, #tpu.memory_space<vmem>>, vector<1x8x128xf32>
    %8 = vector.shape_cast %7 : vector<1x8x128xf32> to vector<8x128xf32>
    %9 = arith.addf %6, %8 : vector<8x128xf32>
    %10 = arith.truncf %4 : vector<8x128xf32> to vector<8x128xbf16>
    %c0_11 = arith.constant 0 : index
    %c0_12 = arith.constant 0 : index
    %11 = vector.load %arg6[%c0_11, %c0_12] : memref<128x128xbf16, #tpu.memory_space<vmem>>, vector<128x128xbf16>
    %cst = arith.constant dense<0.000000e+00> : vector<8x128xf32>
    %12 = tpu.matmul %10, %11, %cst {dimension_numbers = #tpu.dot_dimension_numbers<[1], [0], [0], [1], [0, 0, 1, 1], [], []>} : vector<8x128xbf16>, vector<128x128xbf16>, vector<8x128xf32> -> vector<8x128xf32>
    %c0_13 = arith.constant 0 : index
    %c0_14 = arith.constant 0 : index
    %13 = vector.load %arg7[%c0_13, %c0_14] : memref<1x128xf32, #tpu.memory_space<vmem>>, vector<1x128xf32>
    %14 = vector.broadcast %13 : vector<1x128xf32> to vector<8x128xf32>
    %15 = arith.addf %12, %14 : vector<8x128xf32>
    %16 = arith.truncf %9 : vector<8x128xf32> to vector<8x128xbf16>
    %c0_15 = arith.constant 0 : index
    %c0_16 = arith.constant 0 : index
    %17 = vector.load %arg8[%c0_15, %c0_16] : memref<128x128xbf16, #tpu.memory_space<vmem>>, vector<128x128xbf16>
    %cst_17 = arith.constant dense<0.000000e+00> : vector<8x128xf32>
    %18 = tpu.matmul %16, %17, %cst_17 {dimension_numbers = #tpu.dot_dimension_numbers<[1], [0], [0], [1], [0, 0, 1, 1], [], []>} : vector<8x128xbf16>, vector<128x128xbf16>, vector<8x128xf32> -> vector<8x128xf32>
    %c0_18 = arith.constant 0 : index
    %c0_19 = arith.constant 0 : index
    %19 = vector.load %arg9[%c0_18, %c0_19] : memref<1x128xf32, #tpu.memory_space<vmem>>, vector<1x128xf32>
    %20 = vector.broadcast %19 : vector<1x128xf32> to vector<8x128xf32>
    %21 = arith.addf %18, %20 : vector<8x128xf32>
    %22 = arith.truncf %6 : vector<8x128xf32> to vector<8x128xbf16>
    %c0_20 = arith.constant 0 : index
    %c0_21 = arith.constant 0 : index
    %23 = vector.load %arg10[%c0_20, %c0_21] : memref<128x128xbf16, #tpu.memory_space<vmem>>, vector<128x128xbf16>
    %cst_22 = arith.constant dense<0.000000e+00> : vector<8x128xf32>
    %24 = tpu.matmul %22, %23, %cst_22 {dimension_numbers = #tpu.dot_dimension_numbers<[1], [0], [0], [1], [0, 0, 1, 1], [], []>} : vector<8x128xbf16>, vector<128x128xbf16>, vector<8x128xf32> -> vector<8x128xf32>
    %c0_23 = arith.constant 0 : index
    %c0_24 = arith.constant 0 : index
    %25 = vector.load %arg11[%c0_23, %c0_24] : memref<1x128xf32, #tpu.memory_space<vmem>>, vector<1x128xf32>
    %26 = vector.broadcast %25 : vector<1x128xf32> to vector<8x128xf32>
    %27 = arith.addf %24, %26 : vector<8x128xf32>
    %cst_25 = arith.constant 0.176776692 : f32
    %28 = vector.broadcast %cst_25 : f32 to vector<8x128xf32>
    %29 = arith.mulf %15, %28 : vector<8x128xf32>
    %30 = arith.truncf %29 : vector<8x128xf32> to vector<8x128xbf16>
    %31 = arith.truncf %21 : vector<8x128xf32> to vector<8x128xbf16>
    %32 = arith.truncf %27 : vector<8x128xf32> to vector<8x128xbf16>
    %33 = vector.extract_strided_slice %30 {offsets = [0, 0], sizes = [8, 32], strides = [1, 1]} : vector<8x128xbf16> to vector<8x32xbf16>
    %34 = vector.extract_strided_slice %31 {offsets = [0, 0], sizes = [8, 32], strides = [1, 1]} : vector<8x128xbf16> to vector<8x32xbf16>
    %cst_26 = arith.constant dense<0.000000e+00> : vector<8x8xf32>
    %35 = tpu.matmul %33, %34, %cst_26 {dimension_numbers = #tpu.dot_dimension_numbers<[1], [1], [0], [0], [0, 0, 1, 0], [], []>} : vector<8x32xbf16>, vector<8x32xbf16>, vector<8x8xf32> -> vector<8x8xf32>
    %cst_27 = arith.constant dense<0xFF800000> : vector<8xf32>
    %36 = vector.multi_reduction <maximumf>, %35, %cst_27 [1] : vector<8x8xf32> to vector<8xf32>
    %37 = vector.shape_cast %36 : vector<8xf32> to vector<8x1xf32>
    %38 = vector.broadcast %37 : vector<8x1xf32> to vector<8x8xf32>
    %39 = arith.subf %35, %38 : vector<8x8xf32>
    %40 = math.exp %39 : vector<8x8xf32>
    %cst_28 = arith.constant dense<0.000000e+00> : vector<8xf32>
    %41 = vector.multi_reduction <add>, %40, %cst_28 [1] : vector<8x8xf32> to vector<8xf32>
    %42 = vector.shape_cast %41 : vector<8xf32> to vector<8x1xf32>
    %43 = tpu.reciprocal %42 {approx = true} : vector<8x1xf32> -> vector<8x1xf32>
    %44 = vector.broadcast %43 : vector<8x1xf32> to vector<8x8xf32>
    %45 = arith.mulf %40, %44 : vector<8x8xf32>
    %46 = arith.truncf %45 : vector<8x8xf32> to vector<8x8xbf16>
    %47 = vector.extract_strided_slice %32 {offsets = [0, 0], sizes = [8, 32], strides = [1, 1]} : vector<8x128xbf16> to vector<8x32xbf16>
    %cst_29 = arith.constant dense<0.000000e+00> : vector<8x32xf32>
    %48 = tpu.matmul %46, %47, %cst_29 {dimension_numbers = #tpu.dot_dimension_numbers<[1], [0], [0], [1], [0, 0, 1, 1], [], []>} : vector<8x8xbf16>, vector<8x32xbf16>, vector<8x32xf32> -> vector<8x32xf32>
    %49 = vector.extract_strided_slice %30 {offsets = [0, 32], sizes = [8, 32], strides = [1, 1]} : vector<8x128xbf16> to vector<8x32xbf16>
    %50 = vector.extract_strided_slice %31 {offsets = [0, 32], sizes = [8, 32], strides = [1, 1]} : vector<8x128xbf16> to vector<8x32xbf16>
    %cst_30 = arith.constant dense<0.000000e+00> : vector<8x8xf32>
    %51 = tpu.matmul %49, %50, %cst_30 {dimension_numbers = #tpu.dot_dimension_numbers<[1], [1], [0], [0], [0, 0, 1, 0], [], []>} : vector<8x32xbf16>, vector<8x32xbf16>, vector<8x8xf32> -> vector<8x8xf32>
    %cst_31 = arith.constant dense<0xFF800000> : vector<8xf32>
    %52 = vector.multi_reduction <maximumf>, %51, %cst_31 [1] : vector<8x8xf32> to vector<8xf32>
    %53 = vector.shape_cast %52 : vector<8xf32> to vector<8x1xf32>
    %54 = vector.broadcast %53 : vector<8x1xf32> to vector<8x8xf32>
    %55 = arith.subf %51, %54 : vector<8x8xf32>
    %56 = math.exp %55 : vector<8x8xf32>
    %cst_32 = arith.constant dense<0.000000e+00> : vector<8xf32>
    %57 = vector.multi_reduction <add>, %56, %cst_32 [1] : vector<8x8xf32> to vector<8xf32>
    %58 = vector.shape_cast %57 : vector<8xf32> to vector<8x1xf32>
    %59 = tpu.reciprocal %58 {approx = true} : vector<8x1xf32> -> vector<8x1xf32>
    %60 = vector.broadcast %59 : vector<8x1xf32> to vector<8x8xf32>
    %61 = arith.mulf %56, %60 : vector<8x8xf32>
    %62 = arith.truncf %61 : vector<8x8xf32> to vector<8x8xbf16>
    %63 = vector.extract_strided_slice %32 {offsets = [0, 32], sizes = [8, 32], strides = [1, 1]} : vector<8x128xbf16> to vector<8x32xbf16>
    %cst_33 = arith.constant dense<0.000000e+00> : vector<8x32xf32>
    %64 = tpu.matmul %62, %63, %cst_33 {dimension_numbers = #tpu.dot_dimension_numbers<[1], [0], [0], [1], [0, 0, 1, 1], [], []>} : vector<8x8xbf16>, vector<8x32xbf16>, vector<8x32xf32> -> vector<8x32xf32>
    %65 = vector.extract_strided_slice %30 {offsets = [0, 64], sizes = [8, 32], strides = [1, 1]} : vector<8x128xbf16> to vector<8x32xbf16>
    %66 = vector.extract_strided_slice %31 {offsets = [0, 64], sizes = [8, 32], strides = [1, 1]} : vector<8x128xbf16> to vector<8x32xbf16>
    %cst_34 = arith.constant dense<0.000000e+00> : vector<8x8xf32>
    %67 = tpu.matmul %65, %66, %cst_34 {dimension_numbers = #tpu.dot_dimension_numbers<[1], [1], [0], [0], [0, 0, 1, 0], [], []>} : vector<8x32xbf16>, vector<8x32xbf16>, vector<8x8xf32> -> vector<8x8xf32>
    %cst_35 = arith.constant dense<0xFF800000> : vector<8xf32>
    %68 = vector.multi_reduction <maximumf>, %67, %cst_35 [1] : vector<8x8xf32> to vector<8xf32>
    %69 = vector.shape_cast %68 : vector<8xf32> to vector<8x1xf32>
    %70 = vector.broadcast %69 : vector<8x1xf32> to vector<8x8xf32>
    %71 = arith.subf %67, %70 : vector<8x8xf32>
    %72 = math.exp %71 : vector<8x8xf32>
    %cst_36 = arith.constant dense<0.000000e+00> : vector<8xf32>
    %73 = vector.multi_reduction <add>, %72, %cst_36 [1] : vector<8x8xf32> to vector<8xf32>
    %74 = vector.shape_cast %73 : vector<8xf32> to vector<8x1xf32>
    %75 = tpu.reciprocal %74 {approx = true} : vector<8x1xf32> -> vector<8x1xf32>
    %76 = vector.broadcast %75 : vector<8x1xf32> to vector<8x8xf32>
    %77 = arith.mulf %72, %76 : vector<8x8xf32>
    %78 = arith.truncf %77 : vector<8x8xf32> to vector<8x8xbf16>
    %79 = vector.extract_strided_slice %32 {offsets = [0, 64], sizes = [8, 32], strides = [1, 1]} : vector<8x128xbf16> to vector<8x32xbf16>
    %cst_37 = arith.constant dense<0.000000e+00> : vector<8x32xf32>
    %80 = tpu.matmul %78, %79, %cst_37 {dimension_numbers = #tpu.dot_dimension_numbers<[1], [0], [0], [1], [0, 0, 1, 1], [], []>} : vector<8x8xbf16>, vector<8x32xbf16>, vector<8x32xf32> -> vector<8x32xf32>
    %81 = vector.extract_strided_slice %30 {offsets = [0, 96], sizes = [8, 32], strides = [1, 1]} : vector<8x128xbf16> to vector<8x32xbf16>
    %82 = vector.extract_strided_slice %31 {offsets = [0, 96], sizes = [8, 32], strides = [1, 1]} : vector<8x128xbf16> to vector<8x32xbf16>
    %cst_38 = arith.constant dense<0.000000e+00> : vector<8x8xf32>
    %83 = tpu.matmul %81, %82, %cst_38 {dimension_numbers = #tpu.dot_dimension_numbers<[1], [1], [0], [0], [0, 0, 1, 0], [], []>} : vector<8x32xbf16>, vector<8x32xbf16>, vector<8x8xf32> -> vector<8x8xf32>
    %cst_39 = arith.constant dense<0xFF800000> : vector<8xf32>
    %84 = vector.multi_reduction <maximumf>, %83, %cst_39 [1] : vector<8x8xf32> to vector<8xf32>
    %85 = vector.shape_cast %84 : vector<8xf32> to vector<8x1xf32>
    %86 = vector.broadcast %85 : vector<8x1xf32> to vector<8x8xf32>
    %87 = arith.subf %83, %86 : vector<8x8xf32>
    %88 = math.exp %87 : vector<8x8xf32>
    %cst_40 = arith.constant dense<0.000000e+00> : vector<8xf32>
    %89 = vector.multi_reduction <add>, %88, %cst_40 [1] : vector<8x8xf32> to vector<8xf32>
    %90 = vector.shape_cast %89 : vector<8xf32> to vector<8x1xf32>
    %91 = tpu.reciprocal %90 {approx = true} : vector<8x1xf32> -> vector<8x1xf32>
    %92 = vector.broadcast %91 : vector<8x1xf32> to vector<8x8xf32>
    %93 = arith.mulf %88, %92 : vector<8x8xf32>
    %94 = arith.truncf %93 : vector<8x8xf32> to vector<8x8xbf16>
    %95 = vector.extract_strided_slice %32 {offsets = [0, 96], sizes = [8, 32], strides = [1, 1]} : vector<8x128xbf16> to vector<8x32xbf16>
    %cst_41 = arith.constant dense<0.000000e+00> : vector<8x32xf32>
    %96 = tpu.matmul %94, %95, %cst_41 {dimension_numbers = #tpu.dot_dimension_numbers<[1], [0], [0], [1], [0, 0, 1, 1], [], []>} : vector<8x8xbf16>, vector<8x32xbf16>, vector<8x32xf32> -> vector<8x32xf32>
    %97 = tpu.concatenate %48, %64, %80, %96 in 1 : vector<8x32xf32>, vector<8x32xf32>, vector<8x32xf32>, vector<8x32xf32> -> vector<8x128xf32>
    %98 = arith.truncf %97 : vector<8x128xf32> to vector<8x128xbf16>
    %c0_42 = arith.constant 0 : index
    %c0_43 = arith.constant 0 : index
    %99 = vector.load %arg12[%c0_42, %c0_43] : memref<128x128xbf16, #tpu.memory_space<vmem>>, vector<128x128xbf16>
    %cst_44 = arith.constant dense<0.000000e+00> : vector<8x128xf32>
    %100 = tpu.matmul %98, %99, %cst_44 {dimension_numbers = #tpu.dot_dimension_numbers<[1], [0], [0], [1], [0, 0, 1, 1], [], []>} : vector<8x128xbf16>, vector<128x128xbf16>, vector<8x128xf32> -> vector<8x128xf32>
    %c0_45 = arith.constant 0 : index
    %c0_46 = arith.constant 0 : index
    %101 = vector.load %arg13[%c0_45, %c0_46] : memref<1x128xf32, #tpu.memory_space<vmem>>, vector<1x128xf32>
    %102 = vector.broadcast %101 : vector<1x128xf32> to vector<8x128xf32>
    %103 = arith.addf %100, %102 : vector<8x128xf32>
    %104 = arith.addf %1, %103 : vector<8x128xf32>
    %cst_47 = arith.constant dense<0.000000e+00> : vector<8xf32>
    %105 = vector.multi_reduction <add>, %104, %cst_47 [1] : vector<8x128xf32> to vector<8xf32>
    %106 = vector.shape_cast %105 : vector<8xf32> to vector<8x1xf32>
    %cst_48 = arith.constant 1.280000e+02 : f32
    %107 = vector.broadcast %cst_48 : f32 to vector<8x1xf32>
    %108 = arith.divf %106, %107 : vector<8x1xf32>
    %109 = vector.broadcast %108 : vector<8x1xf32> to vector<8x128xf32>
    %110 = arith.subf %104, %109 : vector<8x128xf32>
    %111 = arith.mulf %110, %110 : vector<8x128xf32>
    %cst_49 = arith.constant dense<0.000000e+00> : vector<8xf32>
    %112 = vector.multi_reduction <add>, %111, %cst_49 [1] : vector<8x128xf32> to vector<8xf32>
    %113 = vector.shape_cast %112 : vector<8xf32> to vector<8x1xf32>
    %cst_50 = arith.constant 1.280000e+02 : f32
    %114 = vector.broadcast %cst_50 : f32 to vector<8x1xf32>
    %115 = arith.divf %113, %114 : vector<8x1xf32>
    %116 = vector.broadcast %108 : vector<8x1xf32> to vector<8x128xf32>
    %117 = arith.subf %104, %116 : vector<8x128xf32>
    %cst_51 = arith.constant 9.99999974E-6 : f32
    %118 = vector.broadcast %cst_51 : f32 to vector<8x1xf32>
    %119 = arith.addf %115, %118 : vector<8x1xf32>
    %120 = math.rsqrt %119 : vector<8x1xf32>
    %121 = vector.broadcast %120 : vector<8x1xf32> to vector<8x128xf32>
    %122 = arith.mulf %117, %121 : vector<8x128xf32>
    %c0_52 = arith.constant 0 : index
    %c0_53 = arith.constant 0 : index
    %123 = vector.load %arg14[%c0_52, %c0_53] : memref<1x128xf32, #tpu.memory_space<vmem>>, vector<1x128xf32>
    %124 = vector.broadcast %123 : vector<1x128xf32> to vector<8x128xf32>
    %125 = arith.mulf %122, %124 : vector<8x128xf32>
    %c0_54 = arith.constant 0 : index
    %c0_55 = arith.constant 0 : index
    %126 = vector.load %arg15[%c0_54, %c0_55] : memref<1x128xf32, #tpu.memory_space<vmem>>, vector<1x128xf32>
    %127 = vector.broadcast %126 : vector<1x128xf32> to vector<8x128xf32>
    %128 = arith.addf %125, %127 : vector<8x128xf32>
    %c0_56 = arith.constant 0 : index
    %c0_57 = arith.constant 0 : index
    %c0_58 = arith.constant 0 : index
    %129 = vector.load %arg16[%c0_56, %c0_57, %c0_58] : memref<1x8x128xf32, #tpu.memory_space<vmem>>, vector<1x8x128xf32>
    %130 = vector.shape_cast %129 : vector<1x8x128xf32> to vector<8x128xf32>
    %131 = vector.shape_cast %128 : vector<8x128xf32> to vector<1x8x128xf32>
    tpu.vector_store %arg16[%c0_56, %c0_57, %c0_58], %131 {strides = array<i32>} : memref<1x8x128xf32, #tpu.memory_space<vmem>>, vector<1x8x128xf32>,
    return
  }
  func.func @transform_0(%arg0: i32, %arg1: i32) -> (i32, i32, i32) {
    %c0_i32 = arith.constant 0 : i32
    %c0_i32_0 = arith.constant 0 : i32
    return %arg0, %arg1, %c0_i32 : i32, i32, i32
  }
  func.func @transform_1(%arg0: i32, %arg1: i32) -> (i32, i32, i32) {
    %c0_i32 = arith.constant 0 : i32
    %c0_i32_0 = arith.constant 0 : i32
    return %arg0, %arg1, %c0_i32 : i32, i32, i32
  }
  func.func @transform_2(%arg0: i32, %arg1: i32) -> (i32, i32, i32) {
    %c0_i32 = arith.constant 0 : i32
    %c0_i32_0 = arith.constant 0 : i32
    %c0_i32_1 = arith.constant 0 : i32
    return %arg0, %c0_i32, %c0_i32_0 : i32, i32, i32
  }
  func.func @transform_3(%arg0: i32, %arg1: i32) -> (i32, i32, i32) {
    %c0_i32 = arith.constant 0 : i32
    %c0_i32_0 = arith.constant 0 : i32
    %c0_i32_1 = arith.constant 0 : i32
    return %arg0, %c0_i32, %c0_i32_0 : i32, i32, i32
  }
  func.func @transform_4(%arg0: i32, %arg1: i32) -> (i32, i32) {
    %c0_i32 = arith.constant 0 : i32
    %c0_i32_0 = arith.constant 0 : i32
    %c0_i32_1 = arith.constant 0 : i32
    return %c0_i32, %c0_i32_0 : i32, i32
  }
  func.func @transform_5(%arg0: i32, %arg1: i32) -> (i32, i32) {
    %c0_i32 = arith.constant 0 : i32
    %c0_i32_0 = arith.constant 0 : i32
    %c0_i32_1 = arith.constant 0 : i32
    return %c0_i32, %c0_i32_0 : i32, i32
  }
  func.func @transform_6(%arg0: i32, %arg1: i32) -> (i32, i32) {
    %c0_i32 = arith.constant 0 : i32
    %c0_i32_0 = arith.constant 0 : i32
    %c0_i32_1 = arith.constant 0 : i32
    return %c0_i32, %c0_i32_0 : i32, i32
  }
  func.func @transform_7(%arg0: i32, %arg1: i32) -> (i32, i32) {
    %c0_i32 = arith.constant 0 : i32
    %c0_i32_0 = arith.constant 0 : i32
    %c0_i32_1 = arith.constant 0 : i32
    return %c0_i32, %c0_i32_0 : i32, i32
  }
  func.func @transform_8(%arg0: i32, %arg1: i32) -> (i32, i32) {
    %c0_i32 = arith.constant 0 : i32
    %c0_i32_0 = arith.constant 0 : i32
    %c0_i32_1 = arith.constant 0 : i32
    return %c0_i32, %c0_i32_0 : i32, i32
  }
  func.func @transform_9(%arg0: i32, %arg1: i32) -> (i32, i32) {
    %c0_i32 = arith.constant 0 : i32
    %c0_i32_0 = arith.constant 0 : i32
    %c0_i32_1 = arith.constant 0 : i32
    return %c0_i32, %c0_i32_0 : i32, i32
  }
  func.func @transform_10(%arg0: i32, %arg1: i32) -> (i32, i32) {
    %c0_i32 = arith.constant 0 : i32
    %c0_i32_0 = arith.constant 0 : i32
    %c0_i32_1 = arith.constant 0 : i32
    return %c0_i32, %c0_i32_0 : i32, i32
  }
  func.func @transform_11(%arg0: i32, %arg1: i32) -> (i32, i32) {
    %c0_i32 = arith.constant 0 : i32
    %c0_i32_0 = arith.constant 0 : i32
    %c0_i32_1 = arith.constant 0 : i32
    return %c0_i32, %c0_i32_0 : i32, i32
  }
  func.func @transform_12(%arg0: i32, %arg1: i32) -> (i32, i32) {
    %c0_i32 = arith.constant 0 : i32
    %c0_i32_0 = arith.constant 0 : i32
    %c0_i32_1 = arith.constant 0 : i32
    return %c0_i32, %c0_i32_0 : i32, i32
  }
  func.func @transform_13(%arg0: i32, %arg1: i32) -> (i32, i32) {
    %c0_i32 = arith.constant 0 : i32
    %c0_i32_0 = arith.constant 0 : i32
    %c0_i32_1 = arith.constant 0 : i32
    return %c0_i32, %c0_i32_0 : i32, i32
  }
  func.func @transform_14(%arg0: i32, %arg1: i32) -> (i32, i32, i32) {
    %c0_i32 = arith.constant 0 : i32
    %c0_i32_0 = arith.constant 0 : i32
    return %arg0, %arg1, %c0_i32 : i32, i32, i32
  }
}

module attributes {stable_mosaic.version = 11 : i64} {
  func.func @_attn_block_kernel(%arg0: i32, %arg1: i32, %arg2: memref<1x16x128xf32, #tpu.memory_space<vmem>>, %arg3: memref<1x16x128xf32, #tpu.memory_space<vmem>>, %arg4: memref<1x16x128xf32, #tpu.memory_space<vmem>>, %arg5: memref<1x16x128xf32, #tpu.memory_space<vmem>>, %arg6: memref<1x1x16xf32, #tpu.memory_space<vmem>>, %arg7: memref<128x128xbf16, #tpu.memory_space<vmem>>, %arg8: memref<1x128xf32, #tpu.memory_space<vmem>>, %arg9: memref<128x128xbf16, #tpu.memory_space<vmem>>, %arg10: memref<1x128xf32, #tpu.memory_space<vmem>>, %arg11: memref<128x128xbf16, #tpu.memory_space<vmem>>, %arg12: memref<1x128xf32, #tpu.memory_space<vmem>>, %arg13: memref<128x128xbf16, #tpu.memory_space<vmem>>, %arg14: memref<1x128xf32, #tpu.memory_space<vmem>>, %arg15: memref<1x128xf32, #tpu.memory_space<vmem>>, %arg16: memref<1x128xf32, #tpu.memory_space<vmem>>, %arg17: memref<1x16x128xf32, #tpu.memory_space<vmem>>) attributes {dimension_semantics = [#tpu.dimension_semantics<parallel>, #tpu.dimension_semantics<parallel>], iteration_bounds = array<i64: 2, 1>, scalar_prefetch = 0 : i64, scratch_operands = 0 : i64, tpu.core_type = #tpu.core_type<tc>, window_params = [{transform_indices = @transform_0, window_bounds = array<i64: 1, 16, 128>}, {transform_indices = @transform_1, window_bounds = array<i64: 1, 16, 128>}, {transform_indices = @transform_2, window_bounds = array<i64: 1, 16, 128>}, {transform_indices = @transform_3, window_bounds = array<i64: 1, 16, 128>}, {transform_indices = @transform_4, window_bounds = array<i64: 1, 1, 16>}, {pipeline_mode = #tpu.pipeline_mode<synchronous>, transform_indices = @transform_5, window_bounds = array<i64: 128, 128>}, {pipeline_mode = #tpu.pipeline_mode<synchronous>, transform_indices = @transform_6, window_bounds = array<i64: 1, 128>}, {pipeline_mode = #tpu.pipeline_mode<synchronous>, transform_indices = @transform_7, window_bounds = array<i64: 128, 128>}, {pipeline_mode = #tpu.pipeline_mode<synchronous>, transform_indices = @transform_8, window_bounds = array<i64: 1, 128>}, {pipeline_mode = #tpu.pipeline_mode<synchronous>, transform_indices = @transform_9, window_bounds = array<i64: 128, 128>}, {pipeline_mode = #tpu.pipeline_mode<synchronous>, transform_indices = @transform_10, window_bounds = array<i64: 1, 128>}, {pipeline_mode = #tpu.pipeline_mode<synchronous>, transform_indices = @transform_11, window_bounds = array<i64: 128, 128>}, {pipeline_mode = #tpu.pipeline_mode<synchronous>, transform_indices = @transform_12, window_bounds = array<i64: 1, 128>}, {pipeline_mode = #tpu.pipeline_mode<synchronous>, transform_indices = @transform_13, window_bounds = array<i64: 1, 128>}, {pipeline_mode = #tpu.pipeline_mode<synchronous>, transform_indices = @transform_14, window_bounds = array<i64: 1, 128>}, {transform_indices = @transform_15, window_bounds = array<i64: 1, 16, 128>}]} {
    %c0 = arith.constant 0 : index
    %c0_0 = arith.constant 0 : index
    %c0_1 = arith.constant 0 : index
    %0 = vector.load %arg2[%c0, %c0_0, %c0_1] : memref<1x16x128xf32, #tpu.memory_space<vmem>>, vector<1x16x128xf32>
    %1 = vector.shape_cast %0 : vector<1x16x128xf32> to vector<16x128xf32>
    %c0_2 = arith.constant 0 : index
    %c0_3 = arith.constant 0 : index
    %c0_4 = arith.constant 0 : index
    %2 = vector.load %arg3[%c0_2, %c0_3, %c0_4] : memref<1x16x128xf32, #tpu.memory_space<vmem>>, vector<1x16x128xf32>
    %3 = vector.shape_cast %2 : vector<1x16x128xf32> to vector<16x128xf32>
    %4 = arith.addf %1, %3 : vector<16x128xf32>
    %c0_5 = arith.constant 0 : index
    %c0_6 = arith.constant 0 : index
    %c0_7 = arith.constant 0 : index
    %5 = vector.load %arg4[%c0_5, %c0_6, %c0_7] : memref<1x16x128xf32, #tpu.memory_space<vmem>>, vector<1x16x128xf32>
    %6 = vector.shape_cast %5 : vector<1x16x128xf32> to vector<16x128xf32>
    %c0_8 = arith.constant 0 : index
    %c0_9 = arith.constant 0 : index
    %c0_10 = arith.constant 0 : index
    %7 = vector.load %arg5[%c0_8, %c0_9, %c0_10] : memref<1x16x128xf32, #tpu.memory_space<vmem>>, vector<1x16x128xf32>
    %8 = vector.shape_cast %7 : vector<1x16x128xf32> to vector<16x128xf32>
    %9 = arith.addf %6, %8 : vector<16x128xf32>
    %10 = arith.truncf %4 : vector<16x128xf32> to vector<16x128xbf16>
    %c0_11 = arith.constant 0 : index
    %c0_12 = arith.constant 0 : index
    %11 = vector.load %arg7[%c0_11, %c0_12] : memref<128x128xbf16, #tpu.memory_space<vmem>>, vector<128x128xbf16>
    %cst = arith.constant dense<0.000000e+00> : vector<16x128xf32>
    %12 = tpu.matmul %10, %11, %cst {dimension_numbers = #tpu.dot_dimension_numbers<[1], [0], [0], [1], [0, 0, 1, 1], [], []>} : vector<16x128xbf16>, vector<128x128xbf16>, vector<16x128xf32> -> vector<16x128xf32>
    %c0_13 = arith.constant 0 : index
    %c0_14 = arith.constant 0 : index
    %13 = vector.load %arg8[%c0_13, %c0_14] : memref<1x128xf32, #tpu.memory_space<vmem>>, vector<1x128xf32>
    %14 = vector.broadcast %13 : vector<1x128xf32> to vector<16x128xf32>
    %15 = arith.addf %12, %14 : vector<16x128xf32>
    %16 = arith.truncf %9 : vector<16x128xf32> to vector<16x128xbf16>
    %c0_15 = arith.constant 0 : index
    %c0_16 = arith.constant 0 : index
    %17 = vector.load %arg9[%c0_15, %c0_16] : memref<128x128xbf16, #tpu.memory_space<vmem>>, vector<128x128xbf16>
    %cst_17 = arith.constant dense<0.000000e+00> : vector<16x128xf32>
    %18 = tpu.matmul %16, %17, %cst_17 {dimension_numbers = #tpu.dot_dimension_numbers<[1], [0], [0], [1], [0, 0, 1, 1], [], []>} : vector<16x128xbf16>, vector<128x128xbf16>, vector<16x128xf32> -> vector<16x128xf32>
    %c0_18 = arith.constant 0 : index
    %c0_19 = arith.constant 0 : index
    %19 = vector.load %arg10[%c0_18, %c0_19] : memref<1x128xf32, #tpu.memory_space<vmem>>, vector<1x128xf32>
    %20 = vector.broadcast %19 : vector<1x128xf32> to vector<16x128xf32>
    %21 = arith.addf %18, %20 : vector<16x128xf32>
    %22 = arith.truncf %6 : vector<16x128xf32> to vector<16x128xbf16>
    %c0_20 = arith.constant 0 : index
    %c0_21 = arith.constant 0 : index
    %23 = vector.load %arg11[%c0_20, %c0_21] : memref<128x128xbf16, #tpu.memory_space<vmem>>, vector<128x128xbf16>
    %cst_22 = arith.constant dense<0.000000e+00> : vector<16x128xf32>
    %24 = tpu.matmul %22, %23, %cst_22 {dimension_numbers = #tpu.dot_dimension_numbers<[1], [0], [0], [1], [0, 0, 1, 1], [], []>} : vector<16x128xbf16>, vector<128x128xbf16>, vector<16x128xf32> -> vector<16x128xf32>
    %c0_23 = arith.constant 0 : index
    %c0_24 = arith.constant 0 : index
    %25 = vector.load %arg12[%c0_23, %c0_24] : memref<1x128xf32, #tpu.memory_space<vmem>>, vector<1x128xf32>
    %26 = vector.broadcast %25 : vector<1x128xf32> to vector<16x128xf32>
    %27 = arith.addf %24, %26 : vector<16x128xf32>
    %cst_25 = arith.constant 0.176776692 : f32
    %28 = vector.broadcast %cst_25 : f32 to vector<16x128xf32>
    %29 = arith.mulf %15, %28 : vector<16x128xf32>
    %30 = arith.truncf %29 : vector<16x128xf32> to vector<16x128xbf16>
    %31 = arith.truncf %21 : vector<16x128xf32> to vector<16x128xbf16>
    %32 = arith.truncf %27 : vector<16x128xf32> to vector<16x128xbf16>
    %33 = vector.extract_strided_slice %30 {offsets = [0, 0], sizes = [16, 32], strides = [1, 1]} : vector<16x128xbf16> to vector<16x32xbf16>
    %34 = vector.extract_strided_slice %31 {offsets = [0, 0], sizes = [16, 32], strides = [1, 1]} : vector<16x128xbf16> to vector<16x32xbf16>
    %cst_26 = arith.constant dense<0.000000e+00> : vector<16x16xf32>
    %35 = tpu.matmul %33, %34, %cst_26 {dimension_numbers = #tpu.dot_dimension_numbers<[1], [1], [0], [0], [0, 0, 1, 0], [], []>} : vector<16x32xbf16>, vector<16x32xbf16>, vector<16x16xf32> -> vector<16x16xf32>
    %c0_27 = arith.constant 0 : index
    %c0_28 = arith.constant 0 : index
    %c0_29 = arith.constant 0 : index
    %36 = vector.load %arg6[%c0_27, %c0_28, %c0_29] : memref<1x1x16xf32, #tpu.memory_space<vmem>>, vector<1x1x16xf32>
    %37 = vector.shape_cast %36 : vector<1x1x16xf32> to vector<1x16xf32>
    %38 = vector.broadcast %37 : vector<1x16xf32> to vector<16x16xf32>
    %39 = arith.addf %35, %38 : vector<16x16xf32>
    %cst_30 = arith.constant dense<0xFF800000> : vector<16xf32>
    %40 = vector.multi_reduction <maximumf>, %39, %cst_30 [1] : vector<16x16xf32> to vector<16xf32>
    %41 = vector.shape_cast %40 : vector<16xf32> to vector<16x1xf32>
    %42 = vector.broadcast %41 : vector<16x1xf32> to vector<16x16xf32>
    %43 = arith.subf %39, %42 : vector<16x16xf32>
    %44 = math.exp %43 : vector<16x16xf32>
    %cst_31 = arith.constant dense<0.000000e+00> : vector<16xf32>
    %45 = vector.multi_reduction <add>, %44, %cst_31 [1] : vector<16x16xf32> to vector<16xf32>
    %46 = vector.shape_cast %45 : vector<16xf32> to vector<16x1xf32>
    %47 = tpu.reciprocal %46 {approx = true} : vector<16x1xf32> -> vector<16x1xf32>
    %48 = vector.broadcast %47 : vector<16x1xf32> to vector<16x16xf32>
    %49 = arith.mulf %44, %48 : vector<16x16xf32>
    %50 = arith.truncf %49 : vector<16x16xf32> to vector<16x16xbf16>
    %51 = vector.extract_strided_slice %32 {offsets = [0, 0], sizes = [16, 32], strides = [1, 1]} : vector<16x128xbf16> to vector<16x32xbf16>
    %cst_32 = arith.constant dense<0.000000e+00> : vector<16x32xf32>
    %52 = tpu.matmul %50, %51, %cst_32 {dimension_numbers = #tpu.dot_dimension_numbers<[1], [0], [0], [1], [0, 0, 1, 1], [], []>} : vector<16x16xbf16>, vector<16x32xbf16>, vector<16x32xf32> -> vector<16x32xf32>
    %53 = vector.extract_strided_slice %30 {offsets = [0, 32], sizes = [16, 32], strides = [1, 1]} : vector<16x128xbf16> to vector<16x32xbf16>
    %54 = vector.extract_strided_slice %31 {offsets = [0, 32], sizes = [16, 32], strides = [1, 1]} : vector<16x128xbf16> to vector<16x32xbf16>
    %cst_33 = arith.constant dense<0.000000e+00> : vector<16x16xf32>
    %55 = tpu.matmul %53, %54, %cst_33 {dimension_numbers = #tpu.dot_dimension_numbers<[1], [1], [0], [0], [0, 0, 1, 0], [], []>} : vector<16x32xbf16>, vector<16x32xbf16>, vector<16x16xf32> -> vector<16x16xf32>
    %c0_34 = arith.constant 0 : index
    %c0_35 = arith.constant 0 : index
    %c0_36 = arith.constant 0 : index
    %56 = vector.load %arg6[%c0_34, %c0_35, %c0_36] : memref<1x1x16xf32, #tpu.memory_space<vmem>>, vector<1x1x16xf32>
    %57 = vector.shape_cast %56 : vector<1x1x16xf32> to vector<1x16xf32>
    %58 = vector.broadcast %57 : vector<1x16xf32> to vector<16x16xf32>
    %59 = arith.addf %55, %58 : vector<16x16xf32>
    %cst_37 = arith.constant dense<0xFF800000> : vector<16xf32>
    %60 = vector.multi_reduction <maximumf>, %59, %cst_37 [1] : vector<16x16xf32> to vector<16xf32>
    %61 = vector.shape_cast %60 : vector<16xf32> to vector<16x1xf32>
    %62 = vector.broadcast %61 : vector<16x1xf32> to vector<16x16xf32>
    %63 = arith.subf %59, %62 : vector<16x16xf32>
    %64 = math.exp %63 : vector<16x16xf32>
    %cst_38 = arith.constant dense<0.000000e+00> : vector<16xf32>
    %65 = vector.multi_reduction <add>, %64, %cst_38 [1] : vector<16x16xf32> to vector<16xf32>
    %66 = vector.shape_cast %65 : vector<16xf32> to vector<16x1xf32>
    %67 = tpu.reciprocal %66 {approx = true} : vector<16x1xf32> -> vector<16x1xf32>
    %68 = vector.broadcast %67 : vector<16x1xf32> to vector<16x16xf32>
    %69 = arith.mulf %64, %68 : vector<16x16xf32>
    %70 = arith.truncf %69 : vector<16x16xf32> to vector<16x16xbf16>
    %71 = vector.extract_strided_slice %32 {offsets = [0, 32], sizes = [16, 32], strides = [1, 1]} : vector<16x128xbf16> to vector<16x32xbf16>
    %cst_39 = arith.constant dense<0.000000e+00> : vector<16x32xf32>
    %72 = tpu.matmul %70, %71, %cst_39 {dimension_numbers = #tpu.dot_dimension_numbers<[1], [0], [0], [1], [0, 0, 1, 1], [], []>} : vector<16x16xbf16>, vector<16x32xbf16>, vector<16x32xf32> -> vector<16x32xf32>
    %73 = vector.extract_strided_slice %30 {offsets = [0, 64], sizes = [16, 32], strides = [1, 1]} : vector<16x128xbf16> to vector<16x32xbf16>
    %74 = vector.extract_strided_slice %31 {offsets = [0, 64], sizes = [16, 32], strides = [1, 1]} : vector<16x128xbf16> to vector<16x32xbf16>
    %cst_40 = arith.constant dense<0.000000e+00> : vector<16x16xf32>
    %75 = tpu.matmul %73, %74, %cst_40 {dimension_numbers = #tpu.dot_dimension_numbers<[1], [1], [0], [0], [0, 0, 1, 0], [], []>} : vector<16x32xbf16>, vector<16x32xbf16>, vector<16x16xf32> -> vector<16x16xf32>
    %c0_41 = arith.constant 0 : index
    %c0_42 = arith.constant 0 : index
    %c0_43 = arith.constant 0 : index
    %76 = vector.load %arg6[%c0_41, %c0_42, %c0_43] : memref<1x1x16xf32, #tpu.memory_space<vmem>>, vector<1x1x16xf32>
    %77 = vector.shape_cast %76 : vector<1x1x16xf32> to vector<1x16xf32>
    %78 = vector.broadcast %77 : vector<1x16xf32> to vector<16x16xf32>
    %79 = arith.addf %75, %78 : vector<16x16xf32>
    %cst_44 = arith.constant dense<0xFF800000> : vector<16xf32>
    %80 = vector.multi_reduction <maximumf>, %79, %cst_44 [1] : vector<16x16xf32> to vector<16xf32>
    %81 = vector.shape_cast %80 : vector<16xf32> to vector<16x1xf32>
    %82 = vector.broadcast %81 : vector<16x1xf32> to vector<16x16xf32>
    %83 = arith.subf %79, %82 : vector<16x16xf32>
    %84 = math.exp %83 : vector<16x16xf32>
    %cst_45 = arith.constant dense<0.000000e+00> : vector<16xf32>
    %85 = vector.multi_reduction <add>, %84, %cst_45 [1] : vector<16x16xf32> to vector<16xf32>
    %86 = vector.shape_cast %85 : vector<16xf32> to vector<16x1xf32>
    %87 = tpu.reciprocal %86 {approx = true} : vector<16x1xf32> -> vector<16x1xf32>
    %88 = vector.broadcast %87 : vector<16x1xf32> to vector<16x16xf32>
    %89 = arith.mulf %84, %88 : vector<16x16xf32>
    %90 = arith.truncf %89 : vector<16x16xf32> to vector<16x16xbf16>
    %91 = vector.extract_strided_slice %32 {offsets = [0, 64], sizes = [16, 32], strides = [1, 1]} : vector<16x128xbf16> to vector<16x32xbf16>
    %cst_46 = arith.constant dense<0.000000e+00> : vector<16x32xf32>
    %92 = tpu.matmul %90, %91, %cst_46 {dimension_numbers = #tpu.dot_dimension_numbers<[1], [0], [0], [1], [0, 0, 1, 1], [], []>} : vector<16x16xbf16>, vector<16x32xbf16>, vector<16x32xf32> -> vector<16x32xf32>
    %93 = vector.extract_strided_slice %30 {offsets = [0, 96], sizes = [16, 32], strides = [1, 1]} : vector<16x128xbf16> to vector<16x32xbf16>
    %94 = vector.extract_strided_slice %31 {offsets = [0, 96], sizes = [16, 32], strides = [1, 1]} : vector<16x128xbf16> to vector<16x32xbf16>
    %cst_47 = arith.constant dense<0.000000e+00> : vector<16x16xf32>
    %95 = tpu.matmul %93, %94, %cst_47 {dimension_numbers = #tpu.dot_dimension_numbers<[1], [1], [0], [0], [0, 0, 1, 0], [], []>} : vector<16x32xbf16>, vector<16x32xbf16>, vector<16x16xf32> -> vector<16x16xf32>
    %c0_48 = arith.constant 0 : index
    %c0_49 = arith.constant 0 : index
    %c0_50 = arith.constant 0 : index
    %96 = vector.load %arg6[%c0_48, %c0_49, %c0_50] : memref<1x1x16xf32, #tpu.memory_space<vmem>>, vector<1x1x16xf32>
    %97 = vector.shape_cast %96 : vector<1x1x16xf32> to vector<1x16xf32>
    %98 = vector.broadcast %97 : vector<1x16xf32> to vector<16x16xf32>
    %99 = arith.addf %95, %98 : vector<16x16xf32>
    %cst_51 = arith.constant dense<0xFF800000> : vector<16xf32>
    %100 = vector.multi_reduction <maximumf>, %99, %cst_51 [1] : vector<16x16xf32> to vector<16xf32>
    %101 = vector.shape_cast %100 : vector<16xf32> to vector<16x1xf32>
    %102 = vector.broadcast %101 : vector<16x1xf32> to vector<16x16xf32>
    %103 = arith.subf %99, %102 : vector<16x16xf32>
    %104 = math.exp %103 : vector<16x16xf32>
    %cst_52 = arith.constant dense<0.000000e+00> : vector<16xf32>
    %105 = vector.multi_reduction <add>, %104, %cst_52 [1] : vector<16x16xf32> to vector<16xf32>
    %106 = vector.shape_cast %105 : vector<16xf32> to vector<16x1xf32>
    %107 = tpu.reciprocal %106 {approx = true} : vector<16x1xf32> -> vector<16x1xf32>
    %108 = vector.broadcast %107 : vector<16x1xf32> to vector<16x16xf32>
    %109 = arith.mulf %104, %108 : vector<16x16xf32>
    %110 = arith.truncf %109 : vector<16x16xf32> to vector<16x16xbf16>
    %111 = vector.extract_strided_slice %32 {offsets = [0, 96], sizes = [16, 32], strides = [1, 1]} : vector<16x128xbf16> to vector<16x32xbf16>
    %cst_53 = arith.constant dense<0.000000e+00> : vector<16x32xf32>
    %112 = tpu.matmul %110, %111, %cst_53 {dimension_numbers = #tpu.dot_dimension_numbers<[1], [0], [0], [1], [0, 0, 1, 1], [], []>} : vector<16x16xbf16>, vector<16x32xbf16>, vector<16x32xf32> -> vector<16x32xf32>
    %113 = tpu.concatenate %52, %72, %92, %112 in 1 : vector<16x32xf32>, vector<16x32xf32>, vector<16x32xf32>, vector<16x32xf32> -> vector<16x128xf32>
    %114 = arith.truncf %113 : vector<16x128xf32> to vector<16x128xbf16>
    %c0_54 = arith.constant 0 : index
    %c0_55 = arith.constant 0 : index
    %115 = vector.load %arg13[%c0_54, %c0_55] : memref<128x128xbf16, #tpu.memory_space<vmem>>, vector<128x128xbf16>
    %cst_56 = arith.constant dense<0.000000e+00> : vector<16x128xf32>
    %116 = tpu.matmul %114, %115, %cst_56 {dimension_numbers = #tpu.dot_dimension_numbers<[1], [0], [0], [1], [0, 0, 1, 1], [], []>} : vector<16x128xbf16>, vector<128x128xbf16>, vector<16x128xf32> -> vector<16x128xf32>
    %c0_57 = arith.constant 0 : index
    %c0_58 = arith.constant 0 : index
    %117 = vector.load %arg14[%c0_57, %c0_58] : memref<1x128xf32, #tpu.memory_space<vmem>>, vector<1x128xf32>
    %118 = vector.broadcast %117 : vector<1x128xf32> to vector<16x128xf32>
    %119 = arith.addf %116, %118 : vector<16x128xf32>
    %120 = arith.addf %1, %119 : vector<16x128xf32>
    %cst_59 = arith.constant dense<0.000000e+00> : vector<16xf32>
    %121 = vector.multi_reduction <add>, %120, %cst_59 [1] : vector<16x128xf32> to vector<16xf32>
    %122 = vector.shape_cast %121 : vector<16xf32> to vector<16x1xf32>
    %cst_60 = arith.constant 1.280000e+02 : f32
    %123 = vector.broadcast %cst_60 : f32 to vector<16x1xf32>
    %124 = arith.divf %122, %123 : vector<16x1xf32>
    %125 = vector.broadcast %124 : vector<16x1xf32> to vector<16x128xf32>
    %126 = arith.subf %120, %125 : vector<16x128xf32>
    %127 = arith.mulf %126, %126 : vector<16x128xf32>
    %cst_61 = arith.constant dense<0.000000e+00> : vector<16xf32>
    %128 = vector.multi_reduction <add>, %127, %cst_61 [1] : vector<16x128xf32> to vector<16xf32>
    %129 = vector.shape_cast %128 : vector<16xf32> to vector<16x1xf32>
    %cst_62 = arith.constant 1.280000e+02 : f32
    %130 = vector.broadcast %cst_62 : f32 to vector<16x1xf32>
    %131 = arith.divf %129, %130 : vector<16x1xf32>
    %132 = vector.broadcast %124 : vector<16x1xf32> to vector<16x128xf32>
    %133 = arith.subf %120, %132 : vector<16x128xf32>
    %cst_63 = arith.constant 9.99999974E-6 : f32
    %134 = vector.broadcast %cst_63 : f32 to vector<16x1xf32>
    %135 = arith.addf %131, %134 : vector<16x1xf32>
    %136 = math.rsqrt %135 : vector<16x1xf32>
    %137 = vector.broadcast %136 : vector<16x1xf32> to vector<16x128xf32>
    %138 = arith.mulf %133, %137 : vector<16x128xf32>
    %c0_64 = arith.constant 0 : index
    %c0_65 = arith.constant 0 : index
    %139 = vector.load %arg15[%c0_64, %c0_65] : memref<1x128xf32, #tpu.memory_space<vmem>>, vector<1x128xf32>
    %140 = vector.broadcast %139 : vector<1x128xf32> to vector<16x128xf32>
    %141 = arith.mulf %138, %140 : vector<16x128xf32>
    %c0_66 = arith.constant 0 : index
    %c0_67 = arith.constant 0 : index
    %142 = vector.load %arg16[%c0_66, %c0_67] : memref<1x128xf32, #tpu.memory_space<vmem>>, vector<1x128xf32>
    %143 = vector.broadcast %142 : vector<1x128xf32> to vector<16x128xf32>
    %144 = arith.addf %141, %143 : vector<16x128xf32>
    %c0_68 = arith.constant 0 : index
    %c0_69 = arith.constant 0 : index
    %c0_70 = arith.constant 0 : index
    %145 = vector.load %arg17[%c0_68, %c0_69, %c0_70] : memref<1x16x128xf32, #tpu.memory_space<vmem>>, vector<1x16x128xf32>
    %146 = vector.shape_cast %145 : vector<1x16x128xf32> to vector<16x128xf32>
    %147 = vector.shape_cast %144 : vector<16x128xf32> to vector<1x16x128xf32>
    tpu.vector_store %arg17[%c0_68, %c0_69, %c0_70], %147 {strides = array<i32>} : memref<1x16x128xf32, #tpu.memory_space<vmem>>, vector<1x16x128xf32>,
    return
  }
  func.func @transform_0(%arg0: i32, %arg1: i32) -> (i32, i32, i32) {
    %c0_i32 = arith.constant 0 : i32
    %c0_i32_0 = arith.constant 0 : i32
    return %arg0, %arg1, %c0_i32 : i32, i32, i32
  }
  func.func @transform_1(%arg0: i32, %arg1: i32) -> (i32, i32, i32) {
    %c0_i32 = arith.constant 0 : i32
    %c0_i32_0 = arith.constant 0 : i32
    return %arg0, %arg1, %c0_i32 : i32, i32, i32
  }
  func.func @transform_2(%arg0: i32, %arg1: i32) -> (i32, i32, i32) {
    %c0_i32 = arith.constant 0 : i32
    %c0_i32_0 = arith.constant 0 : i32
    %c0_i32_1 = arith.constant 0 : i32
    return %arg0, %c0_i32, %c0_i32_0 : i32, i32, i32
  }
  func.func @transform_3(%arg0: i32, %arg1: i32) -> (i32, i32, i32) {
    %c0_i32 = arith.constant 0 : i32
    %c0_i32_0 = arith.constant 0 : i32
    %c0_i32_1 = arith.constant 0 : i32
    return %arg0, %c0_i32, %c0_i32_0 : i32, i32, i32
  }
  func.func @transform_4(%arg0: i32, %arg1: i32) -> (i32, i32, i32) {
    %c0_i32 = arith.constant 0 : i32
    %c0_i32_0 = arith.constant 0 : i32
    %c0_i32_1 = arith.constant 0 : i32
    return %arg0, %c0_i32, %c0_i32_0 : i32, i32, i32
  }
  func.func @transform_5(%arg0: i32, %arg1: i32) -> (i32, i32) {
    %c0_i32 = arith.constant 0 : i32
    %c0_i32_0 = arith.constant 0 : i32
    %c0_i32_1 = arith.constant 0 : i32
    return %c0_i32, %c0_i32_0 : i32, i32
  }
  func.func @transform_6(%arg0: i32, %arg1: i32) -> (i32, i32) {
    %c0_i32 = arith.constant 0 : i32
    %c0_i32_0 = arith.constant 0 : i32
    %c0_i32_1 = arith.constant 0 : i32
    return %c0_i32, %c0_i32_0 : i32, i32
  }
  func.func @transform_7(%arg0: i32, %arg1: i32) -> (i32, i32) {
    %c0_i32 = arith.constant 0 : i32
    %c0_i32_0 = arith.constant 0 : i32
    %c0_i32_1 = arith.constant 0 : i32
    return %c0_i32, %c0_i32_0 : i32, i32
  }
  func.func @transform_8(%arg0: i32, %arg1: i32) -> (i32, i32) {
    %c0_i32 = arith.constant 0 : i32
    %c0_i32_0 = arith.constant 0 : i32
    %c0_i32_1 = arith.constant 0 : i32
    return %c0_i32, %c0_i32_0 : i32, i32
  }
  func.func @transform_9(%arg0: i32, %arg1: i32) -> (i32, i32) {
    %c0_i32 = arith.constant 0 : i32
    %c0_i32_0 = arith.constant 0 : i32
    %c0_i32_1 = arith.constant 0 : i32
    return %c0_i32, %c0_i32_0 : i32, i32
  }
  func.func @transform_10(%arg0: i32, %arg1: i32) -> (i32, i32) {
    %c0_i32 = arith.constant 0 : i32
    %c0_i32_0 = arith.constant 0 : i32
    %c0_i32_1 = arith.constant 0 : i32
    return %c0_i32, %c0_i32_0 : i32, i32
  }
  func.func @transform_11(%arg0: i32, %arg1: i32) -> (i32, i32) {
    %c0_i32 = arith.constant 0 : i32
    %c0_i32_0 = arith.constant 0 : i32
    %c0_i32_1 = arith.constant 0 : i32
    return %c0_i32, %c0_i32_0 : i32, i32
  }
  func.func @transform_12(%arg0: i32, %arg1: i32) -> (i32, i32) {
    %c0_i32 = arith.constant 0 : i32
    %c0_i32_0 = arith.constant 0 : i32
    %c0_i32_1 = arith.constant 0 : i32
    return %c0_i32, %c0_i32_0 : i32, i32
  }
  func.func @transform_13(%arg0: i32, %arg1: i32) -> (i32, i32) {
    %c0_i32 = arith.constant 0 : i32
    %c0_i32_0 = arith.constant 0 : i32
    %c0_i32_1 = arith.constant 0 : i32
    return %c0_i32, %c0_i32_0 : i32, i32
  }
  func.func @transform_14(%arg0: i32, %arg1: i32) -> (i32, i32) {
    %c0_i32 = arith.constant 0 : i32
    %c0_i32_0 = arith.constant 0 : i32
    %c0_i32_1 = arith.constant 0 : i32
    return %c0_i32, %c0_i32_0 : i32, i32
  }
  func.func @transform_15(%arg0: i32, %arg1: i32) -> (i32, i32, i32) {
    %c0_i32 = arith.constant 0 : i32
    %c0_i32_0 = arith.constant 0 : i32
    return %arg0, %arg1, %c0_i32 : i32, i32, i32
  }
}

module attributes {stable_mosaic.version = 11 : i64} {
  func.func @_ffn_block_kernel(%arg0: i32, %arg1: memref<16x128xf32, #tpu.memory_space<vmem>>, %arg2: memref<128x256xbf16, #tpu.memory_space<vmem>>, %arg3: memref<1x256xf32, #tpu.memory_space<vmem>>, %arg4: memref<256x128xbf16, #tpu.memory_space<vmem>>, %arg5: memref<1x128xf32, #tpu.memory_space<vmem>>, %arg6: memref<1x128xf32, #tpu.memory_space<vmem>>, %arg7: memref<1x128xf32, #tpu.memory_space<vmem>>, %arg8: memref<16x128xf32, #tpu.memory_space<vmem>>) attributes {dimension_semantics = [#tpu.dimension_semantics<parallel>], iteration_bounds = array<i64: 1>, scalar_prefetch = 0 : i64, scratch_operands = 0 : i64, tpu.core_type = #tpu.core_type<tc>, window_params = [{transform_indices = @transform_0, window_bounds = array<i64: 16, 128>}, {pipeline_mode = #tpu.pipeline_mode<synchronous>, transform_indices = @transform_1, window_bounds = array<i64: 128, 256>}, {pipeline_mode = #tpu.pipeline_mode<synchronous>, transform_indices = @transform_2, window_bounds = array<i64: 1, 256>}, {pipeline_mode = #tpu.pipeline_mode<synchronous>, transform_indices = @transform_3, window_bounds = array<i64: 256, 128>}, {pipeline_mode = #tpu.pipeline_mode<synchronous>, transform_indices = @transform_4, window_bounds = array<i64: 1, 128>}, {pipeline_mode = #tpu.pipeline_mode<synchronous>, transform_indices = @transform_5, window_bounds = array<i64: 1, 128>}, {pipeline_mode = #tpu.pipeline_mode<synchronous>, transform_indices = @transform_6, window_bounds = array<i64: 1, 128>}, {transform_indices = @transform_7, window_bounds = array<i64: 16, 128>}]} {
    %c0 = arith.constant 0 : index
    %c0_0 = arith.constant 0 : index
    %0 = vector.load %arg1[%c0, %c0_0] : memref<16x128xf32, #tpu.memory_space<vmem>>, vector<16x128xf32>
    %1 = arith.truncf %0 : vector<16x128xf32> to vector<16x128xbf16>
    %c0_1 = arith.constant 0 : index
    %c0_2 = arith.constant 0 : index
    %2 = vector.load %arg2[%c0_1, %c0_2] : memref<128x256xbf16, #tpu.memory_space<vmem>>, vector<128x256xbf16>
    %cst = arith.constant dense<0.000000e+00> : vector<16x256xf32>
    %3 = tpu.matmul %1, %2, %cst {dimension_numbers = #tpu.dot_dimension_numbers<[1], [0], [0], [1], [0, 0, 1, 1], [], []>} : vector<16x128xbf16>, vector<128x256xbf16>, vector<16x256xf32> -> vector<16x256xf32>
    %c0_3 = arith.constant 0 : index
    %c0_4 = arith.constant 0 : index
    %4 = vector.load %arg3[%c0_3, %c0_4] : memref<1x256xf32, #tpu.memory_space<vmem>>, vector<1x256xf32>
    %5 = vector.broadcast %4 : vector<1x256xf32> to vector<16x256xf32>
    %6 = arith.addf %3, %5 : vector<16x256xf32>
    %cst_5 = arith.constant 0.000000e+00 : f32
    %7 = vector.broadcast %cst_5 : f32 to vector<16x256xf32>
    %8 = arith.maximumf %6, %7 : vector<16x256xf32>
    %9 = arith.truncf %8 : vector<16x256xf32> to vector<16x256xbf16>
    %c0_6 = arith.constant 0 : index
    %c0_7 = arith.constant 0 : index
    %10 = vector.load %arg4[%c0_6, %c0_7] : memref<256x128xbf16, #tpu.memory_space<vmem>>, vector<256x128xbf16>
    %cst_8 = arith.constant dense<0.000000e+00> : vector<16x128xf32>
    %11 = tpu.matmul %9, %10, %cst_8 {dimension_numbers = #tpu.dot_dimension_numbers<[1], [0], [0], [1], [0, 0, 1, 1], [], []>} : vector<16x256xbf16>, vector<256x128xbf16>, vector<16x128xf32> -> vector<16x128xf32>
    %12 = arith.addf %0, %11 : vector<16x128xf32>
    %c0_9 = arith.constant 0 : index
    %c0_10 = arith.constant 0 : index
    %13 = vector.load %arg5[%c0_9, %c0_10] : memref<1x128xf32, #tpu.memory_space<vmem>>, vector<1x128xf32>
    %14 = vector.broadcast %13 : vector<1x128xf32> to vector<16x128xf32>
    %15 = arith.addf %12, %14 : vector<16x128xf32>
    %cst_11 = arith.constant dense<0.000000e+00> : vector<16xf32>
    %16 = vector.multi_reduction <add>, %15, %cst_11 [1] : vector<16x128xf32> to vector<16xf32>
    %17 = vector.shape_cast %16 : vector<16xf32> to vector<16x1xf32>
    %cst_12 = arith.constant 1.280000e+02 : f32
    %18 = vector.broadcast %cst_12 : f32 to vector<16x1xf32>
    %19 = arith.divf %17, %18 : vector<16x1xf32>
    %20 = vector.broadcast %19 : vector<16x1xf32> to vector<16x128xf32>
    %21 = arith.subf %15, %20 : vector<16x128xf32>
    %22 = arith.mulf %21, %21 : vector<16x128xf32>
    %cst_13 = arith.constant dense<0.000000e+00> : vector<16xf32>
    %23 = vector.multi_reduction <add>, %22, %cst_13 [1] : vector<16x128xf32> to vector<16xf32>
    %24 = vector.shape_cast %23 : vector<16xf32> to vector<16x1xf32>
    %cst_14 = arith.constant 1.280000e+02 : f32
    %25 = vector.broadcast %cst_14 : f32 to vector<16x1xf32>
    %26 = arith.divf %24, %25 : vector<16x1xf32>
    %27 = vector.broadcast %19 : vector<16x1xf32> to vector<16x128xf32>
    %28 = arith.subf %15, %27 : vector<16x128xf32>
    %cst_15 = arith.constant 9.99999974E-6 : f32
    %29 = vector.broadcast %cst_15 : f32 to vector<16x1xf32>
    %30 = arith.addf %26, %29 : vector<16x1xf32>
    %31 = math.rsqrt %30 : vector<16x1xf32>
    %32 = vector.broadcast %31 : vector<16x1xf32> to vector<16x128xf32>
    %33 = arith.mulf %28, %32 : vector<16x128xf32>
    %c0_16 = arith.constant 0 : index
    %c0_17 = arith.constant 0 : index
    %34 = vector.load %arg6[%c0_16, %c0_17] : memref<1x128xf32, #tpu.memory_space<vmem>>, vector<1x128xf32>
    %35 = vector.broadcast %34 : vector<1x128xf32> to vector<16x128xf32>
    %36 = arith.mulf %33, %35 : vector<16x128xf32>
    %c0_18 = arith.constant 0 : index
    %c0_19 = arith.constant 0 : index
    %37 = vector.load %arg7[%c0_18, %c0_19] : memref<1x128xf32, #tpu.memory_space<vmem>>, vector<1x128xf32>
    %38 = vector.broadcast %37 : vector<1x128xf32> to vector<16x128xf32>
    %39 = arith.addf %36, %38 : vector<16x128xf32>
    %c0_20 = arith.constant 0 : index
    %c0_21 = arith.constant 0 : index
    %40 = vector.load %arg8[%c0_20, %c0_21] : memref<16x128xf32, #tpu.memory_space<vmem>>, vector<16x128xf32>
    tpu.vector_store %arg8[%c0_20, %c0_21], %39 {strides = array<i32>} : memref<16x128xf32, #tpu.memory_space<vmem>>, vector<16x128xf32>,
    return
  }
  func.func @transform_0(%arg0: i32) -> (i32, i32) {
    %c0_i32 = arith.constant 0 : i32
    %c0_i32_0 = arith.constant 0 : i32
    return %arg0, %c0_i32 : i32, i32
  }
  func.func @transform_1(%arg0: i32) -> (i32, i32) {
    %c0_i32 = arith.constant 0 : i32
    %c0_i32_0 = arith.constant 0 : i32
    %c0_i32_1 = arith.constant 0 : i32
    return %c0_i32, %c0_i32_0 : i32, i32
  }
  func.func @transform_2(%arg0: i32) -> (i32, i32) {
    %c0_i32 = arith.constant 0 : i32
    %c0_i32_0 = arith.constant 0 : i32
    %c0_i32_1 = arith.constant 0 : i32
    return %c0_i32, %c0_i32_0 : i32, i32
  }
  func.func @transform_3(%arg0: i32) -> (i32, i32) {
    %c0_i32 = arith.constant 0 : i32
    %c0_i32_0 = arith.constant 0 : i32
    %c0_i32_1 = arith.constant 0 : i32
    return %c0_i32, %c0_i32_0 : i32, i32
  }
  func.func @transform_4(%arg0: i32) -> (i32, i32) {
    %c0_i32 = arith.constant 0 : i32
    %c0_i32_0 = arith.constant 0 : i32
    %c0_i32_1 = arith.constant 0 : i32
    return %c0_i32, %c0_i32_0 : i32, i32
  }
  func.func @transform_5(%arg0: i32) -> (i32, i32) {
    %c0_i32 = arith.constant 0 : i32
    %c0_i32_0 = arith.constant 0 : i32
    %c0_i32_1 = arith.constant 0 : i32
    return %c0_i32, %c0_i32_0 : i32, i32
  }
  func.func @transform_6(%arg0: i32) -> (i32, i32) {
    %c0_i32 = arith.constant 0 : i32
    %c0_i32_0 = arith.constant 0 : i32
    %c0_i32_1 = arith.constant 0 : i32
    return %c0_i32, %c0_i32_0 : i32, i32
  }
  func.func @transform_7(%arg0: i32) -> (i32, i32) {
    %c0_i32 = arith.constant 0 : i32
    %c0_i32_0 = arith.constant 0 : i32
    return %arg0, %c0_i32 : i32, i32
  }
}

module attributes {stable_mosaic.version = 11 : i64} {
  func.func @_attn_block_kernel(%arg0: i32, %arg1: i32, %arg2: memref<1x8x128xf32, #tpu.memory_space<vmem>>, %arg3: memref<1x8x128xf32, #tpu.memory_space<vmem>>, %arg4: memref<1x8x128xf32, #tpu.memory_space<vmem>>, %arg5: memref<1x8x128xf32, #tpu.memory_space<vmem>>, %arg6: memref<128x128xbf16, #tpu.memory_space<vmem>>, %arg7: memref<1x128xf32, #tpu.memory_space<vmem>>, %arg8: memref<128x128xbf16, #tpu.memory_space<vmem>>, %arg9: memref<1x128xf32, #tpu.memory_space<vmem>>, %arg10: memref<128x128xbf16, #tpu.memory_space<vmem>>, %arg11: memref<1x128xf32, #tpu.memory_space<vmem>>, %arg12: memref<128x128xbf16, #tpu.memory_space<vmem>>, %arg13: memref<1x128xf32, #tpu.memory_space<vmem>>, %arg14: memref<1x128xf32, #tpu.memory_space<vmem>>, %arg15: memref<1x128xf32, #tpu.memory_space<vmem>>, %arg16: memref<1x8x128xf32, #tpu.memory_space<vmem>>) attributes {dimension_semantics = [#tpu.dimension_semantics<parallel>, #tpu.dimension_semantics<parallel>], iteration_bounds = array<i64: 2, 1>, scalar_prefetch = 0 : i64, scratch_operands = 0 : i64, tpu.core_type = #tpu.core_type<tc>, window_params = [{transform_indices = @transform_0, window_bounds = array<i64: 1, 8, 128>}, {transform_indices = @transform_1, window_bounds = array<i64: 1, 8, 128>}, {transform_indices = @transform_2, window_bounds = array<i64: 1, 8, 128>}, {transform_indices = @transform_3, window_bounds = array<i64: 1, 8, 128>}, {pipeline_mode = #tpu.pipeline_mode<synchronous>, transform_indices = @transform_4, window_bounds = array<i64: 128, 128>}, {pipeline_mode = #tpu.pipeline_mode<synchronous>, transform_indices = @transform_5, window_bounds = array<i64: 1, 128>}, {pipeline_mode = #tpu.pipeline_mode<synchronous>, transform_indices = @transform_6, window_bounds = array<i64: 128, 128>}, {pipeline_mode = #tpu.pipeline_mode<synchronous>, transform_indices = @transform_7, window_bounds = array<i64: 1, 128>}, {pipeline_mode = #tpu.pipeline_mode<synchronous>, transform_indices = @transform_8, window_bounds = array<i64: 128, 128>}, {pipeline_mode = #tpu.pipeline_mode<synchronous>, transform_indices = @transform_9, window_bounds = array<i64: 1, 128>}, {pipeline_mode = #tpu.pipeline_mode<synchronous>, transform_indices = @transform_10, window_bounds = array<i64: 128, 128>}, {pipeline_mode = #tpu.pipeline_mode<synchronous>, transform_indices = @transform_11, window_bounds = array<i64: 1, 128>}, {pipeline_mode = #tpu.pipeline_mode<synchronous>, transform_indices = @transform_12, window_bounds = array<i64: 1, 128>}, {pipeline_mode = #tpu.pipeline_mode<synchronous>, transform_indices = @transform_13, window_bounds = array<i64: 1, 128>}, {transform_indices = @transform_14, window_bounds = array<i64: 1, 8, 128>}]} {
    %c0 = arith.constant 0 : index
    %c0_0 = arith.constant 0 : index
    %c0_1 = arith.constant 0 : index
    %0 = vector.load %arg2[%c0, %c0_0, %c0_1] : memref<1x8x128xf32, #tpu.memory_space<vmem>>, vector<1x8x128xf32>
    %1 = vector.shape_cast %0 : vector<1x8x128xf32> to vector<8x128xf32>
    %c0_2 = arith.constant 0 : index
    %c0_3 = arith.constant 0 : index
    %c0_4 = arith.constant 0 : index
    %2 = vector.load %arg3[%c0_2, %c0_3, %c0_4] : memref<1x8x128xf32, #tpu.memory_space<vmem>>, vector<1x8x128xf32>
    %3 = vector.shape_cast %2 : vector<1x8x128xf32> to vector<8x128xf32>
    %4 = arith.addf %1, %3 : vector<8x128xf32>
    %c0_5 = arith.constant 0 : index
    %c0_6 = arith.constant 0 : index
    %c0_7 = arith.constant 0 : index
    %5 = vector.load %arg4[%c0_5, %c0_6, %c0_7] : memref<1x8x128xf32, #tpu.memory_space<vmem>>, vector<1x8x128xf32>
    %6 = vector.shape_cast %5 : vector<1x8x128xf32> to vector<8x128xf32>
    %c0_8 = arith.constant 0 : index
    %c0_9 = arith.constant 0 : index
    %c0_10 = arith.constant 0 : index
    %7 = vector.load %arg5[%c0_8, %c0_9, %c0_10] : memref<1x8x128xf32, #tpu.memory_space<vmem>>, vector<1x8x128xf32>
    %8 = vector.shape_cast %7 : vector<1x8x128xf32> to vector<8x128xf32>
    %9 = arith.addf %6, %8 : vector<8x128xf32>
    %10 = arith.truncf %4 : vector<8x128xf32> to vector<8x128xbf16>
    %c0_11 = arith.constant 0 : index
    %c0_12 = arith.constant 0 : index
    %11 = vector.load %arg6[%c0_11, %c0_12] : memref<128x128xbf16, #tpu.memory_space<vmem>>, vector<128x128xbf16>
    %cst = arith.constant dense<0.000000e+00> : vector<8x128xf32>
    %12 = tpu.matmul %10, %11, %cst {dimension_numbers = #tpu.dot_dimension_numbers<[1], [0], [0], [1], [0, 0, 1, 1], [], []>} : vector<8x128xbf16>, vector<128x128xbf16>, vector<8x128xf32> -> vector<8x128xf32>
    %c0_13 = arith.constant 0 : index
    %c0_14 = arith.constant 0 : index
    %13 = vector.load %arg7[%c0_13, %c0_14] : memref<1x128xf32, #tpu.memory_space<vmem>>, vector<1x128xf32>
    %14 = vector.broadcast %13 : vector<1x128xf32> to vector<8x128xf32>
    %15 = arith.addf %12, %14 : vector<8x128xf32>
    %16 = arith.truncf %9 : vector<8x128xf32> to vector<8x128xbf16>
    %c0_15 = arith.constant 0 : index
    %c0_16 = arith.constant 0 : index
    %17 = vector.load %arg8[%c0_15, %c0_16] : memref<128x128xbf16, #tpu.memory_space<vmem>>, vector<128x128xbf16>
    %cst_17 = arith.constant dense<0.000000e+00> : vector<8x128xf32>
    %18 = tpu.matmul %16, %17, %cst_17 {dimension_numbers = #tpu.dot_dimension_numbers<[1], [0], [0], [1], [0, 0, 1, 1], [], []>} : vector<8x128xbf16>, vector<128x128xbf16>, vector<8x128xf32> -> vector<8x128xf32>
    %c0_18 = arith.constant 0 : index
    %c0_19 = arith.constant 0 : index
    %19 = vector.load %arg9[%c0_18, %c0_19] : memref<1x128xf32, #tpu.memory_space<vmem>>, vector<1x128xf32>
    %20 = vector.broadcast %19 : vector<1x128xf32> to vector<8x128xf32>
    %21 = arith.addf %18, %20 : vector<8x128xf32>
    %22 = arith.truncf %6 : vector<8x128xf32> to vector<8x128xbf16>
    %c0_20 = arith.constant 0 : index
    %c0_21 = arith.constant 0 : index
    %23 = vector.load %arg10[%c0_20, %c0_21] : memref<128x128xbf16, #tpu.memory_space<vmem>>, vector<128x128xbf16>
    %cst_22 = arith.constant dense<0.000000e+00> : vector<8x128xf32>
    %24 = tpu.matmul %22, %23, %cst_22 {dimension_numbers = #tpu.dot_dimension_numbers<[1], [0], [0], [1], [0, 0, 1, 1], [], []>} : vector<8x128xbf16>, vector<128x128xbf16>, vector<8x128xf32> -> vector<8x128xf32>
    %c0_23 = arith.constant 0 : index
    %c0_24 = arith.constant 0 : index
    %25 = vector.load %arg11[%c0_23, %c0_24] : memref<1x128xf32, #tpu.memory_space<vmem>>, vector<1x128xf32>
    %26 = vector.broadcast %25 : vector<1x128xf32> to vector<8x128xf32>
    %27 = arith.addf %24, %26 : vector<8x128xf32>
    %cst_25 = arith.constant 0.176776692 : f32
    %28 = vector.broadcast %cst_25 : f32 to vector<8x128xf32>
    %29 = arith.mulf %15, %28 : vector<8x128xf32>
    %30 = arith.truncf %29 : vector<8x128xf32> to vector<8x128xbf16>
    %31 = arith.truncf %21 : vector<8x128xf32> to vector<8x128xbf16>
    %32 = arith.truncf %27 : vector<8x128xf32> to vector<8x128xbf16>
    %33 = vector.extract_strided_slice %30 {offsets = [0, 0], sizes = [8, 32], strides = [1, 1]} : vector<8x128xbf16> to vector<8x32xbf16>
    %34 = vector.extract_strided_slice %31 {offsets = [0, 0], sizes = [8, 32], strides = [1, 1]} : vector<8x128xbf16> to vector<8x32xbf16>
    %cst_26 = arith.constant dense<0.000000e+00> : vector<8x8xf32>
    %35 = tpu.matmul %33, %34, %cst_26 {dimension_numbers = #tpu.dot_dimension_numbers<[1], [1], [0], [0], [0, 0, 1, 0], [], []>} : vector<8x32xbf16>, vector<8x32xbf16>, vector<8x8xf32> -> vector<8x8xf32>
    %cst_27 = arith.constant dense<0xFF800000> : vector<8xf32>
    %36 = vector.multi_reduction <maximumf>, %35, %cst_27 [1] : vector<8x8xf32> to vector<8xf32>
    %37 = vector.shape_cast %36 : vector<8xf32> to vector<8x1xf32>
    %38 = vector.broadcast %37 : vector<8x1xf32> to vector<8x8xf32>
    %39 = arith.subf %35, %38 : vector<8x8xf32>
    %40 = math.exp %39 : vector<8x8xf32>
    %cst_28 = arith.constant dense<0.000000e+00> : vector<8xf32>
    %41 = vector.multi_reduction <add>, %40, %cst_28 [1] : vector<8x8xf32> to vector<8xf32>
    %42 = vector.shape_cast %41 : vector<8xf32> to vector<8x1xf32>
    %43 = tpu.reciprocal %42 {approx = true} : vector<8x1xf32> -> vector<8x1xf32>
    %44 = vector.broadcast %43 : vector<8x1xf32> to vector<8x8xf32>
    %45 = arith.mulf %40, %44 : vector<8x8xf32>
    %46 = arith.truncf %45 : vector<8x8xf32> to vector<8x8xbf16>
    %47 = vector.extract_strided_slice %32 {offsets = [0, 0], sizes = [8, 32], strides = [1, 1]} : vector<8x128xbf16> to vector<8x32xbf16>
    %cst_29 = arith.constant dense<0.000000e+00> : vector<8x32xf32>
    %48 = tpu.matmul %46, %47, %cst_29 {dimension_numbers = #tpu.dot_dimension_numbers<[1], [0], [0], [1], [0, 0, 1, 1], [], []>} : vector<8x8xbf16>, vector<8x32xbf16>, vector<8x32xf32> -> vector<8x32xf32>
    %49 = vector.extract_strided_slice %30 {offsets = [0, 32], sizes = [8, 32], strides = [1, 1]} : vector<8x128xbf16> to vector<8x32xbf16>
    %50 = vector.extract_strided_slice %31 {offsets = [0, 32], sizes = [8, 32], strides = [1, 1]} : vector<8x128xbf16> to vector<8x32xbf16>
    %cst_30 = arith.constant dense<0.000000e+00> : vector<8x8xf32>
    %51 = tpu.matmul %49, %50, %cst_30 {dimension_numbers = #tpu.dot_dimension_numbers<[1], [1], [0], [0], [0, 0, 1, 0], [], []>} : vector<8x32xbf16>, vector<8x32xbf16>, vector<8x8xf32> -> vector<8x8xf32>
    %cst_31 = arith.constant dense<0xFF800000> : vector<8xf32>
    %52 = vector.multi_reduction <maximumf>, %51, %cst_31 [1] : vector<8x8xf32> to vector<8xf32>
    %53 = vector.shape_cast %52 : vector<8xf32> to vector<8x1xf32>
    %54 = vector.broadcast %53 : vector<8x1xf32> to vector<8x8xf32>
    %55 = arith.subf %51, %54 : vector<8x8xf32>
    %56 = math.exp %55 : vector<8x8xf32>
    %cst_32 = arith.constant dense<0.000000e+00> : vector<8xf32>
    %57 = vector.multi_reduction <add>, %56, %cst_32 [1] : vector<8x8xf32> to vector<8xf32>
    %58 = vector.shape_cast %57 : vector<8xf32> to vector<8x1xf32>
    %59 = tpu.reciprocal %58 {approx = true} : vector<8x1xf32> -> vector<8x1xf32>
    %60 = vector.broadcast %59 : vector<8x1xf32> to vector<8x8xf32>
    %61 = arith.mulf %56, %60 : vector<8x8xf32>
    %62 = arith.truncf %61 : vector<8x8xf32> to vector<8x8xbf16>
    %63 = vector.extract_strided_slice %32 {offsets = [0, 32], sizes = [8, 32], strides = [1, 1]} : vector<8x128xbf16> to vector<8x32xbf16>
    %cst_33 = arith.constant dense<0.000000e+00> : vector<8x32xf32>
    %64 = tpu.matmul %62, %63, %cst_33 {dimension_numbers = #tpu.dot_dimension_numbers<[1], [0], [0], [1], [0, 0, 1, 1], [], []>} : vector<8x8xbf16>, vector<8x32xbf16>, vector<8x32xf32> -> vector<8x32xf32>
    %65 = vector.extract_strided_slice %30 {offsets = [0, 64], sizes = [8, 32], strides = [1, 1]} : vector<8x128xbf16> to vector<8x32xbf16>
    %66 = vector.extract_strided_slice %31 {offsets = [0, 64], sizes = [8, 32], strides = [1, 1]} : vector<8x128xbf16> to vector<8x32xbf16>
    %cst_34 = arith.constant dense<0.000000e+00> : vector<8x8xf32>
    %67 = tpu.matmul %65, %66, %cst_34 {dimension_numbers = #tpu.dot_dimension_numbers<[1], [1], [0], [0], [0, 0, 1, 0], [], []>} : vector<8x32xbf16>, vector<8x32xbf16>, vector<8x8xf32> -> vector<8x8xf32>
    %cst_35 = arith.constant dense<0xFF800000> : vector<8xf32>
    %68 = vector.multi_reduction <maximumf>, %67, %cst_35 [1] : vector<8x8xf32> to vector<8xf32>
    %69 = vector.shape_cast %68 : vector<8xf32> to vector<8x1xf32>
    %70 = vector.broadcast %69 : vector<8x1xf32> to vector<8x8xf32>
    %71 = arith.subf %67, %70 : vector<8x8xf32>
    %72 = math.exp %71 : vector<8x8xf32>
    %cst_36 = arith.constant dense<0.000000e+00> : vector<8xf32>
    %73 = vector.multi_reduction <add>, %72, %cst_36 [1] : vector<8x8xf32> to vector<8xf32>
    %74 = vector.shape_cast %73 : vector<8xf32> to vector<8x1xf32>
    %75 = tpu.reciprocal %74 {approx = true} : vector<8x1xf32> -> vector<8x1xf32>
    %76 = vector.broadcast %75 : vector<8x1xf32> to vector<8x8xf32>
    %77 = arith.mulf %72, %76 : vector<8x8xf32>
    %78 = arith.truncf %77 : vector<8x8xf32> to vector<8x8xbf16>
    %79 = vector.extract_strided_slice %32 {offsets = [0, 64], sizes = [8, 32], strides = [1, 1]} : vector<8x128xbf16> to vector<8x32xbf16>
    %cst_37 = arith.constant dense<0.000000e+00> : vector<8x32xf32>
    %80 = tpu.matmul %78, %79, %cst_37 {dimension_numbers = #tpu.dot_dimension_numbers<[1], [0], [0], [1], [0, 0, 1, 1], [], []>} : vector<8x8xbf16>, vector<8x32xbf16>, vector<8x32xf32> -> vector<8x32xf32>
    %81 = vector.extract_strided_slice %30 {offsets = [0, 96], sizes = [8, 32], strides = [1, 1]} : vector<8x128xbf16> to vector<8x32xbf16>
    %82 = vector.extract_strided_slice %31 {offsets = [0, 96], sizes = [8, 32], strides = [1, 1]} : vector<8x128xbf16> to vector<8x32xbf16>
    %cst_38 = arith.constant dense<0.000000e+00> : vector<8x8xf32>
    %83 = tpu.matmul %81, %82, %cst_38 {dimension_numbers = #tpu.dot_dimension_numbers<[1], [1], [0], [0], [0, 0, 1, 0], [], []>} : vector<8x32xbf16>, vector<8x32xbf16>, vector<8x8xf32> -> vector<8x8xf32>
    %cst_39 = arith.constant dense<0xFF800000> : vector<8xf32>
    %84 = vector.multi_reduction <maximumf>, %83, %cst_39 [1] : vector<8x8xf32> to vector<8xf32>
    %85 = vector.shape_cast %84 : vector<8xf32> to vector<8x1xf32>
    %86 = vector.broadcast %85 : vector<8x1xf32> to vector<8x8xf32>
    %87 = arith.subf %83, %86 : vector<8x8xf32>
    %88 = math.exp %87 : vector<8x8xf32>
    %cst_40 = arith.constant dense<0.000000e+00> : vector<8xf32>
    %89 = vector.multi_reduction <add>, %88, %cst_40 [1] : vector<8x8xf32> to vector<8xf32>
    %90 = vector.shape_cast %89 : vector<8xf32> to vector<8x1xf32>
    %91 = tpu.reciprocal %90 {approx = true} : vector<8x1xf32> -> vector<8x1xf32>
    %92 = vector.broadcast %91 : vector<8x1xf32> to vector<8x8xf32>
    %93 = arith.mulf %88, %92 : vector<8x8xf32>
    %94 = arith.truncf %93 : vector<8x8xf32> to vector<8x8xbf16>
    %95 = vector.extract_strided_slice %32 {offsets = [0, 96], sizes = [8, 32], strides = [1, 1]} : vector<8x128xbf16> to vector<8x32xbf16>
    %cst_41 = arith.constant dense<0.000000e+00> : vector<8x32xf32>
    %96 = tpu.matmul %94, %95, %cst_41 {dimension_numbers = #tpu.dot_dimension_numbers<[1], [0], [0], [1], [0, 0, 1, 1], [], []>} : vector<8x8xbf16>, vector<8x32xbf16>, vector<8x32xf32> -> vector<8x32xf32>
    %97 = tpu.concatenate %48, %64, %80, %96 in 1 : vector<8x32xf32>, vector<8x32xf32>, vector<8x32xf32>, vector<8x32xf32> -> vector<8x128xf32>
    %98 = arith.truncf %97 : vector<8x128xf32> to vector<8x128xbf16>
    %c0_42 = arith.constant 0 : index
    %c0_43 = arith.constant 0 : index
    %99 = vector.load %arg12[%c0_42, %c0_43] : memref<128x128xbf16, #tpu.memory_space<vmem>>, vector<128x128xbf16>
    %cst_44 = arith.constant dense<0.000000e+00> : vector<8x128xf32>
    %100 = tpu.matmul %98, %99, %cst_44 {dimension_numbers = #tpu.dot_dimension_numbers<[1], [0], [0], [1], [0, 0, 1, 1], [], []>} : vector<8x128xbf16>, vector<128x128xbf16>, vector<8x128xf32> -> vector<8x128xf32>
    %c0_45 = arith.constant 0 : index
    %c0_46 = arith.constant 0 : index
    %101 = vector.load %arg13[%c0_45, %c0_46] : memref<1x128xf32, #tpu.memory_space<vmem>>, vector<1x128xf32>
    %102 = vector.broadcast %101 : vector<1x128xf32> to vector<8x128xf32>
    %103 = arith.addf %100, %102 : vector<8x128xf32>
    %104 = arith.addf %1, %103 : vector<8x128xf32>
    %cst_47 = arith.constant dense<0.000000e+00> : vector<8xf32>
    %105 = vector.multi_reduction <add>, %104, %cst_47 [1] : vector<8x128xf32> to vector<8xf32>
    %106 = vector.shape_cast %105 : vector<8xf32> to vector<8x1xf32>
    %cst_48 = arith.constant 1.280000e+02 : f32
    %107 = vector.broadcast %cst_48 : f32 to vector<8x1xf32>
    %108 = arith.divf %106, %107 : vector<8x1xf32>
    %109 = vector.broadcast %108 : vector<8x1xf32> to vector<8x128xf32>
    %110 = arith.subf %104, %109 : vector<8x128xf32>
    %111 = arith.mulf %110, %110 : vector<8x128xf32>
    %cst_49 = arith.constant dense<0.000000e+00> : vector<8xf32>
    %112 = vector.multi_reduction <add>, %111, %cst_49 [1] : vector<8x128xf32> to vector<8xf32>
    %113 = vector.shape_cast %112 : vector<8xf32> to vector<8x1xf32>
    %cst_50 = arith.constant 1.280000e+02 : f32
    %114 = vector.broadcast %cst_50 : f32 to vector<8x1xf32>
    %115 = arith.divf %113, %114 : vector<8x1xf32>
    %116 = vector.broadcast %108 : vector<8x1xf32> to vector<8x128xf32>
    %117 = arith.subf %104, %116 : vector<8x128xf32>
    %cst_51 = arith.constant 9.99999974E-6 : f32
    %118 = vector.broadcast %cst_51 : f32 to vector<8x1xf32>
    %119 = arith.addf %115, %118 : vector<8x1xf32>
    %120 = math.rsqrt %119 : vector<8x1xf32>
    %121 = vector.broadcast %120 : vector<8x1xf32> to vector<8x128xf32>
    %122 = arith.mulf %117, %121 : vector<8x128xf32>
    %c0_52 = arith.constant 0 : index
    %c0_53 = arith.constant 0 : index
    %123 = vector.load %arg14[%c0_52, %c0_53] : memref<1x128xf32, #tpu.memory_space<vmem>>, vector<1x128xf32>
    %124 = vector.broadcast %123 : vector<1x128xf32> to vector<8x128xf32>
    %125 = arith.mulf %122, %124 : vector<8x128xf32>
    %c0_54 = arith.constant 0 : index
    %c0_55 = arith.constant 0 : index
    %126 = vector.load %arg15[%c0_54, %c0_55] : memref<1x128xf32, #tpu.memory_space<vmem>>, vector<1x128xf32>
    %127 = vector.broadcast %126 : vector<1x128xf32> to vector<8x128xf32>
    %128 = arith.addf %125, %127 : vector<8x128xf32>
    %c0_56 = arith.constant 0 : index
    %c0_57 = arith.constant 0 : index
    %c0_58 = arith.constant 0 : index
    %129 = vector.load %arg16[%c0_56, %c0_57, %c0_58] : memref<1x8x128xf32, #tpu.memory_space<vmem>>, vector<1x8x128xf32>
    %130 = vector.shape_cast %129 : vector<1x8x128xf32> to vector<8x128xf32>
    %131 = vector.shape_cast %128 : vector<8x128xf32> to vector<1x8x128xf32>
    tpu.vector_store %arg16[%c0_56, %c0_57, %c0_58], %131 {strides = array<i32>} : memref<1x8x128xf32, #tpu.memory_space<vmem>>, vector<1x8x128xf32>,
    return
  }
  func.func @transform_0(%arg0: i32, %arg1: i32) -> (i32, i32, i32) {
    %c0_i32 = arith.constant 0 : i32
    %c0_i32_0 = arith.constant 0 : i32
    return %arg0, %arg1, %c0_i32 : i32, i32, i32
  }
  func.func @transform_1(%arg0: i32, %arg1: i32) -> (i32, i32, i32) {
    %c0_i32 = arith.constant 0 : i32
    %c0_i32_0 = arith.constant 0 : i32
    return %arg0, %arg1, %c0_i32 : i32, i32, i32
  }
  func.func @transform_2(%arg0: i32, %arg1: i32) -> (i32, i32, i32) {
    %c0_i32 = arith.constant 0 : i32
    %c0_i32_0 = arith.constant 0 : i32
    %c0_i32_1 = arith.constant 0 : i32
    return %arg0, %c0_i32, %c0_i32_0 : i32, i32, i32
  }
  func.func @transform_3(%arg0: i32, %arg1: i32) -> (i32, i32, i32) {
    %c0_i32 = arith.constant 0 : i32
    %c0_i32_0 = arith.constant 0 : i32
    %c0_i32_1 = arith.constant 0 : i32
    return %arg0, %c0_i32, %c0_i32_0 : i32, i32, i32
  }
  func.func @transform_4(%arg0: i32, %arg1: i32) -> (i32, i32) {
    %c0_i32 = arith.constant 0 : i32
    %c0_i32_0 = arith.constant 0 : i32
    %c0_i32_1 = arith.constant 0 : i32
    return %c0_i32, %c0_i32_0 : i32, i32
  }
  func.func @transform_5(%arg0: i32, %arg1: i32) -> (i32, i32) {
    %c0_i32 = arith.constant 0 : i32
    %c0_i32_0 = arith.constant 0 : i32
    %c0_i32_1 = arith.constant 0 : i32
    return %c0_i32, %c0_i32_0 : i32, i32
  }
  func.func @transform_6(%arg0: i32, %arg1: i32) -> (i32, i32) {
    %c0_i32 = arith.constant 0 : i32
    %c0_i32_0 = arith.constant 0 : i32
    %c0_i32_1 = arith.constant 0 : i32
    return %c0_i32, %c0_i32_0 : i32, i32
  }
  func.func @transform_7(%arg0: i32, %arg1: i32) -> (i32, i32) {
    %c0_i32 = arith.constant 0 : i32
    %c0_i32_0 = arith.constant 0 : i32
    %c0_i32_1 = arith.constant 0 : i32
    return %c0_i32, %c0_i32_0 : i32, i32
  }
  func.func @transform_8(%arg0: i32, %arg1: i32) -> (i32, i32) {
    %c0_i32 = arith.constant 0 : i32
    %c0_i32_0 = arith.constant 0 : i32
    %c0_i32_1 = arith.constant 0 : i32
    return %c0_i32, %c0_i32_0 : i32, i32
  }
  func.func @transform_9(%arg0: i32, %arg1: i32) -> (i32, i32) {
    %c0_i32 = arith.constant 0 : i32
    %c0_i32_0 = arith.constant 0 : i32
    %c0_i32_1 = arith.constant 0 : i32
    return %c0_i32, %c0_i32_0 : i32, i32
  }
  func.func @transform_10(%arg0: i32, %arg1: i32) -> (i32, i32) {
    %c0_i32 = arith.constant 0 : i32
    %c0_i32_0 = arith.constant 0 : i32
    %c0_i32_1 = arith.constant 0 : i32
    return %c0_i32, %c0_i32_0 : i32, i32
  }
  func.func @transform_11(%arg0: i32, %arg1: i32) -> (i32, i32) {
    %c0_i32 = arith.constant 0 : i32
    %c0_i32_0 = arith.constant 0 : i32
    %c0_i32_1 = arith.constant 0 : i32
    return %c0_i32, %c0_i32_0 : i32, i32
  }
  func.func @transform_12(%arg0: i32, %arg1: i32) -> (i32, i32) {
    %c0_i32 = arith.constant 0 : i32
    %c0_i32_0 = arith.constant 0 : i32
    %c0_i32_1 = arith.constant 0 : i32
    return %c0_i32, %c0_i32_0 : i32, i32
  }
  func.func @transform_13(%arg0: i32, %arg1: i32) -> (i32, i32) {
    %c0_i32 = arith.constant 0 : i32
    %c0_i32_0 = arith.constant 0 : i32
    %c0_i32_1 = arith.constant 0 : i32
    return %c0_i32, %c0_i32_0 : i32, i32
  }
  func.func @transform_14(%arg0: i32, %arg1: i32) -> (i32, i32, i32) {
    %c0_i32 = arith.constant 0 : i32
    %c0_i32_0 = arith.constant 0 : i32
    return %arg0, %arg1, %c0_i32 : i32, i32, i32
  }
}

module attributes {stable_mosaic.version = 11 : i64} {
  func.func @_logits_kernel(%arg0: i32, %arg1: memref<1x8x128xf32, #tpu.memory_space<vmem>>, %arg2: memref<1x16x128xf32, #tpu.memory_space<vmem>>, %arg3: memref<1x8x16xf32, #tpu.memory_space<vmem>>, %arg4: memref<1x8x1xf32, #tpu.memory_space<vmem>>) attributes {dimension_semantics = [#tpu.dimension_semantics<parallel>], iteration_bounds = array<i64: 2>, scalar_prefetch = 0 : i64, scratch_operands = 0 : i64, tpu.core_type = #tpu.core_type<tc>, window_params = [{transform_indices = @transform_0, window_bounds = array<i64: 1, 8, 128>}, {transform_indices = @transform_1, window_bounds = array<i64: 1, 16, 128>}, {transform_indices = @transform_2, window_bounds = array<i64: 1, 8, 16>}, {transform_indices = @transform_3, window_bounds = array<i64: 1, 8, 1>}]} {
    %c0 = arith.constant 0 : index
    %c0_0 = arith.constant 0 : index
    %c0_1 = arith.constant 0 : index
    %0 = vector.load %arg1[%c0, %c0_0, %c0_1] : memref<1x8x128xf32, #tpu.memory_space<vmem>>, vector<1x8x128xf32>
    %1 = vector.shape_cast %0 : vector<1x8x128xf32> to vector<8x128xf32>
    %2 = arith.truncf %1 : vector<8x128xf32> to vector<8x128xbf16>
    %c0_2 = arith.constant 0 : index
    %c0_3 = arith.constant 0 : index
    %c0_4 = arith.constant 0 : index
    %3 = vector.load %arg2[%c0_2, %c0_3, %c0_4] : memref<1x16x128xf32, #tpu.memory_space<vmem>>, vector<1x16x128xf32>
    %4 = vector.shape_cast %3 : vector<1x16x128xf32> to vector<16x128xf32>
    %5 = arith.truncf %4 : vector<16x128xf32> to vector<16x128xbf16>
    %cst = arith.constant dense<0.000000e+00> : vector<8x16xf32>
    %6 = tpu.matmul %2, %5, %cst {dimension_numbers = #tpu.dot_dimension_numbers<[1], [1], [0], [0], [0, 0, 1, 0], [], []>} : vector<8x128xbf16>, vector<16x128xbf16>, vector<8x16xf32> -> vector<8x16xf32>
    %cst_5 = arith.constant 0.0883883461 : f32
    %7 = vector.broadcast %cst_5 : f32 to vector<8x16xf32>
    %8 = arith.mulf %6, %7 : vector<8x16xf32>
    %c0_6 = arith.constant 0 : index
    %c0_7 = arith.constant 0 : index
    %c0_8 = arith.constant 0 : index
    %9 = vector.load %arg3[%c0_6, %c0_7, %c0_8] : memref<1x8x16xf32, #tpu.memory_space<vmem>>, vector<1x8x16xf32>
    %10 = vector.shape_cast %9 : vector<1x8x16xf32> to vector<8x16xf32>
    %11 = vector.shape_cast %8 : vector<8x16xf32> to vector<1x8x16xf32>
    tpu.vector_store %arg3[%c0_6, %c0_7, %c0_8], %11 {strides = array<i32>} : memref<1x8x16xf32, #tpu.memory_space<vmem>>, vector<1x8x16xf32>,
    %cst_9 = arith.constant dense<0xFF800000> : vector<8xf32>
    %12 = vector.multi_reduction <maximumf>, %8, %cst_9 [1] : vector<8x16xf32> to vector<8xf32>
    %13 = vector.shape_cast %12 : vector<8xf32> to vector<8x1xf32>
    %c0_10 = arith.constant 0 : index
    %c0_11 = arith.constant 0 : index
    %c0_12 = arith.constant 0 : index
    %14 = vector.load %arg4[%c0_10, %c0_11, %c0_12] : memref<1x8x1xf32, #tpu.memory_space<vmem>>, vector<1x8x1xf32>
    %15 = vector.shape_cast %14 : vector<1x8x1xf32> to vector<8x1xf32>
    %16 = vector.shape_cast %13 : vector<8x1xf32> to vector<1x8x1xf32>
    tpu.vector_store %arg4[%c0_10, %c0_11, %c0_12], %16 {strides = array<i32>} : memref<1x8x1xf32, #tpu.memory_space<vmem>>, vector<1x8x1xf32>,
    return
  }
  func.func @transform_0(%arg0: i32) -> (i32, i32, i32) {
    %c0_i32 = arith.constant 0 : i32
    %c0_i32_0 = arith.constant 0 : i32
    %c0_i32_1 = arith.constant 0 : i32
    return %arg0, %c0_i32, %c0_i32_0 : i32, i32, i32
  }
  func.func @transform_1(%arg0: i32) -> (i32, i32, i32) {
    %c0_i32 = arith.constant 0 : i32
    %c0_i32_0 = arith.constant 0 : i32
    %c0_i32_1 = arith.constant 0 : i32
    return %arg0, %c0_i32, %c0_i32_0 : i32, i32, i32
  }
  func.func @transform_2(%arg0: i32) -> (i32, i32, i32) {
    %c0_i32 = arith.constant 0 : i32
    %c0_i32_0 = arith.constant 0 : i32
    %c0_i32_1 = arith.constant 0 : i32
    return %arg0, %c0_i32, %c0_i32_0 : i32, i32, i32
  }
  func.func @transform_3(%arg0: i32) -> (i32, i32, i32) {
    %c0_i32 = arith.constant 0 : i32
    %c0_i32_0 = arith.constant 0 : i32
    %c0_i32_1 = arith.constant 0 : i32
    return %arg0, %c0_i32, %c0_i32_0 : i32, i32, i32
  }
}

module attributes {stable_mosaic.version = 11 : i64} {
  func.func @_head_block_kernel(%arg0: i32, %arg1: memref<16x128xf32, #tpu.memory_space<vmem>>, %arg2: memref<1x128xf32, #tpu.memory_space<vmem>>, %arg3: memref<1x128xf32, #tpu.memory_space<vmem>>, %arg4: memref<128x256xbf16, #tpu.memory_space<vmem>>, %arg5: memref<1x256xf32, #tpu.memory_space<vmem>>, %arg6: memref<1x256xf32, #tpu.memory_space<vmem>>, %arg7: memref<16x256xf32, #tpu.memory_space<vmem>>) attributes {dimension_semantics = [#tpu.dimension_semantics<parallel>], iteration_bounds = array<i64: 1>, scalar_prefetch = 0 : i64, scratch_operands = 0 : i64, tpu.core_type = #tpu.core_type<tc>, window_params = [{transform_indices = @transform_0, window_bounds = array<i64: 16, 128>}, {pipeline_mode = #tpu.pipeline_mode<synchronous>, transform_indices = @transform_1, window_bounds = array<i64: 1, 128>}, {pipeline_mode = #tpu.pipeline_mode<synchronous>, transform_indices = @transform_2, window_bounds = array<i64: 1, 128>}, {pipeline_mode = #tpu.pipeline_mode<synchronous>, transform_indices = @transform_3, window_bounds = array<i64: 128, 256>}, {pipeline_mode = #tpu.pipeline_mode<synchronous>, transform_indices = @transform_4, window_bounds = array<i64: 1, 256>}, {pipeline_mode = #tpu.pipeline_mode<synchronous>, transform_indices = @transform_5, window_bounds = array<i64: 1, 256>}, {transform_indices = @transform_6, window_bounds = array<i64: 16, 256>}]} {
    %c0 = arith.constant 0 : index
    %c0_0 = arith.constant 0 : index
    %0 = vector.load %arg1[%c0, %c0_0] : memref<16x128xf32, #tpu.memory_space<vmem>>, vector<16x128xf32>
    %cst = arith.constant dense<0.000000e+00> : vector<16xf32>
    %1 = vector.multi_reduction <add>, %0, %cst [1] : vector<16x128xf32> to vector<16xf32>
    %2 = vector.shape_cast %1 : vector<16xf32> to vector<16x1xf32>
    %cst_1 = arith.constant 1.280000e+02 : f32
    %3 = vector.broadcast %cst_1 : f32 to vector<16x1xf32>
    %4 = arith.divf %2, %3 : vector<16x1xf32>
    %5 = vector.broadcast %4 : vector<16x1xf32> to vector<16x128xf32>
    %6 = arith.subf %0, %5 : vector<16x128xf32>
    %7 = arith.mulf %6, %6 : vector<16x128xf32>
    %cst_2 = arith.constant dense<0.000000e+00> : vector<16xf32>
    %8 = vector.multi_reduction <add>, %7, %cst_2 [1] : vector<16x128xf32> to vector<16xf32>
    %9 = vector.shape_cast %8 : vector<16xf32> to vector<16x1xf32>
    %cst_3 = arith.constant 1.280000e+02 : f32
    %10 = vector.broadcast %cst_3 : f32 to vector<16x1xf32>
    %11 = arith.divf %9, %10 : vector<16x1xf32>
    %12 = vector.broadcast %4 : vector<16x1xf32> to vector<16x128xf32>
    %13 = arith.subf %0, %12 : vector<16x128xf32>
    %cst_4 = arith.constant 9.99999974E-6 : f32
    %14 = vector.broadcast %cst_4 : f32 to vector<16x1xf32>
    %15 = arith.addf %11, %14 : vector<16x1xf32>
    %16 = math.rsqrt %15 : vector<16x1xf32>
    %17 = vector.broadcast %16 : vector<16x1xf32> to vector<16x128xf32>
    %18 = arith.mulf %13, %17 : vector<16x128xf32>
    %c0_5 = arith.constant 0 : index
    %c0_6 = arith.constant 0 : index
    %19 = vector.load %arg2[%c0_5, %c0_6] : memref<1x128xf32, #tpu.memory_space<vmem>>, vector<1x128xf32>
    %20 = vector.broadcast %19 : vector<1x128xf32> to vector<16x128xf32>
    %21 = arith.mulf %18, %20 : vector<16x128xf32>
    %c0_7 = arith.constant 0 : index
    %c0_8 = arith.constant 0 : index
    %22 = vector.load %arg3[%c0_7, %c0_8] : memref<1x128xf32, #tpu.memory_space<vmem>>, vector<1x128xf32>
    %23 = vector.broadcast %22 : vector<1x128xf32> to vector<16x128xf32>
    %24 = arith.addf %21, %23 : vector<16x128xf32>
    %cst_9 = arith.constant 0.000000e+00 : f32
    %25 = vector.broadcast %cst_9 : f32 to vector<16x128xf32>
    %26 = arith.maximumf %24, %25 : vector<16x128xf32>
    %27 = arith.truncf %26 : vector<16x128xf32> to vector<16x128xbf16>
    %c0_10 = arith.constant 0 : index
    %c0_11 = arith.constant 0 : index
    %28 = vector.load %arg4[%c0_10, %c0_11] : memref<128x256xbf16, #tpu.memory_space<vmem>>, vector<128x256xbf16>
    %cst_12 = arith.constant dense<0.000000e+00> : vector<16x256xf32>
    %29 = tpu.matmul %27, %28, %cst_12 {dimension_numbers = #tpu.dot_dimension_numbers<[1], [0], [0], [1], [0, 0, 1, 1], [], []>} : vector<16x128xbf16>, vector<128x256xbf16>, vector<16x256xf32> -> vector<16x256xf32>
    %c0_13 = arith.constant 0 : index
    %c0_14 = arith.constant 0 : index
    %30 = vector.load %arg5[%c0_13, %c0_14] : memref<1x256xf32, #tpu.memory_space<vmem>>, vector<1x256xf32>
    %31 = vector.broadcast %30 : vector<1x256xf32> to vector<16x256xf32>
    %32 = arith.mulf %29, %31 : vector<16x256xf32>
    %c0_15 = arith.constant 0 : index
    %c0_16 = arith.constant 0 : index
    %33 = vector.load %arg6[%c0_15, %c0_16] : memref<1x256xf32, #tpu.memory_space<vmem>>, vector<1x256xf32>
    %34 = vector.broadcast %33 : vector<1x256xf32> to vector<16x256xf32>
    %35 = arith.addf %32, %34 : vector<16x256xf32>
    %c0_17 = arith.constant 0 : index
    %c0_18 = arith.constant 0 : index
    %36 = vector.load %arg7[%c0_17, %c0_18] : memref<16x256xf32, #tpu.memory_space<vmem>>, vector<16x256xf32>
    tpu.vector_store %arg7[%c0_17, %c0_18], %35 {strides = array<i32>} : memref<16x256xf32, #tpu.memory_space<vmem>>, vector<16x256xf32>,
    return
  }
  func.func @transform_0(%arg0: i32) -> (i32, i32) {
    %c0_i32 = arith.constant 0 : i32
    %c0_i32_0 = arith.constant 0 : i32
    return %arg0, %c0_i32 : i32, i32
  }
  func.func @transform_1(%arg0: i32) -> (i32, i32) {
    %c0_i32 = arith.constant 0 : i32
    %c0_i32_0 = arith.constant 0 : i32
    %c0_i32_1 = arith.constant 0 : i32
    return %c0_i32, %c0_i32_0 : i32, i32
  }
  func.func @transform_2(%arg0: i32) -> (i32, i32) {
    %c0_i32 = arith.constant 0 : i32
    %c0_i32_0 = arith.constant 0 : i32
    %c0_i32_1 = arith.constant 0 : i32
    return %c0_i32, %c0_i32_0 : i32, i32
  }
  func.func @transform_3(%arg0: i32) -> (i32, i32) {
    %c0_i32 = arith.constant 0 : i32
    %c0_i32_0 = arith.constant 0 : i32
    %c0_i32_1 = arith.constant 0 : i32
    return %c0_i32, %c0_i32_0 : i32, i32
  }
  func.func @transform_4(%arg0: i32) -> (i32, i32) {
    %c0_i32 = arith.constant 0 : i32
    %c0_i32_0 = arith.constant 0 : i32
    %c0_i32_1 = arith.constant 0 : i32
    return %c0_i32, %c0_i32_0 : i32, i32
  }
  func.func @transform_5(%arg0: i32) -> (i32, i32) {
    %c0_i32 = arith.constant 0 : i32
    %c0_i32_0 = arith.constant 0 : i32
    %c0_i32_1 = arith.constant 0 : i32
    return %c0_i32, %c0_i32_0 : i32, i32
  }
  func.func @transform_6(%arg0: i32) -> (i32, i32) {
    %c0_i32 = arith.constant 0 : i32
    %c0_i32_0 = arith.constant 0 : i32
    return %arg0, %c0_i32 : i32, i32
  }
}

</mosaic_0001>

<llo_original>
// kernel: tpu_custom_call.1
$region0: #{tpu_custom_call.1}
  #allocation0 [shape = 'u32[]', space=smem, size = 0x4, offset = 0x4, fixed_abs, tag = 'smem constant byte address 0x4 - core index']
  #allocation1 [shape = 'u32[144,128]{1,0:T(1,128)}', space=vmem, size = 0x12000, scoped, tag = 'internal scratch']
  %s0 = inlined_call_operand.hbm [shape: f32[8,128], index: 0, kind: input, shape index: {}]
  %s1 = inlined_call_operand.hbm [shape: f32[8,128], index: 1, kind: output, shape index: {}]
  %s2 = sld [smem:[#allocation0]]
  $region41: #{tpu_custom_call.1} parent=0
    _
  %s4 = ssub.s32 1, %s2
  %s5 = scalar_select 0, %s4, %s2
  $region1: #{tpu_custom_call.1} parent=0
    #allocation2 [shape = 'u8[4096]{0}', space=vmem, size = 0x1000, scoped, tag = 'input window, operand 0, single buffered']
    #allocation3 [shape = 's32[2]{0}', space=sflag, size = 0x8, scoped, tag = 'scoped memory for tpu_custom_call.1']
    #allocation4 [shape = 's32[2]{0}', space=sflag, size = 0x8, scoped, tag = 'scoped memory for tpu_custom_call.1']
    #allocation5 [shape = 'u8[4096]{0}', space=vmem, size = 0x1000, scoped, tag = 'output window, operand 0, single buffered']
    %6 = vsyncpa [#allocation3], 0
    %7 = vsyncpa [#allocation4], 0
    loop: start=0, step=1, limit=4
    $region2: #{tpu_custom_call.1} parent=1 // loop_pre_header
      _
    $region3: #{tpu_custom_call.1} parent=1 // loop_header
      %s9 = sphi 0, %s13
      %p10 = scmp.ge.s32.totalorder %s9, 4
      %s17 = sphi 0, %s17
      %s19 = sphi 0, %s17
      %s20 = sphi 0, %s19
      %s34 = sphi 0, %s20
      %s38 = sphi 0, %s38
      %s40 = sphi 0, %s38
      %s41 = sphi 0, %s40
      %s55 = sphi 0, %s41
    $region4: #{tpu_custom_call.1} parent=1 // loop_header_branch
      %12 = sbr.rel (%p10) target = $region8
    $region5: #{tpu_custom_call.1} parent=1 // loop_body
      %s14 = ssub.s32 %s9, 1
      %s15 = ssub.s32 %s9, 2
      %s16 = sadd.s32 %s9, 1
      %s18 = sadd.s32 %s17, 1
      %p21 = scmp.eq.s32.totalorder %s9, 1
      %p22 = scmp.ne.s32.totalorder %s17, %s19
      %p23 = scmp.eq.s32.totalorder %s9, 0
      %p24 = por %p22, %p23
      %p25 = scmp.ne.s32.totalorder %s17, %s19
      %p26 = scmp.eq.s32.totalorder %s14, 1
      %p27 = por %p25, %p26
      %p28 = scmp.ne.s32.totalorder %s19, %s20
      %p29 = scmp.eq.s32.totalorder %s14, 0
      %p30 = por %p28, %p29
      %p31 = scmp.ne.s32.totalorder %s19, %s20
      %p32 = scmp.eq.s32.totalorder %s15, 1
      %p33 = por %p31, %p32
      %p35 = scmp.ne.s32.totalorder %s20, %s34
      %p36 = scmp.eq.s32.totalorder %s15, 0
      %p37 = por %p35, %p36
      %s39 = sadd.s32 %s38, 1
      %p42 = scmp.eq.s32.totalorder %s9, 1
      %p43 = scmp.ne.s32.totalorder %s38, %s40
      %p44 = scmp.eq.s32.totalorder %s9, 0
      %p45 = por %p43, %p44
      %p46 = scmp.ne.s32.totalorder %s38, %s40
      %p47 = scmp.eq.s32.totalorder %s14, 1
      %p48 = por %p46, %p47
      %p49 = scmp.ne.s32.totalorder %s40, %s41
      %p50 = scmp.eq.s32.totalorder %s14, 0
      %p51 = por %p49, %p50
      %p52 = scmp.ne.s32.totalorder %s40, %s41
      %p53 = scmp.eq.s32.totalorder %s15, 1
      %p54 = por %p52, %p53
      %p56 = scmp.ne.s32.totalorder %s41, %s55
      %p57 = scmp.eq.s32.totalorder %s15, 0
      %p58 = por %p56, %p57
      %p59 = scmp.le.s32.totalorder 1, %s9
      %p60 = scmp.lt.s32.totalorder %s9, 3
      %p61 = pnand %p59, %p60
      %p62 = pneg %p61
      // Predicated region
      $region9: #{tpu_custom_call.1} parent=5 // pred_check
        _
      $region10: #{tpu_custom_call.1} parent=5 // pred_check_branch
        %64 = sbr.rel (%p61) target = $region12
      $region11: #{tpu_custom_call.1} parent=5 // pred_region
        %s65 = ssub.s32 %s9, 1
        // Predicated region
        $region13: #{tpu_custom_call.1} parent=11 // pred_check
          %p66 = pneg %p30
        $region14: #{tpu_custom_call.1} parent=11 // pred_check_branch
          %68 = sbr.rel (%p66) target = $region16
        $region15: #{tpu_custom_call.1} parent=11 // pred_region
          %s70 = ssub.s32 128, 128
          %71 = vsyncadd [#allocation3], %s70
          %s73 = sshll.u32 [#allocation2], 4
          %s74 = int_to_ptr.vmem [resolvable:$true] %s73
          %76 = dma.hbm_to_vmem [thread:$0]  %s0, 128, %s74, [#allocation3]
        $region16: #{tpu_custom_call.1} parent=11 // pred_fallthru
          _
      $region12: #{tpu_custom_call.1} parent=5 // pred_fallthru
        _
      %p77 = scmp.lt.s32.totalorder %s9, 2
      // Predicated region
      $region17: #{tpu_custom_call.1} parent=5 // pred_check
        %p78 = pneg %p77
      $region18: #{tpu_custom_call.1} parent=5 // pred_check_branch
        %80 = sbr.rel (%p78) target = $region20
      $region19: #{tpu_custom_call.1} parent=5 // pred_region
        _
      $region20: #{tpu_custom_call.1} parent=5 // pred_fallthru
        _
      %p81 = scmp.le.s32.totalorder 1, %s9
      %p82 = scmp.lt.s32.totalorder %s9, 3
      %p83 = pnand %p81, %p82
      %p84 = pneg %p83
      // Predicated region
      $region21: #{tpu_custom_call.1} parent=5 // pred_check
        _
      $region22: #{tpu_custom_call.1} parent=5 // pred_check_branch
        %86 = sbr.rel (%p83) target = $region24
      $region23: #{tpu_custom_call.1} parent=5 // pred_region
        %s87 = ssub.s32 %s9, 1
        // Predicated region
        $region25: #{tpu_custom_call.1} parent=23 // pred_check
          %p88 = pneg %p30
        $region26: #{tpu_custom_call.1} parent=23 // pred_check_branch
          %90 = sbr.rel (%p88) target = $region28
        $region27: #{tpu_custom_call.1} parent=23 // pred_region
          %91 = dma.done [#allocation3], 128
        $region28: #{tpu_custom_call.1} parent=23 // pred_fallthru
          _
        %p92 = pneg %p30
        %p93 = pneg %p27
        %p94 = pneg %p51
        %p95 = pneg %p48
        %v96 = vld [vmem:[#allocation2] sm:$0xff]
        %97 = vst [vmem:[#allocation5] sm:$0xff] %v96
        // Predicated region
        $region29: #{tpu_custom_call.1} parent=23 // pred_check
          %p98 = pneg %p48
        $region30: #{tpu_custom_call.1} parent=23 // pred_check_branch
          %100 = sbr.rel (%p98) target = $region32
        $region31: #{tpu_custom_call.1} parent=23 // pred_region
          %s102 = ssub.s32 128, 128
          %103 = vsyncadd [#allocation4], %s102
          %s105 = sshll.u32 [#allocation5], 4
          %s106 = int_to_ptr.vmem [resolvable:$true] %s105
          %108 = dma.vmem_to_hbm [thread:$0]  %s106, 128, %s1, [#allocation4]
        $region32: #{tpu_custom_call.1} parent=23 // pred_fallthru
          _
        // Predicated region
        $region33: #{tpu_custom_call.1} parent=23 // pred_check
          %p109 = pneg %p48
        $region34: #{tpu_custom_call.1} parent=23 // pred_check_branch
          %111 = sbr.rel (%p109) target = $region36
        $region35: #{tpu_custom_call.1} parent=23 // pred_region
          %112 = dma.done [#allocation4], 128
        $region36: #{tpu_custom_call.1} parent=23 // pred_fallthru
          _
      $region24: #{tpu_custom_call.1} parent=5 // pred_fallthru
        _
      %p113 = scmp.le.s32.totalorder 2, %s9
      // Predicated region
      $region37: #{tpu_custom_call.1} parent=5 // pred_check
        %p114 = pneg %p113
      $region38: #{tpu_custom_call.1} parent=5 // pred_check_branch
        %116 = sbr.rel (%p114) target = $region40
      $region39: #{tpu_custom_call.1} parent=5 // pred_region
        %s117 = ssub.s32 %s9, 2
      $region40: #{tpu_custom_call.1} parent=5 // pred_fallthru
        _
    $region6: #{tpu_custom_call.1} parent=1 // loop_footer
      %s13 = sadd.s32 1, %s9
    $region7: #{tpu_custom_call.1} parent=1 // loop_footer_branch
      %8 = sbr.rel target = $region3
    $region8: #{tpu_custom_call.1} parent=1 // loop_exit
      _
    %118 = vsyncpa [#allocation3], 1
    %s119 = scalar_lea.sflag [#allocation3], 1
    %120 = vsyncpa %s119, 1
    %121 = vsyncpa [#allocation4], 1
    %s122 = scalar_lea.sflag [#allocation4], 1
    %123 = vsyncpa %s122, 1

// kernel: transformer_clustering_forward.13
$region0: #{transformer_clustering_forward.13}
  #allocation0 [shape = 'u32[]', space=smem, size = 0x4, offset = 0x4, fixed_abs, tag = 'smem constant byte address 0x4 - core index']
  #allocation1 [shape = 'u32[144,128]{1,0:T(1,128)}', space=vmem, size = 0x12000, scoped, tag = 'internal scratch']
  %s0 = inlined_call_operand.vmem [shape: f32[32,128], index: 0, kind: input, shape index: {}]
  %s1 = inlined_call_operand.vmem [shape: bf16[128,256], index: 1, kind: input, shape index: {}]
  %s2 = inlined_call_operand.vmem [shape: f32[1,256], index: 2, kind: input, shape index: {}]
  %s3 = inlined_call_operand.vmem [shape: bf16[256,128], index: 3, kind: input, shape index: {}]
  %s4 = inlined_call_operand.vmem [shape: f32[1,128], index: 4, kind: input, shape index: {}]
  %s5 = inlined_call_operand.vmem [shape: f32[1,128], index: 5, kind: input, shape index: {}]
  %s6 = inlined_call_operand.vmem [shape: f32[1,128], index: 6, kind: input, shape index: {}]
  %s7 = inlined_call_operand.vmem [shape: f32[32,128], index: 7, kind: output, shape index: {}]
  %s8 = sld [smem:[#allocation0]]
  $region38: #{transformer_clustering_forward.13} parent=0
    _
  %s10 = ssub.s32 1, %s8
  %s11 = scalar_select 0, %s10, %s8
  // Predicated region
  $region2: #{transformer_clustering_forward.13} parent=0 // pred_check
    _
  $region3: #{transformer_clustering_forward.13} parent=0 // pred_check_branch
    %13 = sbr.rel (0) target = $region5
  $region4: #{transformer_clustering_forward.13} parent=0 // pred_region
    _
  $region5: #{transformer_clustering_forward.13} parent=0 // pred_fallthru
    _
  // Predicated region
  $region6: #{transformer_clustering_forward.13} parent=0 // pred_check
    _
  $region7: #{transformer_clustering_forward.13} parent=0 // pred_check_branch
    %15 = sbr.rel (0) target = $region9
  $region8: #{transformer_clustering_forward.13} parent=0 // pred_region
    _
  $region9: #{transformer_clustering_forward.13} parent=0 // pred_fallthru
    _
  // Predicated region
  $region10: #{transformer_clustering_forward.13} parent=0 // pred_check
    _
  $region11: #{transformer_clustering_forward.13} parent=0 // pred_check_branch
    %17 = sbr.rel (0) target = $region13
  $region12: #{transformer_clustering_forward.13} parent=0 // pred_region
    _
  $region13: #{transformer_clustering_forward.13} parent=0 // pred_fallthru
    _
  // Predicated region
  $region14: #{transformer_clustering_forward.13} parent=0 // pred_check
    _
  $region15: #{transformer_clustering_forward.13} parent=0 // pred_check_branch
    %19 = sbr.rel (0) target = $region17
  $region16: #{transformer_clustering_forward.13} parent=0 // pred_region
    _
  $region17: #{transformer_clustering_forward.13} parent=0 // pred_fallthru
    _
  // Predicated region
  $region18: #{transformer_clustering_forward.13} parent=0 // pred_check
    _
  $region19: #{transformer_clustering_forward.13} parent=0 // pred_check_branch
    %21 = sbr.rel (0) target = $region21
  $region20: #{transformer_clustering_forward.13} parent=0 // pred_region
    _
  $region21: #{transformer_clustering_forward.13} parent=0 // pred_fallthru
    _
  // Predicated region
  $region22: #{transformer_clustering_forward.13} parent=0 // pred_check
    _
  $region23: #{transformer_clustering_forward.13} parent=0 // pred_check_branch
    %23 = sbr.rel (0) target = $region25
  $region24: #{transformer_clustering_forward.13} parent=0 // pred_region
    _
  $region25: #{transformer_clustering_forward.13} parent=0 // pred_fallthru
    _
  // Predicated region
  $region26: #{transformer_clustering_forward.13} parent=0 // pred_check
    _
  $region27: #{transformer_clustering_forward.13} parent=0 // pred_check_branch
    %25 = sbr.rel (0) target = $region29
  $region28: #{transformer_clustering_forward.13} parent=0 // pred_region
    _
  $region29: #{transformer_clustering_forward.13} parent=0 // pred_fallthru
    _
  %v27 = vld [vmem:[%s0] sm:$0xff]
  %v28 = vld [vmem:[%s0 + $0x8] sm:$0xff]
  %v29 = vld [vmem:[%s0 + $0x10] sm:$0xff]
  %v30 = vld [vmem:[%s0 + $0x18] sm:$0xff]
  %v31 = vpack.c.bf16 %v28, %v27
  %v32 = vpack.c.bf16 %v30, %v29
  %v33 = vld [vmem:[%s1] sm:$0xff]
  %v34 = vld [vmem:[%s1 + $0x8] sm:$0xff]
  %v35 = vld [vmem:[%s1 + $0x10] sm:$0xff]
  %v36 = vld [vmem:[%s1 + $0x18] sm:$0xff]
  %v37 = vld [vmem:[%s1 + $0x20] sm:$0xff]
  %v38 = vld [vmem:[%s1 + $0x28] sm:$0xff]
  %v39 = vld [vmem:[%s1 + $0x30] sm:$0xff]
  %v40 = vld [vmem:[%s1 + $0x38] sm:$0xff]
  %v41 = vld [vmem:[%s1 + $0x40] sm:$0xff]
  %v42 = vld [vmem:[%s1 + $0x48] sm:$0xff]
  %v43 = vld [vmem:[%s1 + $0x50] sm:$0xff]
  %v44 = vld [vmem:[%s1 + $0x58] sm:$0xff]
  %v45 = vld [vmem:[%s1 + $0x60] sm:$0xff]
  %v46 = vld [vmem:[%s1 + $0x68] sm:$0xff]
  %v47 = vld [vmem:[%s1 + $0x70] sm:$0xff]
  %v48 = vld [vmem:[%s1 + $0x78] sm:$0xff]
  %v49 = vld [vmem:[%s2] sm:$0x3]
  %v51 = vlaneseq
  %v52 = vshrl.u32 %v51, 7
  %v53 = vsub.s32 0, %v52
  %v54 = vrot.slane %v49, %v53
  %v55 = vlaneseq
  %v56 = vshrl.u32 %v55, 7
  %v57 = vsub.s32 1, %v56
  %v58 = vrot.slane %v49, %v57
  %v77 = vunpack.c.l.b16 %v33
  %v78 = vunpack.c.h.b16 %v33
  %v79 = vunpack.c.l.b16 %v34
  %v80 = vunpack.c.h.b16 %v34
  %v81 = vunpack.c.l.b16 %v35
  %v82 = vunpack.c.h.b16 %v35
  %v83 = vunpack.c.l.b16 %v36
  %v84 = vunpack.c.h.b16 %v36
  %v85 = vunpack.c.l.b16 %v37
  %v86 = vunpack.c.h.b16 %v37
  %v87 = vunpack.c.l.b16 %v38
  %v88 = vunpack.c.h.b16 %v38
  %v89 = vunpack.c.l.b16 %v39
  %v90 = vunpack.c.h.b16 %v39
  %v91 = vunpack.c.l.b16 %v40
  %v92 = vunpack.c.h.b16 %v40
  %v93 = vunpack.c.l.b16 %v41
  %v94 = vunpack.c.h.b16 %v41
  %v95 = vunpack.c.l.b16 %v42
  %v96 = vunpack.c.h.b16 %v42
  %v97 = vunpack.c.l.b16 %v43
  %v98 = vunpack.c.h.b16 %v43
  %v99 = vunpack.c.l.b16 %v44
  %v100 = vunpack.c.h.b16 %v44
  %v101 = vunpack.c.l.b16 %v45
  %v102 = vunpack.c.h.b16 %v45
  %v103 = vunpack.c.l.b16 %v46
  %v104 = vunpack.c.h.b16 %v46
  %v105 = vunpack.c.l.b16 %v47
  %v106 = vunpack.c.h.b16 %v47
  %v107 = vunpack.c.l.b16 %v48
  %v108 = vunpack.c.h.b16 %v48
  %v109 = vpack.c.b16 %v79, %v77
  %v110 = vpack.c.b16 %v80, %v78
  %v111 = vpack.c.b16 %v83, %v81
  %v112 = vpack.c.b16 %v84, %v82
  %v113 = vpack.c.b16 %v87, %v85
  %v114 = vpack.c.b16 %v88, %v86
  %v115 = vpack.c.b16 %v91, %v89
  %v116 = vpack.c.b16 %v92, %v90
  %v117 = vpack.c.b16 %v95, %v93
  %v118 = vpack.c.b16 %v96, %v94
  %v119 = vpack.c.b16 %v99, %v97
  %v120 = vpack.c.b16 %v100, %v98
  %v121 = vpack.c.b16 %v103, %v101
  %v122 = vpack.c.b16 %v104, %v102
  %v123 = vpack.c.b16 %v107, %v105
  %v124 = vpack.c.b16 %v108, %v106
  %141 = vmatprep.subr.bf16.mxu0 %v124
  %142 = vmatpush1.bf16.msra.mxu0 %v123
  %143 = vmatprep.subr.bf16.mxu0 %v122
  %144 = vmatpush1.bf16.msra.mxu0 %v121
  %145 = vmatprep.subr.bf16.mxu0 %v120
  %146 = vmatpush1.bf16.msra.mxu0 %v119
  %147 = vmatprep.subr.bf16.mxu0 %v118
  %148 = vmatpush1.bf16.msra.mxu0 %v117
  %149 = vmatprep.subr.bf16.mxu0 %v116
  %150 = vmatpush1.bf16.msra.mxu0 %v115
  %151 = vmatprep.subr.bf16.mxu0 %v114
  %152 = vmatpush1.bf16.msra.mxu0 %v113
  %153 = vmatprep.subr.bf16.mxu0 %v112
  %154 = vmatpush1.bf16.msra.mxu0 %v111
  %155 = vmatprep.subr.bf16.mxu0 %v110
  %156 = vmatpush1.bf16.msra.mxu0 %v109
  %157 = vmatprep.subr.bf16.mxu0 0
  %158 = vmatpush2.bf16.msra.mxu0 0
  %159 = vmatprep.subr.bf16.mxu0 0
  %160 = vmatpush2.bf16.msra.mxu0 0
  %161 = vmatprep.subr.bf16.mxu0 0
  %162 = vmatpush2.bf16.msra.mxu0 0
  %163 = vmatprep.subr.bf16.mxu0 0
  %164 = vmatpush2.bf16.msra.mxu0 0
  %165 = vmatprep.subr.bf16.mxu0 0
  %166 = vmatpush2.bf16.msra.mxu0 0
  %167 = vmatprep.subr.bf16.mxu0 0
  %168 = vmatpush2.bf16.msra.mxu0 0
  %169 = vmatprep.subr.bf16.mxu0 0
  %170 = vmatpush2.bf16.msra.mxu0 0
  %171 = vmatprep.subr.bf16.mxu0 0
  %172 = vmatpush2.bf16.msra.mxu0 0
  %173 = vmatprep.mubr.bf16.mxu0 0
  %174 = vmatmul.mubr.bf16.gmra.mxu0 %v31
  %v175 = vpop.f32.mrf.mxu0
  %v176 = vadd.f32 %v54, %v175
  %v177 = vpop.f32.mrf.mxu0
  %v178 = vadd.f32 %v58, %v177
  %v179 = vpop.f32.mrf.mxu0
  %v180 = vadd.f32 %v54, %v179
  %v181 = vpop.f32.mrf.mxu0
  %v182 = vadd.f32 %v58, %v181
  %183 = vmatprep.mubr.bf16.mxu0 0
  %184 = vmatmul.mubr.bf16.gmra.mxu0 %v32
  %v185 = vpop.f32.mrf.mxu0
  %v186 = vadd.f32 %v54, %v185
  %v187 = vpop.f32.mrf.mxu0
  %v188 = vadd.f32 %v58, %v187
  %v189 = vpop.f32.mrf.mxu0
  %v190 = vadd.f32 %v54, %v189
  %v191 = vpop.f32.mrf.mxu0
  %v192 = vadd.f32 %v58, %v191
  %193 = vdwg.mxu0
  %v194 = vmax.f32 %v176, 0.0
  %v195 = vmax.f32 %v178, 0.0
  %v196 = vmax.f32 %v180, 0.0
  %v197 = vmax.f32 %v182, 0.0
  %v198 = vmax.f32 %v186, 0.0
  %v199 = vmax.f32 %v188, 0.0
  %v200 = vmax.f32 %v190, 0.0
  %v201 = vmax.f32 %v192, 0.0
  %v202 = vpack.c.bf16 %v196, %v194
  %v203 = vpack.c.bf16 %v197, %v195
  %v204 = vpack.c.bf16 %v200, %v198
  %v205 = vpack.c.bf16 %v201, %v199
  %v206 = vld [vmem:[%s3] sm:$0xf]
  %v207 = vld [vmem:[%s3 + $0x4] sm:$0xf]
  %v208 = vld [vmem:[%s3 + $0x8] sm:$0xf]
  %v209 = vld [vmem:[%s3 + $0xc] sm:$0xf]
  %v210 = vld [vmem:[%s3 + $0x10] sm:$0xf]
  %v211 = vld [vmem:[%s3 + $0x14] sm:$0xf]
  %v212 = vld [vmem:[%s3 + $0x18] sm:$0xf]
  %v213 = vld [vmem:[%s3 + $0x1c] sm:$0xf]
  %v214 = vld [vmem:[%s3 + $0x20] sm:$0xf]
  %v215 = vld [vmem:[%s3 + $0x24] sm:$0xf]
  %v216 = vld [vmem:[%s3 + $0x28] sm:$0xf]
  %v217 = vld [vmem:[%s3 + $0x2c] sm:$0xf]
  %v218 = vld [vmem:[%s3 + $0x30] sm:$0xf]
  %v219 = vld [vmem:[%s3 + $0x34] sm:$0xf]
  %v220 = vld [vmem:[%s3 + $0x38] sm:$0xf]
  %v221 = vld [vmem:[%s3 + $0x3c] sm:$0xf]
  %v222 = vld [vmem:[%s3 + $0x40] sm:$0xf]
  %v223 = vld [vmem:[%s3 + $0x44] sm:$0xf]
  %v224 = vld [vmem:[%s3 + $0x48] sm:$0xf]
  %v225 = vld [vmem:[%s3 + $0x4c] sm:$0xf]
  %v226 = vld [vmem:[%s3 + $0x50] sm:$0xf]
  %v227 = vld [vmem:[%s3 + $0x54] sm:$0xf]
  %v228 = vld [vmem:[%s3 + $0x58] sm:$0xf]
  %v229 = vld [vmem:[%s3 + $0x5c] sm:$0xf]
  %v230 = vld [vmem:[%s3 + $0x60] sm:$0xf]
  %v231 = vld [vmem:[%s3 + $0x64] sm:$0xf]
  %v232 = vld [vmem:[%s3 + $0x68] sm:$0xf]
  %v233 = vld [vmem:[%s3 + $0x6c] sm:$0xf]
  %v234 = vld [vmem:[%s3 + $0x70] sm:$0xf]
  %v235 = vld [vmem:[%s3 + $0x74] sm:$0xf]
  %v236 = vld [vmem:[%s3 + $0x78] sm:$0xf]
  %v237 = vld [vmem:[%s3 + $0x7c] sm:$0xf]
  %v270 = vunpack.c.l.b16 %v206
  %v271 = vunpack.c.l.b16 %v207
  %v272 = vunpack.c.l.b16 %v208
  %v273 = vunpack.c.l.b16 %v209
  %v274 = vunpack.c.l.b16 %v210
  %v275 = vunpack.c.l.b16 %v211
  %v276 = vunpack.c.l.b16 %v212
  %v277 = vunpack.c.l.b16 %v213
  %v278 = vunpack.c.l.b16 %v214
  %v279 = vunpack.c.l.b16 %v215
  %v280 = vunpack.c.l.b16 %v216
  %v281 = vunpack.c.l.b16 %v217
  %v282 = vunpack.c.l.b16 %v218
  %v283 = vunpack.c.l.b16 %v219
  %v284 = vunpack.c.l.b16 %v220
  %v285 = vunpack.c.l.b16 %v221
  %v286 = vunpack.c.l.b16 %v222
  %v287 = vunpack.c.l.b16 %v223
  %v288 = vunpack.c.l.b16 %v224
  %v289 = vunpack.c.l.b16 %v225
  %v290 = vunpack.c.l.b16 %v226
  %v291 = vunpack.c.l.b16 %v227
  %v292 = vunpack.c.l.b16 %v228
  %v293 = vunpack.c.l.b16 %v229
  %v294 = vunpack.c.l.b16 %v230
  %v295 = vunpack.c.l.b16 %v231
  %v296 = vunpack.c.l.b16 %v232
  %v297 = vunpack.c.l.b16 %v233
  %v298 = vunpack.c.l.b16 %v234
  %v299 = vunpack.c.l.b16 %v235
  %v300 = vunpack.c.l.b16 %v236
  %v301 = vunpack.c.l.b16 %v237
  %v302 = vpack.c.b16 %v271, %v270
  %v303 = vpack.c.b16 %v273, %v272
  %v304 = vpack.c.b16 %v275, %v274
  %v305 = vpack.c.b16 %v277, %v276
  %v306 = vpack.c.b16 %v279, %v278
  %v307 = vpack.c.b16 %v281, %v280
  %v308 = vpack.c.b16 %v283, %v282
  %v309 = vpack.c.b16 %v285, %v284
  %v310 = vpack.c.b16 %v287, %v286
  %v311 = vpack.c.b16 %v289, %v288
  %v312 = vpack.c.b16 %v291, %v290
  %v313 = vpack.c.b16 %v293, %v292
  %v314 = vpack.c.b16 %v295, %v294
  %v315 = vpack.c.b16 %v297, %v296
  %v316 = vpack.c.b16 %v299, %v298
  %v317 = vpack.c.b16 %v301, %v300
  %334 = vmatprep.subr.bf16.mxu0 0
  %335 = vmatpush1.bf16.msra.mxu0 %v309
  %336 = vmatprep.subr.bf16.mxu0 0
  %337 = vmatpush1.bf16.msra.mxu0 %v308
  %338 = vmatprep.subr.bf16.mxu0 0
  %339 = vmatpush1.bf16.msra.mxu0 %v307
  %340 = vmatprep.subr.bf16.mxu0 0
  %341 = vmatpush1.bf16.msra.mxu0 %v306
  %342 = vmatprep.subr.bf16.mxu0 0
  %343 = vmatpush1.bf16.msra.mxu0 %v305
  %344 = vmatprep.subr.bf16.mxu0 0
  %345 = vmatpush1.bf16.msra.mxu0 %v304
  %346 = vmatprep.subr.bf16.mxu0 0
  %347 = vmatpush1.bf16.msra.mxu0 %v303
  %348 = vmatprep.subr.bf16.mxu0 0
  %349 = vmatpush1.bf16.msra.mxu0 %v302
  %350 = vmatprep.subr.bf16.mxu0 0
  %351 = vmatpush2.bf16.msra.mxu0 %v317
  %352 = vmatprep.subr.bf16.mxu0 0
  %353 = vmatpush2.bf16.msra.mxu0 %v316
  %354 = vmatprep.subr.bf16.mxu0 0
  %355 = vmatpush2.bf16.msra.mxu0 %v315
  %356 = vmatprep.subr.bf16.mxu0 0
  %357 = vmatpush2.bf16.msra.mxu0 %v314
  %358 = vmatprep.subr.bf16.mxu0 0
  %359 = vmatpush2.bf16.msra.mxu0 %v313
  %360 = vmatprep.subr.bf16.mxu0 0
  %361 = vmatpush2.bf16.msra.mxu0 %v312
  %362 = vmatprep.subr.bf16.mxu0 0
  %363 = vmatpush2.bf16.msra.mxu0 %v311
  %364 = vmatprep.subr.bf16.mxu0 0
  %365 = vmatpush2.bf16.msra.mxu0 %v310
  %366 = vmatprep.mubr.bf16.mxu0 %v203
  %367 = vmatmul.mubr.bf16.gmra.mxu0 %v202
  %v368 = vpop.f32.mrf.mxu0
  %v369 = vadd.f32 0.0, %v368
  %v370 = vpop.f32.mrf.mxu0
  %v371 = vpop.f32.mrf.mxu0
  %v372 = vadd.f32 0.0, %v371
  %v373 = vpop.f32.mrf.mxu0
  %374 = vmatprep.mubr.bf16.mxu0 %v205
  %375 = vmatmul.mubr.bf16.gmra.mxu0 %v204
  %v376 = vpop.f32.mrf.mxu0
  %v377 = vadd.f32 0.0, %v376
  %v378 = vpop.f32.mrf.mxu0
  %v379 = vpop.f32.mrf.mxu0
  %v380 = vadd.f32 0.0, %v379
  %v381 = vpop.f32.mrf.mxu0
  %382 = vdwg.mxu0
  %v383 = vadd.f32 %v27, %v369
  %v384 = vadd.f32 %v28, %v372
  %v385 = vadd.f32 %v29, %v377
  %v386 = vadd.f32 %v30, %v380
  %v387 = vld [vmem:[%s4] sm:$0x1]
  %v389 = vlaneseq
  %v390 = vshrl.u32 %v389, 7
  %v391 = vsub.s32 0, %v390
  %v392 = vrot.slane %v387, %v391
  %v394 = vadd.f32 %v383, %v392
  %v395 = vadd.f32 %v384, %v392
  %v396 = vadd.f32 %v385, %v392
  %v397 = vadd.f32 %v386, %v392
  %398 = vadd.xlane.f32.xlu0 %v394
  %v399 = vpop.xlane.xlu0 %398
  %400 = vadd.xlane.f32.xlu0 %v395
  %v401 = vpop.xlane.xlu0 %400
  %402 = vadd.xlane.f32.xlu0 %v396
  %v403 = vpop.xlane.xlu0 %402
  %404 = vadd.xlane.f32.xlu0 %v397
  %v405 = vpop.xlane.xlu0 %404
  %v406 = vrcp.pop 128.0
  %v407 = vmul.f32 %v399, %v406
  %v408 = vmul.f32 %v401, %v406
  %v409 = vmul.f32 %v403, %v406
  %v410 = vmul.f32 %v405, %v406
  %v411 = vsub.f32 %v394, %v407
  %v412 = vsub.f32 %v395, %v408
  %v413 = vsub.f32 %v396, %v409
  %v414 = vsub.f32 %v397, %v410
  %v415 = vmul.f32 %v411, %v411
  %v416 = vmul.f32 %v412, %v412
  %v417 = vmul.f32 %v413, %v413
  %v418 = vmul.f32 %v414, %v414
  %419 = vadd.xlane.f32.xlu0 %v415
  %v420 = vpop.xlane.xlu0 %419
  %421 = vadd.xlane.f32.xlu0 %v416
  %v422 = vpop.xlane.xlu0 %421
  %423 = vadd.xlane.f32.xlu0 %v417
  %v424 = vpop.xlane.xlu0 %423
  %425 = vadd.xlane.f32.xlu0 %v418
  %v426 = vpop.xlane.xlu0 %425
  %v427 = vmul.f32 %v420, %v406
  %v428 = vmul.f32 %v422, %v406
  %v429 = vmul.f32 %v424, %v406
  %v430 = vmul.f32 %v426, %v406
  %v431 = vadd.f32 %v427, 1e-05
  %v432 = vadd.f32 %v428, 1e-05
  %v433 = vadd.f32 %v429, 1e-05
  %v434 = vadd.f32 %v430, 1e-05
  %v435 = vrsqrt.pop %v431
  %v436 = vrsqrt.pop %v432
  %v437 = vrsqrt.pop %v433
  %v438 = vrsqrt.pop %v434
  %v439 = vmul.f32 %v411, %v435
  %v440 = vmul.f32 %v412, %v436
  %v441 = vmul.f32 %v413, %v437
  %v442 = vmul.f32 %v414, %v438
  %v443 = vld [vmem:[%s5] sm:$0x1]
  %v445 = vlaneseq
  %v446 = vshrl.u32 %v445, 7
  %v447 = vsub.s32 0, %v446
  %v448 = vrot.slane %v443, %v447
  %v450 = vmul.f32 %v439, %v448
  %v451 = vmul.f32 %v440, %v448
  %v452 = vmul.f32 %v441, %v448
  %v453 = vmul.f32 %v442, %v448
  %v454 = vld [vmem:[%s6] sm:$0x1]
  %v456 = vlaneseq
  %v457 = vshrl.u32 %v456, 7
  %v458 = vsub.s32 0, %v457
  %v459 = vrot.slane %v454, %v458
  %v461 = vadd.f32 %v450, %v459
  %v462 = vadd.f32 %v451, %v459
  %v463 = vadd.f32 %v452, %v459
  %v464 = vadd.f32 %v453, %v459
  %465 = vst [vmem:[%s7] sm:$0xff] %v461
  %466 = vst [vmem:[%s7 + $0x8] sm:$0xff] %v462
  %467 = vst [vmem:[%s7 + $0x10] sm:$0xff] %v463
  %468 = vst [vmem:[%s7 + $0x18] sm:$0xff] %v464
  // Predicated region
  $region30: #{transformer_clustering_forward.13} parent=0 // pred_check
    _
  $region31: #{transformer_clustering_forward.13} parent=0 // pred_check_branch
    %470 = sbr.rel (0) target = $region33
  $region32: #{transformer_clustering_forward.13} parent=0 // pred_region
    _
  $region33: #{transformer_clustering_forward.13} parent=0 // pred_fallthru
    _
  // Predicated region
  $region34: #{transformer_clustering_forward.13} parent=0 // pred_check
    _
  $region35: #{transformer_clustering_forward.13} parent=0 // pred_check_branch
    %472 = sbr.rel (0) target = $region37
  $region36: #{transformer_clustering_forward.13} parent=0 // pred_region
    _
  $region37: #{transformer_clustering_forward.13} parent=0 // pred_fallthru
    _

// kernel: transformer_clustering_forward.16
$region0: #{transformer_clustering_forward.16}
  #allocation0 [shape = 'u32[]', space=smem, size = 0x4, offset = 0x4, fixed_abs, tag = 'smem constant byte address 0x4 - core index']
  #allocation1 [shape = 'u32[144,128]{1,0:T(1,128)}', space=vmem, size = 0x12000, scoped, tag = 'internal scratch']
  %s0 = inlined_call_operand.vmem [shape: f32[2,8,128], index: 0, kind: input, shape index: {}, may-alias: {0,2}]
  %s1 = inlined_call_operand.vmem [shape: f32[2,8,128], index: 1, kind: input, shape index: {}, may-alias: {1,3}]
  %s2 = inlined_call_operand.vmem [shape: f32[2,8,128], index: 2, kind: input, shape index: {}, may-alias: {0,2}]
  %s3 = inlined_call_operand.vmem [shape: f32[2,8,128], index: 3, kind: input, shape index: {}, may-alias: {1,3}]
  %s4 = inlined_call_operand.vmem [shape: bf16[128,128], index: 4, kind: input, shape index: {}]
  %s5 = inlined_call_operand.vmem [shape: f32[1,128], index: 5, kind: input, shape index: {}]
  %s6 = inlined_call_operand.vmem [shape: bf16[128,128], index: 6, kind: input, shape index: {}]
  %s7 = inlined_call_operand.hbm [shape: f32[1,128], index: 7, kind: input, shape index: {}]
  %s8 = inlined_call_operand.vmem [shape: bf16[128,128], index: 8, kind: input, shape index: {}]
  %s9 = inlined_call_operand.hbm [shape: f32[1,128], index: 9, kind: input, shape index: {}]
  %s10 = inlined_call_operand.hbm [shape: bf16[128,128], index: 10, kind: input, shape index: {}]
  %s11 = inlined_call_operand.hbm [shape: f32[1,128], index: 11, kind: input, shape index: {}]
  %s12 = inlined_call_operand.hbm [shape: f32[1,128], index: 12, kind: input, shape index: {}]
  %s13 = inlined_call_operand.hbm [shape: f32[1,128], index: 13, kind: input, shape index: {}]
  %s14 = inlined_call_operand.vmem [shape: f32[2,8,128], index: 14, kind: output, shape index: {}]
  %s15 = sld [smem:[#allocation0]]
  $region113: #{transformer_clustering_forward.16} parent=0
    _
  %s17 = ssub.s32 1, %s15
  %s18 = scalar_select 0, %s17, %s15
  $region1: #{transformer_clustering_forward.16} parent=0
    #allocation2 [shape = 'u8[512]{0}', space=vmem, size = 0x400, scoped, tag = 'input window, operand 7, single buffered']
    #allocation3 [shape = 's32[2]{0}', space=sflag, size = 0x8, scoped, tag = 'scoped memory for transformer_clustering_forward.16']
    #allocation4 [shape = 'u8[512]{0}', space=vmem, size = 0x400, scoped, tag = 'input window, operand 9, single buffered']
    #allocation5 [shape = 's32[1]{0}', space=sflag, size = 0x4, scoped, tag = 'scoped memory for transformer_clustering_forward.16']
    #allocation6 [shape = 'u8[32768]{0}', space=vmem, size = 0x8000, scoped, tag = 'input window, operand 10, single buffered']
    #allocation7 [shape = 'u8[512]{0}', space=vmem, size = 0x400, scoped, tag = 'input window, operand 11, single buffered']
    #allocation8 [shape = 's32[1]{0}', space=sflag, size = 0x4, scoped, tag = 'scoped memory for transformer_clustering_forward.16']
    #allocation9 [shape = 'u8[512]{0}', space=vmem, size = 0x400, scoped, tag = 'input window, operand 12, single buffered']
    #allocation10 [shape = 'u8[512]{0}', space=vmem, size = 0x400, scoped, tag = 'input window, operand 13, single buffered']
    #allocation11 [shape = 's32[1]{0}', space=sflag, size = 0x4, scoped, tag = 'scoped memory for transformer_clustering_forward.16']
    %19 = vsyncpa [#allocation3], 0
    %20 = vsyncpa [#allocation5], 0
    %21 = vsyncpa [#allocation8], 0
    %22 = vsyncpa [#allocation11], 0
    loop: start=0, step=1, limit=4
    $region2: #{transformer_clustering_forward.16} parent=1 // loop_pre_header
      _
    $region3: #{transformer_clustering_forward.16} parent=1 // loop_header
      %s24 = sphi 0, %s28
      %p25 = scmp.ge.s32.totalorder %s24, 4
      %s31 = sphi 0, %s43
      %s32 = sphi 0, %s39
      %s33 = sphi 0, %s31
      %s34 = sphi 0, %s32
      %s35 = sphi 0, %s33
      %s36 = sphi 0, %s34
      %s48 = sphi 0, %s50
      %s51 = sphi 0, %s48
      %s52 = sphi 0, %s51
      %s68 = sphi 0, %s52
      %s76 = sphi 0, %s78
      %s79 = sphi 0, %s76
      %s80 = sphi 0, %s79
      %s96 = sphi 0, %s80
      %s102 = sphi 0, %s104
      %s105 = sphi 0, %s102
      %s106 = sphi 0, %s105
      %s122 = sphi 0, %s106
      %s128 = sphi 0, %s130
      %s131 = sphi 0, %s128
      %s132 = sphi 0, %s131
      %s148 = sphi 0, %s132
      %s152 = sphi 0, %s152
      %s154 = sphi 0, %s152
      %s155 = sphi 0, %s154
      %s169 = sphi 0, %s155
      %s173 = sphi 0, %s173
      %s175 = sphi 0, %s173
      %s176 = sphi 0, %s175
      %s190 = sphi 0, %s176
      %s194 = sphi 0, %s194
      %s196 = sphi 0, %s194
      %s197 = sphi 0, %s196
      %s211 = sphi 0, %s197
      %s215 = sphi 0, %s215
      %s217 = sphi 0, %s215
      %s218 = sphi 0, %s217
      %s232 = sphi 0, %s218
      %s236 = sphi 0, %s236
      %s238 = sphi 0, %s236
      %s239 = sphi 0, %s238
      %s253 = sphi 0, %s239
      %s257 = sphi 0, %s257
      %s259 = sphi 0, %s257
      %s260 = sphi 0, %s259
      %s274 = sphi 0, %s260
      %s278 = sphi 0, %s278
      %s280 = sphi 0, %s278
      %s281 = sphi 0, %s280
      %s295 = sphi 0, %s281
      %s299 = sphi 0, %s299
      %s301 = sphi 0, %s299
      %s302 = sphi 0, %s301
      %s316 = sphi 0, %s302
      %s320 = sphi 0, %s320
      %s322 = sphi 0, %s320
      %s323 = sphi 0, %s322
      %s337 = sphi 0, %s323
      %s341 = sphi 0, %s341
      %s343 = sphi 0, %s341
      %s344 = sphi 0, %s343
      %s358 = sphi 0, %s344
      %s366 = sphi 0, %s368
      %s369 = sphi 0, %s366
      %s370 = sphi 0, %s369
      %s386 = sphi 0, %s370
    $region4: #{transformer_clustering_forward.16} parent=1 // loop_header_branch
      %27 = sbr.rel (%p25) target = $region8
    $region5: #{transformer_clustering_forward.16} parent=1 // loop_body
      %s29 = ssub.s32 %s24, 1
      %s30 = ssub.s32 %s24, 2
      %s37 = sadd.s32 1, %s32
      %p38 = scmp.ge.s32.totalorder %s37, 1
      %s39 = scalar_select %p38, 0, %s37
      %s40 = sadd.s32 1, %s31
      %s41 = scalar_select %p38, %s40, %s31
      %p42 = scmp.ge.s32.totalorder %s41, 2
      %s43 = scalar_select %p42, 0, %s41
      %s44 = ssub.s32 %s31, %s43
      %s45 = ssub.s32 %s32, %s39
      %s46 = sor.u32 %s44, %s45
      %p47 = scmp.eq.s32.totalorder %s46, 0
      %s49 = sadd.s32 %s48, 1
      %s50 = scalar_select %p47, %s48, %s49
      %p53 = pneg %p47
      %p54 = scmp.eq.s32.totalorder %s24, 1
      %p55 = por %p53, %p54
      %p56 = scmp.ne.s32.totalorder %s48, %s51
      %p57 = scmp.eq.s32.totalorder %s24, 0
      %p58 = por %p56, %p57
      %p59 = scmp.ne.s32.totalorder %s48, %s51
      %p60 = scmp.eq.s32.totalorder %s29, 1
      %p61 = por %p59, %p60
      %p62 = scmp.ne.s32.totalorder %s51, %s52
      %p63 = scmp.eq.s32.totalorder %s29, 0
      %p64 = por %p62, %p63
      %p65 = scmp.ne.s32.totalorder %s51, %s52
      %p66 = scmp.eq.s32.totalorder %s30, 1
      %p67 = por %p65, %p66
      %p69 = scmp.ne.s32.totalorder %s52, %s68
      %p70 = scmp.eq.s32.totalorder %s30, 0
      %p71 = por %p69, %p70
      %s72 = ssub.s32 %s31, %s43
      %s73 = ssub.s32 %s32, %s39
      %s74 = sor.u32 %s72, %s73
      %p75 = scmp.eq.s32.totalorder %s74, 0
      %s77 = sadd.s32 %s76, 1
      %s78 = scalar_select %p75, %s76, %s77
      %p81 = pneg %p75
      %p82 = scmp.eq.s32.totalorder %s24, 1
      %p83 = por %p81, %p82
      %p84 = scmp.ne.s32.totalorder %s76, %s79
      %p85 = scmp.eq.s32.totalorder %s24, 0
      %p86 = por %p84, %p85
      %p87 = scmp.ne.s32.totalorder %s76, %s79
      %p88 = scmp.eq.s32.totalorder %s29, 1
      %p89 = por %p87, %p88
      %p90 = scmp.ne.s32.totalorder %s79, %s80
      %p91 = scmp.eq.s32.totalorder %s29, 0
      %p92 = por %p90, %p91
      %p93 = scmp.ne.s32.totalorder %s79, %s80
      %p94 = scmp.eq.s32.totalorder %s30, 1
      %p95 = por %p93, %p94
      %p97 = scmp.ne.s32.totalorder %s80, %s96
      %p98 = scmp.eq.s32.totalorder %s30, 0
      %p99 = por %p97, %p98
      %s100 = ssub.s32 %s31, %s43
      %p101 = scmp.eq.s32.totalorder %s100, 0
      %s103 = sadd.s32 %s102, 1
      %s104 = scalar_select %p101, %s102, %s103
      %p107 = pneg %p101
      %p108 = scmp.eq.s32.totalorder %s24, 1
      %p109 = por %p107, %p108
      %p110 = scmp.ne.s32.totalorder %s102, %s105
      %p111 = scmp.eq.s32.totalorder %s24, 0
      %p112 = por %p110, %p111
      %p113 = scmp.ne.s32.totalorder %s102, %s105
      %p114 = scmp.eq.s32.totalorder %s29, 1
      %p115 = por %p113, %p114
      %p116 = scmp.ne.s32.totalorder %s105, %s106
      %p117 = scmp.eq.s32.totalorder %s29, 0
      %p118 = por %p116, %p117
      %p119 = scmp.ne.s32.totalorder %s105, %s106
      %p120 = scmp.eq.s32.totalorder %s30, 1
      %p121 = por %p119, %p120
      %p123 = scmp.ne.s32.totalorder %s106, %s122
      %p124 = scmp.eq.s32.totalorder %s30, 0
      %p125 = por %p123, %p124
      %s126 = ssub.s32 %s31, %s43
      %p127 = scmp.eq.s32.totalorder %s126, 0
      %s129 = sadd.s32 %s128, 1
      %s130 = scalar_select %p127, %s128, %s129
      %p133 = pneg %p127
      %p134 = scmp.eq.s32.totalorder %s24, 1
      %p135 = por %p133, %p134
      %p136 = scmp.ne.s32.totalorder %s128, %s131
      %p137 = scmp.eq.s32.totalorder %s24, 0
      %p138 = por %p136, %p137
      %p139 = scmp.ne.s32.totalorder %s128, %s131
      %p140 = scmp.eq.s32.totalorder %s29, 1
      %p141 = por %p139, %p140
      %p142 = scmp.ne.s32.totalorder %s131, %s132
      %p143 = scmp.eq.s32.totalorder %s29, 0
      %p144 = por %p142, %p143
      %p145 = scmp.ne.s32.totalorder %s131, %s132
      %p146 = scmp.eq.s32.totalorder %s30, 1
      %p147 = por %p145, %p146
      %p149 = scmp.ne.s32.totalorder %s132, %s148
      %p150 = scmp.eq.s32.totalorder %s30, 0
      %p151 = por %p149, %p150
      %s153 = sadd.s32 %s152, 1
      %p156 = scmp.eq.s32.totalorder %s24, 1
      %p157 = scmp.ne.s32.totalorder %s152, %s154
      %p158 = scmp.eq.s32.totalorder %s24, 0
      %p159 = por %p157, %p158
      %p160 = scmp.ne.s32.totalorder %s152, %s154
      %p161 = scmp.eq.s32.totalorder %s29, 1
      %p162 = por %p160, %p161
      %p163 = scmp.ne.s32.totalorder %s154, %s155
      %p164 = scmp.eq.s32.totalorder %s29, 0
      %p165 = por %p163, %p164
      %p166 = scmp.ne.s32.totalorder %s154, %s155
      %p167 = scmp.eq.s32.totalorder %s30, 1
      %p168 = por %p166, %p167
      %p170 = scmp.ne.s32.totalorder %s155, %s169
      %p171 = scmp.eq.s32.totalorder %s30, 0
      %p172 = por %p170, %p171
      %s174 = sadd.s32 %s173, 1
      %p177 = scmp.eq.s32.totalorder %s24, 1
      %p178 = scmp.ne.s32.totalorder %s173, %s175
      %p179 = scmp.eq.s32.totalorder %s24, 0
      %p180 = por %p178, %p179
      %p181 = scmp.ne.s32.totalorder %s173, %s175
      %p182 = scmp.eq.s32.totalorder %s29, 1
      %p183 = por %p181, %p182
      %p184 = scmp.ne.s32.totalorder %s175, %s176
      %p185 = scmp.eq.s32.totalorder %s29, 0
      %p186 = por %p184, %p185
      %p187 = scmp.ne.s32.totalorder %s175, %s176
      %p188 = scmp.eq.s32.totalorder %s30, 1
      %p189 = por %p187, %p188
      %p191 = scmp.ne.s32.totalorder %s176, %s190
      %p192 = scmp.eq.s32.totalorder %s30, 0
      %p193 = por %p191, %p192
      %s195 = sadd.s32 %s194, 1
      %p198 = scmp.eq.s32.totalorder %s24, 1
      %p199 = scmp.ne.s32.totalorder %s194, %s196
      %p200 = scmp.eq.s32.totalorder %s24, 0
      %p201 = por %p199, %p200
      %p202 = scmp.ne.s32.totalorder %s194, %s196
      %p203 = scmp.eq.s32.totalorder %s29, 1
      %p204 = por %p202, %p203
      %p205 = scmp.ne.s32.totalorder %s196, %s197
      %p206 = scmp.eq.s32.totalorder %s29, 0
      %p207 = por %p205, %p206
      %p208 = scmp.ne.s32.totalorder %s196, %s197
      %p209 = scmp.eq.s32.totalorder %s30, 1
      %p210 = por %p208, %p209
      %p212 = scmp.ne.s32.totalorder %s197, %s211
      %p213 = scmp.eq.s32.totalorder %s30, 0
      %p214 = por %p212, %p213
      %s216 = sadd.s32 %s215, 1
      %p219 = scmp.eq.s32.totalorder %s24, 1
      %p220 = scmp.ne.s32.totalorder %s215, %s217
      %p221 = scmp.eq.s32.totalorder %s24, 0
      %p222 = por %p220, %p221
      %p223 = scmp.ne.s32.totalorder %s215, %s217
      %p224 = scmp.eq.s32.totalorder %s29, 1
      %p225 = por %p223, %p224
      %p226 = scmp.ne.s32.totalorder %s217, %s218
      %p227 = scmp.eq.s32.totalorder %s29, 0
      %p228 = por %p226, %p227
      %p229 = scmp.ne.s32.totalorder %s217, %s218
      %p230 = scmp.eq.s32.totalorder %s30, 1
      %p231 = por %p229, %p230
      %p233 = scmp.ne.s32.totalorder %s218, %s232
      %p234 = scmp.eq.s32.totalorder %s30, 0
      %p235 = por %p233, %p234
      %s237 = sadd.s32 %s236, 1
      %p240 = scmp.eq.s32.totalorder %s24, 1
      %p241 = scmp.ne.s32.totalorder %s236, %s238
      %p242 = scmp.eq.s32.totalorder %s24, 0
      %p243 = por %p241, %p242
      %p244 = scmp.ne.s32.totalorder %s236, %s238
      %p245 = scmp.eq.s32.totalorder %s29, 1
      %p246 = por %p244, %p245
      %p247 = scmp.ne.s32.totalorder %s238, %s239
      %p248 = scmp.eq.s32.totalorder %s29, 0
      %p249 = por %p247, %p248
      %p250 = scmp.ne.s32.totalorder %s238, %s239
      %p251 = scmp.eq.s32.totalorder %s30, 1
      %p252 = por %p250, %p251
      %p254 = scmp.ne.s32.totalorder %s239, %s253
      %p255 = scmp.eq.s32.totalorder %s30, 0
      %p256 = por %p254, %p255
      %s258 = sadd.s32 %s257, 1
      %p261 = scmp.eq.s32.totalorder %s24, 1
      %p262 = scmp.ne.s32.totalorder %s257, %s259
      %p263 = scmp.eq.s32.totalorder %s24, 0
      %p264 = por %p262, %p263
      %p265 = scmp.ne.s32.totalorder %s257, %s259
      %p266 = scmp.eq.s32.totalorder %s29, 1
      %p267 = por %p265, %p266
      %p268 = scmp.ne.s32.totalorder %s259, %s260
      %p269 = scmp.eq.s32.totalorder %s29, 0
      %p270 = por %p268, %p269
      %p271 = scmp.ne.s32.totalorder %s259, %s260
      %p272 = scmp.eq.s32.totalorder %s30, 1
      %p273 = por %p271, %p272
      %p275 = scmp.ne.s32.totalorder %s260, %s274
      %p276 = scmp.eq.s32.totalorder %s30, 0
      %p277 = por %p275, %p276
      %s279 = sadd.s32 %s278, 1
      %p282 = scmp.eq.s32.totalorder %s24, 1
      %p283 = scmp.ne.s32.totalorder %s278, %s280
      %p284 = scmp.eq.s32.totalorder %s24, 0
      %p285 = por %p283, %p284
      %p286 = scmp.ne.s32.totalorder %s278, %s280
      %p287 = scmp.eq.s32.totalorder %s29, 1
      %p288 = por %p286, %p287
      %p289 = scmp.ne.s32.totalorder %s280, %s281
      %p290 = scmp.eq.s32.totalorder %s29, 0
      %p291 = por %p289, %p290
      %p292 = scmp.ne.s32.totalorder %s280, %s281
      %p293 = scmp.eq.s32.totalorder %s30, 1
      %p294 = por %p292, %p293
      %p296 = scmp.ne.s32.totalorder %s281, %s295
      %p297 = scmp.eq.s32.totalorder %s30, 0
      %p298 = por %p296, %p297
      %s300 = sadd.s32 %s299, 1
      %p303 = scmp.eq.s32.totalorder %s24, 1
      %p304 = scmp.ne.s32.totalorder %s299, %s301
      %p305 = scmp.eq.s32.totalorder %s24, 0
      %p306 = por %p304, %p305
      %p307 = scmp.ne.s32.totalorder %s299, %s301
      %p308 = scmp.eq.s32.totalorder %s29, 1
      %p309 = por %p307, %p308
      %p310 = scmp.ne.s32.totalorder %s301, %s302
      %p311 = scmp.eq.s32.totalorder %s29, 0
      %p312 = por %p310, %p311
      %p313 = scmp.ne.s32.totalorder %s301, %s302
      %p314 = scmp.eq.s32.totalorder %s30, 1
      %p315 = por %p313, %p314
      %p317 = scmp.ne.s32.totalorder %s302, %s316
      %p318 = scmp.eq.s32.totalorder %s30, 0
      %p319 = por %p317, %p318
      %s321 = sadd.s32 %s320, 1
      %p324 = scmp.eq.s32.totalorder %s24, 1
      %p325 = scmp.ne.s32.totalorder %s320, %s322
      %p326 = scmp.eq.s32.totalorder %s24, 0
      %p327 = por %p325, %p326
      %p328 = scmp.ne.s32.totalorder %s320, %s322
      %p329 = scmp.eq.s32.totalorder %s29, 1
      %p330 = por %p328, %p329
      %p331 = scmp.ne.s32.totalorder %s322, %s323
      %p332 = scmp.eq.s32.totalorder %s29, 0
      %p333 = por %p331, %p332
      %p334 = scmp.ne.s32.totalorder %s322, %s323
      %p335 = scmp.eq.s32.totalorder %s30, 1
      %p336 = por %p334, %p335
      %p338 = scmp.ne.s32.totalorder %s323, %s337
      %p339 = scmp.eq.s32.totalorder %s30, 0
      %p340 = por %p338, %p339
      %s342 = sadd.s32 %s341, 1
      %p345 = scmp.eq.s32.totalorder %s24, 1
      %p346 = scmp.ne.s32.totalorder %s341, %s343
      %p347 = scmp.eq.s32.totalorder %s24, 0
      %p348 = por %p346, %p347
      %p349 = scmp.ne.s32.totalorder %s341, %s343
      %p350 = scmp.eq.s32.totalorder %s29, 1
      %p351 = por %p349, %p350
      %p352 = scmp.ne.s32.totalorder %s343, %s344
      %p353 = scmp.eq.s32.totalorder %s29, 0
      %p354 = por %p352, %p353
      %p355 = scmp.ne.s32.totalorder %s343, %s344
      %p356 = scmp.eq.s32.totalorder %s30, 1
      %p357 = por %p355, %p356
      %p359 = scmp.ne.s32.totalorder %s344, %s358
      %p360 = scmp.eq.s32.totalorder %s30, 0
      %p361 = por %p359, %p360
      %s362 = ssub.s32 %s31, %s43
      %s363 = ssub.s32 %s32, %s39
      %s364 = sor.u32 %s362, %s363
      %p365 = scmp.eq.s32.totalorder %s364, 0
      %s367 = sadd.s32 %s366, 1
      %s368 = scalar_select %p365, %s366, %s367
      %p371 = pneg %p365
      %p372 = scmp.eq.s32.totalorder %s24, 1
      %p373 = por %p371, %p372
      %p374 = scmp.ne.s32.totalorder %s366, %s369
      %p375 = scmp.eq.s32.totalorder %s24, 0
      %p376 = por %p374, %p375
      %p377 = scmp.ne.s32.totalorder %s366, %s369
      %p378 = scmp.eq.s32.totalorder %s29, 1
      %p379 = por %p377, %p378
      %p380 = scmp.ne.s32.totalorder %s369, %s370
      %p381 = scmp.eq.s32.totalorder %s29, 0
      %p382 = por %p380, %p381
      %p383 = scmp.ne.s32.totalorder %s369, %s370
      %p384 = scmp.eq.s32.totalorder %s30, 1
      %p385 = por %p383, %p384
      %p387 = scmp.ne.s32.totalorder %s370, %s386
      %p388 = scmp.eq.s32.totalorder %s30, 0
      %p389 = por %p387, %p388
      %p390 = scmp.le.s32.totalorder 1, %s24
      %p391 = scmp.lt.s32.totalorder %s24, 3
      %p392 = pnand %p390, %p391
      %p393 = pneg %p392
      // Predicated region
      $region9: #{transformer_clustering_forward.16} parent=5 // pred_check
        _
      $region10: #{transformer_clustering_forward.16} parent=5 // pred_check_branch
        %395 = sbr.rel (%p392) target = $region12
      $region11: #{transformer_clustering_forward.16} parent=5 // pred_region
        %s396 = ssub.s32 %s24, 1
        // Predicated region
        $region13: #{transformer_clustering_forward.16} parent=11 // pred_check
          %p397 = pneg %p165
        $region14: #{transformer_clustering_forward.16} parent=11 // pred_check_branch
          %399 = sbr.rel (%p397) target = $region16
        $region15: #{transformer_clustering_forward.16} parent=11 // pred_region
          _
        $region16: #{transformer_clustering_forward.16} parent=11 // pred_fallthru
          _
        // Predicated region
        $region17: #{transformer_clustering_forward.16} parent=11 // pred_check
          %p400 = pneg %p186
        $region18: #{transformer_clustering_forward.16} parent=11 // pred_check_branch
          %402 = sbr.rel (%p400) target = $region20
        $region19: #{transformer_clustering_forward.16} parent=11 // pred_region
          _
        $region20: #{transformer_clustering_forward.16} parent=11 // pred_fallthru
          _
        // Predicated region
        $region21: #{transformer_clustering_forward.16} parent=11 // pred_check
          %p403 = pneg %p207
        $region22: #{transformer_clustering_forward.16} parent=11 // pred_check_branch
          %405 = sbr.rel (%p403) target = $region24
        $region23: #{transformer_clustering_forward.16} parent=11 // pred_region
          _
        $region24: #{transformer_clustering_forward.16} parent=11 // pred_fallthru
          _
        // Predicated region
        $region25: #{transformer_clustering_forward.16} parent=11 // pred_check
          %p406 = pneg %p228
        $region26: #{transformer_clustering_forward.16} parent=11 // pred_check_branch
          %408 = sbr.rel (%p406) target = $region28
        $region27: #{transformer_clustering_forward.16} parent=11 // pred_region
          %s410 = ssub.s32 16, 16
          %411 = vsyncadd [#allocation3], %s410
          %s413 = sshll.u32 [#allocation2], 4
          %s414 = int_to_ptr.vmem [resolvable:$true] %s413
          %416 = dma.hbm_to_vmem [thread:$0]  %s7, 16, %s414, [#allocation3]
        $region28: #{transformer_clustering_forward.16} parent=11 // pred_fallthru
          _
        // Predicated region
        $region29: #{transformer_clustering_forward.16} parent=11 // pred_check
          %p417 = pneg %p249
        $region30: #{transformer_clustering_forward.16} parent=11 // pred_check_branch
          %419 = sbr.rel (%p417) target = $region32
        $region31: #{transformer_clustering_forward.16} parent=11 // pred_region
          _
        $region32: #{transformer_clustering_forward.16} parent=11 // pred_fallthru
          _
        // Predicated region
        $region33: #{transformer_clustering_forward.16} parent=11 // pred_check
          %p420 = pneg %p270
        $region34: #{transformer_clustering_forward.16} parent=11 // pred_check_branch
          %422 = sbr.rel (%p420) target = $region36
        $region35: #{transformer_clustering_forward.16} parent=11 // pred_region
          %s424 = ssub.s32 16, 16
          %425 = vsyncadd [#allocation5], %s424
          %s427 = sshll.u32 [#allocation4], 4
          %s428 = int_to_ptr.vmem [resolvable:$true] %s427
          %430 = dma.hbm_to_vmem [thread:$0]  %s9, 16, %s428, [#allocation5]
        $region36: #{transformer_clustering_forward.16} parent=11 // pred_fallthru
          _
        // Predicated region
        $region37: #{transformer_clustering_forward.16} parent=11 // pred_check
          %p431 = pneg %p291
        $region38: #{transformer_clustering_forward.16} parent=11 // pred_check_branch
          %433 = sbr.rel (%p431) target = $region40
        $region39: #{transformer_clustering_forward.16} parent=11 // pred_region
          %s435 = ssub.s32 1024, 1024
          %436 = vsyncadd [#allocation5], %s435
          %s437 = sshll.u32 [#allocation6], 4
          %s438 = int_to_ptr.vmem [resolvable:$true] %s437
          %443 = dma.hbm_to_vmem [thread:$0]  %s10, 1024, %s438, [#allocation5], 64, 64, 4
        $region40: #{transformer_clustering_forward.16} parent=11 // pred_fallthru
          _
        // Predicated region
        $region41: #{transformer_clustering_forward.16} parent=11 // pred_check
          %p444 = pneg %p312
        $region42: #{transformer_clustering_forward.16} parent=11 // pred_check_branch
          %446 = sbr.rel (%p444) target = $region44
        $region43: #{transformer_clustering_forward.16} parent=11 // pred_region
          %s448 = ssub.s32 16, 16
          %449 = vsyncadd [#allocation8], %s448
          %s451 = sshll.u32 [#allocation7], 4
          %s452 = int_to_ptr.vmem [resolvable:$true] %s451
          %454 = dma.hbm_to_vmem [thread:$0]  %s11, 16, %s452, [#allocation8]
        $region44: #{transformer_clustering_forward.16} parent=11 // pred_fallthru
          _
        // Predicated region
        $region45: #{transformer_clustering_forward.16} parent=11 // pred_check
          %p455 = pneg %p333
        $region46: #{transformer_clustering_forward.16} parent=11 // pred_check_branch
          %457 = sbr.rel (%p455) target = $region48
        $region47: #{transformer_clustering_forward.16} parent=11 // pred_region
          %s459 = ssub.s32 16, 16
          %460 = vsyncadd [#allocation8], %s459
          %s462 = sshll.u32 [#allocation9], 4
          %s463 = int_to_ptr.vmem [resolvable:$true] %s462
          %465 = dma.hbm_to_vmem [thread:$0]  %s12, 16, %s463, [#allocation8]
        $region48: #{transformer_clustering_forward.16} parent=11 // pred_fallthru
          _
        // Predicated region
        $region49: #{transformer_clustering_forward.16} parent=11 // pred_check
          %p466 = pneg %p354
        $region50: #{transformer_clustering_forward.16} parent=11 // pred_check_branch
          %468 = sbr.rel (%p466) target = $region52
        $region51: #{transformer_clustering_forward.16} parent=11 // pred_region
          %s470 = ssub.s32 16, 16
          %471 = vsyncadd [#allocation11], %s470
          %s473 = sshll.u32 [#allocation10], 4
          %s474 = int_to_ptr.vmem [resolvable:$true] %s473
          %476 = dma.hbm_to_vmem [thread:$0]  %s13, 16, %s474, [#allocation11]
        $region52: #{transformer_clustering_forward.16} parent=11 // pred_fallthru
          _
      $region12: #{transformer_clustering_forward.16} parent=5 // pred_fallthru
        _
      %p477 = scmp.lt.s32.totalorder %s24, 2
      // Predicated region
      $region53: #{transformer_clustering_forward.16} parent=5 // pred_check
        %p478 = pneg %p477
      $region54: #{transformer_clustering_forward.16} parent=5 // pred_check_branch
        %480 = sbr.rel (%p478) target = $region56
      $region55: #{transformer_clustering_forward.16} parent=5 // pred_region
        // Predicated region
        $region57: #{transformer_clustering_forward.16} parent=55 // pred_check
          %p481 = pneg %p58
        $region58: #{transformer_clustering_forward.16} parent=55 // pred_check_branch
          %483 = sbr.rel (%p481) target = $region60
        $region59: #{transformer_clustering_forward.16} parent=55 // pred_region
          %p484 = scmp.lt.s32.totalorder %s31, 1
          %s485 = scalar_select %p484, %s31, 1
          %p486 = scmp.lt.s32.totalorder %s32, 0
          %s487 = scalar_select %p486, %s32, 0
          %s488 = sadd.s32 %s487, %s485
          %s489 = smul.addr %s488, 8
          %s490 = scalar_lea.vmem %s0, %s489
        $region60: #{transformer_clustering_forward.16} parent=55 // pred_fallthru
          _
        // Predicated region
        $region61: #{transformer_clustering_forward.16} parent=55 // pred_check
          %p491 = pneg %p86
        $region62: #{transformer_clustering_forward.16} parent=55 // pred_check_branch
          %493 = sbr.rel (%p491) target = $region64
        $region63: #{transformer_clustering_forward.16} parent=55 // pred_region
          %p494 = scmp.lt.s32.totalorder %s31, 1
          %s495 = scalar_select %p494, %s31, 1
          %p496 = scmp.lt.s32.totalorder %s32, 0
          %s497 = scalar_select %p496, %s32, 0
          %s498 = sadd.s32 %s497, %s495
          %s499 = smul.addr %s498, 8
          %s500 = scalar_lea.vmem %s1, %s499
        $region64: #{transformer_clustering_forward.16} parent=55 // pred_fallthru
          _
        // Predicated region
        $region65: #{transformer_clustering_forward.16} parent=55 // pred_check
          %p501 = pneg %p112
        $region66: #{transformer_clustering_forward.16} parent=55 // pred_check_branch
          %503 = sbr.rel (%p501) target = $region68
        $region67: #{transformer_clustering_forward.16} parent=55 // pred_region
          %p504 = scmp.lt.s32.totalorder %s31, 1
          %s505 = scalar_select %p504, %s31, 1
          %s506 = smul.addr %s505, 8
          %s507 = scalar_lea.vmem %s2, %s506
        $region68: #{transformer_clustering_forward.16} parent=55 // pred_fallthru
          _
        // Predicated region
        $region69: #{transformer_clustering_forward.16} parent=55 // pred_check
          %p508 = pneg %p138
        $region70: #{transformer_clustering_forward.16} parent=55 // pred_check_branch
          %510 = sbr.rel (%p508) target = $region72
        $region71: #{transformer_clustering_forward.16} parent=55 // pred_region
          %p511 = scmp.lt.s32.totalorder %s31, 1
          %s512 = scalar_select %p511, %s31, 1
          %s513 = smul.addr %s512, 8
          %s514 = scalar_lea.vmem %s3, %s513
        $region72: #{transformer_clustering_forward.16} parent=55 // pred_fallthru
          _
      $region56: #{transformer_clustering_forward.16} parent=5 // pred_fallthru
        _
      %p515 = scmp.le.s32.totalorder 1, %s24
      %p516 = scmp.lt.s32.totalorder %s24, 3
      %p517 = pnand %p515, %p516
      %p518 = pneg %p517
      // Predicated region
      $region73: #{transformer_clustering_forward.16} parent=5 // pred_check
        _
      $region74: #{transformer_clustering_forward.16} parent=5 // pred_check_branch
        %520 = sbr.rel (%p517) target = $region76
      $region75: #{transformer_clustering_forward.16} parent=5 // pred_region
        %s521 = ssub.s32 %s24, 1
        // Predicated region
        $region77: #{transformer_clustering_forward.16} parent=75 // pred_check
          %p522 = pneg %p228
        $region78: #{transformer_clustering_forward.16} parent=75 // pred_check_branch
          %524 = sbr.rel (%p522) target = $region80
        $region79: #{transformer_clustering_forward.16} parent=75 // pred_region
          %525 = dma.done [#allocation3], 16
        $region80: #{transformer_clustering_forward.16} parent=75 // pred_fallthru
          _
        // Predicated region
        $region81: #{transformer_clustering_forward.16} parent=75 // pred_check
          %p526 = pneg %p270
        $region82: #{transformer_clustering_forward.16} parent=75 // pred_check_branch
          %528 = sbr.rel (%p526) target = $region84
        $region83: #{transformer_clustering_forward.16} parent=75 // pred_region
          %529 = dma.done [#allocation5], 16
        $region84: #{transformer_clustering_forward.16} parent=75 // pred_fallthru
          _
        // Predicated region
        $region85: #{transformer_clustering_forward.16} parent=75 // pred_check
          %p530 = pneg %p291
        $region86: #{transformer_clustering_forward.16} parent=75 // pred_check_branch
          %532 = sbr.rel (%p530) target = $region88
        $region87: #{transformer_clustering_forward.16} parent=75 // pred_region
          %533 = dma.done [#allocation5], 1024
        $region88: #{transformer_clustering_forward.16} parent=75 // pred_fallthru
          _
        // Predicated region
        $region89: #{transformer_clustering_forward.16} parent=75 // pred_check
          %p534 = pneg %p312
        $region90: #{transformer_clustering_forward.16} parent=75 // pred_check_branch
          %536 = sbr.rel (%p534) target = $region92
        $region91: #{transformer_clustering_forward.16} parent=75 // pred_region
          %537 = dma.done [#allocation8], 16
        $region92: #{transformer_clustering_forward.16} parent=75 // pred_fallthru
          _
        // Predicated region
        $region93: #{transformer_clustering_forward.16} parent=75 // pred_check
          %p538 = pneg %p333
        $region94: #{transformer_clustering_forward.16} parent=75 // pred_check_branch
          %540 = sbr.rel (%p538) target = $region96
        $region95: #{transformer_clustering_forward.16} parent=75 // pred_region
          %541 = dma.done [#allocation8], 16
        $region96: #{transformer_clustering_forward.16} parent=75 // pred_fallthru
          _
        // Predicated region
        $region97: #{transformer_clustering_forward.16} parent=75 // pred_check
          %p542 = pneg %p354
        $region98: #{transformer_clustering_forward.16} parent=75 // pred_check_branch
          %544 = sbr.rel (%p542) target = $region100
        $region99: #{transformer_clustering_forward.16} parent=75 // pred_region
          %545 = dma.done [#allocation11], 16
        $region100: #{transformer_clustering_forward.16} parent=75 // pred_fallthru
          _
        %p546 = scmp.lt.s32.totalorder %s33, 1
        %s547 = scalar_select %p546, %s33, 1
        %p548 = scmp.lt.s32.totalorder %s34, 0
        %s549 = scalar_select %p548, %s34, 0
        %s550 = sadd.s32 %s549, %s547
        %s551 = smul.addr %s550, 8
        %s552 = scalar_lea.vmem %s0, %s551
        %p553 = pneg %p64
        %p554 = pneg %p61
        %p555 = scmp.lt.s32.totalorder %s33, 1
        %s556 = scalar_select %p555, %s33, 1
        %p557 = scmp.lt.s32.totalorder %s34, 0
        %s558 = scalar_select %p557, %s34, 0
        %s559 = sadd.s32 %s558, %s556
        %s560 = smul.addr %s559, 8
        %s561 = scalar_lea.vmem %s1, %s560
        %p562 = pneg %p92
        %p563 = pneg %p89
        %p564 = scmp.lt.s32.totalorder %s33, 1
        %s565 = scalar_select %p564, %s33, 1
        %s566 = smul.addr %s565, 8
        %s567 = scalar_lea.vmem %s2, %s566
        %p568 = pneg %p118
        %p569 = pneg %p115
        %p570 = scmp.lt.s32.totalorder %s33, 1
        %s571 = scalar_select %p570, %s33, 1
        %s572 = smul.addr %s571, 8
        %s573 = scalar_lea.vmem %s3, %s572
        %p574 = pneg %p144
        %p575 = pneg %p141
        %p576 = pneg %p165
        %p577 = pneg %p162
        %p578 = pneg %p186
        %p579 = pneg %p183
        %p580 = pneg %p207
        %p581 = pneg %p204
        %p582 = pneg %p228
        %p583 = pneg %p225
        %p584 = pneg %p249
        %p585 = pneg %p246
        %p586 = pneg %p270
        %p587 = pneg %p267
        %p588 = pneg %p291
        %p589 = pneg %p288
        %p590 = pneg %p312
        %p591 = pneg %p309
        %p592 = pneg %p333
        %p593 = pneg %p330
        %p594 = pneg %p354
        %p595 = pneg %p351
        %p596 = pneg %p382
        %p597 = pneg %p379
        %p598 = scmp.lt.s32.totalorder %s33, 1
        %s599 = scalar_select %p598, %s33, 1
        %p600 = scmp.lt.s32.totalorder %s34, 0
        %s601 = scalar_select %p600, %s34, 0
        %s602 = sadd.s32 %s601, %s599
        %s603 = smul.addr %s602, 8
        %s604 = scalar_lea.vmem %s14, %s603
        %p605 = scmp.lt.s32.totalorder %s33, 1
        %s606 = scalar_select %p605, %s33, 1
        %p607 = scmp.lt.s32.totalorder %s34, 0
        %s608 = scalar_select %p607, %s34, 0
        %s609 = sadd.s32 %s608, %s606
        %s610 = smul.addr %s609, 8
        %s611 = scalar_lea.vmem %s0, %s610
        %p612 = scmp.lt.s32.totalorder %s33, 1
        %s613 = scalar_select %p612, %s33, 1
        %p614 = scmp.lt.s32.totalorder %s34, 0
        %s615 = scalar_select %p614, %s34, 0
        %s616 = sadd.s32 %s615, %s613
        %s617 = smul.addr %s616, 8
        %s618 = scalar_lea.vmem %s1, %s617
        %p619 = scmp.lt.s32.totalorder %s33, 1
        %s620 = scalar_select %p619, %s33, 1
        %s621 = smul.addr %s620, 8
        %s622 = scalar_lea.vmem %s2, %s621
        %p623 = scmp.lt.s32.totalorder %s33, 1
        %s624 = scalar_select %p623, %s33, 1
        %s625 = smul.addr %s624, 8
        %s626 = scalar_lea.vmem %s3, %s625
        %p627 = scmp.lt.s32.totalorder %s33, 1
        %s628 = scalar_select %p627, %s33, 1
        %p629 = scmp.lt.s32.totalorder %s34, 0
        %s630 = scalar_select %p629, %s34, 0
        %s631 = sadd.s32 %s630, %s628
        %s632 = smul.addr %s631, 8
        %s633 = scalar_lea.vmem %s14, %s632
        %v635 = vld [vmem:[%s611] sm:$0xff]
        %v636 = vld [vmem:[%s618] sm:$0xff]
        %v637 = vadd.f32 %v635, %v636
        %v638 = vld [vmem:[%s622] sm:$0xff]
        %v639 = vld [vmem:[%s626] sm:$0xff]
        %v640 = vadd.f32 %v638, %v639
        %v641 = vpack.c.bf16 %v637, %v637
        %v642 = vld [vmem:[%s4] sm:$0xf]
        %v643 = vld [vmem:[%s4 + $0x4] sm:$0xf]
        %v644 = vld [vmem:[%s4 + $0x8] sm:$0xf]
        %v645 = vld [vmem:[%s4 + $0xc] sm:$0xf]
        %v646 = vld [vmem:[%s4 + $0x10] sm:$0xf]
        %v647 = vld [vmem:[%s4 + $0x14] sm:$0xf]
        %v648 = vld [vmem:[%s4 + $0x18] sm:$0xf]
        %v649 = vld [vmem:[%s4 + $0x1c] sm:$0xf]
        %v650 = vld [vmem:[%s4 + $0x20] sm:$0xf]
        %v651 = vld [vmem:[%s4 + $0x24] sm:$0xf]
        %v652 = vld [vmem:[%s4 + $0x28] sm:$0xf]
        %v653 = vld [vmem:[%s4 + $0x2c] sm:$0xf]
        %v654 = vld [vmem:[%s4 + $0x30] sm:$0xf]
        %v655 = vld [vmem:[%s4 + $0x34] sm:$0xf]
        %v656 = vld [vmem:[%s4 + $0x38] sm:$0xf]
        %v657 = vld [vmem:[%s4 + $0x3c] sm:$0xf]
        %v658 = vld [vmem:[%s5] sm:$0x1]
        %v660 = vlaneseq
        %v661 = vshrl.u32 %v660, 7
        %v662 = vsub.s32 0, %v661
        %v663 = vrot.slane %v658, %v662
        %v681 = vunpack.c.l.b16 %v642
        %v682 = vunpack.c.l.b16 %v643
        %v683 = vunpack.c.l.b16 %v644
        %v684 = vunpack.c.l.b16 %v645
        %v685 = vunpack.c.l.b16 %v646
        %v686 = vunpack.c.l.b16 %v647
        %v687 = vunpack.c.l.b16 %v648
        %v688 = vunpack.c.l.b16 %v649
        %v689 = vunpack.c.l.b16 %v650
        %v690 = vunpack.c.l.b16 %v651
        %v691 = vunpack.c.l.b16 %v652
        %v692 = vunpack.c.l.b16 %v653
        %v693 = vunpack.c.l.b16 %v654
        %v694 = vunpack.c.l.b16 %v655
        %v695 = vunpack.c.l.b16 %v656
        %v696 = vunpack.c.l.b16 %v657
        %v697 = vpack.c.b16 %v682, %v681
        %v698 = vpack.c.b16 %v684, %v683
        %v699 = vpack.c.b16 %v686, %v685
        %v700 = vpack.c.b16 %v688, %v687
        %v701 = vpack.c.b16 %v690, %v689
        %v702 = vpack.c.b16 %v692, %v691
        %v703 = vpack.c.b16 %v694, %v693
        %v704 = vpack.c.b16 %v696, %v695
        %713 = vmatprep.subr.bf16.mxu0 0
        %714 = vmatpush1.bf16.msra.mxu0 %v704
        %715 = vmatprep.subr.bf16.mxu0 0
        %716 = vmatpush1.bf16.msra.mxu0 %v703
        %717 = vmatprep.subr.bf16.mxu0 0
        %718 = vmatpush1.bf16.msra.mxu0 %v702
        %719 = vmatprep.subr.bf16.mxu0 0
        %720 = vmatpush1.bf16.msra.mxu0 %v701
        %721 = vmatprep.subr.bf16.mxu0 0
        %722 = vmatpush1.bf16.msra.mxu0 %v700
        %723 = vmatprep.subr.bf16.mxu0 0
        %724 = vmatpush1.bf16.msra.mxu0 %v699
        %725 = vmatprep.subr.bf16.mxu0 0
        %726 = vmatpush1.bf16.msra.mxu0 %v698
        %727 = vmatprep.subr.bf16.mxu0 0
        %728 = vmatpush1.bf16.msra.mxu0 %v697
        %729 = vmatprep.subr.bf16.mxu0 0
        %730 = vmatpush2.bf16.msra.mxu0 0
        %731 = vmatprep.subr.bf16.mxu0 0
        %732 = vmatpush2.bf16.msra.mxu0 0
        %733 = vmatprep.subr.bf16.mxu0 0
        %734 = vmatpush2.bf16.msra.mxu0 0
        %735 = vmatprep.subr.bf16.mxu0 0
        %736 = vmatpush2.bf16.msra.mxu0 0
        %737 = vmatprep.subr.bf16.mxu0 0
        %738 = vmatpush2.bf16.msra.mxu0 0
        %739 = vmatprep.subr.bf16.mxu0 0
        %740 = vmatpush2.bf16.msra.mxu0 0
        %741 = vmatprep.subr.bf16.mxu0 0
        %742 = vmatpush2.bf16.msra.mxu0 0
        %743 = vmatprep.subr.bf16.mxu0 0
        %744 = vmatpush2.bf16.msra.mxu0 0
        %745 = vmatprep.mubr.bf16.mxu0 0
        %746 = vmatmul.mubr.bf16.gmra.mxu0 %v641
        %v747 = vpop.f32.mrf.mxu0
        %v748 = vadd.f32 %v663, %v747
        %v749 = vpop.f32.mrf.mxu0
        %v750 = vpop.f32.mrf.mxu0
        %v751 = vpop.f32.mrf.mxu0
        %752 = vdwg.mxu0
        %v753 = vpack.c.bf16 %v640, %v640
        %v754 = vld [vmem:[%s6] sm:$0xf]
        %v755 = vld [vmem:[%s6 + $0x4] sm:$0xf]
        %v756 = vld [vmem:[%s6 + $0x8] sm:$0xf]
        %v757 = vld [vmem:[%s6 + $0xc] sm:$0xf]
        %v758 = vld [vmem:[%s6 + $0x10] sm:$0xf]
        %v759 = vld [vmem:[%s6 + $0x14] sm:$0xf]
        %v760 = vld [vmem:[%s6 + $0x18] sm:$0xf]
        %v761 = vld [vmem:[%s6 + $0x1c] sm:$0xf]
        %v762 = vld [vmem:[%s6 + $0x20] sm:$0xf]
        %v763 = vld [vmem:[%s6 + $0x24] sm:$0xf]
        %v764 = vld [vmem:[%s6 + $0x28] sm:$0xf]
        %v765 = vld [vmem:[%s6 + $0x2c] sm:$0xf]
        %v766 = vld [vmem:[%s6 + $0x30] sm:$0xf]
        %v767 = vld [vmem:[%s6 + $0x34] sm:$0xf]
        %v768 = vld [vmem:[%s6 + $0x38] sm:$0xf]
        %v769 = vld [vmem:[%s6 + $0x3c] sm:$0xf]
        %v770 = vld [vmem:[#allocation2] sm:$0x1]
        %v772 = vlaneseq
        %v773 = vshrl.u32 %v772, 7
        %v774 = vsub.s32 0, %v773
        %v775 = vrot.slane %v770, %v774
        %v793 = vunpack.c.l.b16 %v754
        %v794 = vunpack.c.l.b16 %v755
        %v795 = vunpack.c.l.b16 %v756
        %v796 = vunpack.c.l.b16 %v757
        %v797 = vunpack.c.l.b16 %v758
        %v798 = vunpack.c.l.b16 %v759
        %v799 = vunpack.c.l.b16 %v760
        %v800 = vunpack.c.l.b16 %v761
        %v801 = vunpack.c.l.b16 %v762
        %v802 = vunpack.c.l.b16 %v763
        %v803 = vunpack.c.l.b16 %v764
        %v804 = vunpack.c.l.b16 %v765
        %v805 = vunpack.c.l.b16 %v766
        %v806 = vunpack.c.l.b16 %v767
        %v807 = vunpack.c.l.b16 %v768
        %v808 = vunpack.c.l.b16 %v769
        %v809 = vpack.c.b16 %v794, %v793
        %v810 = vpack.c.b16 %v796, %v795
        %v811 = vpack.c.b16 %v798, %v797
        %v812 = vpack.c.b16 %v800, %v799
        %v813 = vpack.c.b16 %v802, %v801
        %v814 = vpack.c.b16 %v804, %v803
        %v815 = vpack.c.b16 %v806, %v805
        %v816 = vpack.c.b16 %v808, %v807
        %825 = vmatprep.subr.bf16.mxu0 0
        %826 = vmatpush1.bf16.msra.mxu0 %v816
        %827 = vmatprep.subr.bf16.mxu0 0
        %828 = vmatpush1.bf16.msra.mxu0 %v815
        %829 = vmatprep.subr.bf16.mxu0 0
        %830 = vmatpush1.bf16.msra.mxu0 %v814
        %831 = vmatprep.subr.bf16.mxu0 0
        %832 = vmatpush1.bf16.msra.mxu0 %v813
        %833 = vmatprep.subr.bf16.mxu0 0
        %834 = vmatpush1.bf16.msra.mxu0 %v812
        %835 = vmatprep.subr.bf16.mxu0 0
        %836 = vmatpush1.bf16.msra.mxu0 %v811
        %837 = vmatprep.subr.bf16.mxu0 0
        %838 = vmatpush1.bf16.msra.mxu0 %v810
        %839 = vmatprep.subr.bf16.mxu0 0
        %840 = vmatpush1.bf16.msra.mxu0 %v809
        %841 = vmatprep.subr.bf16.mxu0 0
        %842 = vmatpush2.bf16.msra.mxu0 0
        %843 = vmatprep.subr.bf16.mxu0 0
        %844 = vmatpush2.bf16.msra.mxu0 0
        %845 = vmatprep.subr.bf16.mxu0 0
        %846 = vmatpush2.bf16.msra.mxu0 0
        %847 = vmatprep.subr.bf16.mxu0 0
        %848 = vmatpush2.bf16.msra.mxu0 0
        %849 = vmatprep.subr.bf16.mxu0 0
        %850 = vmatpush2.bf16.msra.mxu0 0
        %851 = vmatprep.subr.bf16.mxu0 0
        %852 = vmatpush2.bf16.msra.mxu0 0
        %853 = vmatprep.subr.bf16.mxu0 0
        %854 = vmatpush2.bf16.msra.mxu0 0
        %855 = vmatprep.subr.bf16.mxu0 0
        %856 = vmatpush2.bf16.msra.mxu0 0
        %857 = vmatprep.mubr.bf16.mxu0 0
        %858 = vmatmul.mubr.bf16.gmra.mxu0 %v753
        %v859 = vpop.f32.mrf.mxu0
        %v860 = vadd.f32 %v775, %v859
        %v861 = vpop.f32.mrf.mxu0
        %v862 = vpop.f32.mrf.mxu0
        %v863 = vpop.f32.mrf.mxu0
        %864 = vdwg.mxu0
        %v865 = vpack.c.bf16 %v638, %v638
        %v866 = vld [vmem:[%s8] sm:$0xf]
        %v867 = vld [vmem:[%s8 + $0x4] sm:$0xf]
        %v868 = vld [vmem:[%s8 + $0x8] sm:$0xf]
        %v869 = vld [vmem:[%s8 + $0xc] sm:$0xf]
        %v870 = vld [vmem:[%s8 + $0x10] sm:$0xf]
        %v871 = vld [vmem:[%s8 + $0x14] sm:$0xf]
        %v872 = vld [vmem:[%s8 + $0x18] sm:$0xf]
        %v873 = vld [vmem:[%s8 + $0x1c] sm:$0xf]
        %v874 = vld [vmem:[%s8 + $0x20] sm:$0xf]
        %v875 = vld [vmem:[%s8 + $0x24] sm:$0xf]
        %v876 = vld [vmem:[%s8 + $0x28] sm:$0xf]
        %v877 = vld [vmem:[%s8 + $0x2c] sm:$0xf]
        %v878 = vld [vmem:[%s8 + $0x30] sm:$0xf]
        %v879 = vld [vmem:[%s8 + $0x34] sm:$0xf]
        %v880 = vld [vmem:[%s8 + $0x38] sm:$0xf]
        %v881 = vld [vmem:[%s8 + $0x3c] sm:$0xf]
        %v882 = vld [vmem:[#allocation4] sm:$0x1]
        %v884 = vlaneseq
        %v885 = vshrl.u32 %v884, 7
        %v886 = vsub.s32 0, %v885
        %v887 = vrot.slane %v882, %v886
        %v905 = vunpack.c.l.b16 %v866
        %v906 = vunpack.c.l.b16 %v867
        %v907 = vunpack.c.l.b16 %v868
        %v908 = vunpack.c.l.b16 %v869
        %v909 = vunpack.c.l.b16 %v870
        %v910 = vunpack.c.l.b16 %v871
        %v911 = vunpack.c.l.b16 %v872
        %v912 = vunpack.c.l.b16 %v873
        %v913 = vunpack.c.l.b16 %v874
        %v914 = vunpack.c.l.b16 %v875
        %v915 = vunpack.c.l.b16 %v876
        %v916 = vunpack.c.l.b16 %v877
        %v917 = vunpack.c.l.b16 %v878
        %v918 = vunpack.c.l.b16 %v879
        %v919 = vunpack.c.l.b16 %v880
        %v920 = vunpack.c.l.b16 %v881
        %v921 = vpack.c.b16 %v906, %v905
        %v922 = vpack.c.b16 %v908, %v907
        %v923 = vpack.c.b16 %v910, %v909
        %v924 = vpack.c.b16 %v912, %v911
        %v925 = vpack.c.b16 %v914, %v913
        %v926 = vpack.c.b16 %v916, %v915
        %v927 = vpack.c.b16 %v918, %v917
        %v928 = vpack.c.b16 %v920, %v919
        %937 = vmatprep.subr.bf16.mxu0 0
        %938 = vmatpush1.bf16.msra.mxu0 %v928
        %939 = vmatprep.subr.bf16.mxu0 0
        %940 = vmatpush1.bf16.msra.mxu0 %v927
        %941 = vmatprep.subr.bf16.mxu0 0
        %942 = vmatpush1.bf16.msra.mxu0 %v926
        %943 = vmatprep.subr.bf16.mxu0 0
        %944 = vmatpush1.bf16.msra.mxu0 %v925
        %945 = vmatprep.subr.bf16.mxu0 0
        %946 = vmatpush1.bf16.msra.mxu0 %v924
        %947 = vmatprep.subr.bf16.mxu0 0
        %948 = vmatpush1.bf16.msra.mxu0 %v923
        %949 = vmatprep.subr.bf16.mxu0 0
        %950 = vmatpush1.bf16.msra.mxu0 %v922
        %951 = vmatprep.subr.bf16.mxu0 0
        %952 = vmatpush1.bf16.msra.mxu0 %v921
        %953 = vmatprep.subr.bf16.mxu0 0
        %954 = vmatpush2.bf16.msra.mxu0 0
        %955 = vmatprep.subr.bf16.mxu0 0
        %956 = vmatpush2.bf16.msra.mxu0 0
        %957 = vmatprep.subr.bf16.mxu0 0
        %958 = vmatpush2.bf16.msra.mxu0 0
        %959 = vmatprep.subr.bf16.mxu0 0
        %960 = vmatpush2.bf16.msra.mxu0 0
        %961 = vmatprep.subr.bf16.mxu0 0
        %962 = vmatpush2.bf16.msra.mxu0 0
        %963 = vmatprep.subr.bf16.mxu0 0
        %964 = vmatpush2.bf16.msra.mxu0 0
        %965 = vmatprep.subr.bf16.mxu0 0
        %966 = vmatpush2.bf16.msra.mxu0 0
        %967 = vmatprep.subr.bf16.mxu0 0
        %968 = vmatpush2.bf16.msra.mxu0 0
        %969 = vmatprep.mubr.bf16.mxu0 0
        %970 = vmatmul.mubr.bf16.gmra.mxu0 %v865
        %v971 = vpop.f32.mrf.mxu0
        %v972 = vadd.f32 %v887, %v971
        %v973 = vpop.f32.mrf.mxu0
        %v974 = vpop.f32.mrf.mxu0
        %v975 = vpop.f32.mrf.mxu0
        %976 = vdwg.mxu0
        %v977 = vmul.f32 %v748, 0.17677669
        %v978 = vpack.c.bf16 %v977, %v977
        %v979 = vpack.c.bf16 %v860, %v860
        %v980 = vpack.c.bf16 %v972, %v972
        %vm981 = vcmask 261120
        %v983 = vsel %vm981, %v978, 0
        %v986 = vsel %vm981, %v979, 0
        %988 = vmatprep.subr.bf16.mxu0 0
        %989 = vmatpush1.bf16.xpose.msra.mxu0 0
        %990 = vmatprep.subr.bf16.mxu0 0
        %991 = vmatpush1.bf16.xpose.msra.mxu0 0
        %992 = vmatprep.subr.bf16.mxu0 0
        %993 = vmatpush1.bf16.xpose.msra.mxu0 0
        %994 = vmatprep.subr.bf16.mxu0 0
        %995 = vmatpush1.bf16.xpose.msra.mxu0 0
        %996 = vmatprep.subr.bf16.mxu0 0
        %997 = vmatpush1.bf16.xpose.msra.mxu0 0
        %998 = vmatprep.subr.bf16.mxu0 0
        %999 = vmatpush1.bf16.xpose.msra.mxu0 0
        %1000 = vmatprep.subr.bf16.mxu0 0
        %1001 = vmatpush1.bf16.xpose.msra.mxu0 0
        %1002 = vmatprep.subr.bf16.mxu0 0
        %1003 = vmatpush1.bf16.xpose.msra.mxu0 %v986
        %1004 = vmatprep.subr.bf16.mxu0 0
        %1005 = vmatpush2.bf16.xpose.msra.mxu0 0
        %1006 = vmatprep.subr.bf16.mxu0 0
        %1007 = vmatpush2.bf16.xpose.msra.mxu0 0
        %1008 = vmatprep.subr.bf16.mxu0 0
        %1009 = vmatpush2.bf16.xpose.msra.mxu0 0
        %1010 = vmatprep.subr.bf16.mxu0 0
        %1011 = vmatpush2.bf16.xpose.msra.mxu0 0
        %1012 = vmatprep.subr.bf16.mxu0 0
        %1013 = vmatpush2.bf16.xpose.msra.mxu0 0
        %1014 = vmatprep.subr.bf16.mxu0 0
        %1015 = vmatpush2.bf16.xpose.msra.mxu0 0
        %1016 = vmatprep.subr.bf16.mxu0 0
        %1017 = vmatpush2.bf16.xpose.msra.mxu0 0
        %1018 = vmatprep.subr.bf16.mxu0 0
        %1019 = vmatpush2.bf16.xpose.msra.mxu0 0
        %1020 = vmatprep.mubr.bf16.mxu0 0
        %1021 = vmatmul.mubr.bf16.gmra.mxu0 %v983
        %v1022 = vpop.f32.mrf.mxu0
        %v1023 = vadd.f32 0.0, %v1022
        %v1024 = vpop.f32.mrf.mxu0
        %v1025 = vpop.f32.mrf.mxu0
        %v1026 = vpop.f32.mrf.mxu0
        %1027 = vdwg.mxu0
        %vm1028 = vcmask 64512
        %v1029 = vsel %vm1028, %v1023, -inf
        %1030 = vmax.xlane.f32.xlu0 %v1029
        %v1031 = vpop.xlane.xlu0 %1030
        %v1032 = vsub.f32 %v1023, %v1031
        %v1033 = vmul.f32 %v1032, 1.442695
        %v1034 = vpow.pop %v1033
        %v1035 = vsel %vm1028, %v1034, 0.0
        %1036 = vadd.xlane.f32.xlu0 %v1035
        %v1037 = vpop.xlane.xlu0 %1036
        %v1038 = vrcp.pop %v1037
        %v1039 = vmul.f32 %v1034, %v1038
        %v1040 = vpack.c.bf16 %v1039, %v1039
        %v1042 = vsel %vm1028, %v1040, 0
        %vm1044 = vcmask 1043456
        %v1046 = vsel %vm1044, %v980, 0
        %1048 = vmatprep.subr.bf16.mxu0 0
        %1049 = vmatpush1.bf16.msra.mxu0 0
        %1050 = vmatprep.subr.bf16.mxu0 0
        %1051 = vmatpush1.bf16.msra.mxu0 0
        %1052 = vmatprep.subr.bf16.mxu0 0
        %1053 = vmatpush1.bf16.msra.mxu0 0
        %1054 = vmatprep.subr.bf16.mxu0 0
        %1055 = vmatpush1.bf16.msra.mxu0 0
        %1056 = vmatprep.subr.bf16.mxu0 0
        %1057 = vmatpush1.bf16.msra.mxu0 0
        %1058 = vmatprep.subr.bf16.mxu0 0
        %1059 = vmatpush1.bf16.msra.mxu0 0
        %1060 = vmatprep.subr.bf16.mxu0 0
        %1061 = vmatpush1.bf16.msra.mxu0 0
        %1062 = vmatprep.subr.bf16.mxu0 0
        %1063 = vmatpush1.bf16.msra.mxu0 %v1046
        %1064 = vmatprep.subr.bf16.mxu0 0
        %1065 = vmatpush2.bf16.msra.mxu0 0
        %1066 = vmatprep.subr.bf16.mxu0 0
        %1067 = vmatpush2.bf16.msra.mxu0 0
        %1068 = vmatprep.subr.bf16.mxu0 0
        %1069 = vmatpush2.bf16.msra.mxu0 0
        %1070 = vmatprep.subr.bf16.mxu0 0
        %1071 = vmatpush2.bf16.msra.mxu0 0
        %1072 = vmatprep.subr.bf16.mxu0 0
        %1073 = vmatpush2.bf16.msra.mxu0 0
        %1074 = vmatprep.subr.bf16.mxu0 0
        %1075 = vmatpush2.bf16.msra.mxu0 0
        %1076 = vmatprep.subr.bf16.mxu0 0
        %1077 = vmatpush2.bf16.msra.mxu0 0
        %1078 = vmatprep.subr.bf16.mxu0 0
        %1079 = vmatpush2.bf16.msra.mxu0 0
        %1080 = vmatprep.mubr.bf16.mxu0 0
        %1081 = vmatmul.mubr.bf16.gmra.mxu0 %v1042
        %v1082 = vpop.f32.mrf.mxu0
        %v1083 = vadd.f32 0.0, %v1082
        %v1084 = vpop.f32.mrf.mxu0
        %v1085 = vpop.f32.mrf.mxu0
        %v1086 = vpop.f32.mrf.mxu0
        %1087 = vdwg.mxu0
        %1089 = vrot.lane.b32.xlu0 %v978, 96
        %v1090 = vpop.permute.xlu0 %1089
        %1092 = vrot.lane.b32.xlu0 %v979, 96
        %v1093 = vpop.permute.xlu0 %1092
        %v1095 = vsel %vm981, %v1090, 0
        %v1098 = vsel %vm981, %v1093, 0
        %1100 = vmatprep.subr.bf16.mxu0 0
        %1101 = vmatpush1.bf16.xpose.msra.mxu0 0
        %1102 = vmatprep.subr.bf16.mxu0 0
        %1103 = vmatpush1.bf16.xpose.msra.mxu0 0
        %1104 = vmatprep.subr.bf16.mxu0 0
        %1105 = vmatpush1.bf16.xpose.msra.mxu0 0
        %1106 = vmatprep.subr.bf16.mxu0 0
        %1107 = vmatpush1.bf16.xpose.msra.mxu0 0
        %1108 = vmatprep.subr.bf16.mxu0 0
        %1109 = vmatpush1.bf16.xpose.msra.mxu0 0
        %1110 = vmatprep.subr.bf16.mxu0 0
        %1111 = vmatpush1.bf16.xpose.msra.mxu0 0
        %1112 = vmatprep.subr.bf16.mxu0 0
        %1113 = vmatpush1.bf16.xpose.msra.mxu0 0
        %1114 = vmatprep.subr.bf16.mxu0 0
        %1115 = vmatpush1.bf16.xpose.msra.mxu0 %v1098
        %1116 = vmatprep.subr.bf16.mxu0 0
        %1117 = vmatpush2.bf16.xpose.msra.mxu0 0
        %1118 = vmatprep.subr.bf16.mxu0 0
        %1119 = vmatpush2.bf16.xpose.msra.mxu0 0
        %1120 = vmatprep.subr.bf16.mxu0 0
        %1121 = vmatpush2.bf16.xpose.msra.mxu0 0
        %1122 = vmatprep.subr.bf16.mxu0 0
        %1123 = vmatpush2.bf16.xpose.msra.mxu0 0
        %1124 = vmatprep.subr.bf16.mxu0 0
        %1125 = vmatpush2.bf16.xpose.msra.mxu0 0
        %1126 = vmatprep.subr.bf16.mxu0 0
        %1127 = vmatpush2.bf16.xpose.msra.mxu0 0
        %1128 = vmatprep.subr.bf16.mxu0 0
        %1129 = vmatpush2.bf16.xpose.msra.mxu0 0
        %1130 = vmatprep.subr.bf16.mxu0 0
        %1131 = vmatpush2.bf16.xpose.msra.mxu0 0
        %1132 = vmatprep.mubr.bf16.mxu0 0
        %1133 = vmatmul.mubr.bf16.gmra.mxu0 %v1095
        %v1134 = vpop.f32.mrf.mxu0
        %v1135 = vadd.f32 0.0, %v1134
        %v1136 = vpop.f32.mrf.mxu0
        %v1137 = vpop.f32.mrf.mxu0
        %v1138 = vpop.f32.mrf.mxu0
        %1139 = vdwg.mxu0
        %v1140 = vsel %vm1028, %v1135, -inf
        %1141 = vmax.xlane.f32.xlu0 %v1140
        %v1142 = vpop.xlane.xlu0 %1141
        %v1143 = vsub.f32 %v1135, %v1142
        %v1144 = vmul.f32 %v1143, 1.442695
        %v1145 = vpow.pop %v1144
        %v1146 = vsel %vm1028, %v1145, 0.0
        %1147 = vadd.xlane.f32.xlu0 %v1146
        %v1148 = vpop.xlane.xlu0 %1147
        %v1149 = vrcp.pop %v1148
        %v1150 = vmul.f32 %v1145, %v1149
        %v1151 = vpack.c.bf16 %v1150, %v1150
        %1153 = vrot.lane.b32.xlu0 %v980, 96
        %v1154 = vpop.permute.xlu0 %1153
        %v1156 = vsel %vm1028, %v1151, 0
        %v1159 = vsel %vm1044, %v1154, 0
        %1161 = vmatprep.subr.bf16.mxu0 0
        %1162 = vmatpush1.bf16.msra.mxu0 0
        %1163 = vmatprep.subr.bf16.mxu0 0
        %1164 = vmatpush1.bf16.msra.mxu0 0
        %1165 = vmatprep.subr.bf16.mxu0 0
        %1166 = vmatpush1.bf16.msra.mxu0 0
        %1167 = vmatprep.subr.bf16.mxu0 0
        %1168 = vmatpush1.bf16.msra.mxu0 0
        %1169 = vmatprep.subr.bf16.mxu0 0
        %1170 = vmatpush1.bf16.msra.mxu0 0
        %1171 = vmatprep.subr.bf16.mxu0 0
        %1172 = vmatpush1.bf16.msra.mxu0 0
        %1173 = vmatprep.subr.bf16.mxu0 0
        %1174 = vmatpush1.bf16.msra.mxu0 0
        %1175 = vmatprep.subr.bf16.mxu0 0
        %1176 = vmatpush1.bf16.msra.mxu0 %v1159
        %1177 = vmatprep.subr.bf16.mxu0 0
        %1178 = vmatpush2.bf16.msra.mxu0 0
        %1179 = vmatprep.subr.bf16.mxu0 0
        %1180 = vmatpush2.bf16.msra.mxu0 0
        %1181 = vmatprep.subr.bf16.mxu0 0
        %1182 = vmatpush2.bf16.msra.mxu0 0
        %1183 = vmatprep.subr.bf16.mxu0 0
        %1184 = vmatpush2.bf16.msra.mxu0 0
        %1185 = vmatprep.subr.bf16.mxu0 0
        %1186 = vmatpush2.bf16.msra.mxu0 0
        %1187 = vmatprep.subr.bf16.mxu0 0
        %1188 = vmatpush2.bf16.msra.mxu0 0
        %1189 = vmatprep.subr.bf16.mxu0 0
        %1190 = vmatpush2.bf16.msra.mxu0 0
        %1191 = vmatprep.subr.bf16.mxu0 0
        %1192 = vmatpush2.bf16.msra.mxu0 0
        %1193 = vmatprep.mubr.bf16.mxu0 0
        %1194 = vmatmul.mubr.bf16.gmra.mxu0 %v1156
        %v1195 = vpop.f32.mrf.mxu0
        %v1196 = vadd.f32 0.0, %v1195
        %v1197 = vpop.f32.mrf.mxu0
        %v1198 = vpop.f32.mrf.mxu0
        %v1199 = vpop.f32.mrf.mxu0
        %1200 = vdwg.mxu0
        %1201 = vrot.lane.b32.xlu0 %v978, 64
        %v1202 = vpop.permute.xlu0 %1201
        %1203 = vrot.lane.b32.xlu0 %v979, 64
        %v1204 = vpop.permute.xlu0 %1203
        %v1206 = vsel %vm981, %v1202, 0
        %v1209 = vsel %vm981, %v1204, 0
        %1211 = vmatprep.subr.bf16.mxu0 0
        %1212 = vmatpush1.bf16.xpose.msra.mxu0 0
        %1213 = vmatprep.subr.bf16.mxu0 0
        %1214 = vmatpush1.bf16.xpose.msra.mxu0 0
        %1215 = vmatprep.subr.bf16.mxu0 0
        %1216 = vmatpush1.bf16.xpose.msra.mxu0 0
        %1217 = vmatprep.subr.bf16.mxu0 0
        %1218 = vmatpush1.bf16.xpose.msra.mxu0 0
        %1219 = vmatprep.subr.bf16.mxu0 0
        %1220 = vmatpush1.bf16.xpose.msra.mxu0 0
        %1221 = vmatprep.subr.bf16.mxu0 0
        %1222 = vmatpush1.bf16.xpose.msra.mxu0 0
        %1223 = vmatprep.subr.bf16.mxu0 0
        %1224 = vmatpush1.bf16.xpose.msra.mxu0 0
        %1225 = vmatprep.subr.bf16.mxu0 0
        %1226 = vmatpush1.bf16.xpose.msra.mxu0 %v1209
        %1227 = vmatprep.subr.bf16.mxu0 0
        %1228 = vmatpush2.bf16.xpose.msra.mxu0 0
        %1229 = vmatprep.subr.bf16.mxu0 0
        %1230 = vmatpush2.bf16.xpose.msra.mxu0 0
        %1231 = vmatprep.subr.bf16.mxu0 0
        %1232 = vmatpush2.bf16.xpose.msra.mxu0 0
        %1233 = vmatprep.subr.bf16.mxu0 0
        %1234 = vmatpush2.bf16.xpose.msra.mxu0 0
        %1235 = vmatprep.subr.bf16.mxu0 0
        %1236 = vmatpush2.bf16.xpose.msra.mxu0 0
        %1237 = vmatprep.subr.bf16.mxu0 0
        %1238 = vmatpush2.bf16.xpose.msra.mxu0 0
        %1239 = vmatprep.subr.bf16.mxu0 0
        %1240 = vmatpush2.bf16.xpose.msra.mxu0 0
        %1241 = vmatprep.subr.bf16.mxu0 0
        %1242 = vmatpush2.bf16.xpose.msra.mxu0 0
        %1243 = vmatprep.mubr.bf16.mxu0 0
        %1244 = vmatmul.mubr.bf16.gmra.mxu0 %v1206
        %v1245 = vpop.f32.mrf.mxu0
        %v1246 = vadd.f32 0.0, %v1245
        %v1247 = vpop.f32.mrf.mxu0
        %v1248 = vpop.f32.mrf.mxu0
        %v1249 = vpop.f32.mrf.mxu0
        %1250 = vdwg.mxu0
        %v1251 = vsel %vm1028, %v1246, -inf
        %1252 = vmax.xlane.f32.xlu0 %v1251
        %v1253 = vpop.xlane.xlu0 %1252
        %v1254 = vsub.f32 %v1246, %v1253
        %v1255 = vmul.f32 %v1254, 1.442695
        %v1256 = vpow.pop %v1255
        %v1257 = vsel %vm1028, %v1256, 0.0
        %1258 = vadd.xlane.f32.xlu0 %v1257
        %v1259 = vpop.xlane.xlu0 %1258
        %v1260 = vrcp.pop %v1259
        %v1261 = vmul.f32 %v1256, %v1260
        %v1262 = vpack.c.bf16 %v1261, %v1261
        %1263 = vrot.lane.b32.xlu0 %v980, 64
        %v1264 = vpop.permute.xlu0 %1263
        %v1266 = vsel %vm1028, %v1262, 0
        %v1269 = vsel %vm1044, %v1264, 0
        %1271 = vmatprep.subr.bf16.mxu0 0
        %1272 = vmatpush1.bf16.msra.mxu0 0
        %1273 = vmatprep.subr.bf16.mxu0 0
        %1274 = vmatpush1.bf16.msra.mxu0 0
        %1275 = vmatprep.subr.bf16.mxu0 0
        %1276 = vmatpush1.bf16.msra.mxu0 0
        %1277 = vmatprep.subr.bf16.mxu0 0
        %1278 = vmatpush1.bf16.msra.mxu0 0
        %1279 = vmatprep.subr.bf16.mxu0 0
        %1280 = vmatpush1.bf16.msra.mxu0 0
        %1281 = vmatprep.subr.bf16.mxu0 0
        %1282 = vmatpush1.bf16.msra.mxu0 0
        %1283 = vmatprep.subr.bf16.mxu0 0
        %1284 = vmatpush1.bf16.msra.mxu0 0
        %1285 = vmatprep.subr.bf16.mxu0 0
        %1286 = vmatpush1.bf16.msra.mxu0 %v1269
        %1287 = vmatprep.subr.bf16.mxu0 0
        %1288 = vmatpush2.bf16.msra.mxu0 0
        %1289 = vmatprep.subr.bf16.mxu0 0
        %1290 = vmatpush2.bf16.msra.mxu0 0
        %1291 = vmatprep.subr.bf16.mxu0 0
        %1292 = vmatpush2.bf16.msra.mxu0 0
        %1293 = vmatprep.subr.bf16.mxu0 0
        %1294 = vmatpush2.bf16.msra.mxu0 0
        %1295 = vmatprep.subr.bf16.mxu0 0
        %1296 = vmatpush2.bf16.msra.mxu0 0
        %1297 = vmatprep.subr.bf16.mxu0 0
        %1298 = vmatpush2.bf16.msra.mxu0 0
        %1299 = vmatprep.subr.bf16.mxu0 0
        %1300 = vmatpush2.bf16.msra.mxu0 0
        %1301 = vmatprep.subr.bf16.mxu0 0
        %1302 = vmatpush2.bf16.msra.mxu0 0
        %1303 = vmatprep.mubr.bf16.mxu0 0
        %1304 = vmatmul.mubr.bf16.gmra.mxu0 %v1266
        %v1305 = vpop.f32.mrf.mxu0
        %v1306 = vadd.f32 0.0, %v1305
        %v1307 = vpop.f32.mrf.mxu0
        %v1308 = vpop.f32.mrf.mxu0
        %v1309 = vpop.f32.mrf.mxu0
        %1310 = vdwg.mxu0
        %1311 = vrot.lane.b32.xlu0 %v978, 32
        %v1312 = vpop.permute.xlu0 %1311
        %1313 = vrot.lane.b32.xlu0 %v979, 32
        %v1314 = vpop.permute.xlu0 %1313
        %v1316 = vsel %vm981, %v1312, 0
        %v1319 = vsel %vm981, %v1314, 0
        %1321 = vmatprep.subr.bf16.mxu0 0
        %1322 = vmatpush1.bf16.xpose.msra.mxu0 0
        %1323 = vmatprep.subr.bf16.mxu0 0
        %1324 = vmatpush1.bf16.xpose.msra.mxu0 0
        %1325 = vmatprep.subr.bf16.mxu0 0
        %1326 = vmatpush1.bf16.xpose.msra.mxu0 0
        %1327 = vmatprep.subr.bf16.mxu0 0
        %1328 = vmatpush1.bf16.xpose.msra.mxu0 0
        %1329 = vmatprep.subr.bf16.mxu0 0
        %1330 = vmatpush1.bf16.xpose.msra.mxu0 0
        %1331 = vmatprep.subr.bf16.mxu0 0
        %1332 = vmatpush1.bf16.xpose.msra.mxu0 0
        %1333 = vmatprep.subr.bf16.mxu0 0
        %1334 = vmatpush1.bf16.xpose.msra.mxu0 0
        %1335 = vmatprep.subr.bf16.mxu0 0
        %1336 = vmatpush1.bf16.xpose.msra.mxu0 %v1319
        %1337 = vmatprep.subr.bf16.mxu0 0
        %1338 = vmatpush2.bf16.xpose.msra.mxu0 0
        %1339 = vmatprep.subr.bf16.mxu0 0
        %1340 = vmatpush2.bf16.xpose.msra.mxu0 0
        %1341 = vmatprep.subr.bf16.mxu0 0
        %1342 = vmatpush2.bf16.xpose.msra.mxu0 0
        %1343 = vmatprep.subr.bf16.mxu0 0
        %1344 = vmatpush2.bf16.xpose.msra.mxu0 0
        %1345 = vmatprep.subr.bf16.mxu0 0
        %1346 = vmatpush2.bf16.xpose.msra.mxu0 0
        %1347 = vmatprep.subr.bf16.mxu0 0
        %1348 = vmatpush2.bf16.xpose.msra.mxu0 0
        %1349 = vmatprep.subr.bf16.mxu0 0
        %1350 = vmatpush2.bf16.xpose.msra.mxu0 0
        %1351 = vmatprep.subr.bf16.mxu0 0
        %1352 = vmatpush2.bf16.xpose.msra.mxu0 0
        %1353 = vmatprep.mubr.bf16.mxu0 0
        %1354 = vmatmul.mubr.bf16.gmra.mxu0 %v1316
        %v1355 = vpop.f32.mrf.mxu0
        %v1356 = vadd.f32 0.0, %v1355
        %v1357 = vpop.f32.mrf.mxu0
        %v1358 = vpop.f32.mrf.mxu0
        %v1359 = vpop.f32.mrf.mxu0
        %1360 = vdwg.mxu0
        %v1361 = vsel %vm1028, %v1356, -inf
        %1362 = vmax.xlane.f32.xlu0 %v1361
        %v1363 = vpop.xlane.xlu0 %1362
        %v1364 = vsub.f32 %v1356, %v1363
        %v1365 = vmul.f32 %v1364, 1.442695
        %v1366 = vpow.pop %v1365
        %v1367 = vsel %vm1028, %v1366, 0.0
        %1368 = vadd.xlane.f32.xlu0 %v1367
        %v1369 = vpop.xlane.xlu0 %1368
        %v1370 = vrcp.pop %v1369
        %v1371 = vmul.f32 %v1366, %v1370
        %v1372 = vpack.c.bf16 %v1371, %v1371
        %1373 = vrot.lane.b32.xlu0 %v980, 32
        %v1374 = vpop.permute.xlu0 %1373
        %v1376 = vsel %vm1028, %v1372, 0
        %v1379 = vsel %vm1044, %v1374, 0
        %1381 = vmatprep.subr.bf16.mxu0 0
        %1382 = vmatpush1.bf16.msra.mxu0 0
        %1383 = vmatprep.subr.bf16.mxu0 0
        %1384 = vmatpush1.bf16.msra.mxu0 0
        %1385 = vmatprep.subr.bf16.mxu0 0
        %1386 = vmatpush1.bf16.msra.mxu0 0
        %1387 = vmatprep.subr.bf16.mxu0 0
        %1388 = vmatpush1.bf16.msra.mxu0 0
        %1389 = vmatprep.subr.bf16.mxu0 0
        %1390 = vmatpush1.bf16.msra.mxu0 0
        %1391 = vmatprep.subr.bf16.mxu0 0
        %1392 = vmatpush1.bf16.msra.mxu0 0
        %1393 = vmatprep.subr.bf16.mxu0 0
        %1394 = vmatpush1.bf16.msra.mxu0 0
        %1395 = vmatprep.subr.bf16.mxu0 0
        %1396 = vmatpush1.bf16.msra.mxu0 %v1379
        %1397 = vmatprep.subr.bf16.mxu0 0
        %1398 = vmatpush2.bf16.msra.mxu0 0
        %1399 = vmatprep.subr.bf16.mxu0 0
        %1400 = vmatpush2.bf16.msra.mxu0 0
        %1401 = vmatprep.subr.bf16.mxu0 0
        %1402 = vmatpush2.bf16.msra.mxu0 0
        %1403 = vmatprep.subr.bf16.mxu0 0
        %1404 = vmatpush2.bf16.msra.mxu0 0
        %1405 = vmatprep.subr.bf16.mxu0 0
        %1406 = vmatpush2.bf16.msra.mxu0 0
        %1407 = vmatprep.subr.bf16.mxu0 0
        %1408 = vmatpush2.bf16.msra.mxu0 0
        %1409 = vmatprep.subr.bf16.mxu0 0
        %1410 = vmatpush2.bf16.msra.mxu0 0
        %1411 = vmatprep.subr.bf16.mxu0 0
        %1412 = vmatpush2.bf16.msra.mxu0 0
        %1413 = vmatprep.mubr.bf16.mxu0 0
        %1414 = vmatmul.mubr.bf16.gmra.mxu0 %v1376
        %v1415 = vpop.f32.mrf.mxu0
        %v1416 = vadd.f32 0.0, %v1415
        %v1417 = vpop.f32.mrf.mxu0
        %v1418 = vpop.f32.mrf.mxu0
        %v1419 = vpop.f32.mrf.mxu0
        %1420 = vdwg.mxu0
        %1422 = vrot.lane.b32.xlu0 %v1196, 32
        %v1423 = vpop.permute.xlu0 %1422
        %1426 = vrot.lane.b32.xlu0 %v1306, 64
        %v1427 = vpop.permute.xlu0 %1426
        %1430 = vrot.lane.b32.xlu0 %v1416, 96
        %v1431 = vpop.permute.xlu0 %1430
        %v1433 = vsel %vm981, %v1083, %v1423
        %vm1434 = vcmask 523264
        %v1435 = vsel %vm1434, %v1433, %v1427
        %vm1436 = vcmask 785408
        %v1437 = vsel %vm1436, %v1435, %v1431
        %v1438 = vpack.c.bf16 %v1437, %v1437
        %v1439 = vld [vmem:[#allocation6] sm:$0xf]
        %v1440 = vld [vmem:[#allocation6 + $0x4] sm:$0xf]
        %v1441 = vld [vmem:[#allocation6 + $0x8] sm:$0xf]
        %v1442 = vld [vmem:[#allocation6 + $0xc] sm:$0xf]
        %v1443 = vld [vmem:[#allocation6 + $0x10] sm:$0xf]
        %v1444 = vld [vmem:[#allocation6 + $0x14] sm:$0xf]
        %v1445 = vld [vmem:[#allocation6 + $0x18] sm:$0xf]
        %v1446 = vld [vmem:[#allocation6 + $0x1c] sm:$0xf]
        %v1447 = vld [vmem:[#allocation6 + $0x20] sm:$0xf]
        %v1448 = vld [vmem:[#allocation6 + $0x24] sm:$0xf]
        %v1449 = vld [vmem:[#allocation6 + $0x28] sm:$0xf]
        %v1450 = vld [vmem:[#allocation6 + $0x2c] sm:$0xf]
        %v1451 = vld [vmem:[#allocation6 + $0x30] sm:$0xf]
        %v1452 = vld [vmem:[#allocation6 + $0x34] sm:$0xf]
        %v1453 = vld [vmem:[#allocation6 + $0x38] sm:$0xf]
        %v1454 = vld [vmem:[#allocation6 + $0x3c] sm:$0xf]
        %v1455 = vld [vmem:[#allocation7] sm:$0x1]
        %v1457 = vlaneseq
        %v1458 = vshrl.u32 %v1457, 7
        %v1459 = vsub.s32 0, %v1458
        %v1460 = vrot.slane %v1455, %v1459
        %v1478 = vunpack.c.l.b16 %v1439
        %v1479 = vunpack.c.l.b16 %v1440
        %v1480 = vunpack.c.l.b16 %v1441
        %v1481 = vunpack.c.l.b16 %v1442
        %v1482 = vunpack.c.l.b16 %v1443
        %v1483 = vunpack.c.l.b16 %v1444
        %v1484 = vunpack.c.l.b16 %v1445
        %v1485 = vunpack.c.l.b16 %v1446
        %v1486 = vunpack.c.l.b16 %v1447
        %v1487 = vunpack.c.l.b16 %v1448
        %v1488 = vunpack.c.l.b16 %v1449
        %v1489 = vunpack.c.l.b16 %v1450
        %v1490 = vunpack.c.l.b16 %v1451
        %v1491 = vunpack.c.l.b16 %v1452
        %v1492 = vunpack.c.l.b16 %v1453
        %v1493 = vunpack.c.l.b16 %v1454
        %v1494 = vpack.c.b16 %v1479, %v1478
        %v1495 = vpack.c.b16 %v1481, %v1480
        %v1496 = vpack.c.b16 %v1483, %v1482
        %v1497 = vpack.c.b16 %v1485, %v1484
        %v1498 = vpack.c.b16 %v1487, %v1486
        %v1499 = vpack.c.b16 %v1489, %v1488
        %v1500 = vpack.c.b16 %v1491, %v1490
        %v1501 = vpack.c.b16 %v1493, %v1492
        %1510 = vmatprep.subr.bf16.mxu0 0
        %1511 = vmatpush1.bf16.msra.mxu0 %v1501
        %1512 = vmatprep.subr.bf16.mxu0 0
        %1513 = vmatpush1.bf16.msra.mxu0 %v1500
        %1514 = vmatprep.subr.bf16.mxu0 0
        %1515 = vmatpush1.bf16.msra.mxu0 %v1499
        %1516 = vmatprep.subr.bf16.mxu0 0
        %1517 = vmatpush1.bf16.msra.mxu0 %v1498
        %1518 = vmatprep.subr.bf16.mxu0 0
        %1519 = vmatpush1.bf16.msra.mxu0 %v1497
        %1520 = vmatprep.subr.bf16.mxu0 0
        %1521 = vmatpush1.bf16.msra.mxu0 %v1496
        %1522 = vmatprep.subr.bf16.mxu0 0
        %1523 = vmatpush1.bf16.msra.mxu0 %v1495
        %1524 = vmatprep.subr.bf16.mxu0 0
        %1525 = vmatpush1.bf16.msra.mxu0 %v1494
        %1526 = vmatprep.subr.bf16.mxu0 0
        %1527 = vmatpush2.bf16.msra.mxu0 0
        %1528 = vmatprep.subr.bf16.mxu0 0
        %1529 = vmatpush2.bf16.msra.mxu0 0
        %1530 = vmatprep.subr.bf16.mxu0 0
        %1531 = vmatpush2.bf16.msra.mxu0 0
        %1532 = vmatprep.subr.bf16.mxu0 0
        %1533 = vmatpush2.bf16.msra.mxu0 0
        %1534 = vmatprep.subr.bf16.mxu0 0
        %1535 = vmatpush2.bf16.msra.mxu0 0
        %1536 = vmatprep.subr.bf16.mxu0 0
        %1537 = vmatpush2.bf16.msra.mxu0 0
        %1538 = vmatprep.subr.bf16.mxu0 0
        %1539 = vmatpush2.bf16.msra.mxu0 0
        %1540 = vmatprep.subr.bf16.mxu0 0
        %1541 = vmatpush2.bf16.msra.mxu0 0
        %1542 = vmatprep.mubr.bf16.mxu0 0
        %1543 = vmatmul.mubr.bf16.gmra.mxu0 %v1438
        %v1544 = vpop.f32.mrf.mxu0
        %v1545 = vadd.f32 %v1460, %v1544
        %v1546 = vpop.f32.mrf.mxu0
        %v1547 = vpop.f32.mrf.mxu0
        %v1548 = vpop.f32.mrf.mxu0
        %1549 = vdwg.mxu0
        %v1550 = vadd.f32 %v635, %v1545
        %1551 = vadd.xlane.f32.xlu0 %v1550
        %v1552 = vpop.xlane.xlu0 %1551
        %v1553 = vrcp.pop 128.0
        %v1554 = vmul.f32 %v1552, %v1553
        %v1555 = vsub.f32 %v1550, %v1554
        %v1556 = vmul.f32 %v1555, %v1555
        %1557 = vadd.xlane.f32.xlu0 %v1556
        %v1558 = vpop.xlane.xlu0 %1557
        %v1559 = vmul.f32 %v1558, %v1553
        %v1560 = vadd.f32 %v1559, 1e-05
        %v1561 = vrsqrt.pop %v1560
        %v1562 = vmul.f32 %v1555, %v1561
        %v1563 = vld [vmem:[#allocation9] sm:$0x1]
        %v1565 = vlaneseq
        %v1566 = vshrl.u32 %v1565, 7
        %v1567 = vsub.s32 0, %v1566
        %v1568 = vrot.slane %v1563, %v1567
        %v1570 = vmul.f32 %v1562, %v1568
        %v1571 = vld [vmem:[#allocation10] sm:$0x1]
        %v1573 = vlaneseq
        %v1574 = vshrl.u32 %v1573, 7
        %v1575 = vsub.s32 0, %v1574
        %v1576 = vrot.slane %v1571, %v1575
        %v1578 = vadd.f32 %v1570, %v1576
        %1579 = vst [vmem:[%s633] sm:$0xff] %v1578
        %p1580 = scmp.lt.s32.totalorder %s33, 1
        %s1581 = scalar_select %p1580, %s33, 1
        %p1582 = scmp.lt.s32.totalorder %s34, 0
        %s1583 = scalar_select %p1582, %s34, 0
        %s1584 = sadd.s32 %s1583, %s1581
        %s1585 = smul.addr %s1584, 8
        %s1586 = scalar_lea.vmem %s14, %s1585
        // Predicated region
        $region101: #{transformer_clustering_forward.16} parent=75 // pred_check
          %p1587 = pneg %p379
        $region102: #{transformer_clustering_forward.16} parent=75 // pred_check_branch
          %1589 = sbr.rel (%p1587) target = $region104
        $region103: #{transformer_clustering_forward.16} parent=75 // pred_region
          _
        $region104: #{transformer_clustering_forward.16} parent=75 // pred_fallthru
          _
      $region76: #{transformer_clustering_forward.16} parent=5 // pred_fallthru
        _
      %p1590 = scmp.le.s32.totalorder 2, %s24
      // Predicated region
      $region105: #{transformer_clustering_forward.16} parent=5 // pred_check
        %p1591 = pneg %p1590
      $region106: #{transformer_clustering_forward.16} parent=5 // pred_check_branch
        %1593 = sbr.rel (%p1591) target = $region108
      $region107: #{transformer_clustering_forward.16} parent=5 // pred_region
        %s1594 = ssub.s32 %s24, 2
        // Predicated region
        $region109: #{transformer_clustering_forward.16} parent=107 // pred_check
          %p1595 = pneg %p385
        $region110: #{transformer_clustering_forward.16} parent=107 // pred_check_branch
          %1597 = sbr.rel (%p1595) target = $region112
        $region111: #{transformer_clustering_forward.16} parent=107 // pred_region
          %p1598 = scmp.lt.s32.totalorder %s35, 1
          %s1599 = scalar_select %p1598, %s35, 1
          %p1600 = scmp.lt.s32.totalorder %s36, 0
          %s1601 = scalar_select %p1600, %s36, 0
          %s1602 = sadd.s32 %s1601, %s1599
          %s1603 = smul.addr %s1602, 8
          %s1604 = scalar_lea.vmem %s14, %s1603
        $region112: #{transformer_clustering_forward.16} parent=107 // pred_fallthru
          _
      $region108: #{transformer_clustering_forward.16} parent=5 // pred_fallthru
        _
    $region6: #{transformer_clustering_forward.16} parent=1 // loop_footer
      %s28 = sadd.s32 1, %s24
    $region7: #{transformer_clustering_forward.16} parent=1 // loop_footer_branch
      %23 = sbr.rel target = $region3
    $region8: #{transformer_clustering_forward.16} parent=1 // loop_exit
      _
    %1605 = vsyncpa [#allocation3], 1
    %s1606 = scalar_lea.sflag [#allocation3], 1
    %1607 = vsyncpa %s1606, 1
    %1608 = vsyncpa [#allocation5], 1
    %1609 = vsyncpa [#allocation8], 1
    %1610 = vsyncpa [#allocation11], 1

// kernel: transformer_clustering_forward.12
$region0: #{transformer_clustering_forward.12}
  #allocation0 [shape = 'u32[]', space=smem, size = 0x4, offset = 0x4, fixed_abs, tag = 'smem constant byte address 0x4 - core index']
  #allocation1 [shape = 'u32[144,128]{1,0:T(1,128)}', space=vmem, size = 0x12000, scoped, tag = 'internal scratch']
  %s0 = inlined_call_operand.vmem [shape: f32[2,16,128], index: 0, kind: input, shape index: {}, may-alias: {0,2}]
  %s1 = inlined_call_operand.vmem [shape: f32[2,16,128], index: 1, kind: input, shape index: {}, may-alias: {1,3}]
  %s2 = inlined_call_operand.vmem [shape: f32[2,16,128], index: 2, kind: input, shape index: {}, may-alias: {0,2}]
  %s3 = inlined_call_operand.vmem [shape: f32[2,16,128], index: 3, kind: input, shape index: {}, may-alias: {1,3}]
  %s4 = inlined_call_operand.vmem [shape: f32[2,1,16], index: 4, kind: input, shape index: {}]
  %s5 = inlined_call_operand.vmem [shape: bf16[128,128], index: 5, kind: input, shape index: {}]
  %s6 = inlined_call_operand.vmem [shape: f32[1,128], index: 6, kind: input, shape index: {}]
  %s7 = inlined_call_operand.vmem [shape: bf16[128,128], index: 7, kind: input, shape index: {}]
  %s8 = inlined_call_operand.vmem [shape: f32[1,128], index: 8, kind: input, shape index: {}]
  %s9 = inlined_call_operand.vmem [shape: bf16[128,128], index: 9, kind: input, shape index: {}]
  %s10 = inlined_call_operand.vmem [shape: f32[1,128], index: 10, kind: input, shape index: {}]
  %s11 = inlined_call_operand.vmem [shape: bf16[128,128], index: 11, kind: input, shape index: {}]
  %s12 = inlined_call_operand.vmem [shape: f32[1,128], index: 12, kind: input, shape index: {}]
  %s13 = inlined_call_operand.vmem [shape: f32[1,128], index: 13, kind: input, shape index: {}]
  %s14 = inlined_call_operand.vmem [shape: f32[1,128], index: 14, kind: input, shape index: {}]
  %s15 = inlined_call_operand.vmem [shape: f32[2,16,128], index: 15, kind: output, shape index: {}]
  %s16 = sld [smem:[#allocation0]]
  $region93: #{transformer_clustering_forward.12} parent=0
    _
  %s18 = ssub.s32 1, %s16
  %s19 = scalar_select 0, %s18, %s16
  loop: start=0, step=1, limit=4
  $region2: #{transformer_clustering_forward.12} parent=0 // loop_pre_header
    _
  $region3: #{transformer_clustering_forward.12} parent=0 // loop_header
    %s21 = sphi 0, %s25
    %p22 = scmp.ge.s32.totalorder %s21, 4
    %s28 = sphi 0, %s40
    %s29 = sphi 0, %s36
    %s30 = sphi 0, %s28
    %s31 = sphi 0, %s29
    %s32 = sphi 0, %s30
    %s33 = sphi 0, %s31
    %s45 = sphi 0, %s47
    %s48 = sphi 0, %s45
    %s49 = sphi 0, %s48
    %s65 = sphi 0, %s49
    %s73 = sphi 0, %s75
    %s76 = sphi 0, %s73
    %s77 = sphi 0, %s76
    %s93 = sphi 0, %s77
    %s99 = sphi 0, %s101
    %s102 = sphi 0, %s99
    %s103 = sphi 0, %s102
    %s119 = sphi 0, %s103
    %s125 = sphi 0, %s127
    %s128 = sphi 0, %s125
    %s129 = sphi 0, %s128
    %s145 = sphi 0, %s129
    %s151 = sphi 0, %s153
    %s154 = sphi 0, %s151
    %s155 = sphi 0, %s154
    %s171 = sphi 0, %s155
    %s175 = sphi 0, %s175
    %s177 = sphi 0, %s175
    %s178 = sphi 0, %s177
    %s192 = sphi 0, %s178
    %s196 = sphi 0, %s196
    %s198 = sphi 0, %s196
    %s199 = sphi 0, %s198
    %s213 = sphi 0, %s199
    %s217 = sphi 0, %s217
    %s219 = sphi 0, %s217
    %s220 = sphi 0, %s219
    %s234 = sphi 0, %s220
    %s238 = sphi 0, %s238
    %s240 = sphi 0, %s238
    %s241 = sphi 0, %s240
    %s255 = sphi 0, %s241
    %s259 = sphi 0, %s259
    %s261 = sphi 0, %s259
    %s262 = sphi 0, %s261
    %s276 = sphi 0, %s262
    %s280 = sphi 0, %s280
    %s282 = sphi 0, %s280
    %s283 = sphi 0, %s282
    %s297 = sphi 0, %s283
    %s301 = sphi 0, %s301
    %s303 = sphi 0, %s301
    %s304 = sphi 0, %s303
    %s318 = sphi 0, %s304
    %s322 = sphi 0, %s322
    %s324 = sphi 0, %s322
    %s325 = sphi 0, %s324
    %s339 = sphi 0, %s325
    %s343 = sphi 0, %s343
    %s345 = sphi 0, %s343
    %s346 = sphi 0, %s345
    %s360 = sphi 0, %s346
    %s364 = sphi 0, %s364
    %s366 = sphi 0, %s364
    %s367 = sphi 0, %s366
    %s381 = sphi 0, %s367
    %s389 = sphi 0, %s391
    %s392 = sphi 0, %s389
    %s393 = sphi 0, %s392
    %s409 = sphi 0, %s393
  $region4: #{transformer_clustering_forward.12} parent=0 // loop_header_branch
    %24 = sbr.rel (%p22) target = $region8
  $region5: #{transformer_clustering_forward.12} parent=0 // loop_body
    %s26 = ssub.s32 %s21, 1
    %s27 = ssub.s32 %s21, 2
    %s34 = sadd.s32 1, %s29
    %p35 = scmp.ge.s32.totalorder %s34, 1
    %s36 = scalar_select %p35, 0, %s34
    %s37 = sadd.s32 1, %s28
    %s38 = scalar_select %p35, %s37, %s28
    %p39 = scmp.ge.s32.totalorder %s38, 2
    %s40 = scalar_select %p39, 0, %s38
    %s41 = ssub.s32 %s28, %s40
    %s42 = ssub.s32 %s29, %s36
    %s43 = sor.u32 %s41, %s42
    %p44 = scmp.eq.s32.totalorder %s43, 0
    %s46 = sadd.s32 %s45, 1
    %s47 = scalar_select %p44, %s45, %s46
    %p50 = pneg %p44
    %p51 = scmp.eq.s32.totalorder %s21, 1
    %p52 = por %p50, %p51
    %p53 = scmp.ne.s32.totalorder %s45, %s48
    %p54 = scmp.eq.s32.totalorder %s21, 0
    %p55 = por %p53, %p54
    %p56 = scmp.ne.s32.totalorder %s45, %s48
    %p57 = scmp.eq.s32.totalorder %s26, 1
    %p58 = por %p56, %p57
    %p59 = scmp.ne.s32.totalorder %s48, %s49
    %p60 = scmp.eq.s32.totalorder %s26, 0
    %p61 = por %p59, %p60
    %p62 = scmp.ne.s32.totalorder %s48, %s49
    %p63 = scmp.eq.s32.totalorder %s27, 1
    %p64 = por %p62, %p63
    %p66 = scmp.ne.s32.totalorder %s49, %s65
    %p67 = scmp.eq.s32.totalorder %s27, 0
    %p68 = por %p66, %p67
    %s69 = ssub.s32 %s28, %s40
    %s70 = ssub.s32 %s29, %s36
    %s71 = sor.u32 %s69, %s70
    %p72 = scmp.eq.s32.totalorder %s71, 0
    %s74 = sadd.s32 %s73, 1
    %s75 = scalar_select %p72, %s73, %s74
    %p78 = pneg %p72
    %p79 = scmp.eq.s32.totalorder %s21, 1
    %p80 = por %p78, %p79
    %p81 = scmp.ne.s32.totalorder %s73, %s76
    %p82 = scmp.eq.s32.totalorder %s21, 0
    %p83 = por %p81, %p82
    %p84 = scmp.ne.s32.totalorder %s73, %s76
    %p85 = scmp.eq.s32.totalorder %s26, 1
    %p86 = por %p84, %p85
    %p87 = scmp.ne.s32.totalorder %s76, %s77
    %p88 = scmp.eq.s32.totalorder %s26, 0
    %p89 = por %p87, %p88
    %p90 = scmp.ne.s32.totalorder %s76, %s77
    %p91 = scmp.eq.s32.totalorder %s27, 1
    %p92 = por %p90, %p91
    %p94 = scmp.ne.s32.totalorder %s77, %s93
    %p95 = scmp.eq.s32.totalorder %s27, 0
    %p96 = por %p94, %p95
    %s97 = ssub.s32 %s28, %s40
    %p98 = scmp.eq.s32.totalorder %s97, 0
    %s100 = sadd.s32 %s99, 1
    %s101 = scalar_select %p98, %s99, %s100
    %p104 = pneg %p98
    %p105 = scmp.eq.s32.totalorder %s21, 1
    %p106 = por %p104, %p105
    %p107 = scmp.ne.s32.totalorder %s99, %s102
    %p108 = scmp.eq.s32.totalorder %s21, 0
    %p109 = por %p107, %p108
    %p110 = scmp.ne.s32.totalorder %s99, %s102
    %p111 = scmp.eq.s32.totalorder %s26, 1
    %p112 = por %p110, %p111
    %p113 = scmp.ne.s32.totalorder %s102, %s103
    %p114 = scmp.eq.s32.totalorder %s26, 0
    %p115 = por %p113, %p114
    %p116 = scmp.ne.s32.totalorder %s102, %s103
    %p117 = scmp.eq.s32.totalorder %s27, 1
    %p118 = por %p116, %p117
    %p120 = scmp.ne.s32.totalorder %s103, %s119
    %p121 = scmp.eq.s32.totalorder %s27, 0
    %p122 = por %p120, %p121
    %s123 = ssub.s32 %s28, %s40
    %p124 = scmp.eq.s32.totalorder %s123, 0
    %s126 = sadd.s32 %s125, 1
    %s127 = scalar_select %p124, %s125, %s126
    %p130 = pneg %p124
    %p131 = scmp.eq.s32.totalorder %s21, 1
    %p132 = por %p130, %p131
    %p133 = scmp.ne.s32.totalorder %s125, %s128
    %p134 = scmp.eq.s32.totalorder %s21, 0
    %p135 = por %p133, %p134
    %p136 = scmp.ne.s32.totalorder %s125, %s128
    %p137 = scmp.eq.s32.totalorder %s26, 1
    %p138 = por %p136, %p137
    %p139 = scmp.ne.s32.totalorder %s128, %s129
    %p140 = scmp.eq.s32.totalorder %s26, 0
    %p141 = por %p139, %p140
    %p142 = scmp.ne.s32.totalorder %s128, %s129
    %p143 = scmp.eq.s32.totalorder %s27, 1
    %p144 = por %p142, %p143
    %p146 = scmp.ne.s32.totalorder %s129, %s145
    %p147 = scmp.eq.s32.totalorder %s27, 0
    %p148 = por %p146, %p147
    %s149 = ssub.s32 %s28, %s40
    %p150 = scmp.eq.s32.totalorder %s149, 0
    %s152 = sadd.s32 %s151, 1
    %s153 = scalar_select %p150, %s151, %s152
    %p156 = pneg %p150
    %p157 = scmp.eq.s32.totalorder %s21, 1
    %p158 = por %p156, %p157
    %p159 = scmp.ne.s32.totalorder %s151, %s154
    %p160 = scmp.eq.s32.totalorder %s21, 0
    %p161 = por %p159, %p160
    %p162 = scmp.ne.s32.totalorder %s151, %s154
    %p163 = scmp.eq.s32.totalorder %s26, 1
    %p164 = por %p162, %p163
    %p165 = scmp.ne.s32.totalorder %s154, %s155
    %p166 = scmp.eq.s32.totalorder %s26, 0
    %p167 = por %p165, %p166
    %p168 = scmp.ne.s32.totalorder %s154, %s155
    %p169 = scmp.eq.s32.totalorder %s27, 1
    %p170 = por %p168, %p169
    %p172 = scmp.ne.s32.totalorder %s155, %s171
    %p173 = scmp.eq.s32.totalorder %s27, 0
    %p174 = por %p172, %p173
    %s176 = sadd.s32 %s175, 1
    %p179 = scmp.eq.s32.totalorder %s21, 1
    %p180 = scmp.ne.s32.totalorder %s175, %s177
    %p181 = scmp.eq.s32.totalorder %s21, 0
    %p182 = por %p180, %p181
    %p183 = scmp.ne.s32.totalorder %s175, %s177
    %p184 = scmp.eq.s32.totalorder %s26, 1
    %p185 = por %p183, %p184
    %p186 = scmp.ne.s32.totalorder %s177, %s178
    %p187 = scmp.eq.s32.totalorder %s26, 0
    %p188 = por %p186, %p187
    %p189 = scmp.ne.s32.totalorder %s177, %s178
    %p190 = scmp.eq.s32.totalorder %s27, 1
    %p191 = por %p189, %p190
    %p193 = scmp.ne.s32.totalorder %s178, %s192
    %p194 = scmp.eq.s32.totalorder %s27, 0
    %p195 = por %p193, %p194
    %s197 = sadd.s32 %s196, 1
    %p200 = scmp.eq.s32.totalorder %s21, 1
    %p201 = scmp.ne.s32.totalorder %s196, %s198
    %p202 = scmp.eq.s32.totalorder %s21, 0
    %p203 = por %p201, %p202
    %p204 = scmp.ne.s32.totalorder %s196, %s198
    %p205 = scmp.eq.s32.totalorder %s26, 1
    %p206 = por %p204, %p205
    %p207 = scmp.ne.s32.totalorder %s198, %s199
    %p208 = scmp.eq.s32.totalorder %s26, 0
    %p209 = por %p207, %p208
    %p210 = scmp.ne.s32.totalorder %s198, %s199
    %p211 = scmp.eq.s32.totalorder %s27, 1
    %p212 = por %p210, %p211
    %p214 = scmp.ne.s32.totalorder %s199, %s213
    %p215 = scmp.eq.s32.totalorder %s27, 0
    %p216 = por %p214, %p215
    %s218 = sadd.s32 %s217, 1
    %p221 = scmp.eq.s32.totalorder %s21, 1
    %p222 = scmp.ne.s32.totalorder %s217, %s219
    %p223 = scmp.eq.s32.totalorder %s21, 0
    %p224 = por %p222, %p223
    %p225 = scmp.ne.s32.totalorder %s217, %s219
    %p226 = scmp.eq.s32.totalorder %s26, 1
    %p227 = por %p225, %p226
    %p228 = scmp.ne.s32.totalorder %s219, %s220
    %p229 = scmp.eq.s32.totalorder %s26, 0
    %p230 = por %p228, %p229
    %p231 = scmp.ne.s32.totalorder %s219, %s220
    %p232 = scmp.eq.s32.totalorder %s27, 1
    %p233 = por %p231, %p232
    %p235 = scmp.ne.s32.totalorder %s220, %s234
    %p236 = scmp.eq.s32.totalorder %s27, 0
    %p237 = por %p235, %p236
    %s239 = sadd.s32 %s238, 1
    %p242 = scmp.eq.s32.totalorder %s21, 1
    %p243 = scmp.ne.s32.totalorder %s238, %s240
    %p244 = scmp.eq.s32.totalorder %s21, 0
    %p245 = por %p243, %p244
    %p246 = scmp.ne.s32.totalorder %s238, %s240
    %p247 = scmp.eq.s32.totalorder %s26, 1
    %p248 = por %p246, %p247
    %p249 = scmp.ne.s32.totalorder %s240, %s241
    %p250 = scmp.eq.s32.totalorder %s26, 0
    %p251 = por %p249, %p250
    %p252 = scmp.ne.s32.totalorder %s240, %s241
    %p253 = scmp.eq.s32.totalorder %s27, 1
    %p254 = por %p252, %p253
    %p256 = scmp.ne.s32.totalorder %s241, %s255
    %p257 = scmp.eq.s32.totalorder %s27, 0
    %p258 = por %p256, %p257
    %s260 = sadd.s32 %s259, 1
    %p263 = scmp.eq.s32.totalorder %s21, 1
    %p264 = scmp.ne.s32.totalorder %s259, %s261
    %p265 = scmp.eq.s32.totalorder %s21, 0
    %p266 = por %p264, %p265
    %p267 = scmp.ne.s32.totalorder %s259, %s261
    %p268 = scmp.eq.s32.totalorder %s26, 1
    %p269 = por %p267, %p268
    %p270 = scmp.ne.s32.totalorder %s261, %s262
    %p271 = scmp.eq.s32.totalorder %s26, 0
    %p272 = por %p270, %p271
    %p273 = scmp.ne.s32.totalorder %s261, %s262
    %p274 = scmp.eq.s32.totalorder %s27, 1
    %p275 = por %p273, %p274
    %p277 = scmp.ne.s32.totalorder %s262, %s276
    %p278 = scmp.eq.s32.totalorder %s27, 0
    %p279 = por %p277, %p278
    %s281 = sadd.s32 %s280, 1
    %p284 = scmp.eq.s32.totalorder %s21, 1
    %p285 = scmp.ne.s32.totalorder %s280, %s282
    %p286 = scmp.eq.s32.totalorder %s21, 0
    %p287 = por %p285, %p286
    %p288 = scmp.ne.s32.totalorder %s280, %s282
    %p289 = scmp.eq.s32.totalorder %s26, 1
    %p290 = por %p288, %p289
    %p291 = scmp.ne.s32.totalorder %s282, %s283
    %p292 = scmp.eq.s32.totalorder %s26, 0
    %p293 = por %p291, %p292
    %p294 = scmp.ne.s32.totalorder %s282, %s283
    %p295 = scmp.eq.s32.totalorder %s27, 1
    %p296 = por %p294, %p295
    %p298 = scmp.ne.s32.totalorder %s283, %s297
    %p299 = scmp.eq.s32.totalorder %s27, 0
    %p300 = por %p298, %p299
    %s302 = sadd.s32 %s301, 1
    %p305 = scmp.eq.s32.totalorder %s21, 1
    %p306 = scmp.ne.s32.totalorder %s301, %s303
    %p307 = scmp.eq.s32.totalorder %s21, 0
    %p308 = por %p306, %p307
    %p309 = scmp.ne.s32.totalorder %s301, %s303
    %p310 = scmp.eq.s32.totalorder %s26, 1
    %p311 = por %p309, %p310
    %p312 = scmp.ne.s32.totalorder %s303, %s304
    %p313 = scmp.eq.s32.totalorder %s26, 0
    %p314 = por %p312, %p313
    %p315 = scmp.ne.s32.totalorder %s303, %s304
    %p316 = scmp.eq.s32.totalorder %s27, 1
    %p317 = por %p315, %p316
    %p319 = scmp.ne.s32.totalorder %s304, %s318
    %p320 = scmp.eq.s32.totalorder %s27, 0
    %p321 = por %p319, %p320
    %s323 = sadd.s32 %s322, 1
    %p326 = scmp.eq.s32.totalorder %s21, 1
    %p327 = scmp.ne.s32.totalorder %s322, %s324
    %p328 = scmp.eq.s32.totalorder %s21, 0
    %p329 = por %p327, %p328
    %p330 = scmp.ne.s32.totalorder %s322, %s324
    %p331 = scmp.eq.s32.totalorder %s26, 1
    %p332 = por %p330, %p331
    %p333 = scmp.ne.s32.totalorder %s324, %s325
    %p334 = scmp.eq.s32.totalorder %s26, 0
    %p335 = por %p333, %p334
    %p336 = scmp.ne.s32.totalorder %s324, %s325
    %p337 = scmp.eq.s32.totalorder %s27, 1
    %p338 = por %p336, %p337
    %p340 = scmp.ne.s32.totalorder %s325, %s339
    %p341 = scmp.eq.s32.totalorder %s27, 0
    %p342 = por %p340, %p341
    %s344 = sadd.s32 %s343, 1
    %p347 = scmp.eq.s32.totalorder %s21, 1
    %p348 = scmp.ne.s32.totalorder %s343, %s345
    %p349 = scmp.eq.s32.totalorder %s21, 0
    %p350 = por %p348, %p349
    %p351 = scmp.ne.s32.totalorder %s343, %s345
    %p352 = scmp.eq.s32.totalorder %s26, 1
    %p353 = por %p351, %p352
    %p354 = scmp.ne.s32.totalorder %s345, %s346
    %p355 = scmp.eq.s32.totalorder %s26, 0
    %p356 = por %p354, %p355
    %p357 = scmp.ne.s32.totalorder %s345, %s346
    %p358 = scmp.eq.s32.totalorder %s27, 1
    %p359 = por %p357, %p358
    %p361 = scmp.ne.s32.totalorder %s346, %s360
    %p362 = scmp.eq.s32.totalorder %s27, 0
    %p363 = por %p361, %p362
    %s365 = sadd.s32 %s364, 1
    %p368 = scmp.eq.s32.totalorder %s21, 1
    %p369 = scmp.ne.s32.totalorder %s364, %s366
    %p370 = scmp.eq.s32.totalorder %s21, 0
    %p371 = por %p369, %p370
    %p372 = scmp.ne.s32.totalorder %s364, %s366
    %p373 = scmp.eq.s32.totalorder %s26, 1
    %p374 = por %p372, %p373
    %p375 = scmp.ne.s32.totalorder %s366, %s367
    %p376 = scmp.eq.s32.totalorder %s26, 0
    %p377 = por %p375, %p376
    %p378 = scmp.ne.s32.totalorder %s366, %s367
    %p379 = scmp.eq.s32.totalorder %s27, 1
    %p380 = por %p378, %p379
    %p382 = scmp.ne.s32.totalorder %s367, %s381
    %p383 = scmp.eq.s32.totalorder %s27, 0
    %p384 = por %p382, %p383
    %s385 = ssub.s32 %s28, %s40
    %s386 = ssub.s32 %s29, %s36
    %s387 = sor.u32 %s385, %s386
    %p388 = scmp.eq.s32.totalorder %s387, 0
    %s390 = sadd.s32 %s389, 1
    %s391 = scalar_select %p388, %s389, %s390
    %p394 = pneg %p388
    %p395 = scmp.eq.s32.totalorder %s21, 1
    %p396 = por %p394, %p395
    %p397 = scmp.ne.s32.totalorder %s389, %s392
    %p398 = scmp.eq.s32.totalorder %s21, 0
    %p399 = por %p397, %p398
    %p400 = scmp.ne.s32.totalorder %s389, %s392
    %p401 = scmp.eq.s32.totalorder %s26, 1
    %p402 = por %p400, %p401
    %p403 = scmp.ne.s32.totalorder %s392, %s393
    %p404 = scmp.eq.s32.totalorder %s26, 0
    %p405 = por %p403, %p404
    %p406 = scmp.ne.s32.totalorder %s392, %s393
    %p407 = scmp.eq.s32.totalorder %s27, 1
    %p408 = por %p406, %p407
    %p410 = scmp.ne.s32.totalorder %s393, %s409
    %p411 = scmp.eq.s32.totalorder %s27, 0
    %p412 = por %p410, %p411
    %p413 = scmp.le.s32.totalorder 1, %s21
    %p414 = scmp.lt.s32.totalorder %s21, 3
    %p415 = pnand %p413, %p414
    %p416 = pneg %p415
    // Predicated region
    $region9: #{transformer_clustering_forward.12} parent=5 // pred_check
      _
    $region10: #{transformer_clustering_forward.12} parent=5 // pred_check_branch
      %418 = sbr.rel (%p415) target = $region12
    $region11: #{transformer_clustering_forward.12} parent=5 // pred_region
      %s419 = ssub.s32 %s21, 1
      // Predicated region
      $region13: #{transformer_clustering_forward.12} parent=11 // pred_check
        %p420 = pneg %p188
      $region14: #{transformer_clustering_forward.12} parent=11 // pred_check_branch
        %422 = sbr.rel (%p420) target = $region16
      $region15: #{transformer_clustering_forward.12} parent=11 // pred_region
        _
      $region16: #{transformer_clustering_forward.12} parent=11 // pred_fallthru
        _
      // Predicated region
      $region17: #{transformer_clustering_forward.12} parent=11 // pred_check
        %p423 = pneg %p209
      $region18: #{transformer_clustering_forward.12} parent=11 // pred_check_branch
        %425 = sbr.rel (%p423) target = $region20
      $region19: #{transformer_clustering_forward.12} parent=11 // pred_region
        _
      $region20: #{transformer_clustering_forward.12} parent=11 // pred_fallthru
        _
      // Predicated region
      $region21: #{transformer_clustering_forward.12} parent=11 // pred_check
        %p426 = pneg %p230
      $region22: #{transformer_clustering_forward.12} parent=11 // pred_check_branch
        %428 = sbr.rel (%p426) target = $region24
      $region23: #{transformer_clustering_forward.12} parent=11 // pred_region
        _
      $region24: #{transformer_clustering_forward.12} parent=11 // pred_fallthru
        _
      // Predicated region
      $region25: #{transformer_clustering_forward.12} parent=11 // pred_check
        %p429 = pneg %p251
      $region26: #{transformer_clustering_forward.12} parent=11 // pred_check_branch
        %431 = sbr.rel (%p429) target = $region28
      $region27: #{transformer_clustering_forward.12} parent=11 // pred_region
        _
      $region28: #{transformer_clustering_forward.12} parent=11 // pred_fallthru
        _
      // Predicated region
      $region29: #{transformer_clustering_forward.12} parent=11 // pred_check
        %p432 = pneg %p272
      $region30: #{transformer_clustering_forward.12} parent=11 // pred_check_branch
        %434 = sbr.rel (%p432) target = $region32
      $region31: #{transformer_clustering_forward.12} parent=11 // pred_region
        _
      $region32: #{transformer_clustering_forward.12} parent=11 // pred_fallthru
        _
      // Predicated region
      $region33: #{transformer_clustering_forward.12} parent=11 // pred_check
        %p435 = pneg %p293
      $region34: #{transformer_clustering_forward.12} parent=11 // pred_check_branch
        %437 = sbr.rel (%p435) target = $region36
      $region35: #{transformer_clustering_forward.12} parent=11 // pred_region
        _
      $region36: #{transformer_clustering_forward.12} parent=11 // pred_fallthru
        _
      // Predicated region
      $region37: #{transformer_clustering_forward.12} parent=11 // pred_check
        %p438 = pneg %p314
      $region38: #{transformer_clustering_forward.12} parent=11 // pred_check_branch
        %440 = sbr.rel (%p438) target = $region40
      $region39: #{transformer_clustering_forward.12} parent=11 // pred_region
        _
      $region40: #{transformer_clustering_forward.12} parent=11 // pred_fallthru
        _
      // Predicated region
      $region41: #{transformer_clustering_forward.12} parent=11 // pred_check
        %p441 = pneg %p335
      $region42: #{transformer_clustering_forward.12} parent=11 // pred_check_branch
        %443 = sbr.rel (%p441) target = $region44
      $region43: #{transformer_clustering_forward.12} parent=11 // pred_region
        _
      $region44: #{transformer_clustering_forward.12} parent=11 // pred_fallthru
        _
      // Predicated region
      $region45: #{transformer_clustering_forward.12} parent=11 // pred_check
        %p444 = pneg %p356
      $region46: #{transformer_clustering_forward.12} parent=11 // pred_check_branch
        %446 = sbr.rel (%p444) target = $region48
      $region47: #{transformer_clustering_forward.12} parent=11 // pred_region
        _
      $region48: #{transformer_clustering_forward.12} parent=11 // pred_fallthru
        _
      // Predicated region
      $region49: #{transformer_clustering_forward.12} parent=11 // pred_check
        %p447 = pneg %p377
      $region50: #{transformer_clustering_forward.12} parent=11 // pred_check_branch
        %449 = sbr.rel (%p447) target = $region52
      $region51: #{transformer_clustering_forward.12} parent=11 // pred_region
        _
      $region52: #{transformer_clustering_forward.12} parent=11 // pred_fallthru
        _
    $region12: #{transformer_clustering_forward.12} parent=5 // pred_fallthru
      _
    %p450 = scmp.lt.s32.totalorder %s21, 2
    // Predicated region
    $region53: #{transformer_clustering_forward.12} parent=5 // pred_check
      %p451 = pneg %p450
    $region54: #{transformer_clustering_forward.12} parent=5 // pred_check_branch
      %453 = sbr.rel (%p451) target = $region56
    $region55: #{transformer_clustering_forward.12} parent=5 // pred_region
      // Predicated region
      $region57: #{transformer_clustering_forward.12} parent=55 // pred_check
        %p454 = pneg %p55
      $region58: #{transformer_clustering_forward.12} parent=55 // pred_check_branch
        %456 = sbr.rel (%p454) target = $region60
      $region59: #{transformer_clustering_forward.12} parent=55 // pred_region
        %s457 = smul.u32 2, %s29
        %p458 = scmp.lt.s32.totalorder %s28, 1
        %s459 = scalar_select %p458, %s28, 1
        %p460 = scmp.lt.s32.totalorder %s457, 1
        %s461 = scalar_select %p460, %s457, 1
        %s462 = smul.addr %s459, 2
        %s463 = sadd.s32 %s461, %s462
        %s464 = smul.addr %s463, 8
        %s465 = scalar_lea.vmem %s0, %s464
        %s466 = smul.u32 2, %s29
      $region60: #{transformer_clustering_forward.12} parent=55 // pred_fallthru
        _
      // Predicated region
      $region61: #{transformer_clustering_forward.12} parent=55 // pred_check
        %p467 = pneg %p83
      $region62: #{transformer_clustering_forward.12} parent=55 // pred_check_branch
        %469 = sbr.rel (%p467) target = $region64
      $region63: #{transformer_clustering_forward.12} parent=55 // pred_region
        %s470 = smul.u32 2, %s29
        %p471 = scmp.lt.s32.totalorder %s28, 1
        %s472 = scalar_select %p471, %s28, 1
        %p473 = scmp.lt.s32.totalorder %s470, 1
        %s474 = scalar_select %p473, %s470, 1
        %s475 = smul.addr %s472, 2
        %s476 = sadd.s32 %s474, %s475
        %s477 = smul.addr %s476, 8
        %s478 = scalar_lea.vmem %s1, %s477
        %s479 = smul.u32 2, %s29
      $region64: #{transformer_clustering_forward.12} parent=55 // pred_fallthru
        _
      // Predicated region
      $region65: #{transformer_clustering_forward.12} parent=55 // pred_check
        %p480 = pneg %p109
      $region66: #{transformer_clustering_forward.12} parent=55 // pred_check_branch
        %482 = sbr.rel (%p480) target = $region68
      $region67: #{transformer_clustering_forward.12} parent=55 // pred_region
        %p483 = scmp.lt.s32.totalorder %s28, 1
        %s484 = scalar_select %p483, %s28, 1
        %s485 = smul.addr %s484, 2
        %s486 = smul.addr %s485, 8
        %s487 = scalar_lea.vmem %s2, %s486
      $region68: #{transformer_clustering_forward.12} parent=55 // pred_fallthru
        _
      // Predicated region
      $region69: #{transformer_clustering_forward.12} parent=55 // pred_check
        %p488 = pneg %p135
      $region70: #{transformer_clustering_forward.12} parent=55 // pred_check_branch
        %490 = sbr.rel (%p488) target = $region72
      $region71: #{transformer_clustering_forward.12} parent=55 // pred_region
        %p491 = scmp.lt.s32.totalorder %s28, 1
        %s492 = scalar_select %p491, %s28, 1
        %s493 = smul.addr %s492, 2
        %s494 = smul.addr %s493, 8
        %s495 = scalar_lea.vmem %s3, %s494
      $region72: #{transformer_clustering_forward.12} parent=55 // pred_fallthru
        _
      // Predicated region
      $region73: #{transformer_clustering_forward.12} parent=55 // pred_check
        %p496 = pneg %p161
      $region74: #{transformer_clustering_forward.12} parent=55 // pred_check_branch
        %498 = sbr.rel (%p496) target = $region76
      $region75: #{transformer_clustering_forward.12} parent=55 // pred_region
        %p499 = scmp.lt.s32.totalorder %s28, 1
        %s500 = scalar_select %p499, %s28, 1
        %s501 = scalar_lea.vmem %s4, %s500
      $region76: #{transformer_clustering_forward.12} parent=55 // pred_fallthru
        _
    $region56: #{transformer_clustering_forward.12} parent=5 // pred_fallthru
      _
    %p502 = scmp.le.s32.totalorder 1, %s21
    %p503 = scmp.lt.s32.totalorder %s21, 3
    %p504 = pnand %p502, %p503
    %p505 = pneg %p504
    // Predicated region
    $region77: #{transformer_clustering_forward.12} parent=5 // pred_check
      _
    $region78: #{transformer_clustering_forward.12} parent=5 // pred_check_branch
      %507 = sbr.rel (%p504) target = $region80
    $region79: #{transformer_clustering_forward.12} parent=5 // pred_region
      %s508 = ssub.s32 %s21, 1
      %s509 = smul.u32 2, %s31
      %p510 = scmp.lt.s32.totalorder %s30, 1
      %s511 = scalar_select %p510, %s30, 1
      %p512 = scmp.lt.s32.totalorder %s509, 1
      %s513 = scalar_select %p512, %s509, 1
      %s514 = smul.addr %s511, 2
      %s515 = sadd.s32 %s513, %s514
      %s516 = smul.addr %s515, 8
      %s517 = scalar_lea.vmem %s0, %s516
      %p518 = pneg %p61
      %p519 = pneg %p58
      %s520 = smul.u32 2, %s31
      %p521 = scmp.lt.s32.totalorder %s30, 1
      %s522 = scalar_select %p521, %s30, 1
      %p523 = scmp.lt.s32.totalorder %s520, 1
      %s524 = scalar_select %p523, %s520, 1
      %s525 = smul.addr %s522, 2
      %s526 = sadd.s32 %s524, %s525
      %s527 = smul.addr %s526, 8
      %s528 = scalar_lea.vmem %s1, %s527
      %p529 = pneg %p89
      %p530 = pneg %p86
      %p531 = scmp.lt.s32.totalorder %s30, 1
      %s532 = scalar_select %p531, %s30, 1
      %s533 = smul.addr %s532, 2
      %s534 = smul.addr %s533, 8
      %s535 = scalar_lea.vmem %s2, %s534
      %p536 = pneg %p115
      %p537 = pneg %p112
      %p538 = scmp.lt.s32.totalorder %s30, 1
      %s539 = scalar_select %p538, %s30, 1
      %s540 = smul.addr %s539, 2
      %s541 = smul.addr %s540, 8
      %s542 = scalar_lea.vmem %s3, %s541
      %p543 = pneg %p141
      %p544 = pneg %p138
      %p545 = scmp.lt.s32.totalorder %s30, 1
      %s546 = scalar_select %p545, %s30, 1
      %s547 = scalar_lea.vmem %s4, %s546
      %p548 = pneg %p167
      %p549 = pneg %p164
      %p550 = pneg %p188
      %p551 = pneg %p185
      %p552 = pneg %p209
      %p553 = pneg %p206
      %p554 = pneg %p230
      %p555 = pneg %p227
      %p556 = pneg %p251
      %p557 = pneg %p248
      %p558 = pneg %p272
      %p559 = pneg %p269
      %p560 = pneg %p293
      %p561 = pneg %p290
      %p562 = pneg %p314
      %p563 = pneg %p311
      %p564 = pneg %p335
      %p565 = pneg %p332
      %p566 = pneg %p356
      %p567 = pneg %p353
      %p568 = pneg %p377
      %p569 = pneg %p374
      %p570 = pneg %p405
      %p571 = pneg %p402
      %s572 = smul.u32 2, %s31
      %p573 = scmp.lt.s32.totalorder %s30, 1
      %s574 = scalar_select %p573, %s30, 1
      %p575 = scmp.lt.s32.totalorder %s572, 1
      %s576 = scalar_select %p575, %s572, 1
      %s577 = smul.addr %s574, 2
      %s578 = sadd.s32 %s576, %s577
      %s579 = smul.addr %s578, 8
      %s580 = scalar_lea.vmem %s15, %s579
      %s581 = smul.u32 2, %s31
      %p582 = scmp.lt.s32.totalorder %s30, 1
      %s583 = scalar_select %p582, %s30, 1
      %p584 = scmp.lt.s32.totalorder %s581, 1
      %s585 = scalar_select %p584, %s581, 1
      %s586 = smul.addr %s583, 2
      %s587 = sadd.s32 %s585, %s586
      %s588 = smul.addr %s587, 8
      %s589 = scalar_lea.vmem %s0, %s588
      %s590 = smul.u32 2, %s31
      %s591 = smul.u32 2, %s31
      %p592 = scmp.lt.s32.totalorder %s30, 1
      %s593 = scalar_select %p592, %s30, 1
      %p594 = scmp.lt.s32.totalorder %s591, 1
      %s595 = scalar_select %p594, %s591, 1
      %s596 = smul.addr %s593, 2
      %s597 = sadd.s32 %s595, %s596
      %s598 = smul.addr %s597, 8
      %s599 = scalar_lea.vmem %s1, %s598
      %s600 = smul.u32 2, %s31
      %p601 = scmp.lt.s32.totalorder %s30, 1
      %s602 = scalar_select %p601, %s30, 1
      %s603 = smul.addr %s602, 2
      %s604 = smul.addr %s603, 8
      %s605 = scalar_lea.vmem %s2, %s604
      %p606 = scmp.lt.s32.totalorder %s30, 1
      %s607 = scalar_select %p606, %s30, 1
      %s608 = smul.addr %s607, 2
      %s609 = smul.addr %s608, 8
      %s610 = scalar_lea.vmem %s3, %s609
      %p611 = scmp.lt.s32.totalorder %s30, 1
      %s612 = scalar_select %p611, %s30, 1
      %s613 = scalar_lea.vmem %s4, %s612
      %s614 = smul.u32 2, %s31
      %p615 = scmp.lt.s32.totalorder %s30, 1
      %s616 = scalar_select %p615, %s30, 1
      %p617 = scmp.lt.s32.totalorder %s614, 1
      %s618 = scalar_select %p617, %s614, 1
      %s619 = smul.addr %s616, 2
      %s620 = sadd.s32 %s618, %s619
      %s621 = smul.addr %s620, 8
      %s622 = scalar_lea.vmem %s15, %s621
      %s623 = smul.u32 2, %s31
      %v625 = vld [vmem:[%s589] sm:$0xff]
      %v626 = vld [vmem:[%s589 + $0x8] sm:$0xff]
      %v627 = vld [vmem:[%s599] sm:$0xff]
      %v628 = vld [vmem:[%s599 + $0x8] sm:$0xff]
      %v629 = vadd.f32 %v625, %v627
      %v630 = vadd.f32 %v626, %v628
      %v631 = vld [vmem:[%s605] sm:$0xff]
      %v632 = vld [vmem:[%s605 + $0x8] sm:$0xff]
      %v633 = vld [vmem:[%s610] sm:$0xff]
      %v634 = vld [vmem:[%s610 + $0x8] sm:$0xff]
      %v635 = vadd.f32 %v631, %v633
      %v636 = vadd.f32 %v632, %v634
      %v637 = vpack.c.bf16 %v630, %v629
      %v638 = vld [vmem:[%s5] sm:$0xf]
      %v639 = vld [vmem:[%s5 + $0x4] sm:$0xf]
      %v640 = vld [vmem:[%s5 + $0x8] sm:$0xf]
      %v641 = vld [vmem:[%s5 + $0xc] sm:$0xf]
      %v642 = vld [vmem:[%s5 + $0x10] sm:$0xf]
      %v643 = vld [vmem:[%s5 + $0x14] sm:$0xf]
      %v644 = vld [vmem:[%s5 + $0x18] sm:$0xf]
      %v645 = vld [vmem:[%s5 + $0x1c] sm:$0xf]
      %v646 = vld [vmem:[%s5 + $0x20] sm:$0xf]
      %v647 = vld [vmem:[%s5 + $0x24] sm:$0xf]
      %v648 = vld [vmem:[%s5 + $0x28] sm:$0xf]
      %v649 = vld [vmem:[%s5 + $0x2c] sm:$0xf]
      %v650 = vld [vmem:[%s5 + $0x30] sm:$0xf]
      %v651 = vld [vmem:[%s5 + $0x34] sm:$0xf]
      %v652 = vld [vmem:[%s5 + $0x38] sm:$0xf]
      %v653 = vld [vmem:[%s5 + $0x3c] sm:$0xf]
      %v654 = vld [vmem:[%s6] sm:$0x1]
      %v656 = vlaneseq
      %v657 = vshrl.u32 %v656, 7
      %v658 = vsub.s32 0, %v657
      %v659 = vrot.slane %v654, %v658
      %v677 = vunpack.c.l.b16 %v638
      %v678 = vunpack.c.l.b16 %v639
      %v679 = vunpack.c.l.b16 %v640
      %v680 = vunpack.c.l.b16 %v641
      %v681 = vunpack.c.l.b16 %v642
      %v682 = vunpack.c.l.b16 %v643
      %v683 = vunpack.c.l.b16 %v644
      %v684 = vunpack.c.l.b16 %v645
      %v685 = vunpack.c.l.b16 %v646
      %v686 = vunpack.c.l.b16 %v647
      %v687 = vunpack.c.l.b16 %v648
      %v688 = vunpack.c.l.b16 %v649
      %v689 = vunpack.c.l.b16 %v650
      %v690 = vunpack.c.l.b16 %v651
      %v691 = vunpack.c.l.b16 %v652
      %v692 = vunpack.c.l.b16 %v653
      %v693 = vpack.c.b16 %v678, %v677
      %v694 = vpack.c.b16 %v680, %v679
      %v695 = vpack.c.b16 %v682, %v681
      %v696 = vpack.c.b16 %v684, %v683
      %v697 = vpack.c.b16 %v686, %v685
      %v698 = vpack.c.b16 %v688, %v687
      %v699 = vpack.c.b16 %v690, %v689
      %v700 = vpack.c.b16 %v692, %v691
      %709 = vmatprep.subr.bf16.mxu0 0
      %710 = vmatpush1.bf16.msra.mxu0 %v700
      %711 = vmatprep.subr.bf16.mxu0 0
      %712 = vmatpush1.bf16.msra.mxu0 %v699
      %713 = vmatprep.subr.bf16.mxu0 0
      %714 = vmatpush1.bf16.msra.mxu0 %v698
      %715 = vmatprep.subr.bf16.mxu0 0
      %716 = vmatpush1.bf16.msra.mxu0 %v697
      %717 = vmatprep.subr.bf16.mxu0 0
      %718 = vmatpush1.bf16.msra.mxu0 %v696
      %719 = vmatprep.subr.bf16.mxu0 0
      %720 = vmatpush1.bf16.msra.mxu0 %v695
      %721 = vmatprep.subr.bf16.mxu0 0
      %722 = vmatpush1.bf16.msra.mxu0 %v694
      %723 = vmatprep.subr.bf16.mxu0 0
      %724 = vmatpush1.bf16.msra.mxu0 %v693
      %725 = vmatprep.subr.bf16.mxu0 0
      %726 = vmatpush2.bf16.msra.mxu0 0
      %727 = vmatprep.subr.bf16.mxu0 0
      %728 = vmatpush2.bf16.msra.mxu0 0
      %729 = vmatprep.subr.bf16.mxu0 0
      %730 = vmatpush2.bf16.msra.mxu0 0
      %731 = vmatprep.subr.bf16.mxu0 0
      %732 = vmatpush2.bf16.msra.mxu0 0
      %733 = vmatprep.subr.bf16.mxu0 0
      %734 = vmatpush2.bf16.msra.mxu0 0
      %735 = vmatprep.subr.bf16.mxu0 0
      %736 = vmatpush2.bf16.msra.mxu0 0
      %737 = vmatprep.subr.bf16.mxu0 0
      %738 = vmatpush2.bf16.msra.mxu0 0
      %739 = vmatprep.subr.bf16.mxu0 0
      %740 = vmatpush2.bf16.msra.mxu0 0
      %741 = vmatprep.mubr.bf16.mxu0 0
      %742 = vmatmul.mubr.bf16.gmra.mxu0 %v637
      %v743 = vpop.f32.mrf.mxu0
      %v744 = vadd.f32 %v659, %v743
      %v745 = vpop.f32.mrf.mxu0
      %v746 = vpop.f32.mrf.mxu0
      %v747 = vadd.f32 %v659, %v746
      %v748 = vpop.f32.mrf.mxu0
      %749 = vdwg.mxu0
      %v750 = vpack.c.bf16 %v636, %v635
      %v751 = vld [vmem:[%s7] sm:$0xf]
      %v752 = vld [vmem:[%s7 + $0x4] sm:$0xf]
      %v753 = vld [vmem:[%s7 + $0x8] sm:$0xf]
      %v754 = vld [vmem:[%s7 + $0xc] sm:$0xf]
      %v755 = vld [vmem:[%s7 + $0x10] sm:$0xf]
      %v756 = vld [vmem:[%s7 + $0x14] sm:$0xf]
      %v757 = vld [vmem:[%s7 + $0x18] sm:$0xf]
      %v758 = vld [vmem:[%s7 + $0x1c] sm:$0xf]
      %v759 = vld [vmem:[%s7 + $0x20] sm:$0xf]
      %v760 = vld [vmem:[%s7 + $0x24] sm:$0xf]
      %v761 = vld [vmem:[%s7 + $0x28] sm:$0xf]
      %v762 = vld [vmem:[%s7 + $0x2c] sm:$0xf]
      %v763 = vld [vmem:[%s7 + $0x30] sm:$0xf]
      %v764 = vld [vmem:[%s7 + $0x34] sm:$0xf]
      %v765 = vld [vmem:[%s7 + $0x38] sm:$0xf]
      %v766 = vld [vmem:[%s7 + $0x3c] sm:$0xf]
      %v767 = vld [vmem:[%s8] sm:$0x1]
      %v769 = vlaneseq
      %v770 = vshrl.u32 %v769, 7
      %v771 = vsub.s32 0, %v770
      %v772 = vrot.slane %v767, %v771
      %v790 = vunpack.c.l.b16 %v751
      %v791 = vunpack.c.l.b16 %v752
      %v792 = vunpack.c.l.b16 %v753
      %v793 = vunpack.c.l.b16 %v754
      %v794 = vunpack.c.l.b16 %v755
      %v795 = vunpack.c.l.b16 %v756
      %v796 = vunpack.c.l.b16 %v757
      %v797 = vunpack.c.l.b16 %v758
      %v798 = vunpack.c.l.b16 %v759
      %v799 = vunpack.c.l.b16 %v760
      %v800 = vunpack.c.l.b16 %v761
      %v801 = vunpack.c.l.b16 %v762
      %v802 = vunpack.c.l.b16 %v763
      %v803 = vunpack.c.l.b16 %v764
      %v804 = vunpack.c.l.b16 %v765
      %v805 = vunpack.c.l.b16 %v766
      %v806 = vpack.c.b16 %v791, %v790
      %v807 = vpack.c.b16 %v793, %v792
      %v808 = vpack.c.b16 %v795, %v794
      %v809 = vpack.c.b16 %v797, %v796
      %v810 = vpack.c.b16 %v799, %v798
      %v811 = vpack.c.b16 %v801, %v800
      %v812 = vpack.c.b16 %v803, %v802
      %v813 = vpack.c.b16 %v805, %v804
      %822 = vmatprep.subr.bf16.mxu0 0
      %823 = vmatpush1.bf16.msra.mxu0 %v813
      %824 = vmatprep.subr.bf16.mxu0 0
      %825 = vmatpush1.bf16.msra.mxu0 %v812
      %826 = vmatprep.subr.bf16.mxu0 0
      %827 = vmatpush1.bf16.msra.mxu0 %v811
      %828 = vmatprep.subr.bf16.mxu0 0
      %829 = vmatpush1.bf16.msra.mxu0 %v810
      %830 = vmatprep.subr.bf16.mxu0 0
      %831 = vmatpush1.bf16.msra.mxu0 %v809
      %832 = vmatprep.subr.bf16.mxu0 0
      %833 = vmatpush1.bf16.msra.mxu0 %v808
      %834 = vmatprep.subr.bf16.mxu0 0
      %835 = vmatpush1.bf16.msra.mxu0 %v807
      %836 = vmatprep.subr.bf16.mxu0 0
      %837 = vmatpush1.bf16.msra.mxu0 %v806
      %838 = vmatprep.subr.bf16.mxu0 0
      %839 = vmatpush2.bf16.msra.mxu0 0
      %840 = vmatprep.subr.bf16.mxu0 0
      %841 = vmatpush2.bf16.msra.mxu0 0
      %842 = vmatprep.subr.bf16.mxu0 0
      %843 = vmatpush2.bf16.msra.mxu0 0
      %844 = vmatprep.subr.bf16.mxu0 0
      %845 = vmatpush2.bf16.msra.mxu0 0
      %846 = vmatprep.subr.bf16.mxu0 0
      %847 = vmatpush2.bf16.msra.mxu0 0
      %848 = vmatprep.subr.bf16.mxu0 0
      %849 = vmatpush2.bf16.msra.mxu0 0
      %850 = vmatprep.subr.bf16.mxu0 0
      %851 = vmatpush2.bf16.msra.mxu0 0
      %852 = vmatprep.subr.bf16.mxu0 0
      %853 = vmatpush2.bf16.msra.mxu0 0
      %854 = vmatprep.mubr.bf16.mxu0 0
      %855 = vmatmul.mubr.bf16.gmra.mxu0 %v750
      %v856 = vpop.f32.mrf.mxu0
      %v857 = vadd.f32 %v772, %v856
      %v858 = vpop.f32.mrf.mxu0
      %v859 = vpop.f32.mrf.mxu0
      %v860 = vadd.f32 %v772, %v859
      %v861 = vpop.f32.mrf.mxu0
      %862 = vdwg.mxu0
      %v863 = vpack.c.bf16 %v632, %v631
      %v864 = vld [vmem:[%s9] sm:$0xf]
      %v865 = vld [vmem:[%s9 + $0x4] sm:$0xf]
      %v866 = vld [vmem:[%s9 + $0x8] sm:$0xf]
      %v867 = vld [vmem:[%s9 + $0xc] sm:$0xf]
      %v868 = vld [vmem:[%s9 + $0x10] sm:$0xf]
      %v869 = vld [vmem:[%s9 + $0x14] sm:$0xf]
      %v870 = vld [vmem:[%s9 + $0x18] sm:$0xf]
      %v871 = vld [vmem:[%s9 + $0x1c] sm:$0xf]
      %v872 = vld [vmem:[%s9 + $0x20] sm:$0xf]
      %v873 = vld [vmem:[%s9 + $0x24] sm:$0xf]
      %v874 = vld [vmem:[%s9 + $0x28] sm:$0xf]
      %v875 = vld [vmem:[%s9 + $0x2c] sm:$0xf]
      %v876 = vld [vmem:[%s9 + $0x30] sm:$0xf]
      %v877 = vld [vmem:[%s9 + $0x34] sm:$0xf]
      %v878 = vld [vmem:[%s9 + $0x38] sm:$0xf]
      %v879 = vld [vmem:[%s9 + $0x3c] sm:$0xf]
      %v880 = vld [vmem:[%s10] sm:$0x1]
      %v882 = vlaneseq
      %v883 = vshrl.u32 %v882, 7
      %v884 = vsub.s32 0, %v883
      %v885 = vrot.slane %v880, %v884
      %v903 = vunpack.c.l.b16 %v864
      %v904 = vunpack.c.l.b16 %v865
      %v905 = vunpack.c.l.b16 %v866
      %v906 = vunpack.c.l.b16 %v867
      %v907 = vunpack.c.l.b16 %v868
      %v908 = vunpack.c.l.b16 %v869
      %v909 = vunpack.c.l.b16 %v870
      %v910 = vunpack.c.l.b16 %v871
      %v911 = vunpack.c.l.b16 %v872
      %v912 = vunpack.c.l.b16 %v873
      %v913 = vunpack.c.l.b16 %v874
      %v914 = vunpack.c.l.b16 %v875
      %v915 = vunpack.c.l.b16 %v876
      %v916 = vunpack.c.l.b16 %v877
      %v917 = vunpack.c.l.b16 %v878
      %v918 = vunpack.c.l.b16 %v879
      %v919 = vpack.c.b16 %v904, %v903
      %v920 = vpack.c.b16 %v906, %v905
      %v921 = vpack.c.b16 %v908, %v907
      %v922 = vpack.c.b16 %v910, %v909
      %v923 = vpack.c.b16 %v912, %v911
      %v924 = vpack.c.b16 %v914, %v913
      %v925 = vpack.c.b16 %v916, %v915
      %v926 = vpack.c.b16 %v918, %v917
      %935 = vmatprep.subr.bf16.mxu0 0
      %936 = vmatpush1.bf16.msra.mxu0 %v926
      %937 = vmatprep.subr.bf16.mxu0 0
      %938 = vmatpush1.bf16.msra.mxu0 %v925
      %939 = vmatprep.subr.bf16.mxu0 0
      %940 = vmatpush1.bf16.msra.mxu0 %v924
      %941 = vmatprep.subr.bf16.mxu0 0
      %942 = vmatpush1.bf16.msra.mxu0 %v923
      %943 = vmatprep.subr.bf16.mxu0 0
      %944 = vmatpush1.bf16.msra.mxu0 %v922
      %945 = vmatprep.subr.bf16.mxu0 0
      %946 = vmatpush1.bf16.msra.mxu0 %v921
      %947 = vmatprep.subr.bf16.mxu0 0
      %948 = vmatpush1.bf16.msra.mxu0 %v920
      %949 = vmatprep.subr.bf16.mxu0 0
      %950 = vmatpush1.bf16.msra.mxu0 %v919
      %951 = vmatprep.subr.bf16.mxu0 0
      %952 = vmatpush2.bf16.msra.mxu0 0
      %953 = vmatprep.subr.bf16.mxu0 0
      %954 = vmatpush2.bf16.msra.mxu0 0
      %955 = vmatprep.subr.bf16.mxu0 0
      %956 = vmatpush2.bf16.msra.mxu0 0
      %957 = vmatprep.subr.bf16.mxu0 0
      %958 = vmatpush2.bf16.msra.mxu0 0
      %959 = vmatprep.subr.bf16.mxu0 0
      %960 = vmatpush2.bf16.msra.mxu0 0
      %961 = vmatprep.subr.bf16.mxu0 0
      %962 = vmatpush2.bf16.msra.mxu0 0
      %963 = vmatprep.subr.bf16.mxu0 0
      %964 = vmatpush2.bf16.msra.mxu0 0
      %965 = vmatprep.subr.bf16.mxu0 0
      %966 = vmatpush2.bf16.msra.mxu0 0
      %967 = vmatprep.mubr.bf16.mxu0 0
      %968 = vmatmul.mubr.bf16.gmra.mxu0 %v863
      %v969 = vpop.f32.mrf.mxu0
      %v970 = vadd.f32 %v885, %v969
      %v971 = vpop.f32.mrf.mxu0
      %v972 = vpop.f32.mrf.mxu0
      %v973 = vadd.f32 %v885, %v972
      %v974 = vpop.f32.mrf.mxu0
      %975 = vdwg.mxu0
      %v976 = vmul.f32 %v744, 0.17677669
      %v977 = vmul.f32 %v747, 0.17677669
      %v978 = vpack.c.bf16 %v977, %v976
      %v979 = vpack.c.bf16 %v860, %v857
      %v980 = vpack.c.bf16 %v973, %v970
      %v981 = vld [vmem:[%s613] sm:$0x1]
      %v983 = vlaneseq
      %v984 = vshrl.u32 %v983, 7
      %v985 = vsub.s32 0, %v984
      %v986 = vrot.slane %v981, %v985
      %vm988 = vcmask 261120
      %v990 = vsel %vm988, %v978, 0
      %v993 = vsel %vm988, %v979, 0
      %995 = vmatprep.subr.bf16.mxu0 0
      %996 = vmatpush1.bf16.xpose.msra.mxu0 0
      %997 = vmatprep.subr.bf16.mxu0 0
      %998 = vmatpush1.bf16.xpose.msra.mxu0 0
      %999 = vmatprep.subr.bf16.mxu0 0
      %1000 = vmatpush1.bf16.xpose.msra.mxu0 0
      %1001 = vmatprep.subr.bf16.mxu0 0
      %1002 = vmatpush1.bf16.xpose.msra.mxu0 0
      %1003 = vmatprep.subr.bf16.mxu0 0
      %1004 = vmatpush1.bf16.xpose.msra.mxu0 0
      %1005 = vmatprep.subr.bf16.mxu0 0
      %1006 = vmatpush1.bf16.xpose.msra.mxu0 0
      %1007 = vmatprep.subr.bf16.mxu0 0
      %1008 = vmatpush1.bf16.xpose.msra.mxu0 0
      %1009 = vmatprep.subr.bf16.mxu0 0
      %1010 = vmatpush1.bf16.xpose.msra.mxu0 %v993
      %1011 = vmatprep.subr.bf16.mxu0 0
      %1012 = vmatpush2.bf16.xpose.msra.mxu0 0
      %1013 = vmatprep.subr.bf16.mxu0 0
      %1014 = vmatpush2.bf16.xpose.msra.mxu0 0
      %1015 = vmatprep.subr.bf16.mxu0 0
      %1016 = vmatpush2.bf16.xpose.msra.mxu0 0
      %1017 = vmatprep.subr.bf16.mxu0 0
      %1018 = vmatpush2.bf16.xpose.msra.mxu0 0
      %1019 = vmatprep.subr.bf16.mxu0 0
      %1020 = vmatpush2.bf16.xpose.msra.mxu0 0
      %1021 = vmatprep.subr.bf16.mxu0 0
      %1022 = vmatpush2.bf16.xpose.msra.mxu0 0
      %1023 = vmatprep.subr.bf16.mxu0 0
      %1024 = vmatpush2.bf16.xpose.msra.mxu0 0
      %1025 = vmatprep.subr.bf16.mxu0 0
      %1026 = vmatpush2.bf16.xpose.msra.mxu0 0
      %1027 = vmatprep.mubr.bf16.mxu0 0
      %1028 = vmatmul.mubr.bf16.gmra.mxu0 %v990
      %v1029 = vpop.f32.mrf.mxu0
      %v1030 = vadd.f32 %v986, %v1029
      %v1031 = vpop.f32.mrf.mxu0
      %v1032 = vpop.f32.mrf.mxu0
      %v1033 = vadd.f32 %v986, %v1032
      %v1034 = vpop.f32.mrf.mxu0
      %1035 = vdwg.mxu0
      %vm1036 = vcmask 130048
      %v1037 = vsel %vm1036, %v1030, -inf
      %1038 = vmax.xlane.f32.xlu0 %v1037
      %v1039 = vpop.xlane.xlu0 %1038
      %v1040 = vsel %vm1036, %v1033, -inf
      %1041 = vmax.xlane.f32.xlu0 %v1040
      %v1042 = vpop.xlane.xlu0 %1041
      %v1043 = vsub.f32 %v1030, %v1039
      %v1044 = vsub.f32 %v1033, %v1042
      %v1045 = vmul.f32 %v1043, 1.442695
      %v1046 = vpow.pop %v1045
      %v1047 = vmul.f32 %v1044, 1.442695
      %v1048 = vpow.pop %v1047
      %v1049 = vsel %vm1036, %v1046, 0.0
      %1050 = vadd.xlane.f32.xlu0 %v1049
      %v1051 = vpop.xlane.xlu0 %1050
      %v1052 = vsel %vm1036, %v1048, 0.0
      %1053 = vadd.xlane.f32.xlu0 %v1052
      %v1054 = vpop.xlane.xlu0 %1053
      %v1055 = vrcp.pop %v1051
      %v1056 = vrcp.pop %v1054
      %v1057 = vmul.f32 %v1046, %v1055
      %v1058 = vmul.f32 %v1048, %v1056
      %v1059 = vpack.c.bf16 %v1058, %v1057
      %v1061 = vsel %vm1036, %v1059, 0
      %1063 = vmatprep.subr.bf16.mxu0 0
      %1064 = vmatpush1.bf16.msra.mxu0 0
      %1065 = vmatprep.subr.bf16.mxu0 0
      %1066 = vmatpush1.bf16.msra.mxu0 0
      %1067 = vmatprep.subr.bf16.mxu0 0
      %1068 = vmatpush1.bf16.msra.mxu0 0
      %1069 = vmatprep.subr.bf16.mxu0 0
      %1070 = vmatpush1.bf16.msra.mxu0 0
      %1071 = vmatprep.subr.bf16.mxu0 0
      %1072 = vmatpush1.bf16.msra.mxu0 0
      %1073 = vmatprep.subr.bf16.mxu0 0
      %1074 = vmatpush1.bf16.msra.mxu0 0
      %1075 = vmatprep.subr.bf16.mxu0 0
      %1076 = vmatpush1.bf16.msra.mxu0 0
      %1077 = vmatprep.subr.bf16.mxu0 0
      %1078 = vmatpush1.bf16.msra.mxu0 %v980
      %1079 = vmatprep.subr.bf16.mxu0 0
      %1080 = vmatpush2.bf16.msra.mxu0 0
      %1081 = vmatprep.subr.bf16.mxu0 0
      %1082 = vmatpush2.bf16.msra.mxu0 0
      %1083 = vmatprep.subr.bf16.mxu0 0
      %1084 = vmatpush2.bf16.msra.mxu0 0
      %1085 = vmatprep.subr.bf16.mxu0 0
      %1086 = vmatpush2.bf16.msra.mxu0 0
      %1087 = vmatprep.subr.bf16.mxu0 0
      %1088 = vmatpush2.bf16.msra.mxu0 0
      %1089 = vmatprep.subr.bf16.mxu0 0
      %1090 = vmatpush2.bf16.msra.mxu0 0
      %1091 = vmatprep.subr.bf16.mxu0 0
      %1092 = vmatpush2.bf16.msra.mxu0 0
      %1093 = vmatprep.subr.bf16.mxu0 0
      %1094 = vmatpush2.bf16.msra.mxu0 0
      %1095 = vmatprep.mubr.bf16.mxu0 0
      %1096 = vmatmul.mubr.bf16.gmra.mxu0 %v1061
      %v1097 = vpop.f32.mrf.mxu0
      %v1098 = vadd.f32 0.0, %v1097
      %v1099 = vpop.f32.mrf.mxu0
      %v1100 = vpop.f32.mrf.mxu0
      %v1101 = vadd.f32 0.0, %v1100
      %v1102 = vpop.f32.mrf.mxu0
      %1103 = vdwg.mxu0
      %1105 = vrot.lane.b32.xlu0 %v978, 96
      %v1106 = vpop.permute.xlu0 %1105
      %1108 = vrot.lane.b32.xlu0 %v979, 96
      %v1109 = vpop.permute.xlu0 %1108
      %v1111 = vsel %vm988, %v1106, 0
      %v1114 = vsel %vm988, %v1109, 0
      %1116 = vmatprep.subr.bf16.mxu0 0
      %1117 = vmatpush1.bf16.xpose.msra.mxu0 0
      %1118 = vmatprep.subr.bf16.mxu0 0
      %1119 = vmatpush1.bf16.xpose.msra.mxu0 0
      %1120 = vmatprep.subr.bf16.mxu0 0
      %1121 = vmatpush1.bf16.xpose.msra.mxu0 0
      %1122 = vmatprep.subr.bf16.mxu0 0
      %1123 = vmatpush1.bf16.xpose.msra.mxu0 0
      %1124 = vmatprep.subr.bf16.mxu0 0
      %1125 = vmatpush1.bf16.xpose.msra.mxu0 0
      %1126 = vmatprep.subr.bf16.mxu0 0
      %1127 = vmatpush1.bf16.xpose.msra.mxu0 0
      %1128 = vmatprep.subr.bf16.mxu0 0
      %1129 = vmatpush1.bf16.xpose.msra.mxu0 0
      %1130 = vmatprep.subr.bf16.mxu0 0
      %1131 = vmatpush1.bf16.xpose.msra.mxu0 %v1114
      %1132 = vmatprep.subr.bf16.mxu0 0
      %1133 = vmatpush2.bf16.xpose.msra.mxu0 0
      %1134 = vmatprep.subr.bf16.mxu0 0
      %1135 = vmatpush2.bf16.xpose.msra.mxu0 0
      %1136 = vmatprep.subr.bf16.mxu0 0
      %1137 = vmatpush2.bf16.xpose.msra.mxu0 0
      %1138 = vmatprep.subr.bf16.mxu0 0
      %1139 = vmatpush2.bf16.xpose.msra.mxu0 0
      %1140 = vmatprep.subr.bf16.mxu0 0
      %1141 = vmatpush2.bf16.xpose.msra.mxu0 0
      %1142 = vmatprep.subr.bf16.mxu0 0
      %1143 = vmatpush2.bf16.xpose.msra.mxu0 0
      %1144 = vmatprep.subr.bf16.mxu0 0
      %1145 = vmatpush2.bf16.xpose.msra.mxu0 0
      %1146 = vmatprep.subr.bf16.mxu0 0
      %1147 = vmatpush2.bf16.xpose.msra.mxu0 0
      %1148 = vmatprep.mubr.bf16.mxu0 0
      %1149 = vmatmul.mubr.bf16.gmra.mxu0 %v1111
      %v1150 = vpop.f32.mrf.mxu0
      %v1151 = vadd.f32 %v986, %v1150
      %v1152 = vpop.f32.mrf.mxu0
      %v1153 = vpop.f32.mrf.mxu0
      %v1154 = vadd.f32 %v986, %v1153
      %v1155 = vpop.f32.mrf.mxu0
      %1156 = vdwg.mxu0
      %v1157 = vsel %vm1036, %v1151, -inf
      %1158 = vmax.xlane.f32.xlu0 %v1157
      %v1159 = vpop.xlane.xlu0 %1158
      %v1160 = vsel %vm1036, %v1154, -inf
      %1161 = vmax.xlane.f32.xlu0 %v1160
      %v1162 = vpop.xlane.xlu0 %1161
      %v1163 = vsub.f32 %v1151, %v1159
      %v1164 = vsub.f32 %v1154, %v1162
      %v1165 = vmul.f32 %v1163, 1.442695
      %v1166 = vpow.pop %v1165
      %v1167 = vmul.f32 %v1164, 1.442695
      %v1168 = vpow.pop %v1167
      %v1169 = vsel %vm1036, %v1166, 0.0
      %1170 = vadd.xlane.f32.xlu0 %v1169
      %v1171 = vpop.xlane.xlu0 %1170
      %v1172 = vsel %vm1036, %v1168, 0.0
      %1173 = vadd.xlane.f32.xlu0 %v1172
      %v1174 = vpop.xlane.xlu0 %1173
      %v1175 = vrcp.pop %v1171
      %v1176 = vrcp.pop %v1174
      %v1177 = vmul.f32 %v1166, %v1175
      %v1178 = vmul.f32 %v1168, %v1176
      %v1179 = vpack.c.bf16 %v1178, %v1177
      %1181 = vrot.lane.b32.xlu0 %v980, 96
      %v1182 = vpop.permute.xlu0 %1181
      %v1185 = vsel %vm1036, %v1179, 0
      %1187 = vmatprep.subr.bf16.mxu0 0
      %1188 = vmatpush1.bf16.msra.mxu0 0
      %1189 = vmatprep.subr.bf16.mxu0 0
      %1190 = vmatpush1.bf16.msra.mxu0 0
      %1191 = vmatprep.subr.bf16.mxu0 0
      %1192 = vmatpush1.bf16.msra.mxu0 0
      %1193 = vmatprep.subr.bf16.mxu0 0
      %1194 = vmatpush1.bf16.msra.mxu0 0
      %1195 = vmatprep.subr.bf16.mxu0 0
      %1196 = vmatpush1.bf16.msra.mxu0 0
      %1197 = vmatprep.subr.bf16.mxu0 0
      %1198 = vmatpush1.bf16.msra.mxu0 0
      %1199 = vmatprep.subr.bf16.mxu0 0
      %1200 = vmatpush1.bf16.msra.mxu0 0
      %1201 = vmatprep.subr.bf16.mxu0 0
      %1202 = vmatpush1.bf16.msra.mxu0 %v1182
      %1203 = vmatprep.subr.bf16.mxu0 0
      %1204 = vmatpush2.bf16.msra.mxu0 0
      %1205 = vmatprep.subr.bf16.mxu0 0
      %1206 = vmatpush2.bf16.msra.mxu0 0
      %1207 = vmatprep.subr.bf16.mxu0 0
      %1208 = vmatpush2.bf16.msra.mxu0 0
      %1209 = vmatprep.subr.bf16.mxu0 0
      %1210 = vmatpush2.bf16.msra.mxu0 0
      %1211 = vmatprep.subr.bf16.mxu0 0
      %1212 = vmatpush2.bf16.msra.mxu0 0
      %1213 = vmatprep.subr.bf16.mxu0 0
      %1214 = vmatpush2.bf16.msra.mxu0 0
      %1215 = vmatprep.subr.bf16.mxu0 0
      %1216 = vmatpush2.bf16.msra.mxu0 0
      %1217 = vmatprep.subr.bf16.mxu0 0
      %1218 = vmatpush2.bf16.msra.mxu0 0
      %1219 = vmatprep.mubr.bf16.mxu0 0
      %1220 = vmatmul.mubr.bf16.gmra.mxu0 %v1185
      %v1221 = vpop.f32.mrf.mxu0
      %v1222 = vadd.f32 0.0, %v1221
      %v1223 = vpop.f32.mrf.mxu0
      %v1224 = vpop.f32.mrf.mxu0
      %v1225 = vadd.f32 0.0, %v1224
      %v1226 = vpop.f32.mrf.mxu0
      %1227 = vdwg.mxu0
      %1228 = vrot.lane.b32.xlu0 %v978, 64
      %v1229 = vpop.permute.xlu0 %1228
      %1230 = vrot.lane.b32.xlu0 %v979, 64
      %v1231 = vpop.permute.xlu0 %1230
      %v1233 = vsel %vm988, %v1229, 0
      %v1236 = vsel %vm988, %v1231, 0
      %1238 = vmatprep.subr.bf16.mxu0 0
      %1239 = vmatpush1.bf16.xpose.msra.mxu0 0
      %1240 = vmatprep.subr.bf16.mxu0 0
      %1241 = vmatpush1.bf16.xpose.msra.mxu0 0
      %1242 = vmatprep.subr.bf16.mxu0 0
      %1243 = vmatpush1.bf16.xpose.msra.mxu0 0
      %1244 = vmatprep.subr.bf16.mxu0 0
      %1245 = vmatpush1.bf16.xpose.msra.mxu0 0
      %1246 = vmatprep.subr.bf16.mxu0 0
      %1247 = vmatpush1.bf16.xpose.msra.mxu0 0
      %1248 = vmatprep.subr.bf16.mxu0 0
      %1249 = vmatpush1.bf16.xpose.msra.mxu0 0
      %1250 = vmatprep.subr.bf16.mxu0 0
      %1251 = vmatpush1.bf16.xpose.msra.mxu0 0
      %1252 = vmatprep.subr.bf16.mxu0 0
      %1253 = vmatpush1.bf16.xpose.msra.mxu0 %v1236
      %1254 = vmatprep.subr.bf16.mxu0 0
      %1255 = vmatpush2.bf16.xpose.msra.mxu0 0
      %1256 = vmatprep.subr.bf16.mxu0 0
      %1257 = vmatpush2.bf16.xpose.msra.mxu0 0
      %1258 = vmatprep.subr.bf16.mxu0 0
      %1259 = vmatpush2.bf16.xpose.msra.mxu0 0
      %1260 = vmatprep.subr.bf16.mxu0 0
      %1261 = vmatpush2.bf16.xpose.msra.mxu0 0
      %1262 = vmatprep.subr.bf16.mxu0 0
      %1263 = vmatpush2.bf16.xpose.msra.mxu0 0
      %1264 = vmatprep.subr.bf16.mxu0 0
      %1265 = vmatpush2.bf16.xpose.msra.mxu0 0
      %1266 = vmatprep.subr.bf16.mxu0 0
      %1267 = vmatpush2.bf16.xpose.msra.mxu0 0
      %1268 = vmatprep.subr.bf16.mxu0 0
      %1269 = vmatpush2.bf16.xpose.msra.mxu0 0
      %1270 = vmatprep.mubr.bf16.mxu0 0
      %1271 = vmatmul.mubr.bf16.gmra.mxu0 %v1233
      %v1272 = vpop.f32.mrf.mxu0
      %v1273 = vadd.f32 %v986, %v1272
      %v1274 = vpop.f32.mrf.mxu0
      %v1275 = vpop.f32.mrf.mxu0
      %v1276 = vadd.f32 %v986, %v1275
      %v1277 = vpop.f32.mrf.mxu0
      %1278 = vdwg.mxu0
      %v1279 = vsel %vm1036, %v1273, -inf
      %1280 = vmax.xlane.f32.xlu0 %v1279
      %v1281 = vpop.xlane.xlu0 %1280
      %v1282 = vsel %vm1036, %v1276, -inf
      %1283 = vmax.xlane.f32.xlu0 %v1282
      %v1284 = vpop.xlane.xlu0 %1283
      %v1285 = vsub.f32 %v1273, %v1281
      %v1286 = vsub.f32 %v1276, %v1284
      %v1287 = vmul.f32 %v1285, 1.442695
      %v1288 = vpow.pop %v1287
      %v1289 = vmul.f32 %v1286, 1.442695
      %v1290 = vpow.pop %v1289
      %v1291 = vsel %vm1036, %v1288, 0.0
      %1292 = vadd.xlane.f32.xlu0 %v1291
      %v1293 = vpop.xlane.xlu0 %1292
      %v1294 = vsel %vm1036, %v1290, 0.0
      %1295 = vadd.xlane.f32.xlu0 %v1294
      %v1296 = vpop.xlane.xlu0 %1295
      %v1297 = vrcp.pop %v1293
      %v1298 = vrcp.pop %v1296
      %v1299 = vmul.f32 %v1288, %v1297
      %v1300 = vmul.f32 %v1290, %v1298
      %v1301 = vpack.c.bf16 %v1300, %v1299
      %1302 = vrot.lane.b32.xlu0 %v980, 64
      %v1303 = vpop.permute.xlu0 %1302
      %v1306 = vsel %vm1036, %v1301, 0
      %1308 = vmatprep.subr.bf16.mxu0 0
      %1309 = vmatpush1.bf16.msra.mxu0 0
      %1310 = vmatprep.subr.bf16.mxu0 0
      %1311 = vmatpush1.bf16.msra.mxu0 0
      %1312 = vmatprep.subr.bf16.mxu0 0
      %1313 = vmatpush1.bf16.msra.mxu0 0
      %1314 = vmatprep.subr.bf16.mxu0 0
      %1315 = vmatpush1.bf16.msra.mxu0 0
      %1316 = vmatprep.subr.bf16.mxu0 0
      %1317 = vmatpush1.bf16.msra.mxu0 0
      %1318 = vmatprep.subr.bf16.mxu0 0
      %1319 = vmatpush1.bf16.msra.mxu0 0
      %1320 = vmatprep.subr.bf16.mxu0 0
      %1321 = vmatpush1.bf16.msra.mxu0 0
      %1322 = vmatprep.subr.bf16.mxu0 0
      %1323 = vmatpush1.bf16.msra.mxu0 %v1303
      %1324 = vmatprep.subr.bf16.mxu0 0
      %1325 = vmatpush2.bf16.msra.mxu0 0
      %1326 = vmatprep.subr.bf16.mxu0 0
      %1327 = vmatpush2.bf16.msra.mxu0 0
      %1328 = vmatprep.subr.bf16.mxu0 0
      %1329 = vmatpush2.bf16.msra.mxu0 0
      %1330 = vmatprep.subr.bf16.mxu0 0
      %1331 = vmatpush2.bf16.msra.mxu0 0
      %1332 = vmatprep.subr.bf16.mxu0 0
      %1333 = vmatpush2.bf16.msra.mxu0 0
      %1334 = vmatprep.subr.bf16.mxu0 0
      %1335 = vmatpush2.bf16.msra.mxu0 0
      %1336 = vmatprep.subr.bf16.mxu0 0
      %1337 = vmatpush2.bf16.msra.mxu0 0
      %1338 = vmatprep.subr.bf16.mxu0 0
      %1339 = vmatpush2.bf16.msra.mxu0 0
      %1340 = vmatprep.mubr.bf16.mxu0 0
      %1341 = vmatmul.mubr.bf16.gmra.mxu0 %v1306
      %v1342 = vpop.f32.mrf.mxu0
      %v1343 = vadd.f32 0.0, %v1342
      %v1344 = vpop.f32.mrf.mxu0
      %v1345 = vpop.f32.mrf.mxu0
      %v1346 = vadd.f32 0.0, %v1345
      %v1347 = vpop.f32.mrf.mxu0
      %1348 = vdwg.mxu0
      %1349 = vrot.lane.b32.xlu0 %v978, 32
      %v1350 = vpop.permute.xlu0 %1349
      %1351 = vrot.lane.b32.xlu0 %v979, 32
      %v1352 = vpop.permute.xlu0 %1351
      %v1354 = vsel %vm988, %v1350, 0
      %v1357 = vsel %vm988, %v1352, 0
      %1359 = vmatprep.subr.bf16.mxu0 0
      %1360 = vmatpush1.bf16.xpose.msra.mxu0 0
      %1361 = vmatprep.subr.bf16.mxu0 0
      %1362 = vmatpush1.bf16.xpose.msra.mxu0 0
      %1363 = vmatprep.subr.bf16.mxu0 0
      %1364 = vmatpush1.bf16.xpose.msra.mxu0 0
      %1365 = vmatprep.subr.bf16.mxu0 0
      %1366 = vmatpush1.bf16.xpose.msra.mxu0 0
      %1367 = vmatprep.subr.bf16.mxu0 0
      %1368 = vmatpush1.bf16.xpose.msra.mxu0 0
      %1369 = vmatprep.subr.bf16.mxu0 0
      %1370 = vmatpush1.bf16.xpose.msra.mxu0 0
      %1371 = vmatprep.subr.bf16.mxu0 0
      %1372 = vmatpush1.bf16.xpose.msra.mxu0 0
      %1373 = vmatprep.subr.bf16.mxu0 0
      %1374 = vmatpush1.bf16.xpose.msra.mxu0 %v1357
      %1375 = vmatprep.subr.bf16.mxu0 0
      %1376 = vmatpush2.bf16.xpose.msra.mxu0 0
      %1377 = vmatprep.subr.bf16.mxu0 0
      %1378 = vmatpush2.bf16.xpose.msra.mxu0 0
      %1379 = vmatprep.subr.bf16.mxu0 0
      %1380 = vmatpush2.bf16.xpose.msra.mxu0 0
      %1381 = vmatprep.subr.bf16.mxu0 0
      %1382 = vmatpush2.bf16.xpose.msra.mxu0 0
      %1383 = vmatprep.subr.bf16.mxu0 0
      %1384 = vmatpush2.bf16.xpose.msra.mxu0 0
      %1385 = vmatprep.subr.bf16.mxu0 0
      %1386 = vmatpush2.bf16.xpose.msra.mxu0 0
      %1387 = vmatprep.subr.bf16.mxu0 0
      %1388 = vmatpush2.bf16.xpose.msra.mxu0 0
      %1389 = vmatprep.subr.bf16.mxu0 0
      %1390 = vmatpush2.bf16.xpose.msra.mxu0 0
      %1391 = vmatprep.mubr.bf16.mxu0 0
      %1392 = vmatmul.mubr.bf16.gmra.mxu0 %v1354
      %v1393 = vpop.f32.mrf.mxu0
      %v1394 = vadd.f32 %v986, %v1393
      %v1395 = vpop.f32.mrf.mxu0
      %v1396 = vpop.f32.mrf.mxu0
      %v1397 = vadd.f32 %v986, %v1396
      %v1398 = vpop.f32.mrf.mxu0
      %1399 = vdwg.mxu0
      %v1400 = vsel %vm1036, %v1394, -inf
      %1401 = vmax.xlane.f32.xlu0 %v1400
      %v1402 = vpop.xlane.xlu0 %1401
      %v1403 = vsel %vm1036, %v1397, -inf
      %1404 = vmax.xlane.f32.xlu0 %v1403
      %v1405 = vpop.xlane.xlu0 %1404
      %v1406 = vsub.f32 %v1394, %v1402
      %v1407 = vsub.f32 %v1397, %v1405
      %v1408 = vmul.f32 %v1406, 1.442695
      %v1409 = vpow.pop %v1408
      %v1410 = vmul.f32 %v1407, 1.442695
      %v1411 = vpow.pop %v1410
      %v1412 = vsel %vm1036, %v1409, 0.0
      %1413 = vadd.xlane.f32.xlu0 %v1412
      %v1414 = vpop.xlane.xlu0 %1413
      %v1415 = vsel %vm1036, %v1411, 0.0
      %1416 = vadd.xlane.f32.xlu0 %v1415
      %v1417 = vpop.xlane.xlu0 %1416
      %v1418 = vrcp.pop %v1414
      %v1419 = vrcp.pop %v1417
      %v1420 = vmul.f32 %v1409, %v1418
      %v1421 = vmul.f32 %v1411, %v1419
      %v1422 = vpack.c.bf16 %v1421, %v1420
      %1423 = vrot.lane.b32.xlu0 %v980, 32
      %v1424 = vpop.permute.xlu0 %1423
      %v1427 = vsel %vm1036, %v1422, 0
      %1429 = vmatprep.subr.bf16.mxu0 0
      %1430 = vmatpush1.bf16.msra.mxu0 0
      %1431 = vmatprep.subr.bf16.mxu0 0
      %1432 = vmatpush1.bf16.msra.mxu0 0
      %1433 = vmatprep.subr.bf16.mxu0 0
      %1434 = vmatpush1.bf16.msra.mxu0 0
      %1435 = vmatprep.subr.bf16.mxu0 0
      %1436 = vmatpush1.bf16.msra.mxu0 0
      %1437 = vmatprep.subr.bf16.mxu0 0
      %1438 = vmatpush1.bf16.msra.mxu0 0
      %1439 = vmatprep.subr.bf16.mxu0 0
      %1440 = vmatpush1.bf16.msra.mxu0 0
      %1441 = vmatprep.subr.bf16.mxu0 0
      %1442 = vmatpush1.bf16.msra.mxu0 0
      %1443 = vmatprep.subr.bf16.mxu0 0
      %1444 = vmatpush1.bf16.msra.mxu0 %v1424
      %1445 = vmatprep.subr.bf16.mxu0 0
      %1446 = vmatpush2.bf16.msra.mxu0 0
      %1447 = vmatprep.subr.bf16.mxu0 0
      %1448 = vmatpush2.bf16.msra.mxu0 0
      %1449 = vmatprep.subr.bf16.mxu0 0
      %1450 = vmatpush2.bf16.msra.mxu0 0
      %1451 = vmatprep.subr.bf16.mxu0 0
      %1452 = vmatpush2.bf16.msra.mxu0 0
      %1453 = vmatprep.subr.bf16.mxu0 0
      %1454 = vmatpush2.bf16.msra.mxu0 0
      %1455 = vmatprep.subr.bf16.mxu0 0
      %1456 = vmatpush2.bf16.msra.mxu0 0
      %1457 = vmatprep.subr.bf16.mxu0 0
      %1458 = vmatpush2.bf16.msra.mxu0 0
      %1459 = vmatprep.subr.bf16.mxu0 0
      %1460 = vmatpush2.bf16.msra.mxu0 0
      %1461 = vmatprep.mubr.bf16.mxu0 0
      %1462 = vmatmul.mubr.bf16.gmra.mxu0 %v1427
      %v1463 = vpop.f32.mrf.mxu0
      %v1464 = vadd.f32 0.0, %v1463
      %v1465 = vpop.f32.mrf.mxu0
      %v1466 = vpop.f32.mrf.mxu0
      %v1467 = vadd.f32 0.0, %v1466
      %v1468 = vpop.f32.mrf.mxu0
      %1469 = vdwg.mxu0
      %1472 = vrot.lane.b32.xlu0 %v1222, 32
      %v1473 = vpop.permute.xlu0 %1472
      %1474 = vrot.lane.b32.xlu0 %v1225, 32
      %v1475 = vpop.permute.xlu0 %1474
      %1480 = vrot.lane.b32.xlu0 %v1343, 64
      %v1481 = vpop.permute.xlu0 %1480
      %1482 = vrot.lane.b32.xlu0 %v1346, 64
      %v1483 = vpop.permute.xlu0 %1482
      %1488 = vrot.lane.b32.xlu0 %v1464, 96
      %v1489 = vpop.permute.xlu0 %1488
      %1490 = vrot.lane.b32.xlu0 %v1467, 96
      %v1491 = vpop.permute.xlu0 %1490
      %v1494 = vsel %vm988, %v1098, %v1473
      %v1495 = vsel %vm988, %v1101, %v1475
      %vm1496 = vcmask 523264
      %v1497 = vsel %vm1496, %v1494, %v1481
      %v1498 = vsel %vm1496, %v1495, %v1483
      %vm1499 = vcmask 785408
      %v1500 = vsel %vm1499, %v1497, %v1489
      %v1501 = vsel %vm1499, %v1498, %v1491
      %v1502 = vpack.c.bf16 %v1501, %v1500
      %v1503 = vld [vmem:[%s11] sm:$0xf]
      %v1504 = vld [vmem:[%s11 + $0x4] sm:$0xf]
      %v1505 = vld [vmem:[%s11 + $0x8] sm:$0xf]
      %v1506 = vld [vmem:[%s11 + $0xc] sm:$0xf]
      %v1507 = vld [vmem:[%s11 + $0x10] sm:$0xf]
      %v1508 = vld [vmem:[%s11 + $0x14] sm:$0xf]
      %v1509 = vld [vmem:[%s11 + $0x18] sm:$0xf]
      %v1510 = vld [vmem:[%s11 + $0x1c] sm:$0xf]
      %v1511 = vld [vmem:[%s11 + $0x20] sm:$0xf]
      %v1512 = vld [vmem:[%s11 + $0x24] sm:$0xf]
      %v1513 = vld [vmem:[%s11 + $0x28] sm:$0xf]
      %v1514 = vld [vmem:[%s11 + $0x2c] sm:$0xf]
      %v1515 = vld [vmem:[%s11 + $0x30] sm:$0xf]
      %v1516 = vld [vmem:[%s11 + $0x34] sm:$0xf]
      %v1517 = vld [vmem:[%s11 + $0x38] sm:$0xf]
      %v1518 = vld [vmem:[%s11 + $0x3c] sm:$0xf]
      %v1519 = vld [vmem:[%s12] sm:$0x1]
      %v1521 = vlaneseq
      %v1522 = vshrl.u32 %v1521, 7
      %v1523 = vsub.s32 0, %v1522
      %v1524 = vrot.slane %v1519, %v1523
      %v1542 = vunpack.c.l.b16 %v1503
      %v1543 = vunpack.c.l.b16 %v1504
      %v1544 = vunpack.c.l.b16 %v1505
      %v1545 = vunpack.c.l.b16 %v1506
      %v1546 = vunpack.c.l.b16 %v1507
      %v1547 = vunpack.c.l.b16 %v1508
      %v1548 = vunpack.c.l.b16 %v1509
      %v1549 = vunpack.c.l.b16 %v1510
      %v1550 = vunpack.c.l.b16 %v1511
      %v1551 = vunpack.c.l.b16 %v1512
      %v1552 = vunpack.c.l.b16 %v1513
      %v1553 = vunpack.c.l.b16 %v1514
      %v1554 = vunpack.c.l.b16 %v1515
      %v1555 = vunpack.c.l.b16 %v1516
      %v1556 = vunpack.c.l.b16 %v1517
      %v1557 = vunpack.c.l.b16 %v1518
      %v1558 = vpack.c.b16 %v1543, %v1542
      %v1559 = vpack.c.b16 %v1545, %v1544
      %v1560 = vpack.c.b16 %v1547, %v1546
      %v1561 = vpack.c.b16 %v1549, %v1548
      %v1562 = vpack.c.b16 %v1551, %v1550
      %v1563 = vpack.c.b16 %v1553, %v1552
      %v1564 = vpack.c.b16 %v1555, %v1554
      %v1565 = vpack.c.b16 %v1557, %v1556
      %1574 = vmatprep.subr.bf16.mxu0 0
      %1575 = vmatpush1.bf16.msra.mxu0 %v1565
      %1576 = vmatprep.subr.bf16.mxu0 0
      %1577 = vmatpush1.bf16.msra.mxu0 %v1564
      %1578 = vmatprep.subr.bf16.mxu0 0
      %1579 = vmatpush1.bf16.msra.mxu0 %v1563
      %1580 = vmatprep.subr.bf16.mxu0 0
      %1581 = vmatpush1.bf16.msra.mxu0 %v1562
      %1582 = vmatprep.subr.bf16.mxu0 0
      %1583 = vmatpush1.bf16.msra.mxu0 %v1561
      %1584 = vmatprep.subr.bf16.mxu0 0
      %1585 = vmatpush1.bf16.msra.mxu0 %v1560
      %1586 = vmatprep.subr.bf16.mxu0 0
      %1587 = vmatpush1.bf16.msra.mxu0 %v1559
      %1588 = vmatprep.subr.bf16.mxu0 0
      %1589 = vmatpush1.bf16.msra.mxu0 %v1558
      %1590 = vmatprep.subr.bf16.mxu0 0
      %1591 = vmatpush2.bf16.msra.mxu0 0
      %1592 = vmatprep.subr.bf16.mxu0 0
      %1593 = vmatpush2.bf16.msra.mxu0 0
      %1594 = vmatprep.subr.bf16.mxu0 0
      %1595 = vmatpush2.bf16.msra.mxu0 0
      %1596 = vmatprep.subr.bf16.mxu0 0
      %1597 = vmatpush2.bf16.msra.mxu0 0
      %1598 = vmatprep.subr.bf16.mxu0 0
      %1599 = vmatpush2.bf16.msra.mxu0 0
      %1600 = vmatprep.subr.bf16.mxu0 0
      %1601 = vmatpush2.bf16.msra.mxu0 0
      %1602 = vmatprep.subr.bf16.mxu0 0
      %1603 = vmatpush2.bf16.msra.mxu0 0
      %1604 = vmatprep.subr.bf16.mxu0 0
      %1605 = vmatpush2.bf16.msra.mxu0 0
      %1606 = vmatprep.mubr.bf16.mxu0 0
      %1607 = vmatmul.mubr.bf16.gmra.mxu0 %v1502
      %v1608 = vpop.f32.mrf.mxu0
      %v1609 = vadd.f32 %v1524, %v1608
      %v1610 = vpop.f32.mrf.mxu0
      %v1611 = vpop.f32.mrf.mxu0
      %v1612 = vadd.f32 %v1524, %v1611
      %v1613 = vpop.f32.mrf.mxu0
      %1614 = vdwg.mxu0
      %v1615 = vadd.f32 %v625, %v1609
      %v1616 = vadd.f32 %v626, %v1612
      %1617 = vadd.xlane.f32.xlu0 %v1615
      %v1618 = vpop.xlane.xlu0 %1617
      %1619 = vadd.xlane.f32.xlu0 %v1616
      %v1620 = vpop.xlane.xlu0 %1619
      %v1621 = vrcp.pop 128.0
      %v1622 = vmul.f32 %v1618, %v1621
      %v1623 = vmul.f32 %v1620, %v1621
      %v1624 = vsub.f32 %v1615, %v1622
      %v1625 = vsub.f32 %v1616, %v1623
      %v1626 = vmul.f32 %v1624, %v1624
      %v1627 = vmul.f32 %v1625, %v1625
      %1628 = vadd.xlane.f32.xlu0 %v1626
      %v1629 = vpop.xlane.xlu0 %1628
      %1630 = vadd.xlane.f32.xlu0 %v1627
      %v1631 = vpop.xlane.xlu0 %1630
      %v1632 = vmul.f32 %v1629, %v1621
      %v1633 = vmul.f32 %v1631, %v1621
      %v1634 = vadd.f32 %v1632, 1e-05
      %v1635 = vadd.f32 %v1633, 1e-05
      %v1636 = vrsqrt.pop %v1634
      %v1637 = vrsqrt.pop %v1635
      %v1638 = vmul.f32 %v1624, %v1636
      %v1639 = vmul.f32 %v1625, %v1637
      %v1640 = vld [vmem:[%s13] sm:$0x1]
      %v1642 = vlaneseq
      %v1643 = vshrl.u32 %v1642, 7
      %v1644 = vsub.s32 0, %v1643
      %v1645 = vrot.slane %v1640, %v1644
      %v1647 = vmul.f32 %v1638, %v1645
      %v1648 = vmul.f32 %v1639, %v1645
      %v1649 = vld [vmem:[%s14] sm:$0x1]
      %v1651 = vlaneseq
      %v1652 = vshrl.u32 %v1651, 7
      %v1653 = vsub.s32 0, %v1652
      %v1654 = vrot.slane %v1649, %v1653
      %v1656 = vadd.f32 %v1647, %v1654
      %v1657 = vadd.f32 %v1648, %v1654
      %1658 = vst [vmem:[%s622] sm:$0xff] %v1656
      %1659 = vst [vmem:[%s622 + $0x8] sm:$0xff] %v1657
      %s1660 = smul.u32 2, %s31
      %p1661 = scmp.lt.s32.totalorder %s30, 1
      %s1662 = scalar_select %p1661, %s30, 1
      %p1663 = scmp.lt.s32.totalorder %s1660, 1
      %s1664 = scalar_select %p1663, %s1660, 1
      %s1665 = smul.addr %s1662, 2
      %s1666 = sadd.s32 %s1664, %s1665
      %s1667 = smul.addr %s1666, 8
      %s1668 = scalar_lea.vmem %s15, %s1667
      // Predicated region
      $region81: #{transformer_clustering_forward.12} parent=79 // pred_check
        %p1669 = pneg %p402
      $region82: #{transformer_clustering_forward.12} parent=79 // pred_check_branch
        %1671 = sbr.rel (%p1669) target = $region84
      $region83: #{transformer_clustering_forward.12} parent=79 // pred_region
        %s1672 = smul.u32 2, %s31
      $region84: #{transformer_clustering_forward.12} parent=79 // pred_fallthru
        _
    $region80: #{transformer_clustering_forward.12} parent=5 // pred_fallthru
      _
    %p1673 = scmp.le.s32.totalorder 2, %s21
    // Predicated region
    $region85: #{transformer_clustering_forward.12} parent=5 // pred_check
      %p1674 = pneg %p1673
    $region86: #{transformer_clustering_forward.12} parent=5 // pred_check_branch
      %1676 = sbr.rel (%p1674) target = $region88
    $region87: #{transformer_clustering_forward.12} parent=5 // pred_region
      %s1677 = ssub.s32 %s21, 2
      // Predicated region
      $region89: #{transformer_clustering_forward.12} parent=87 // pred_check
        %p1678 = pneg %p408
      $region90: #{transformer_clustering_forward.12} parent=87 // pred_check_branch
        %1680 = sbr.rel (%p1678) target = $region92
      $region91: #{transformer_clustering_forward.12} parent=87 // pred_region
        %s1681 = smul.u32 2, %s33
        %p1682 = scmp.lt.s32.totalorder %s32, 1
        %s1683 = scalar_select %p1682, %s32, 1
        %p1684 = scmp.lt.s32.totalorder %s1681, 1
        %s1685 = scalar_select %p1684, %s1681, 1
        %s1686 = smul.addr %s1683, 2
        %s1687 = sadd.s32 %s1685, %s1686
        %s1688 = smul.addr %s1687, 8
        %s1689 = scalar_lea.vmem %s15, %s1688
      $region92: #{transformer_clustering_forward.12} parent=87 // pred_fallthru
        _
    $region88: #{transformer_clustering_forward.12} parent=5 // pred_fallthru
      _
  $region6: #{transformer_clustering_forward.12} parent=0 // loop_footer
    %s25 = sadd.s32 1, %s21
  $region7: #{transformer_clustering_forward.12} parent=0 // loop_footer_branch
    %20 = sbr.rel target = $region3
  $region8: #{transformer_clustering_forward.12} parent=0 // loop_exit
    _

// kernel: transformer_clustering_forward.17
$region0: #{transformer_clustering_forward.17}
  #allocation0 [shape = 'u32[]', space=smem, size = 0x4, offset = 0x4, fixed_abs, tag = 'smem constant byte address 0x4 - core index']
  #allocation1 [shape = 'u32[144,128]{1,0:T(1,128)}', space=vmem, size = 0x12000, scoped, tag = 'internal scratch']
  %s0 = inlined_call_operand.vmem [shape: f32[2,8,128], index: 0, kind: input, shape index: {}]
  %s1 = inlined_call_operand.vmem [shape: f32[2,8,128], index: 1, kind: input, shape index: {}]
  %s2 = inlined_call_operand.vmem [shape: f32[2,16,128], index: 2, kind: input, shape index: {}]
  %s3 = inlined_call_operand.vmem [shape: f32[2,16,128], index: 3, kind: input, shape index: {}]
  %s4 = inlined_call_operand.vmem [shape: f32[2,1,16], index: 4, kind: input, shape index: {}]
  %s5 = inlined_call_operand.vmem [shape: bf16[128,128], index: 5, kind: input, shape index: {}]
  %s6 = inlined_call_operand.vmem [shape: f32[1,128], index: 6, kind: input, shape index: {}]
  %s7 = inlined_call_operand.vmem [shape: bf16[128,128], index: 7, kind: input, shape index: {}]
  %s8 = inlined_call_operand.vmem [shape: f32[1,128], index: 8, kind: input, shape index: {}]
  %s9 = inlined_call_operand.vmem [shape: bf16[128,128], index: 9, kind: input, shape index: {}]
  %s10 = inlined_call_operand.vmem [shape: f32[1,128], index: 10, kind: input, shape index: {}]
  %s11 = inlined_call_operand.vmem [shape: bf16[128,128], index: 11, kind: input, shape index: {}]
  %s12 = inlined_call_operand.vmem [shape: f32[1,128], index: 12, kind: input, shape index: {}]
  %s13 = inlined_call_operand.vmem [shape: f32[1,128], index: 13, kind: input, shape index: {}]
  %s14 = inlined_call_operand.vmem [shape: f32[1,128], index: 14, kind: input, shape index: {}]
  %s15 = inlined_call_operand.vmem [shape: f32[2,8,128], index: 15, kind: output, shape index: {}]
  %s16 = sld [smem:[#allocation0]]
  $region93: #{transformer_clustering_forward.17} parent=0
    _
  %s18 = ssub.s32 1, %s16
  %s19 = scalar_select 0, %s18, %s16
  loop: start=0, step=1, limit=4
  $region2: #{transformer_clustering_forward.17} parent=0 // loop_pre_header
    _
  $region3: #{transformer_clustering_forward.17} parent=0 // loop_header
    %s21 = sphi 0, %s25
    %p22 = scmp.ge.s32.totalorder %s21, 4
    %s28 = sphi 0, %s40
    %s29 = sphi 0, %s36
    %s30 = sphi 0, %s28
    %s31 = sphi 0, %s29
    %s32 = sphi 0, %s30
    %s33 = sphi 0, %s31
    %s45 = sphi 0, %s47
    %s48 = sphi 0, %s45
    %s49 = sphi 0, %s48
    %s65 = sphi 0, %s49
    %s73 = sphi 0, %s75
    %s76 = sphi 0, %s73
    %s77 = sphi 0, %s76
    %s93 = sphi 0, %s77
    %s99 = sphi 0, %s101
    %s102 = sphi 0, %s99
    %s103 = sphi 0, %s102
    %s119 = sphi 0, %s103
    %s125 = sphi 0, %s127
    %s128 = sphi 0, %s125
    %s129 = sphi 0, %s128
    %s145 = sphi 0, %s129
    %s151 = sphi 0, %s153
    %s154 = sphi 0, %s151
    %s155 = sphi 0, %s154
    %s171 = sphi 0, %s155
    %s175 = sphi 0, %s175
    %s177 = sphi 0, %s175
    %s178 = sphi 0, %s177
    %s192 = sphi 0, %s178
    %s196 = sphi 0, %s196
    %s198 = sphi 0, %s196
    %s199 = sphi 0, %s198
    %s213 = sphi 0, %s199
    %s217 = sphi 0, %s217
    %s219 = sphi 0, %s217
    %s220 = sphi 0, %s219
    %s234 = sphi 0, %s220
    %s238 = sphi 0, %s238
    %s240 = sphi 0, %s238
    %s241 = sphi 0, %s240
    %s255 = sphi 0, %s241
    %s259 = sphi 0, %s259
    %s261 = sphi 0, %s259
    %s262 = sphi 0, %s261
    %s276 = sphi 0, %s262
    %s280 = sphi 0, %s280
    %s282 = sphi 0, %s280
    %s283 = sphi 0, %s282
    %s297 = sphi 0, %s283
    %s301 = sphi 0, %s301
    %s303 = sphi 0, %s301
    %s304 = sphi 0, %s303
    %s318 = sphi 0, %s304
    %s322 = sphi 0, %s322
    %s324 = sphi 0, %s322
    %s325 = sphi 0, %s324
    %s339 = sphi 0, %s325
    %s343 = sphi 0, %s343
    %s345 = sphi 0, %s343
    %s346 = sphi 0, %s345
    %s360 = sphi 0, %s346
    %s364 = sphi 0, %s364
    %s366 = sphi 0, %s364
    %s367 = sphi 0, %s366
    %s381 = sphi 0, %s367
    %s389 = sphi 0, %s391
    %s392 = sphi 0, %s389
    %s393 = sphi 0, %s392
    %s409 = sphi 0, %s393
  $region4: #{transformer_clustering_forward.17} parent=0 // loop_header_branch
    %24 = sbr.rel (%p22) target = $region8
  $region5: #{transformer_clustering_forward.17} parent=0 // loop_body
    %s26 = ssub.s32 %s21, 1
    %s27 = ssub.s32 %s21, 2
    %s34 = sadd.s32 1, %s29
    %p35 = scmp.ge.s32.totalorder %s34, 1
    %s36 = scalar_select %p35, 0, %s34
    %s37 = sadd.s32 1, %s28
    %s38 = scalar_select %p35, %s37, %s28
    %p39 = scmp.ge.s32.totalorder %s38, 2
    %s40 = scalar_select %p39, 0, %s38
    %s41 = ssub.s32 %s28, %s40
    %s42 = ssub.s32 %s29, %s36
    %s43 = sor.u32 %s41, %s42
    %p44 = scmp.eq.s32.totalorder %s43, 0
    %s46 = sadd.s32 %s45, 1
    %s47 = scalar_select %p44, %s45, %s46
    %p50 = pneg %p44
    %p51 = scmp.eq.s32.totalorder %s21, 1
    %p52 = por %p50, %p51
    %p53 = scmp.ne.s32.totalorder %s45, %s48
    %p54 = scmp.eq.s32.totalorder %s21, 0
    %p55 = por %p53, %p54
    %p56 = scmp.ne.s32.totalorder %s45, %s48
    %p57 = scmp.eq.s32.totalorder %s26, 1
    %p58 = por %p56, %p57
    %p59 = scmp.ne.s32.totalorder %s48, %s49
    %p60 = scmp.eq.s32.totalorder %s26, 0
    %p61 = por %p59, %p60
    %p62 = scmp.ne.s32.totalorder %s48, %s49
    %p63 = scmp.eq.s32.totalorder %s27, 1
    %p64 = por %p62, %p63
    %p66 = scmp.ne.s32.totalorder %s49, %s65
    %p67 = scmp.eq.s32.totalorder %s27, 0
    %p68 = por %p66, %p67
    %s69 = ssub.s32 %s28, %s40
    %s70 = ssub.s32 %s29, %s36
    %s71 = sor.u32 %s69, %s70
    %p72 = scmp.eq.s32.totalorder %s71, 0
    %s74 = sadd.s32 %s73, 1
    %s75 = scalar_select %p72, %s73, %s74
    %p78 = pneg %p72
    %p79 = scmp.eq.s32.totalorder %s21, 1
    %p80 = por %p78, %p79
    %p81 = scmp.ne.s32.totalorder %s73, %s76
    %p82 = scmp.eq.s32.totalorder %s21, 0
    %p83 = por %p81, %p82
    %p84 = scmp.ne.s32.totalorder %s73, %s76
    %p85 = scmp.eq.s32.totalorder %s26, 1
    %p86 = por %p84, %p85
    %p87 = scmp.ne.s32.totalorder %s76, %s77
    %p88 = scmp.eq.s32.totalorder %s26, 0
    %p89 = por %p87, %p88
    %p90 = scmp.ne.s32.totalorder %s76, %s77
    %p91 = scmp.eq.s32.totalorder %s27, 1
    %p92 = por %p90, %p91
    %p94 = scmp.ne.s32.totalorder %s77, %s93
    %p95 = scmp.eq.s32.totalorder %s27, 0
    %p96 = por %p94, %p95
    %s97 = ssub.s32 %s28, %s40
    %p98 = scmp.eq.s32.totalorder %s97, 0
    %s100 = sadd.s32 %s99, 1
    %s101 = scalar_select %p98, %s99, %s100
    %p104 = pneg %p98
    %p105 = scmp.eq.s32.totalorder %s21, 1
    %p106 = por %p104, %p105
    %p107 = scmp.ne.s32.totalorder %s99, %s102
    %p108 = scmp.eq.s32.totalorder %s21, 0
    %p109 = por %p107, %p108
    %p110 = scmp.ne.s32.totalorder %s99, %s102
    %p111 = scmp.eq.s32.totalorder %s26, 1
    %p112 = por %p110, %p111
    %p113 = scmp.ne.s32.totalorder %s102, %s103
    %p114 = scmp.eq.s32.totalorder %s26, 0
    %p115 = por %p113, %p114
    %p116 = scmp.ne.s32.totalorder %s102, %s103
    %p117 = scmp.eq.s32.totalorder %s27, 1
    %p118 = por %p116, %p117
    %p120 = scmp.ne.s32.totalorder %s103, %s119
    %p121 = scmp.eq.s32.totalorder %s27, 0
    %p122 = por %p120, %p121
    %s123 = ssub.s32 %s28, %s40
    %p124 = scmp.eq.s32.totalorder %s123, 0
    %s126 = sadd.s32 %s125, 1
    %s127 = scalar_select %p124, %s125, %s126
    %p130 = pneg %p124
    %p131 = scmp.eq.s32.totalorder %s21, 1
    %p132 = por %p130, %p131
    %p133 = scmp.ne.s32.totalorder %s125, %s128
    %p134 = scmp.eq.s32.totalorder %s21, 0
    %p135 = por %p133, %p134
    %p136 = scmp.ne.s32.totalorder %s125, %s128
    %p137 = scmp.eq.s32.totalorder %s26, 1
    %p138 = por %p136, %p137
    %p139 = scmp.ne.s32.totalorder %s128, %s129
    %p140 = scmp.eq.s32.totalorder %s26, 0
    %p141 = por %p139, %p140
    %p142 = scmp.ne.s32.totalorder %s128, %s129
    %p143 = scmp.eq.s32.totalorder %s27, 1
    %p144 = por %p142, %p143
    %p146 = scmp.ne.s32.totalorder %s129, %s145
    %p147 = scmp.eq.s32.totalorder %s27, 0
    %p148 = por %p146, %p147
    %s149 = ssub.s32 %s28, %s40
    %p150 = scmp.eq.s32.totalorder %s149, 0
    %s152 = sadd.s32 %s151, 1
    %s153 = scalar_select %p150, %s151, %s152
    %p156 = pneg %p150
    %p157 = scmp.eq.s32.totalorder %s21, 1
    %p158 = por %p156, %p157
    %p159 = scmp.ne.s32.totalorder %s151, %s154
    %p160 = scmp.eq.s32.totalorder %s21, 0
    %p161 = por %p159, %p160
    %p162 = scmp.ne.s32.totalorder %s151, %s154
    %p163 = scmp.eq.s32.totalorder %s26, 1
    %p164 = por %p162, %p163
    %p165 = scmp.ne.s32.totalorder %s154, %s155
    %p166 = scmp.eq.s32.totalorder %s26, 0
    %p167 = por %p165, %p166
    %p168 = scmp.ne.s32.totalorder %s154, %s155
    %p169 = scmp.eq.s32.totalorder %s27, 1
    %p170 = por %p168, %p169
    %p172 = scmp.ne.s32.totalorder %s155, %s171
    %p173 = scmp.eq.s32.totalorder %s27, 0
    %p174 = por %p172, %p173
    %s176 = sadd.s32 %s175, 1
    %p179 = scmp.eq.s32.totalorder %s21, 1
    %p180 = scmp.ne.s32.totalorder %s175, %s177
    %p181 = scmp.eq.s32.totalorder %s21, 0
    %p182 = por %p180, %p181
    %p183 = scmp.ne.s32.totalorder %s175, %s177
    %p184 = scmp.eq.s32.totalorder %s26, 1
    %p185 = por %p183, %p184
    %p186 = scmp.ne.s32.totalorder %s177, %s178
    %p187 = scmp.eq.s32.totalorder %s26, 0
    %p188 = por %p186, %p187
    %p189 = scmp.ne.s32.totalorder %s177, %s178
    %p190 = scmp.eq.s32.totalorder %s27, 1
    %p191 = por %p189, %p190
    %p193 = scmp.ne.s32.totalorder %s178, %s192
    %p194 = scmp.eq.s32.totalorder %s27, 0
    %p195 = por %p193, %p194
    %s197 = sadd.s32 %s196, 1
    %p200 = scmp.eq.s32.totalorder %s21, 1
    %p201 = scmp.ne.s32.totalorder %s196, %s198
    %p202 = scmp.eq.s32.totalorder %s21, 0
    %p203 = por %p201, %p202
    %p204 = scmp.ne.s32.totalorder %s196, %s198
    %p205 = scmp.eq.s32.totalorder %s26, 1
    %p206 = por %p204, %p205
    %p207 = scmp.ne.s32.totalorder %s198, %s199
    %p208 = scmp.eq.s32.totalorder %s26, 0
    %p209 = por %p207, %p208
    %p210 = scmp.ne.s32.totalorder %s198, %s199
    %p211 = scmp.eq.s32.totalorder %s27, 1
    %p212 = por %p210, %p211
    %p214 = scmp.ne.s32.totalorder %s199, %s213
    %p215 = scmp.eq.s32.totalorder %s27, 0
    %p216 = por %p214, %p215
    %s218 = sadd.s32 %s217, 1
    %p221 = scmp.eq.s32.totalorder %s21, 1
    %p222 = scmp.ne.s32.totalorder %s217, %s219
    %p223 = scmp.eq.s32.totalorder %s21, 0
    %p224 = por %p222, %p223
    %p225 = scmp.ne.s32.totalorder %s217, %s219
    %p226 = scmp.eq.s32.totalorder %s26, 1
    %p227 = por %p225, %p226
    %p228 = scmp.ne.s32.totalorder %s219, %s220
    %p229 = scmp.eq.s32.totalorder %s26, 0
    %p230 = por %p228, %p229
    %p231 = scmp.ne.s32.totalorder %s219, %s220
    %p232 = scmp.eq.s32.totalorder %s27, 1
    %p233 = por %p231, %p232
    %p235 = scmp.ne.s32.totalorder %s220, %s234
    %p236 = scmp.eq.s32.totalorder %s27, 0
    %p237 = por %p235, %p236
    %s239 = sadd.s32 %s238, 1
    %p242 = scmp.eq.s32.totalorder %s21, 1
    %p243 = scmp.ne.s32.totalorder %s238, %s240
    %p244 = scmp.eq.s32.totalorder %s21, 0
    %p245 = por %p243, %p244
    %p246 = scmp.ne.s32.totalorder %s238, %s240
    %p247 = scmp.eq.s32.totalorder %s26, 1
    %p248 = por %p246, %p247
    %p249 = scmp.ne.s32.totalorder %s240, %s241
    %p250 = scmp.eq.s32.totalorder %s26, 0
    %p251 = por %p249, %p250
    %p252 = scmp.ne.s32.totalorder %s240, %s241
    %p253 = scmp.eq.s32.totalorder %s27, 1
    %p254 = por %p252, %p253
    %p256 = scmp.ne.s32.totalorder %s241, %s255
    %p257 = scmp.eq.s32.totalorder %s27, 0
    %p258 = por %p256, %p257
    %s260 = sadd.s32 %s259, 1
    %p263 = scmp.eq.s32.totalorder %s21, 1
    %p264 = scmp.ne.s32.totalorder %s259, %s261
    %p265 = scmp.eq.s32.totalorder %s21, 0
    %p266 = por %p264, %p265
    %p267 = scmp.ne.s32.totalorder %s259, %s261
    %p268 = scmp.eq.s32.totalorder %s26, 1
    %p269 = por %p267, %p268
    %p270 = scmp.ne.s32.totalorder %s261, %s262
    %p271 = scmp.eq.s32.totalorder %s26, 0
    %p272 = por %p270, %p271
    %p273 = scmp.ne.s32.totalorder %s261, %s262
    %p274 = scmp.eq.s32.totalorder %s27, 1
    %p275 = por %p273, %p274
    %p277 = scmp.ne.s32.totalorder %s262, %s276
    %p278 = scmp.eq.s32.totalorder %s27, 0
    %p279 = por %p277, %p278
    %s281 = sadd.s32 %s280, 1
    %p284 = scmp.eq.s32.totalorder %s21, 1
    %p285 = scmp.ne.s32.totalorder %s280, %s282
    %p286 = scmp.eq.s32.totalorder %s21, 0
    %p287 = por %p285, %p286
    %p288 = scmp.ne.s32.totalorder %s280, %s282
    %p289 = scmp.eq.s32.totalorder %s26, 1
    %p290 = por %p288, %p289
    %p291 = scmp.ne.s32.totalorder %s282, %s283
    %p292 = scmp.eq.s32.totalorder %s26, 0
    %p293 = por %p291, %p292
    %p294 = scmp.ne.s32.totalorder %s282, %s283
    %p295 = scmp.eq.s32.totalorder %s27, 1
    %p296 = por %p294, %p295
    %p298 = scmp.ne.s32.totalorder %s283, %s297
    %p299 = scmp.eq.s32.totalorder %s27, 0
    %p300 = por %p298, %p299
    %s302 = sadd.s32 %s301, 1
    %p305 = scmp.eq.s32.totalorder %s21, 1
    %p306 = scmp.ne.s32.totalorder %s301, %s303
    %p307 = scmp.eq.s32.totalorder %s21, 0
    %p308 = por %p306, %p307
    %p309 = scmp.ne.s32.totalorder %s301, %s303
    %p310 = scmp.eq.s32.totalorder %s26, 1
    %p311 = por %p309, %p310
    %p312 = scmp.ne.s32.totalorder %s303, %s304
    %p313 = scmp.eq.s32.totalorder %s26, 0
    %p314 = por %p312, %p313
    %p315 = scmp.ne.s32.totalorder %s303, %s304
    %p316 = scmp.eq.s32.totalorder %s27, 1
    %p317 = por %p315, %p316
    %p319 = scmp.ne.s32.totalorder %s304, %s318
    %p320 = scmp.eq.s32.totalorder %s27, 0
    %p321 = por %p319, %p320
    %s323 = sadd.s32 %s322, 1
    %p326 = scmp.eq.s32.totalorder %s21, 1
    %p327 = scmp.ne.s32.totalorder %s322, %s324
    %p328 = scmp.eq.s32.totalorder %s21, 0
    %p329 = por %p327, %p328
    %p330 = scmp.ne.s32.totalorder %s322, %s324
    %p331 = scmp.eq.s32.totalorder %s26, 1
    %p332 = por %p330, %p331
    %p333 = scmp.ne.s32.totalorder %s324, %s325
    %p334 = scmp.eq.s32.totalorder %s26, 0
    %p335 = por %p333, %p334
    %p336 = scmp.ne.s32.totalorder %s324, %s325
    %p337 = scmp.eq.s32.totalorder %s27, 1
    %p338 = por %p336, %p337
    %p340 = scmp.ne.s32.totalorder %s325, %s339
    %p341 = scmp.eq.s32.totalorder %s27, 0
    %p342 = por %p340, %p341
    %s344 = sadd.s32 %s343, 1
    %p347 = scmp.eq.s32.totalorder %s21, 1
    %p348 = scmp.ne.s32.totalorder %s343, %s345
    %p349 = scmp.eq.s32.totalorder %s21, 0
    %p350 = por %p348, %p349
    %p351 = scmp.ne.s32.totalorder %s343, %s345
    %p352 = scmp.eq.s32.totalorder %s26, 1
    %p353 = por %p351, %p352
    %p354 = scmp.ne.s32.totalorder %s345, %s346
    %p355 = scmp.eq.s32.totalorder %s26, 0
    %p356 = por %p354, %p355
    %p357 = scmp.ne.s32.totalorder %s345, %s346
    %p358 = scmp.eq.s32.totalorder %s27, 1
    %p359 = por %p357, %p358
    %p361 = scmp.ne.s32.totalorder %s346, %s360
    %p362 = scmp.eq.s32.totalorder %s27, 0
    %p363 = por %p361, %p362
    %s365 = sadd.s32 %s364, 1
    %p368 = scmp.eq.s32.totalorder %s21, 1
    %p369 = scmp.ne.s32.totalorder %s364, %s366
    %p370 = scmp.eq.s32.totalorder %s21, 0
    %p371 = por %p369, %p370
    %p372 = scmp.ne.s32.totalorder %s364, %s366
    %p373 = scmp.eq.s32.totalorder %s26, 1
    %p374 = por %p372, %p373
    %p375 = scmp.ne.s32.totalorder %s366, %s367
    %p376 = scmp.eq.s32.totalorder %s26, 0
    %p377 = por %p375, %p376
    %p378 = scmp.ne.s32.totalorder %s366, %s367
    %p379 = scmp.eq.s32.totalorder %s27, 1
    %p380 = por %p378, %p379
    %p382 = scmp.ne.s32.totalorder %s367, %s381
    %p383 = scmp.eq.s32.totalorder %s27, 0
    %p384 = por %p382, %p383
    %s385 = ssub.s32 %s28, %s40
    %s386 = ssub.s32 %s29, %s36
    %s387 = sor.u32 %s385, %s386
    %p388 = scmp.eq.s32.totalorder %s387, 0
    %s390 = sadd.s32 %s389, 1
    %s391 = scalar_select %p388, %s389, %s390
    %p394 = pneg %p388
    %p395 = scmp.eq.s32.totalorder %s21, 1
    %p396 = por %p394, %p395
    %p397 = scmp.ne.s32.totalorder %s389, %s392
    %p398 = scmp.eq.s32.totalorder %s21, 0
    %p399 = por %p397, %p398
    %p400 = scmp.ne.s32.totalorder %s389, %s392
    %p401 = scmp.eq.s32.totalorder %s26, 1
    %p402 = por %p400, %p401
    %p403 = scmp.ne.s32.totalorder %s392, %s393
    %p404 = scmp.eq.s32.totalorder %s26, 0
    %p405 = por %p403, %p404
    %p406 = scmp.ne.s32.totalorder %s392, %s393
    %p407 = scmp.eq.s32.totalorder %s27, 1
    %p408 = por %p406, %p407
    %p410 = scmp.ne.s32.totalorder %s393, %s409
    %p411 = scmp.eq.s32.totalorder %s27, 0
    %p412 = por %p410, %p411
    %p413 = scmp.le.s32.totalorder 1, %s21
    %p414 = scmp.lt.s32.totalorder %s21, 3
    %p415 = pnand %p413, %p414
    %p416 = pneg %p415
    // Predicated region
    $region9: #{transformer_clustering_forward.17} parent=5 // pred_check
      _
    $region10: #{transformer_clustering_forward.17} parent=5 // pred_check_branch
      %418 = sbr.rel (%p415) target = $region12
    $region11: #{transformer_clustering_forward.17} parent=5 // pred_region
      %s419 = ssub.s32 %s21, 1
      // Predicated region
      $region13: #{transformer_clustering_forward.17} parent=11 // pred_check
        %p420 = pneg %p188
      $region14: #{transformer_clustering_forward.17} parent=11 // pred_check_branch
        %422 = sbr.rel (%p420) target = $region16
      $region15: #{transformer_clustering_forward.17} parent=11 // pred_region
        _
      $region16: #{transformer_clustering_forward.17} parent=11 // pred_fallthru
        _
      // Predicated region
      $region17: #{transformer_clustering_forward.17} parent=11 // pred_check
        %p423 = pneg %p209
      $region18: #{transformer_clustering_forward.17} parent=11 // pred_check_branch
        %425 = sbr.rel (%p423) target = $region20
      $region19: #{transformer_clustering_forward.17} parent=11 // pred_region
        _
      $region20: #{transformer_clustering_forward.17} parent=11 // pred_fallthru
        _
      // Predicated region
      $region21: #{transformer_clustering_forward.17} parent=11 // pred_check
        %p426 = pneg %p230
      $region22: #{transformer_clustering_forward.17} parent=11 // pred_check_branch
        %428 = sbr.rel (%p426) target = $region24
      $region23: #{transformer_clustering_forward.17} parent=11 // pred_region
        _
      $region24: #{transformer_clustering_forward.17} parent=11 // pred_fallthru
        _
      // Predicated region
      $region25: #{transformer_clustering_forward.17} parent=11 // pred_check
        %p429 = pneg %p251
      $region26: #{transformer_clustering_forward.17} parent=11 // pred_check_branch
        %431 = sbr.rel (%p429) target = $region28
      $region27: #{transformer_clustering_forward.17} parent=11 // pred_region
        _
      $region28: #{transformer_clustering_forward.17} parent=11 // pred_fallthru
        _
      // Predicated region
      $region29: #{transformer_clustering_forward.17} parent=11 // pred_check
        %p432 = pneg %p272
      $region30: #{transformer_clustering_forward.17} parent=11 // pred_check_branch
        %434 = sbr.rel (%p432) target = $region32
      $region31: #{transformer_clustering_forward.17} parent=11 // pred_region
        _
      $region32: #{transformer_clustering_forward.17} parent=11 // pred_fallthru
        _
      // Predicated region
      $region33: #{transformer_clustering_forward.17} parent=11 // pred_check
        %p435 = pneg %p293
      $region34: #{transformer_clustering_forward.17} parent=11 // pred_check_branch
        %437 = sbr.rel (%p435) target = $region36
      $region35: #{transformer_clustering_forward.17} parent=11 // pred_region
        _
      $region36: #{transformer_clustering_forward.17} parent=11 // pred_fallthru
        _
      // Predicated region
      $region37: #{transformer_clustering_forward.17} parent=11 // pred_check
        %p438 = pneg %p314
      $region38: #{transformer_clustering_forward.17} parent=11 // pred_check_branch
        %440 = sbr.rel (%p438) target = $region40
      $region39: #{transformer_clustering_forward.17} parent=11 // pred_region
        _
      $region40: #{transformer_clustering_forward.17} parent=11 // pred_fallthru
        _
      // Predicated region
      $region41: #{transformer_clustering_forward.17} parent=11 // pred_check
        %p441 = pneg %p335
      $region42: #{transformer_clustering_forward.17} parent=11 // pred_check_branch
        %443 = sbr.rel (%p441) target = $region44
      $region43: #{transformer_clustering_forward.17} parent=11 // pred_region
        _
      $region44: #{transformer_clustering_forward.17} parent=11 // pred_fallthru
        _
      // Predicated region
      $region45: #{transformer_clustering_forward.17} parent=11 // pred_check
        %p444 = pneg %p356
      $region46: #{transformer_clustering_forward.17} parent=11 // pred_check_branch
        %446 = sbr.rel (%p444) target = $region48
      $region47: #{transformer_clustering_forward.17} parent=11 // pred_region
        _
      $region48: #{transformer_clustering_forward.17} parent=11 // pred_fallthru
        _
      // Predicated region
      $region49: #{transformer_clustering_forward.17} parent=11 // pred_check
        %p447 = pneg %p377
      $region50: #{transformer_clustering_forward.17} parent=11 // pred_check_branch
        %449 = sbr.rel (%p447) target = $region52
      $region51: #{transformer_clustering_forward.17} parent=11 // pred_region
        _
      $region52: #{transformer_clustering_forward.17} parent=11 // pred_fallthru
        _
    $region12: #{transformer_clustering_forward.17} parent=5 // pred_fallthru
      _
    %p450 = scmp.lt.s32.totalorder %s21, 2
    // Predicated region
    $region53: #{transformer_clustering_forward.17} parent=5 // pred_check
      %p451 = pneg %p450
    $region54: #{transformer_clustering_forward.17} parent=5 // pred_check_branch
      %453 = sbr.rel (%p451) target = $region56
    $region55: #{transformer_clustering_forward.17} parent=5 // pred_region
      // Predicated region
      $region57: #{transformer_clustering_forward.17} parent=55 // pred_check
        %p454 = pneg %p55
      $region58: #{transformer_clustering_forward.17} parent=55 // pred_check_branch
        %456 = sbr.rel (%p454) target = $region60
      $region59: #{transformer_clustering_forward.17} parent=55 // pred_region
        %p457 = scmp.lt.s32.totalorder %s28, 1
        %s458 = scalar_select %p457, %s28, 1
        %p459 = scmp.lt.s32.totalorder %s29, 0
        %s460 = scalar_select %p459, %s29, 0
        %s461 = sadd.s32 %s460, %s458
        %s462 = smul.addr %s461, 8
        %s463 = scalar_lea.vmem %s0, %s462
      $region60: #{transformer_clustering_forward.17} parent=55 // pred_fallthru
        _
      // Predicated region
      $region61: #{transformer_clustering_forward.17} parent=55 // pred_check
        %p464 = pneg %p83
      $region62: #{transformer_clustering_forward.17} parent=55 // pred_check_branch
        %466 = sbr.rel (%p464) target = $region64
      $region63: #{transformer_clustering_forward.17} parent=55 // pred_region
        %p467 = scmp.lt.s32.totalorder %s28, 1
        %s468 = scalar_select %p467, %s28, 1
        %p469 = scmp.lt.s32.totalorder %s29, 0
        %s470 = scalar_select %p469, %s29, 0
        %s471 = sadd.s32 %s470, %s468
        %s472 = smul.addr %s471, 8
        %s473 = scalar_lea.vmem %s1, %s472
      $region64: #{transformer_clustering_forward.17} parent=55 // pred_fallthru
        _
      // Predicated region
      $region65: #{transformer_clustering_forward.17} parent=55 // pred_check
        %p474 = pneg %p109
      $region66: #{transformer_clustering_forward.17} parent=55 // pred_check_branch
        %476 = sbr.rel (%p474) target = $region68
      $region67: #{transformer_clustering_forward.17} parent=55 // pred_region
        %p477 = scmp.lt.s32.totalorder %s28, 1
        %s478 = scalar_select %p477, %s28, 1
        %s479 = smul.addr %s478, 2
        %s480 = smul.addr %s479, 8
        %s481 = scalar_lea.vmem %s2, %s480
      $region68: #{transformer_clustering_forward.17} parent=55 // pred_fallthru
        _
      // Predicated region
      $region69: #{transformer_clustering_forward.17} parent=55 // pred_check
        %p482 = pneg %p135
      $region70: #{transformer_clustering_forward.17} parent=55 // pred_check_branch
        %484 = sbr.rel (%p482) target = $region72
      $region71: #{transformer_clustering_forward.17} parent=55 // pred_region
        %p485 = scmp.lt.s32.totalorder %s28, 1
        %s486 = scalar_select %p485, %s28, 1
        %s487 = smul.addr %s486, 2
        %s488 = smul.addr %s487, 8
        %s489 = scalar_lea.vmem %s3, %s488
      $region72: #{transformer_clustering_forward.17} parent=55 // pred_fallthru
        _
      // Predicated region
      $region73: #{transformer_clustering_forward.17} parent=55 // pred_check
        %p490 = pneg %p161
      $region74: #{transformer_clustering_forward.17} parent=55 // pred_check_branch
        %492 = sbr.rel (%p490) target = $region76
      $region75: #{transformer_clustering_forward.17} parent=55 // pred_region
        %p493 = scmp.lt.s32.totalorder %s28, 1
        %s494 = scalar_select %p493, %s28, 1
        %s495 = scalar_lea.vmem %s4, %s494
      $region76: #{transformer_clustering_forward.17} parent=55 // pred_fallthru
        _
    $region56: #{transformer_clustering_forward.17} parent=5 // pred_fallthru
      _
    %p496 = scmp.le.s32.totalorder 1, %s21
    %p497 = scmp.lt.s32.totalorder %s21, 3
    %p498 = pnand %p496, %p497
    %p499 = pneg %p498
    // Predicated region
    $region77: #{transformer_clustering_forward.17} parent=5 // pred_check
      _
    $region78: #{transformer_clustering_forward.17} parent=5 // pred_check_branch
      %501 = sbr.rel (%p498) target = $region80
    $region79: #{transformer_clustering_forward.17} parent=5 // pred_region
      %s502 = ssub.s32 %s21, 1
      %p503 = scmp.lt.s32.totalorder %s30, 1
      %s504 = scalar_select %p503, %s30, 1
      %p505 = scmp.lt.s32.totalorder %s31, 0
      %s506 = scalar_select %p505, %s31, 0
      %s507 = sadd.s32 %s506, %s504
      %s508 = smul.addr %s507, 8
      %s509 = scalar_lea.vmem %s0, %s508
      %p510 = pneg %p61
      %p511 = pneg %p58
      %p512 = scmp.lt.s32.totalorder %s30, 1
      %s513 = scalar_select %p512, %s30, 1
      %p514 = scmp.lt.s32.totalorder %s31, 0
      %s515 = scalar_select %p514, %s31, 0
      %s516 = sadd.s32 %s515, %s513
      %s517 = smul.addr %s516, 8
      %s518 = scalar_lea.vmem %s1, %s517
      %p519 = pneg %p89
      %p520 = pneg %p86
      %p521 = scmp.lt.s32.totalorder %s30, 1
      %s522 = scalar_select %p521, %s30, 1
      %s523 = smul.addr %s522, 2
      %s524 = smul.addr %s523, 8
      %s525 = scalar_lea.vmem %s2, %s524
      %p526 = pneg %p115
      %p527 = pneg %p112
      %p528 = scmp.lt.s32.totalorder %s30, 1
      %s529 = scalar_select %p528, %s30, 1
      %s530 = smul.addr %s529, 2
      %s531 = smul.addr %s530, 8
      %s532 = scalar_lea.vmem %s3, %s531
      %p533 = pneg %p141
      %p534 = pneg %p138
      %p535 = scmp.lt.s32.totalorder %s30, 1
      %s536 = scalar_select %p535, %s30, 1
      %s537 = scalar_lea.vmem %s4, %s536
      %p538 = pneg %p167
      %p539 = pneg %p164
      %p540 = pneg %p188
      %p541 = pneg %p185
      %p542 = pneg %p209
      %p543 = pneg %p206
      %p544 = pneg %p230
      %p545 = pneg %p227
      %p546 = pneg %p251
      %p547 = pneg %p248
      %p548 = pneg %p272
      %p549 = pneg %p269
      %p550 = pneg %p293
      %p551 = pneg %p290
      %p552 = pneg %p314
      %p553 = pneg %p311
      %p554 = pneg %p335
      %p555 = pneg %p332
      %p556 = pneg %p356
      %p557 = pneg %p353
      %p558 = pneg %p377
      %p559 = pneg %p374
      %p560 = pneg %p405
      %p561 = pneg %p402
      %p562 = scmp.lt.s32.totalorder %s30, 1
      %s563 = scalar_select %p562, %s30, 1
      %p564 = scmp.lt.s32.totalorder %s31, 0
      %s565 = scalar_select %p564, %s31, 0
      %s566 = sadd.s32 %s565, %s563
      %s567 = smul.addr %s566, 8
      %s568 = scalar_lea.vmem %s15, %s567
      %p569 = scmp.lt.s32.totalorder %s30, 1
      %s570 = scalar_select %p569, %s30, 1
      %p571 = scmp.lt.s32.totalorder %s31, 0
      %s572 = scalar_select %p571, %s31, 0
      %s573 = sadd.s32 %s572, %s570
      %s574 = smul.addr %s573, 8
      %s575 = scalar_lea.vmem %s0, %s574
      %p576 = scmp.lt.s32.totalorder %s30, 1
      %s577 = scalar_select %p576, %s30, 1
      %p578 = scmp.lt.s32.totalorder %s31, 0
      %s579 = scalar_select %p578, %s31, 0
      %s580 = sadd.s32 %s579, %s577
      %s581 = smul.addr %s580, 8
      %s582 = scalar_lea.vmem %s1, %s581
      %p583 = scmp.lt.s32.totalorder %s30, 1
      %s584 = scalar_select %p583, %s30, 1
      %s585 = smul.addr %s584, 2
      %s586 = smul.addr %s585, 8
      %s587 = scalar_lea.vmem %s2, %s586
      %p588 = scmp.lt.s32.totalorder %s30, 1
      %s589 = scalar_select %p588, %s30, 1
      %s590 = smul.addr %s589, 2
      %s591 = smul.addr %s590, 8
      %s592 = scalar_lea.vmem %s3, %s591
      %p593 = scmp.lt.s32.totalorder %s30, 1
      %s594 = scalar_select %p593, %s30, 1
      %s595 = scalar_lea.vmem %s4, %s594
      %p596 = scmp.lt.s32.totalorder %s30, 1
      %s597 = scalar_select %p596, %s30, 1
      %p598 = scmp.lt.s32.totalorder %s31, 0
      %s599 = scalar_select %p598, %s31, 0
      %s600 = sadd.s32 %s599, %s597
      %s601 = smul.addr %s600, 8
      %s602 = scalar_lea.vmem %s15, %s601
      %v604 = vld [vmem:[%s575] sm:$0xff]
      %v605 = vld [vmem:[%s582] sm:$0xff]
      %v606 = vadd.f32 %v604, %v605
      %v607 = vld [vmem:[%s587] sm:$0xff]
      %v608 = vld [vmem:[%s587 + $0x8] sm:$0xff]
      %v609 = vld [vmem:[%s592] sm:$0xff]
      %v610 = vld [vmem:[%s592 + $0x8] sm:$0xff]
      %v611 = vadd.f32 %v607, %v609
      %v612 = vadd.f32 %v608, %v610
      %v613 = vpack.c.bf16 %v606, %v606
      %v614 = vld [vmem:[%s5] sm:$0xf]
      %v615 = vld [vmem:[%s5 + $0x4] sm:$0xf]
      %v616 = vld [vmem:[%s5 + $0x8] sm:$0xf]
      %v617 = vld [vmem:[%s5 + $0xc] sm:$0xf]
      %v618 = vld [vmem:[%s5 + $0x10] sm:$0xf]
      %v619 = vld [vmem:[%s5 + $0x14] sm:$0xf]
      %v620 = vld [vmem:[%s5 + $0x18] sm:$0xf]
      %v621 = vld [vmem:[%s5 + $0x1c] sm:$0xf]
      %v622 = vld [vmem:[%s5 + $0x20] sm:$0xf]
      %v623 = vld [vmem:[%s5 + $0x24] sm:$0xf]
      %v624 = vld [vmem:[%s5 + $0x28] sm:$0xf]
      %v625 = vld [vmem:[%s5 + $0x2c] sm:$0xf]
      %v626 = vld [vmem:[%s5 + $0x30] sm:$0xf]
      %v627 = vld [vmem:[%s5 + $0x34] sm:$0xf]
      %v628 = vld [vmem:[%s5 + $0x38] sm:$0xf]
      %v629 = vld [vmem:[%s5 + $0x3c] sm:$0xf]
      %v630 = vld [vmem:[%s6] sm:$0x1]
      %v632 = vlaneseq
      %v633 = vshrl.u32 %v632, 7
      %v634 = vsub.s32 0, %v633
      %v635 = vrot.slane %v630, %v634
      %v653 = vunpack.c.l.b16 %v614
      %v654 = vunpack.c.l.b16 %v615
      %v655 = vunpack.c.l.b16 %v616
      %v656 = vunpack.c.l.b16 %v617
      %v657 = vunpack.c.l.b16 %v618
      %v658 = vunpack.c.l.b16 %v619
      %v659 = vunpack.c.l.b16 %v620
      %v660 = vunpack.c.l.b16 %v621
      %v661 = vunpack.c.l.b16 %v622
      %v662 = vunpack.c.l.b16 %v623
      %v663 = vunpack.c.l.b16 %v624
      %v664 = vunpack.c.l.b16 %v625
      %v665 = vunpack.c.l.b16 %v626
      %v666 = vunpack.c.l.b16 %v627
      %v667 = vunpack.c.l.b16 %v628
      %v668 = vunpack.c.l.b16 %v629
      %v669 = vpack.c.b16 %v654, %v653
      %v670 = vpack.c.b16 %v656, %v655
      %v671 = vpack.c.b16 %v658, %v657
      %v672 = vpack.c.b16 %v660, %v659
      %v673 = vpack.c.b16 %v662, %v661
      %v674 = vpack.c.b16 %v664, %v663
      %v675 = vpack.c.b16 %v666, %v665
      %v676 = vpack.c.b16 %v668, %v667
      %685 = vmatprep.subr.bf16.mxu0 0
      %686 = vmatpush1.bf16.msra.mxu0 %v676
      %687 = vmatprep.subr.bf16.mxu0 0
      %688 = vmatpush1.bf16.msra.mxu0 %v675
      %689 = vmatprep.subr.bf16.mxu0 0
      %690 = vmatpush1.bf16.msra.mxu0 %v674
      %691 = vmatprep.subr.bf16.mxu0 0
      %692 = vmatpush1.bf16.msra.mxu0 %v673
      %693 = vmatprep.subr.bf16.mxu0 0
      %694 = vmatpush1.bf16.msra.mxu0 %v672
      %695 = vmatprep.subr.bf16.mxu0 0
      %696 = vmatpush1.bf16.msra.mxu0 %v671
      %697 = vmatprep.subr.bf16.mxu0 0
      %698 = vmatpush1.bf16.msra.mxu0 %v670
      %699 = vmatprep.subr.bf16.mxu0 0
      %700 = vmatpush1.bf16.msra.mxu0 %v669
      %701 = vmatprep.subr.bf16.mxu0 0
      %702 = vmatpush2.bf16.msra.mxu0 0
      %703 = vmatprep.subr.bf16.mxu0 0
      %704 = vmatpush2.bf16.msra.mxu0 0
      %705 = vmatprep.subr.bf16.mxu0 0
      %706 = vmatpush2.bf16.msra.mxu0 0
      %707 = vmatprep.subr.bf16.mxu0 0
      %708 = vmatpush2.bf16.msra.mxu0 0
      %709 = vmatprep.subr.bf16.mxu0 0
      %710 = vmatpush2.bf16.msra.mxu0 0
      %711 = vmatprep.subr.bf16.mxu0 0
      %712 = vmatpush2.bf16.msra.mxu0 0
      %713 = vmatprep.subr.bf16.mxu0 0
      %714 = vmatpush2.bf16.msra.mxu0 0
      %715 = vmatprep.subr.bf16.mxu0 0
      %716 = vmatpush2.bf16.msra.mxu0 0
      %717 = vmatprep.mubr.bf16.mxu0 0
      %718 = vmatmul.mubr.bf16.gmra.mxu0 %v613
      %v719 = vpop.f32.mrf.mxu0
      %v720 = vadd.f32 %v635, %v719
      %v721 = vpop.f32.mrf.mxu0
      %v722 = vpop.f32.mrf.mxu0
      %v723 = vpop.f32.mrf.mxu0
      %724 = vdwg.mxu0
      %v725 = vpack.c.bf16 %v612, %v611
      %v726 = vld [vmem:[%s7] sm:$0xf]
      %v727 = vld [vmem:[%s7 + $0x4] sm:$0xf]
      %v728 = vld [vmem:[%s7 + $0x8] sm:$0xf]
      %v729 = vld [vmem:[%s7 + $0xc] sm:$0xf]
      %v730 = vld [vmem:[%s7 + $0x10] sm:$0xf]
      %v731 = vld [vmem:[%s7 + $0x14] sm:$0xf]
      %v732 = vld [vmem:[%s7 + $0x18] sm:$0xf]
      %v733 = vld [vmem:[%s7 + $0x1c] sm:$0xf]
      %v734 = vld [vmem:[%s7 + $0x20] sm:$0xf]
      %v735 = vld [vmem:[%s7 + $0x24] sm:$0xf]
      %v736 = vld [vmem:[%s7 + $0x28] sm:$0xf]
      %v737 = vld [vmem:[%s7 + $0x2c] sm:$0xf]
      %v738 = vld [vmem:[%s7 + $0x30] sm:$0xf]
      %v739 = vld [vmem:[%s7 + $0x34] sm:$0xf]
      %v740 = vld [vmem:[%s7 + $0x38] sm:$0xf]
      %v741 = vld [vmem:[%s7 + $0x3c] sm:$0xf]
      %v742 = vld [vmem:[%s8] sm:$0x1]
      %v744 = vlaneseq
      %v745 = vshrl.u32 %v744, 7
      %v746 = vsub.s32 0, %v745
      %v747 = vrot.slane %v742, %v746
      %v765 = vunpack.c.l.b16 %v726
      %v766 = vunpack.c.l.b16 %v727
      %v767 = vunpack.c.l.b16 %v728
      %v768 = vunpack.c.l.b16 %v729
      %v769 = vunpack.c.l.b16 %v730
      %v770 = vunpack.c.l.b16 %v731
      %v771 = vunpack.c.l.b16 %v732
      %v772 = vunpack.c.l.b16 %v733
      %v773 = vunpack.c.l.b16 %v734
      %v774 = vunpack.c.l.b16 %v735
      %v775 = vunpack.c.l.b16 %v736
      %v776 = vunpack.c.l.b16 %v737
      %v777 = vunpack.c.l.b16 %v738
      %v778 = vunpack.c.l.b16 %v739
      %v779 = vunpack.c.l.b16 %v740
      %v780 = vunpack.c.l.b16 %v741
      %v781 = vpack.c.b16 %v766, %v765
      %v782 = vpack.c.b16 %v768, %v767
      %v783 = vpack.c.b16 %v770, %v769
      %v784 = vpack.c.b16 %v772, %v771
      %v785 = vpack.c.b16 %v774, %v773
      %v786 = vpack.c.b16 %v776, %v775
      %v787 = vpack.c.b16 %v778, %v777
      %v788 = vpack.c.b16 %v780, %v779
      %797 = vmatprep.subr.bf16.mxu0 0
      %798 = vmatpush1.bf16.msra.mxu0 %v788
      %799 = vmatprep.subr.bf16.mxu0 0
      %800 = vmatpush1.bf16.msra.mxu0 %v787
      %801 = vmatprep.subr.bf16.mxu0 0
      %802 = vmatpush1.bf16.msra.mxu0 %v786
      %803 = vmatprep.subr.bf16.mxu0 0
      %804 = vmatpush1.bf16.msra.mxu0 %v785
      %805 = vmatprep.subr.bf16.mxu0 0
      %806 = vmatpush1.bf16.msra.mxu0 %v784
      %807 = vmatprep.subr.bf16.mxu0 0
      %808 = vmatpush1.bf16.msra.mxu0 %v783
      %809 = vmatprep.subr.bf16.mxu0 0
      %810 = vmatpush1.bf16.msra.mxu0 %v782
      %811 = vmatprep.subr.bf16.mxu0 0
      %812 = vmatpush1.bf16.msra.mxu0 %v781
      %813 = vmatprep.subr.bf16.mxu0 0
      %814 = vmatpush2.bf16.msra.mxu0 0
      %815 = vmatprep.subr.bf16.mxu0 0
      %816 = vmatpush2.bf16.msra.mxu0 0
      %817 = vmatprep.subr.bf16.mxu0 0
      %818 = vmatpush2.bf16.msra.mxu0 0
      %819 = vmatprep.subr.bf16.mxu0 0
      %820 = vmatpush2.bf16.msra.mxu0 0
      %821 = vmatprep.subr.bf16.mxu0 0
      %822 = vmatpush2.bf16.msra.mxu0 0
      %823 = vmatprep.subr.bf16.mxu0 0
      %824 = vmatpush2.bf16.msra.mxu0 0
      %825 = vmatprep.subr.bf16.mxu0 0
      %826 = vmatpush2.bf16.msra.mxu0 0
      %827 = vmatprep.subr.bf16.mxu0 0
      %828 = vmatpush2.bf16.msra.mxu0 0
      %829 = vmatprep.mubr.bf16.mxu0 0
      %830 = vmatmul.mubr.bf16.gmra.mxu0 %v725
      %v831 = vpop.f32.mrf.mxu0
      %v832 = vadd.f32 %v747, %v831
      %v833 = vpop.f32.mrf.mxu0
      %v834 = vpop.f32.mrf.mxu0
      %v835 = vadd.f32 %v747, %v834
      %v836 = vpop.f32.mrf.mxu0
      %837 = vdwg.mxu0
      %v838 = vpack.c.bf16 %v608, %v607
      %v839 = vld [vmem:[%s9] sm:$0xf]
      %v840 = vld [vmem:[%s9 + $0x4] sm:$0xf]
      %v841 = vld [vmem:[%s9 + $0x8] sm:$0xf]
      %v842 = vld [vmem:[%s9 + $0xc] sm:$0xf]
      %v843 = vld [vmem:[%s9 + $0x10] sm:$0xf]
      %v844 = vld [vmem:[%s9 + $0x14] sm:$0xf]
      %v845 = vld [vmem:[%s9 + $0x18] sm:$0xf]
      %v846 = vld [vmem:[%s9 + $0x1c] sm:$0xf]
      %v847 = vld [vmem:[%s9 + $0x20] sm:$0xf]
      %v848 = vld [vmem:[%s9 + $0x24] sm:$0xf]
      %v849 = vld [vmem:[%s9 + $0x28] sm:$0xf]
      %v850 = vld [vmem:[%s9 + $0x2c] sm:$0xf]
      %v851 = vld [vmem:[%s9 + $0x30] sm:$0xf]
      %v852 = vld [vmem:[%s9 + $0x34] sm:$0xf]
      %v853 = vld [vmem:[%s9 + $0x38] sm:$0xf]
      %v854 = vld [vmem:[%s9 + $0x3c] sm:$0xf]
      %v855 = vld [vmem:[%s10] sm:$0x1]
      %v857 = vlaneseq
      %v858 = vshrl.u32 %v857, 7
      %v859 = vsub.s32 0, %v858
      %v860 = vrot.slane %v855, %v859
      %v878 = vunpack.c.l.b16 %v839
      %v879 = vunpack.c.l.b16 %v840
      %v880 = vunpack.c.l.b16 %v841
      %v881 = vunpack.c.l.b16 %v842
      %v882 = vunpack.c.l.b16 %v843
      %v883 = vunpack.c.l.b16 %v844
      %v884 = vunpack.c.l.b16 %v845
      %v885 = vunpack.c.l.b16 %v846
      %v886 = vunpack.c.l.b16 %v847
      %v887 = vunpack.c.l.b16 %v848
      %v888 = vunpack.c.l.b16 %v849
      %v889 = vunpack.c.l.b16 %v850
      %v890 = vunpack.c.l.b16 %v851
      %v891 = vunpack.c.l.b16 %v852
      %v892 = vunpack.c.l.b16 %v853
      %v893 = vunpack.c.l.b16 %v854
      %v894 = vpack.c.b16 %v879, %v878
      %v895 = vpack.c.b16 %v881, %v880
      %v896 = vpack.c.b16 %v883, %v882
      %v897 = vpack.c.b16 %v885, %v884
      %v898 = vpack.c.b16 %v887, %v886
      %v899 = vpack.c.b16 %v889, %v888
      %v900 = vpack.c.b16 %v891, %v890
      %v901 = vpack.c.b16 %v893, %v892
      %910 = vmatprep.subr.bf16.mxu0 0
      %911 = vmatpush1.bf16.msra.mxu0 %v901
      %912 = vmatprep.subr.bf16.mxu0 0
      %913 = vmatpush1.bf16.msra.mxu0 %v900
      %914 = vmatprep.subr.bf16.mxu0 0
      %915 = vmatpush1.bf16.msra.mxu0 %v899
      %916 = vmatprep.subr.bf16.mxu0 0
      %917 = vmatpush1.bf16.msra.mxu0 %v898
      %918 = vmatprep.subr.bf16.mxu0 0
      %919 = vmatpush1.bf16.msra.mxu0 %v897
      %920 = vmatprep.subr.bf16.mxu0 0
      %921 = vmatpush1.bf16.msra.mxu0 %v896
      %922 = vmatprep.subr.bf16.mxu0 0
      %923 = vmatpush1.bf16.msra.mxu0 %v895
      %924 = vmatprep.subr.bf16.mxu0 0
      %925 = vmatpush1.bf16.msra.mxu0 %v894
      %926 = vmatprep.subr.bf16.mxu0 0
      %927 = vmatpush2.bf16.msra.mxu0 0
      %928 = vmatprep.subr.bf16.mxu0 0
      %929 = vmatpush2.bf16.msra.mxu0 0
      %930 = vmatprep.subr.bf16.mxu0 0
      %931 = vmatpush2.bf16.msra.mxu0 0
      %932 = vmatprep.subr.bf16.mxu0 0
      %933 = vmatpush2.bf16.msra.mxu0 0
      %934 = vmatprep.subr.bf16.mxu0 0
      %935 = vmatpush2.bf16.msra.mxu0 0
      %936 = vmatprep.subr.bf16.mxu0 0
      %937 = vmatpush2.bf16.msra.mxu0 0
      %938 = vmatprep.subr.bf16.mxu0 0
      %939 = vmatpush2.bf16.msra.mxu0 0
      %940 = vmatprep.subr.bf16.mxu0 0
      %941 = vmatpush2.bf16.msra.mxu0 0
      %942 = vmatprep.mubr.bf16.mxu0 0
      %943 = vmatmul.mubr.bf16.gmra.mxu0 %v838
      %v944 = vpop.f32.mrf.mxu0
      %v945 = vadd.f32 %v860, %v944
      %v946 = vpop.f32.mrf.mxu0
      %v947 = vpop.f32.mrf.mxu0
      %v948 = vadd.f32 %v860, %v947
      %v949 = vpop.f32.mrf.mxu0
      %950 = vdwg.mxu0
      %v951 = vmul.f32 %v720, 0.17677669
      %v952 = vpack.c.bf16 %v951, %v951
      %v953 = vpack.c.bf16 %v835, %v832
      %v954 = vpack.c.bf16 %v948, %v945
      %v955 = vld [vmem:[%s595] sm:$0x1]
      %v957 = vlaneseq
      %v958 = vshrl.u32 %v957, 7
      %v959 = vsub.s32 0, %v958
      %v960 = vrot.slane %v955, %v959
      %vm962 = vcmask 261120
      %v964 = vsel %vm962, %v952, 0
      %v967 = vsel %vm962, %v953, 0
      %969 = vmatprep.subr.bf16.mxu0 0
      %970 = vmatpush1.bf16.xpose.msra.mxu0 0
      %971 = vmatprep.subr.bf16.mxu0 0
      %972 = vmatpush1.bf16.xpose.msra.mxu0 0
      %973 = vmatprep.subr.bf16.mxu0 0
      %974 = vmatpush1.bf16.xpose.msra.mxu0 0
      %975 = vmatprep.subr.bf16.mxu0 0
      %976 = vmatpush1.bf16.xpose.msra.mxu0 0
      %977 = vmatprep.subr.bf16.mxu0 0
      %978 = vmatpush1.bf16.xpose.msra.mxu0 0
      %979 = vmatprep.subr.bf16.mxu0 0
      %980 = vmatpush1.bf16.xpose.msra.mxu0 0
      %981 = vmatprep.subr.bf16.mxu0 0
      %982 = vmatpush1.bf16.xpose.msra.mxu0 0
      %983 = vmatprep.subr.bf16.mxu0 0
      %984 = vmatpush1.bf16.xpose.msra.mxu0 %v967
      %985 = vmatprep.subr.bf16.mxu0 0
      %986 = vmatpush2.bf16.xpose.msra.mxu0 0
      %987 = vmatprep.subr.bf16.mxu0 0
      %988 = vmatpush2.bf16.xpose.msra.mxu0 0
      %989 = vmatprep.subr.bf16.mxu0 0
      %990 = vmatpush2.bf16.xpose.msra.mxu0 0
      %991 = vmatprep.subr.bf16.mxu0 0
      %992 = vmatpush2.bf16.xpose.msra.mxu0 0
      %993 = vmatprep.subr.bf16.mxu0 0
      %994 = vmatpush2.bf16.xpose.msra.mxu0 0
      %995 = vmatprep.subr.bf16.mxu0 0
      %996 = vmatpush2.bf16.xpose.msra.mxu0 0
      %997 = vmatprep.subr.bf16.mxu0 0
      %998 = vmatpush2.bf16.xpose.msra.mxu0 0
      %999 = vmatprep.subr.bf16.mxu0 0
      %1000 = vmatpush2.bf16.xpose.msra.mxu0 0
      %1001 = vmatprep.mubr.bf16.mxu0 0
      %1002 = vmatmul.mubr.bf16.gmra.mxu0 %v964
      %v1003 = vpop.f32.mrf.mxu0
      %v1004 = vadd.f32 %v960, %v1003
      %v1005 = vpop.f32.mrf.mxu0
      %v1006 = vpop.f32.mrf.mxu0
      %v1007 = vpop.f32.mrf.mxu0
      %1008 = vdwg.mxu0
      %vm1009 = vcmask 130048
      %v1010 = vsel %vm1009, %v1004, -inf
      %1011 = vmax.xlane.f32.xlu0 %v1010
      %v1012 = vpop.xlane.xlu0 %1011
      %v1013 = vsub.f32 %v1004, %v1012
      %v1014 = vmul.f32 %v1013, 1.442695
      %v1015 = vpow.pop %v1014
      %v1016 = vsel %vm1009, %v1015, 0.0
      %1017 = vadd.xlane.f32.xlu0 %v1016
      %v1018 = vpop.xlane.xlu0 %1017
      %v1019 = vrcp.pop %v1018
      %v1020 = vmul.f32 %v1015, %v1019
      %v1021 = vpack.c.bf16 %v1020, %v1020
      %v1023 = vsel %vm1009, %v1021, 0
      %1025 = vmatprep.subr.bf16.mxu0 0
      %1026 = vmatpush1.bf16.msra.mxu0 0
      %1027 = vmatprep.subr.bf16.mxu0 0
      %1028 = vmatpush1.bf16.msra.mxu0 0
      %1029 = vmatprep.subr.bf16.mxu0 0
      %1030 = vmatpush1.bf16.msra.mxu0 0
      %1031 = vmatprep.subr.bf16.mxu0 0
      %1032 = vmatpush1.bf16.msra.mxu0 0
      %1033 = vmatprep.subr.bf16.mxu0 0
      %1034 = vmatpush1.bf16.msra.mxu0 0
      %1035 = vmatprep.subr.bf16.mxu0 0
      %1036 = vmatpush1.bf16.msra.mxu0 0
      %1037 = vmatprep.subr.bf16.mxu0 0
      %1038 = vmatpush1.bf16.msra.mxu0 0
      %1039 = vmatprep.subr.bf16.mxu0 0
      %1040 = vmatpush1.bf16.msra.mxu0 %v954
      %1041 = vmatprep.subr.bf16.mxu0 0
      %1042 = vmatpush2.bf16.msra.mxu0 0
      %1043 = vmatprep.subr.bf16.mxu0 0
      %1044 = vmatpush2.bf16.msra.mxu0 0
      %1045 = vmatprep.subr.bf16.mxu0 0
      %1046 = vmatpush2.bf16.msra.mxu0 0
      %1047 = vmatprep.subr.bf16.mxu0 0
      %1048 = vmatpush2.bf16.msra.mxu0 0
      %1049 = vmatprep.subr.bf16.mxu0 0
      %1050 = vmatpush2.bf16.msra.mxu0 0
      %1051 = vmatprep.subr.bf16.mxu0 0
      %1052 = vmatpush2.bf16.msra.mxu0 0
      %1053 = vmatprep.subr.bf16.mxu0 0
      %1054 = vmatpush2.bf16.msra.mxu0 0
      %1055 = vmatprep.subr.bf16.mxu0 0
      %1056 = vmatpush2.bf16.msra.mxu0 0
      %1057 = vmatprep.mubr.bf16.mxu0 0
      %1058 = vmatmul.mubr.bf16.gmra.mxu0 %v1023
      %v1059 = vpop.f32.mrf.mxu0
      %v1060 = vadd.f32 0.0, %v1059
      %v1061 = vpop.f32.mrf.mxu0
      %v1062 = vpop.f32.mrf.mxu0
      %v1063 = vpop.f32.mrf.mxu0
      %1064 = vdwg.mxu0
      %1066 = vrot.lane.b32.xlu0 %v952, 96
      %v1067 = vpop.permute.xlu0 %1066
      %1069 = vrot.lane.b32.xlu0 %v953, 96
      %v1070 = vpop.permute.xlu0 %1069
      %v1072 = vsel %vm962, %v1067, 0
      %v1075 = vsel %vm962, %v1070, 0
      %1077 = vmatprep.subr.bf16.mxu0 0
      %1078 = vmatpush1.bf16.xpose.msra.mxu0 0
      %1079 = vmatprep.subr.bf16.mxu0 0
      %1080 = vmatpush1.bf16.xpose.msra.mxu0 0
      %1081 = vmatprep.subr.bf16.mxu0 0
      %1082 = vmatpush1.bf16.xpose.msra.mxu0 0
      %1083 = vmatprep.subr.bf16.mxu0 0
      %1084 = vmatpush1.bf16.xpose.msra.mxu0 0
      %1085 = vmatprep.subr.bf16.mxu0 0
      %1086 = vmatpush1.bf16.xpose.msra.mxu0 0
      %1087 = vmatprep.subr.bf16.mxu0 0
      %1088 = vmatpush1.bf16.xpose.msra.mxu0 0
      %1089 = vmatprep.subr.bf16.mxu0 0
      %1090 = vmatpush1.bf16.xpose.msra.mxu0 0
      %1091 = vmatprep.subr.bf16.mxu0 0
      %1092 = vmatpush1.bf16.xpose.msra.mxu0 %v1075
      %1093 = vmatprep.subr.bf16.mxu0 0
      %1094 = vmatpush2.bf16.xpose.msra.mxu0 0
      %1095 = vmatprep.subr.bf16.mxu0 0
      %1096 = vmatpush2.bf16.xpose.msra.mxu0 0
      %1097 = vmatprep.subr.bf16.mxu0 0
      %1098 = vmatpush2.bf16.xpose.msra.mxu0 0
      %1099 = vmatprep.subr.bf16.mxu0 0
      %1100 = vmatpush2.bf16.xpose.msra.mxu0 0
      %1101 = vmatprep.subr.bf16.mxu0 0
      %1102 = vmatpush2.bf16.xpose.msra.mxu0 0
      %1103 = vmatprep.subr.bf16.mxu0 0
      %1104 = vmatpush2.bf16.xpose.msra.mxu0 0
      %1105 = vmatprep.subr.bf16.mxu0 0
      %1106 = vmatpush2.bf16.xpose.msra.mxu0 0
      %1107 = vmatprep.subr.bf16.mxu0 0
      %1108 = vmatpush2.bf16.xpose.msra.mxu0 0
      %1109 = vmatprep.mubr.bf16.mxu0 0
      %1110 = vmatmul.mubr.bf16.gmra.mxu0 %v1072
      %v1111 = vpop.f32.mrf.mxu0
      %v1112 = vadd.f32 %v960, %v1111
      %v1113 = vpop.f32.mrf.mxu0
      %v1114 = vpop.f32.mrf.mxu0
      %v1115 = vpop.f32.mrf.mxu0
      %1116 = vdwg.mxu0
      %v1117 = vsel %vm1009, %v1112, -inf
      %1118 = vmax.xlane.f32.xlu0 %v1117
      %v1119 = vpop.xlane.xlu0 %1118
      %v1120 = vsub.f32 %v1112, %v1119
      %v1121 = vmul.f32 %v1120, 1.442695
      %v1122 = vpow.pop %v1121
      %v1123 = vsel %vm1009, %v1122, 0.0
      %1124 = vadd.xlane.f32.xlu0 %v1123
      %v1125 = vpop.xlane.xlu0 %1124
      %v1126 = vrcp.pop %v1125
      %v1127 = vmul.f32 %v1122, %v1126
      %v1128 = vpack.c.bf16 %v1127, %v1127
      %1130 = vrot.lane.b32.xlu0 %v954, 96
      %v1131 = vpop.permute.xlu0 %1130
      %v1134 = vsel %vm1009, %v1128, 0
      %1136 = vmatprep.subr.bf16.mxu0 0
      %1137 = vmatpush1.bf16.msra.mxu0 0
      %1138 = vmatprep.subr.bf16.mxu0 0
      %1139 = vmatpush1.bf16.msra.mxu0 0
      %1140 = vmatprep.subr.bf16.mxu0 0
      %1141 = vmatpush1.bf16.msra.mxu0 0
      %1142 = vmatprep.subr.bf16.mxu0 0
      %1143 = vmatpush1.bf16.msra.mxu0 0
      %1144 = vmatprep.subr.bf16.mxu0 0
      %1145 = vmatpush1.bf16.msra.mxu0 0
      %1146 = vmatprep.subr.bf16.mxu0 0
      %1147 = vmatpush1.bf16.msra.mxu0 0
      %1148 = vmatprep.subr.bf16.mxu0 0
      %1149 = vmatpush1.bf16.msra.mxu0 0
      %1150 = vmatprep.subr.bf16.mxu0 0
      %1151 = vmatpush1.bf16.msra.mxu0 %v1131
      %1152 = vmatprep.subr.bf16.mxu0 0
      %1153 = vmatpush2.bf16.msra.mxu0 0
      %1154 = vmatprep.subr.bf16.mxu0 0
      %1155 = vmatpush2.bf16.msra.mxu0 0
      %1156 = vmatprep.subr.bf16.mxu0 0
      %1157 = vmatpush2.bf16.msra.mxu0 0
      %1158 = vmatprep.subr.bf16.mxu0 0
      %1159 = vmatpush2.bf16.msra.mxu0 0
      %1160 = vmatprep.subr.bf16.mxu0 0
      %1161 = vmatpush2.bf16.msra.mxu0 0
      %1162 = vmatprep.subr.bf16.mxu0 0
      %1163 = vmatpush2.bf16.msra.mxu0 0
      %1164 = vmatprep.subr.bf16.mxu0 0
      %1165 = vmatpush2.bf16.msra.mxu0 0
      %1166 = vmatprep.subr.bf16.mxu0 0
      %1167 = vmatpush2.bf16.msra.mxu0 0
      %1168 = vmatprep.mubr.bf16.mxu0 0
      %1169 = vmatmul.mubr.bf16.gmra.mxu0 %v1134
      %v1170 = vpop.f32.mrf.mxu0
      %v1171 = vadd.f32 0.0, %v1170
      %v1172 = vpop.f32.mrf.mxu0
      %v1173 = vpop.f32.mrf.mxu0
      %v1174 = vpop.f32.mrf.mxu0
      %1175 = vdwg.mxu0
      %1176 = vrot.lane.b32.xlu0 %v952, 64
      %v1177 = vpop.permute.xlu0 %1176
      %1178 = vrot.lane.b32.xlu0 %v953, 64
      %v1179 = vpop.permute.xlu0 %1178
      %v1181 = vsel %vm962, %v1177, 0
      %v1184 = vsel %vm962, %v1179, 0
      %1186 = vmatprep.subr.bf16.mxu0 0
      %1187 = vmatpush1.bf16.xpose.msra.mxu0 0
      %1188 = vmatprep.subr.bf16.mxu0 0
      %1189 = vmatpush1.bf16.xpose.msra.mxu0 0
      %1190 = vmatprep.subr.bf16.mxu0 0
      %1191 = vmatpush1.bf16.xpose.msra.mxu0 0
      %1192 = vmatprep.subr.bf16.mxu0 0
      %1193 = vmatpush1.bf16.xpose.msra.mxu0 0
      %1194 = vmatprep.subr.bf16.mxu0 0
      %1195 = vmatpush1.bf16.xpose.msra.mxu0 0
      %1196 = vmatprep.subr.bf16.mxu0 0
      %1197 = vmatpush1.bf16.xpose.msra.mxu0 0
      %1198 = vmatprep.subr.bf16.mxu0 0
      %1199 = vmatpush1.bf16.xpose.msra.mxu0 0
      %1200 = vmatprep.subr.bf16.mxu0 0
      %1201 = vmatpush1.bf16.xpose.msra.mxu0 %v1184
      %1202 = vmatprep.subr.bf16.mxu0 0
      %1203 = vmatpush2.bf16.xpose.msra.mxu0 0
      %1204 = vmatprep.subr.bf16.mxu0 0
      %1205 = vmatpush2.bf16.xpose.msra.mxu0 0
      %1206 = vmatprep.subr.bf16.mxu0 0
      %1207 = vmatpush2.bf16.xpose.msra.mxu0 0
      %1208 = vmatprep.subr.bf16.mxu0 0
      %1209 = vmatpush2.bf16.xpose.msra.mxu0 0
      %1210 = vmatprep.subr.bf16.mxu0 0
      %1211 = vmatpush2.bf16.xpose.msra.mxu0 0
      %1212 = vmatprep.subr.bf16.mxu0 0
      %1213 = vmatpush2.bf16.xpose.msra.mxu0 0
      %1214 = vmatprep.subr.bf16.mxu0 0
      %1215 = vmatpush2.bf16.xpose.msra.mxu0 0
      %1216 = vmatprep.subr.bf16.mxu0 0
      %1217 = vmatpush2.bf16.xpose.msra.mxu0 0
      %1218 = vmatprep.mubr.bf16.mxu0 0
      %1219 = vmatmul.mubr.bf16.gmra.mxu0 %v1181
      %v1220 = vpop.f32.mrf.mxu0
      %v1221 = vadd.f32 %v960, %v1220
      %v1222 = vpop.f32.mrf.mxu0
      %v1223 = vpop.f32.mrf.mxu0
      %v1224 = vpop.f32.mrf.mxu0
      %1225 = vdwg.mxu0
      %v1226 = vsel %vm1009, %v1221, -inf
      %1227 = vmax.xlane.f32.xlu0 %v1226
      %v1228 = vpop.xlane.xlu0 %1227
      %v1229 = vsub.f32 %v1221, %v1228
      %v1230 = vmul.f32 %v1229, 1.442695
      %v1231 = vpow.pop %v1230
      %v1232 = vsel %vm1009, %v1231, 0.0
      %1233 = vadd.xlane.f32.xlu0 %v1232
      %v1234 = vpop.xlane.xlu0 %1233
      %v1235 = vrcp.pop %v1234
      %v1236 = vmul.f32 %v1231, %v1235
      %v1237 = vpack.c.bf16 %v1236, %v1236
      %1238 = vrot.lane.b32.xlu0 %v954, 64
      %v1239 = vpop.permute.xlu0 %1238
      %v1242 = vsel %vm1009, %v1237, 0
      %1244 = vmatprep.subr.bf16.mxu0 0
      %1245 = vmatpush1.bf16.msra.mxu0 0
      %1246 = vmatprep.subr.bf16.mxu0 0
      %1247 = vmatpush1.bf16.msra.mxu0 0
      %1248 = vmatprep.subr.bf16.mxu0 0
      %1249 = vmatpush1.bf16.msra.mxu0 0
      %1250 = vmatprep.subr.bf16.mxu0 0
      %1251 = vmatpush1.bf16.msra.mxu0 0
      %1252 = vmatprep.subr.bf16.mxu0 0
      %1253 = vmatpush1.bf16.msra.mxu0 0
      %1254 = vmatprep.subr.bf16.mxu0 0
      %1255 = vmatpush1.bf16.msra.mxu0 0
      %1256 = vmatprep.subr.bf16.mxu0 0
      %1257 = vmatpush1.bf16.msra.mxu0 0
      %1258 = vmatprep.subr.bf16.mxu0 0
      %1259 = vmatpush1.bf16.msra.mxu0 %v1239
      %1260 = vmatprep.subr.bf16.mxu0 0
      %1261 = vmatpush2.bf16.msra.mxu0 0
      %1262 = vmatprep.subr.bf16.mxu0 0
      %1263 = vmatpush2.bf16.msra.mxu0 0
      %1264 = vmatprep.subr.bf16.mxu0 0
      %1265 = vmatpush2.bf16.msra.mxu0 0
      %1266 = vmatprep.subr.bf16.mxu0 0
      %1267 = vmatpush2.bf16.msra.mxu0 0
      %1268 = vmatprep.subr.bf16.mxu0 0
      %1269 = vmatpush2.bf16.msra.mxu0 0
      %1270 = vmatprep.subr.bf16.mxu0 0
      %1271 = vmatpush2.bf16.msra.mxu0 0
      %1272 = vmatprep.subr.bf16.mxu0 0
      %1273 = vmatpush2.bf16.msra.mxu0 0
      %1274 = vmatprep.subr.bf16.mxu0 0
      %1275 = vmatpush2.bf16.msra.mxu0 0
      %1276 = vmatprep.mubr.bf16.mxu0 0
      %1277 = vmatmul.mubr.bf16.gmra.mxu0 %v1242
      %v1278 = vpop.f32.mrf.mxu0
      %v1279 = vadd.f32 0.0, %v1278
      %v1280 = vpop.f32.mrf.mxu0
      %v1281 = vpop.f32.mrf.mxu0
      %v1282 = vpop.f32.mrf.mxu0
      %1283 = vdwg.mxu0
      %1284 = vrot.lane.b32.xlu0 %v952, 32
      %v1285 = vpop.permute.xlu0 %1284
      %1286 = vrot.lane.b32.xlu0 %v953, 32
      %v1287 = vpop.permute.xlu0 %1286
      %v1289 = vsel %vm962, %v1285, 0
      %v1292 = vsel %vm962, %v1287, 0
      %1294 = vmatprep.subr.bf16.mxu0 0
      %1295 = vmatpush1.bf16.xpose.msra.mxu0 0
      %1296 = vmatprep.subr.bf16.mxu0 0
      %1297 = vmatpush1.bf16.xpose.msra.mxu0 0
      %1298 = vmatprep.subr.bf16.mxu0 0
      %1299 = vmatpush1.bf16.xpose.msra.mxu0 0
      %1300 = vmatprep.subr.bf16.mxu0 0
      %1301 = vmatpush1.bf16.xpose.msra.mxu0 0
      %1302 = vmatprep.subr.bf16.mxu0 0
      %1303 = vmatpush1.bf16.xpose.msra.mxu0 0
      %1304 = vmatprep.subr.bf16.mxu0 0
      %1305 = vmatpush1.bf16.xpose.msra.mxu0 0
      %1306 = vmatprep.subr.bf16.mxu0 0
      %1307 = vmatpush1.bf16.xpose.msra.mxu0 0
      %1308 = vmatprep.subr.bf16.mxu0 0
      %1309 = vmatpush1.bf16.xpose.msra.mxu0 %v1292
      %1310 = vmatprep.subr.bf16.mxu0 0
      %1311 = vmatpush2.bf16.xpose.msra.mxu0 0
      %1312 = vmatprep.subr.bf16.mxu0 0
      %1313 = vmatpush2.bf16.xpose.msra.mxu0 0
      %1314 = vmatprep.subr.bf16.mxu0 0
      %1315 = vmatpush2.bf16.xpose.msra.mxu0 0
      %1316 = vmatprep.subr.bf16.mxu0 0
      %1317 = vmatpush2.bf16.xpose.msra.mxu0 0
      %1318 = vmatprep.subr.bf16.mxu0 0
      %1319 = vmatpush2.bf16.xpose.msra.mxu0 0
      %1320 = vmatprep.subr.bf16.mxu0 0
      %1321 = vmatpush2.bf16.xpose.msra.mxu0 0
      %1322 = vmatprep.subr.bf16.mxu0 0
      %1323 = vmatpush2.bf16.xpose.msra.mxu0 0
      %1324 = vmatprep.subr.bf16.mxu0 0
      %1325 = vmatpush2.bf16.xpose.msra.mxu0 0
      %1326 = vmatprep.mubr.bf16.mxu0 0
      %1327 = vmatmul.mubr.bf16.gmra.mxu0 %v1289
      %v1328 = vpop.f32.mrf.mxu0
      %v1329 = vadd.f32 %v960, %v1328
      %v1330 = vpop.f32.mrf.mxu0
      %v1331 = vpop.f32.mrf.mxu0
      %v1332 = vpop.f32.mrf.mxu0
      %1333 = vdwg.mxu0
      %v1334 = vsel %vm1009, %v1329, -inf
      %1335 = vmax.xlane.f32.xlu0 %v1334
      %v1336 = vpop.xlane.xlu0 %1335
      %v1337 = vsub.f32 %v1329, %v1336
      %v1338 = vmul.f32 %v1337, 1.442695
      %v1339 = vpow.pop %v1338
      %v1340 = vsel %vm1009, %v1339, 0.0
      %1341 = vadd.xlane.f32.xlu0 %v1340
      %v1342 = vpop.xlane.xlu0 %1341
      %v1343 = vrcp.pop %v1342
      %v1344 = vmul.f32 %v1339, %v1343
      %v1345 = vpack.c.bf16 %v1344, %v1344
      %1346 = vrot.lane.b32.xlu0 %v954, 32
      %v1347 = vpop.permute.xlu0 %1346
      %v1350 = vsel %vm1009, %v1345, 0
      %1352 = vmatprep.subr.bf16.mxu0 0
      %1353 = vmatpush1.bf16.msra.mxu0 0
      %1354 = vmatprep.subr.bf16.mxu0 0
      %1355 = vmatpush1.bf16.msra.mxu0 0
      %1356 = vmatprep.subr.bf16.mxu0 0
      %1357 = vmatpush1.bf16.msra.mxu0 0
      %1358 = vmatprep.subr.bf16.mxu0 0
      %1359 = vmatpush1.bf16.msra.mxu0 0
      %1360 = vmatprep.subr.bf16.mxu0 0
      %1361 = vmatpush1.bf16.msra.mxu0 0
      %1362 = vmatprep.subr.bf16.mxu0 0
      %1363 = vmatpush1.bf16.msra.mxu0 0
      %1364 = vmatprep.subr.bf16.mxu0 0
      %1365 = vmatpush1.bf16.msra.mxu0 0
      %1366 = vmatprep.subr.bf16.mxu0 0
      %1367 = vmatpush1.bf16.msra.mxu0 %v1347
      %1368 = vmatprep.subr.bf16.mxu0 0
      %1369 = vmatpush2.bf16.msra.mxu0 0
      %1370 = vmatprep.subr.bf16.mxu0 0
      %1371 = vmatpush2.bf16.msra.mxu0 0
      %1372 = vmatprep.subr.bf16.mxu0 0
      %1373 = vmatpush2.bf16.msra.mxu0 0
      %1374 = vmatprep.subr.bf16.mxu0 0
      %1375 = vmatpush2.bf16.msra.mxu0 0
      %1376 = vmatprep.subr.bf16.mxu0 0
      %1377 = vmatpush2.bf16.msra.mxu0 0
      %1378 = vmatprep.subr.bf16.mxu0 0
      %1379 = vmatpush2.bf16.msra.mxu0 0
      %1380 = vmatprep.subr.bf16.mxu0 0
      %1381 = vmatpush2.bf16.msra.mxu0 0
      %1382 = vmatprep.subr.bf16.mxu0 0
      %1383 = vmatpush2.bf16.msra.mxu0 0
      %1384 = vmatprep.mubr.bf16.mxu0 0
      %1385 = vmatmul.mubr.bf16.gmra.mxu0 %v1350
      %v1386 = vpop.f32.mrf.mxu0
      %v1387 = vadd.f32 0.0, %v1386
      %v1388 = vpop.f32.mrf.mxu0
      %v1389 = vpop.f32.mrf.mxu0
      %v1390 = vpop.f32.mrf.mxu0
      %1391 = vdwg.mxu0
      %1393 = vrot.lane.b32.xlu0 %v1171, 32
      %v1394 = vpop.permute.xlu0 %1393
      %1397 = vrot.lane.b32.xlu0 %v1279, 64
      %v1398 = vpop.permute.xlu0 %1397
      %1401 = vrot.lane.b32.xlu0 %v1387, 96
      %v1402 = vpop.permute.xlu0 %1401
      %v1404 = vsel %vm962, %v1060, %v1394
      %vm1405 = vcmask 523264
      %v1406 = vsel %vm1405, %v1404, %v1398
      %vm1407 = vcmask 785408
      %v1408 = vsel %vm1407, %v1406, %v1402
      %v1409 = vpack.c.bf16 %v1408, %v1408
      %v1410 = vld [vmem:[%s11] sm:$0xf]
      %v1411 = vld [vmem:[%s11 + $0x4] sm:$0xf]
      %v1412 = vld [vmem:[%s11 + $0x8] sm:$0xf]
      %v1413 = vld [vmem:[%s11 + $0xc] sm:$0xf]
      %v1414 = vld [vmem:[%s11 + $0x10] sm:$0xf]
      %v1415 = vld [vmem:[%s11 + $0x14] sm:$0xf]
      %v1416 = vld [vmem:[%s11 + $0x18] sm:$0xf]
      %v1417 = vld [vmem:[%s11 + $0x1c] sm:$0xf]
      %v1418 = vld [vmem:[%s11 + $0x20] sm:$0xf]
      %v1419 = vld [vmem:[%s11 + $0x24] sm:$0xf]
      %v1420 = vld [vmem:[%s11 + $0x28] sm:$0xf]
      %v1421 = vld [vmem:[%s11 + $0x2c] sm:$0xf]
      %v1422 = vld [vmem:[%s11 + $0x30] sm:$0xf]
      %v1423 = vld [vmem:[%s11 + $0x34] sm:$0xf]
      %v1424 = vld [vmem:[%s11 + $0x38] sm:$0xf]
      %v1425 = vld [vmem:[%s11 + $0x3c] sm:$0xf]
      %v1426 = vld [vmem:[%s12] sm:$0x1]
      %v1428 = vlaneseq
      %v1429 = vshrl.u32 %v1428, 7
      %v1430 = vsub.s32 0, %v1429
      %v1431 = vrot.slane %v1426, %v1430
      %v1449 = vunpack.c.l.b16 %v1410
      %v1450 = vunpack.c.l.b16 %v1411
      %v1451 = vunpack.c.l.b16 %v1412
      %v1452 = vunpack.c.l.b16 %v1413
      %v1453 = vunpack.c.l.b16 %v1414
      %v1454 = vunpack.c.l.b16 %v1415
      %v1455 = vunpack.c.l.b16 %v1416
      %v1456 = vunpack.c.l.b16 %v1417
      %v1457 = vunpack.c.l.b16 %v1418
      %v1458 = vunpack.c.l.b16 %v1419
      %v1459 = vunpack.c.l.b16 %v1420
      %v1460 = vunpack.c.l.b16 %v1421
      %v1461 = vunpack.c.l.b16 %v1422
      %v1462 = vunpack.c.l.b16 %v1423
      %v1463 = vunpack.c.l.b16 %v1424
      %v1464 = vunpack.c.l.b16 %v1425
      %v1465 = vpack.c.b16 %v1450, %v1449
      %v1466 = vpack.c.b16 %v1452, %v1451
      %v1467 = vpack.c.b16 %v1454, %v1453
      %v1468 = vpack.c.b16 %v1456, %v1455
      %v1469 = vpack.c.b16 %v1458, %v1457
      %v1470 = vpack.c.b16 %v1460, %v1459
      %v1471 = vpack.c.b16 %v1462, %v1461
      %v1472 = vpack.c.b16 %v1464, %v1463
      %1481 = vmatprep.subr.bf16.mxu0 0
      %1482 = vmatpush1.bf16.msra.mxu0 %v1472
      %1483 = vmatprep.subr.bf16.mxu0 0
      %1484 = vmatpush1.bf16.msra.mxu0 %v1471
      %1485 = vmatprep.subr.bf16.mxu0 0
      %1486 = vmatpush1.bf16.msra.mxu0 %v1470
      %1487 = vmatprep.subr.bf16.mxu0 0
      %1488 = vmatpush1.bf16.msra.mxu0 %v1469
      %1489 = vmatprep.subr.bf16.mxu0 0
      %1490 = vmatpush1.bf16.msra.mxu0 %v1468
      %1491 = vmatprep.subr.bf16.mxu0 0
      %1492 = vmatpush1.bf16.msra.mxu0 %v1467
      %1493 = vmatprep.subr.bf16.mxu0 0
      %1494 = vmatpush1.bf16.msra.mxu0 %v1466
      %1495 = vmatprep.subr.bf16.mxu0 0
      %1496 = vmatpush1.bf16.msra.mxu0 %v1465
      %1497 = vmatprep.subr.bf16.mxu0 0
      %1498 = vmatpush2.bf16.msra.mxu0 0
      %1499 = vmatprep.subr.bf16.mxu0 0
      %1500 = vmatpush2.bf16.msra.mxu0 0
      %1501 = vmatprep.subr.bf16.mxu0 0
      %1502 = vmatpush2.bf16.msra.mxu0 0
      %1503 = vmatprep.subr.bf16.mxu0 0
      %1504 = vmatpush2.bf16.msra.mxu0 0
      %1505 = vmatprep.subr.bf16.mxu0 0
      %1506 = vmatpush2.bf16.msra.mxu0 0
      %1507 = vmatprep.subr.bf16.mxu0 0
      %1508 = vmatpush2.bf16.msra.mxu0 0
      %1509 = vmatprep.subr.bf16.mxu0 0
      %1510 = vmatpush2.bf16.msra.mxu0 0
      %1511 = vmatprep.subr.bf16.mxu0 0
      %1512 = vmatpush2.bf16.msra.mxu0 0
      %1513 = vmatprep.mubr.bf16.mxu0 0
      %1514 = vmatmul.mubr.bf16.gmra.mxu0 %v1409
      %v1515 = vpop.f32.mrf.mxu0
      %v1516 = vadd.f32 %v1431, %v1515
      %v1517 = vpop.f32.mrf.mxu0
      %v1518 = vpop.f32.mrf.mxu0
      %v1519 = vpop.f32.mrf.mxu0
      %1520 = vdwg.mxu0
      %v1521 = vadd.f32 %v604, %v1516
      %1522 = vadd.xlane.f32.xlu0 %v1521
      %v1523 = vpop.xlane.xlu0 %1522
      %v1524 = vrcp.pop 128.0
      %v1525 = vmul.f32 %v1523, %v1524
      %v1526 = vsub.f32 %v1521, %v1525
      %v1527 = vmul.f32 %v1526, %v1526
      %1528 = vadd.xlane.f32.xlu0 %v1527
      %v1529 = vpop.xlane.xlu0 %1528
      %v1530 = vmul.f32 %v1529, %v1524
      %v1531 = vadd.f32 %v1530, 1e-05
      %v1532 = vrsqrt.pop %v1531
      %v1533 = vmul.f32 %v1526, %v1532
      %v1534 = vld [vmem:[%s13] sm:$0x1]
      %v1536 = vlaneseq
      %v1537 = vshrl.u32 %v1536, 7
      %v1538 = vsub.s32 0, %v1537
      %v1539 = vrot.slane %v1534, %v1538
      %v1541 = vmul.f32 %v1533, %v1539
      %v1542 = vld [vmem:[%s14] sm:$0x1]
      %v1544 = vlaneseq
      %v1545 = vshrl.u32 %v1544, 7
      %v1546 = vsub.s32 0, %v1545
      %v1547 = vrot.slane %v1542, %v1546
      %v1549 = vadd.f32 %v1541, %v1547
      %1550 = vst [vmem:[%s602] sm:$0xff] %v1549
      %p1551 = scmp.lt.s32.totalorder %s30, 1
      %s1552 = scalar_select %p1551, %s30, 1
      %p1553 = scmp.lt.s32.totalorder %s31, 0
      %s1554 = scalar_select %p1553, %s31, 0
      %s1555 = sadd.s32 %s1554, %s1552
      %s1556 = smul.addr %s1555, 8
      %s1557 = scalar_lea.vmem %s15, %s1556
      // Predicated region
      $region81: #{transformer_clustering_forward.17} parent=79 // pred_check
        %p1558 = pneg %p402
      $region82: #{transformer_clustering_forward.17} parent=79 // pred_check_branch
        %1560 = sbr.rel (%p1558) target = $region84
      $region83: #{transformer_clustering_forward.17} parent=79 // pred_region
        _
      $region84: #{transformer_clustering_forward.17} parent=79 // pred_fallthru
        _
    $region80: #{transformer_clustering_forward.17} parent=5 // pred_fallthru
      _
    %p1561 = scmp.le.s32.totalorder 2, %s21
    // Predicated region
    $region85: #{transformer_clustering_forward.17} parent=5 // pred_check
      %p1562 = pneg %p1561
    $region86: #{transformer_clustering_forward.17} parent=5 // pred_check_branch
      %1564 = sbr.rel (%p1562) target = $region88
    $region87: #{transformer_clustering_forward.17} parent=5 // pred_region
      %s1565 = ssub.s32 %s21, 2
      // Predicated region
      $region89: #{transformer_clustering_forward.17} parent=87 // pred_check
        %p1566 = pneg %p408
      $region90: #{transformer_clustering_forward.17} parent=87 // pred_check_branch
        %1568 = sbr.rel (%p1566) target = $region92
      $region91: #{transformer_clustering_forward.17} parent=87 // pred_region
        %p1569 = scmp.lt.s32.totalorder %s32, 1
        %s1570 = scalar_select %p1569, %s32, 1
        %p1571 = scmp.lt.s32.totalorder %s33, 0
        %s1572 = scalar_select %p1571, %s33, 0
        %s1573 = sadd.s32 %s1572, %s1570
        %s1574 = smul.addr %s1573, 8
        %s1575 = scalar_lea.vmem %s15, %s1574
      $region92: #{transformer_clustering_forward.17} parent=87 // pred_fallthru
        _
    $region88: #{transformer_clustering_forward.17} parent=5 // pred_fallthru
      _
  $region6: #{transformer_clustering_forward.17} parent=0 // loop_footer
    %s25 = sadd.s32 1, %s21
  $region7: #{transformer_clustering_forward.17} parent=0 // loop_footer_branch
    %20 = sbr.rel target = $region3
  $region8: #{transformer_clustering_forward.17} parent=0 // loop_exit
    _

// kernel: transformer_clustering_forward.18
$region0: #{transformer_clustering_forward.18}
  #allocation0 [shape = 'u32[]', space=smem, size = 0x4, offset = 0x4, fixed_abs, tag = 'smem constant byte address 0x4 - core index']
  #allocation1 [shape = 'u32[144,128]{1,0:T(1,128)}', space=vmem, size = 0x12000, scoped, tag = 'internal scratch']
  %s0 = inlined_call_operand.vmem [shape: f32[16,128], index: 0, kind: input, shape index: {}]
  %s1 = inlined_call_operand.vmem [shape: bf16[128,256], index: 1, kind: input, shape index: {}]
  %s2 = inlined_call_operand.vmem [shape: f32[1,256], index: 2, kind: input, shape index: {}]
  %s3 = inlined_call_operand.vmem [shape: bf16[256,128], index: 3, kind: input, shape index: {}]
  %s4 = inlined_call_operand.vmem [shape: f32[1,128], index: 4, kind: input, shape index: {}]
  %s5 = inlined_call_operand.vmem [shape: f32[1,128], index: 5, kind: input, shape index: {}]
  %s6 = inlined_call_operand.vmem [shape: f32[1,128], index: 6, kind: input, shape index: {}]
  %s7 = inlined_call_operand.vmem [shape: f32[16,128], index: 7, kind: output, shape index: {}]
  %s8 = sld [smem:[#allocation0]]
  $region38: #{transformer_clustering_forward.18} parent=0
    _
  %s10 = ssub.s32 1, %s8
  %s11 = scalar_select 0, %s10, %s8
  // Predicated region
  $region2: #{transformer_clustering_forward.18} parent=0 // pred_check
    _
  $region3: #{transformer_clustering_forward.18} parent=0 // pred_check_branch
    %13 = sbr.rel (0) target = $region5
  $region4: #{transformer_clustering_forward.18} parent=0 // pred_region
    _
  $region5: #{transformer_clustering_forward.18} parent=0 // pred_fallthru
    _
  // Predicated region
  $region6: #{transformer_clustering_forward.18} parent=0 // pred_check
    _
  $region7: #{transformer_clustering_forward.18} parent=0 // pred_check_branch
    %15 = sbr.rel (0) target = $region9
  $region8: #{transformer_clustering_forward.18} parent=0 // pred_region
    _
  $region9: #{transformer_clustering_forward.18} parent=0 // pred_fallthru
    _
  // Predicated region
  $region10: #{transformer_clustering_forward.18} parent=0 // pred_check
    _
  $region11: #{transformer_clustering_forward.18} parent=0 // pred_check_branch
    %17 = sbr.rel (0) target = $region13
  $region12: #{transformer_clustering_forward.18} parent=0 // pred_region
    _
  $region13: #{transformer_clustering_forward.18} parent=0 // pred_fallthru
    _
  // Predicated region
  $region14: #{transformer_clustering_forward.18} parent=0 // pred_check
    _
  $region15: #{transformer_clustering_forward.18} parent=0 // pred_check_branch
    %19 = sbr.rel (0) target = $region17
  $region16: #{transformer_clustering_forward.18} parent=0 // pred_region
    _
  $region17: #{transformer_clustering_forward.18} parent=0 // pred_fallthru
    _
  // Predicated region
  $region18: #{transformer_clustering_forward.18} parent=0 // pred_check
    _
  $region19: #{transformer_clustering_forward.18} parent=0 // pred_check_branch
    %21 = sbr.rel (0) target = $region21
  $region20: #{transformer_clustering_forward.18} parent=0 // pred_region
    _
  $region21: #{transformer_clustering_forward.18} parent=0 // pred_fallthru
    _
  // Predicated region
  $region22: #{transformer_clustering_forward.18} parent=0 // pred_check
    _
  $region23: #{transformer_clustering_forward.18} parent=0 // pred_check_branch
    %23 = sbr.rel (0) target = $region25
  $region24: #{transformer_clustering_forward.18} parent=0 // pred_region
    _
  $region25: #{transformer_clustering_forward.18} parent=0 // pred_fallthru
    _
  // Predicated region
  $region26: #{transformer_clustering_forward.18} parent=0 // pred_check
    _
  $region27: #{transformer_clustering_forward.18} parent=0 // pred_check_branch
    %25 = sbr.rel (0) target = $region29
  $region28: #{transformer_clustering_forward.18} parent=0 // pred_region
    _
  $region29: #{transformer_clustering_forward.18} parent=0 // pred_fallthru
    _
  %v27 = vld [vmem:[%s0] sm:$0xff]
  %v28 = vld [vmem:[%s0 + $0x8] sm:$0xff]
  %v29 = vpack.c.bf16 %v28, %v27
  %v30 = vld [vmem:[%s1] sm:$0xff]
  %v31 = vld [vmem:[%s1 + $0x8] sm:$0xff]
  %v32 = vld [vmem:[%s1 + $0x10] sm:$0xff]
  %v33 = vld [vmem:[%s1 + $0x18] sm:$0xff]
  %v34 = vld [vmem:[%s1 + $0x20] sm:$0xff]
  %v35 = vld [vmem:[%s1 + $0x28] sm:$0xff]
  %v36 = vld [vmem:[%s1 + $0x30] sm:$0xff]
  %v37 = vld [vmem:[%s1 + $0x38] sm:$0xff]
  %v38 = vld [vmem:[%s1 + $0x40] sm:$0xff]
  %v39 = vld [vmem:[%s1 + $0x48] sm:$0xff]
  %v40 = vld [vmem:[%s1 + $0x50] sm:$0xff]
  %v41 = vld [vmem:[%s1 + $0x58] sm:$0xff]
  %v42 = vld [vmem:[%s1 + $0x60] sm:$0xff]
  %v43 = vld [vmem:[%s1 + $0x68] sm:$0xff]
  %v44 = vld [vmem:[%s1 + $0x70] sm:$0xff]
  %v45 = vld [vmem:[%s1 + $0x78] sm:$0xff]
  %v46 = vld [vmem:[%s2] sm:$0x3]
  %v48 = vlaneseq
  %v49 = vshrl.u32 %v48, 7
  %v50 = vsub.s32 0, %v49
  %v51 = vrot.slane %v46, %v50
  %v52 = vlaneseq
  %v53 = vshrl.u32 %v52, 7
  %v54 = vsub.s32 1, %v53
  %v55 = vrot.slane %v46, %v54
  %v74 = vunpack.c.l.b16 %v30
  %v75 = vunpack.c.h.b16 %v30
  %v76 = vunpack.c.l.b16 %v31
  %v77 = vunpack.c.h.b16 %v31
  %v78 = vunpack.c.l.b16 %v32
  %v79 = vunpack.c.h.b16 %v32
  %v80 = vunpack.c.l.b16 %v33
  %v81 = vunpack.c.h.b16 %v33
  %v82 = vunpack.c.l.b16 %v34
  %v83 = vunpack.c.h.b16 %v34
  %v84 = vunpack.c.l.b16 %v35
  %v85 = vunpack.c.h.b16 %v35
  %v86 = vunpack.c.l.b16 %v36
  %v87 = vunpack.c.h.b16 %v36
  %v88 = vunpack.c.l.b16 %v37
  %v89 = vunpack.c.h.b16 %v37
  %v90 = vunpack.c.l.b16 %v38
  %v91 = vunpack.c.h.b16 %v38
  %v92 = vunpack.c.l.b16 %v39
  %v93 = vunpack.c.h.b16 %v39
  %v94 = vunpack.c.l.b16 %v40
  %v95 = vunpack.c.h.b16 %v40
  %v96 = vunpack.c.l.b16 %v41
  %v97 = vunpack.c.h.b16 %v41
  %v98 = vunpack.c.l.b16 %v42
  %v99 = vunpack.c.h.b16 %v42
  %v100 = vunpack.c.l.b16 %v43
  %v101 = vunpack.c.h.b16 %v43
  %v102 = vunpack.c.l.b16 %v44
  %v103 = vunpack.c.h.b16 %v44
  %v104 = vunpack.c.l.b16 %v45
  %v105 = vunpack.c.h.b16 %v45
  %v106 = vpack.c.b16 %v76, %v74
  %v107 = vpack.c.b16 %v77, %v75
  %v108 = vpack.c.b16 %v80, %v78
  %v109 = vpack.c.b16 %v81, %v79
  %v110 = vpack.c.b16 %v84, %v82
  %v111 = vpack.c.b16 %v85, %v83
  %v112 = vpack.c.b16 %v88, %v86
  %v113 = vpack.c.b16 %v89, %v87
  %v114 = vpack.c.b16 %v92, %v90
  %v115 = vpack.c.b16 %v93, %v91
  %v116 = vpack.c.b16 %v96, %v94
  %v117 = vpack.c.b16 %v97, %v95
  %v118 = vpack.c.b16 %v100, %v98
  %v119 = vpack.c.b16 %v101, %v99
  %v120 = vpack.c.b16 %v104, %v102
  %v121 = vpack.c.b16 %v105, %v103
  %138 = vmatprep.subr.bf16.mxu0 %v121
  %139 = vmatpush1.bf16.msra.mxu0 %v120
  %140 = vmatprep.subr.bf16.mxu0 %v119
  %141 = vmatpush1.bf16.msra.mxu0 %v118
  %142 = vmatprep.subr.bf16.mxu0 %v117
  %143 = vmatpush1.bf16.msra.mxu0 %v116
  %144 = vmatprep.subr.bf16.mxu0 %v115
  %145 = vmatpush1.bf16.msra.mxu0 %v114
  %146 = vmatprep.subr.bf16.mxu0 %v113
  %147 = vmatpush1.bf16.msra.mxu0 %v112
  %148 = vmatprep.subr.bf16.mxu0 %v111
  %149 = vmatpush1.bf16.msra.mxu0 %v110
  %150 = vmatprep.subr.bf16.mxu0 %v109
  %151 = vmatpush1.bf16.msra.mxu0 %v108
  %152 = vmatprep.subr.bf16.mxu0 %v107
  %153 = vmatpush1.bf16.msra.mxu0 %v106
  %154 = vmatprep.subr.bf16.mxu0 0
  %155 = vmatpush2.bf16.msra.mxu0 0
  %156 = vmatprep.subr.bf16.mxu0 0
  %157 = vmatpush2.bf16.msra.mxu0 0
  %158 = vmatprep.subr.bf16.mxu0 0
  %159 = vmatpush2.bf16.msra.mxu0 0
  %160 = vmatprep.subr.bf16.mxu0 0
  %161 = vmatpush2.bf16.msra.mxu0 0
  %162 = vmatprep.subr.bf16.mxu0 0
  %163 = vmatpush2.bf16.msra.mxu0 0
  %164 = vmatprep.subr.bf16.mxu0 0
  %165 = vmatpush2.bf16.msra.mxu0 0
  %166 = vmatprep.subr.bf16.mxu0 0
  %167 = vmatpush2.bf16.msra.mxu0 0
  %168 = vmatprep.subr.bf16.mxu0 0
  %169 = vmatpush2.bf16.msra.mxu0 0
  %170 = vmatprep.mubr.bf16.mxu0 0
  %171 = vmatmul.mubr.bf16.gmra.mxu0 %v29
  %v172 = vpop.f32.mrf.mxu0
  %v173 = vadd.f32 %v51, %v172
  %v174 = vpop.f32.mrf.mxu0
  %v175 = vadd.f32 %v55, %v174
  %v176 = vpop.f32.mrf.mxu0
  %v177 = vadd.f32 %v51, %v176
  %v178 = vpop.f32.mrf.mxu0
  %v179 = vadd.f32 %v55, %v178
  %180 = vdwg.mxu0
  %v181 = vmax.f32 %v173, 0.0
  %v182 = vmax.f32 %v175, 0.0
  %v183 = vmax.f32 %v177, 0.0
  %v184 = vmax.f32 %v179, 0.0
  %v185 = vpack.c.bf16 %v183, %v181
  %v186 = vpack.c.bf16 %v184, %v182
  %v187 = vld [vmem:[%s3] sm:$0xf]
  %v188 = vld [vmem:[%s3 + $0x4] sm:$0xf]
  %v189 = vld [vmem:[%s3 + $0x8] sm:$0xf]
  %v190 = vld [vmem:[%s3 + $0xc] sm:$0xf]
  %v191 = vld [vmem:[%s3 + $0x10] sm:$0xf]
  %v192 = vld [vmem:[%s3 + $0x14] sm:$0xf]
  %v193 = vld [vmem:[%s3 + $0x18] sm:$0xf]
  %v194 = vld [vmem:[%s3 + $0x1c] sm:$0xf]
  %v195 = vld [vmem:[%s3 + $0x20] sm:$0xf]
  %v196 = vld [vmem:[%s3 + $0x24] sm:$0xf]
  %v197 = vld [vmem:[%s3 + $0x28] sm:$0xf]
  %v198 = vld [vmem:[%s3 + $0x2c] sm:$0xf]
  %v199 = vld [vmem:[%s3 + $0x30] sm:$0xf]
  %v200 = vld [vmem:[%s3 + $0x34] sm:$0xf]
  %v201 = vld [vmem:[%s3 + $0x38] sm:$0xf]
  %v202 = vld [vmem:[%s3 + $0x3c] sm:$0xf]
  %v203 = vld [vmem:[%s3 + $0x40] sm:$0xf]
  %v204 = vld [vmem:[%s3 + $0x44] sm:$0xf]
  %v205 = vld [vmem:[%s3 + $0x48] sm:$0xf]
  %v206 = vld [vmem:[%s3 + $0x4c] sm:$0xf]
  %v207 = vld [vmem:[%s3 + $0x50] sm:$0xf]
  %v208 = vld [vmem:[%s3 + $0x54] sm:$0xf]
  %v209 = vld [vmem:[%s3 + $0x58] sm:$0xf]
  %v210 = vld [vmem:[%s3 + $0x5c] sm:$0xf]
  %v211 = vld [vmem:[%s3 + $0x60] sm:$0xf]
  %v212 = vld [vmem:[%s3 + $0x64] sm:$0xf]
  %v213 = vld [vmem:[%s3 + $0x68] sm:$0xf]
  %v214 = vld [vmem:[%s3 + $0x6c] sm:$0xf]
  %v215 = vld [vmem:[%s3 + $0x70] sm:$0xf]
  %v216 = vld [vmem:[%s3 + $0x74] sm:$0xf]
  %v217 = vld [vmem:[%s3 + $0x78] sm:$0xf]
  %v218 = vld [vmem:[%s3 + $0x7c] sm:$0xf]
  %v251 = vunpack.c.l.b16 %v187
  %v252 = vunpack.c.l.b16 %v188
  %v253 = vunpack.c.l.b16 %v189
  %v254 = vunpack.c.l.b16 %v190
  %v255 = vunpack.c.l.b16 %v191
  %v256 = vunpack.c.l.b16 %v192
  %v257 = vunpack.c.l.b16 %v193
  %v258 = vunpack.c.l.b16 %v194
  %v259 = vunpack.c.l.b16 %v195
  %v260 = vunpack.c.l.b16 %v196
  %v261 = vunpack.c.l.b16 %v197
  %v262 = vunpack.c.l.b16 %v198
  %v263 = vunpack.c.l.b16 %v199
  %v264 = vunpack.c.l.b16 %v200
  %v265 = vunpack.c.l.b16 %v201
  %v266 = vunpack.c.l.b16 %v202
  %v267 = vunpack.c.l.b16 %v203
  %v268 = vunpack.c.l.b16 %v204
  %v269 = vunpack.c.l.b16 %v205
  %v270 = vunpack.c.l.b16 %v206
  %v271 = vunpack.c.l.b16 %v207
  %v272 = vunpack.c.l.b16 %v208
  %v273 = vunpack.c.l.b16 %v209
  %v274 = vunpack.c.l.b16 %v210
  %v275 = vunpack.c.l.b16 %v211
  %v276 = vunpack.c.l.b16 %v212
  %v277 = vunpack.c.l.b16 %v213
  %v278 = vunpack.c.l.b16 %v214
  %v279 = vunpack.c.l.b16 %v215
  %v280 = vunpack.c.l.b16 %v216
  %v281 = vunpack.c.l.b16 %v217
  %v282 = vunpack.c.l.b16 %v218
  %v283 = vpack.c.b16 %v252, %v251
  %v284 = vpack.c.b16 %v254, %v253
  %v285 = vpack.c.b16 %v256, %v255
  %v286 = vpack.c.b16 %v258, %v257
  %v287 = vpack.c.b16 %v260, %v259
  %v288 = vpack.c.b16 %v262, %v261
  %v289 = vpack.c.b16 %v264, %v263
  %v290 = vpack.c.b16 %v266, %v265
  %v291 = vpack.c.b16 %v268, %v267
  %v292 = vpack.c.b16 %v270, %v269
  %v293 = vpack.c.b16 %v272, %v271
  %v294 = vpack.c.b16 %v274, %v273
  %v295 = vpack.c.b16 %v276, %v275
  %v296 = vpack.c.b16 %v278, %v277
  %v297 = vpack.c.b16 %v280, %v279
  %v298 = vpack.c.b16 %v282, %v281
  %315 = vmatprep.subr.bf16.mxu0 0
  %316 = vmatpush1.bf16.msra.mxu0 %v290
  %317 = vmatprep.subr.bf16.mxu0 0
  %318 = vmatpush1.bf16.msra.mxu0 %v289
  %319 = vmatprep.subr.bf16.mxu0 0
  %320 = vmatpush1.bf16.msra.mxu0 %v288
  %321 = vmatprep.subr.bf16.mxu0 0
  %322 = vmatpush1.bf16.msra.mxu0 %v287
  %323 = vmatprep.subr.bf16.mxu0 0
  %324 = vmatpush1.bf16.msra.mxu0 %v286
  %325 = vmatprep.subr.bf16.mxu0 0
  %326 = vmatpush1.bf16.msra.mxu0 %v285
  %327 = vmatprep.subr.bf16.mxu0 0
  %328 = vmatpush1.bf16.msra.mxu0 %v284
  %329 = vmatprep.subr.bf16.mxu0 0
  %330 = vmatpush1.bf16.msra.mxu0 %v283
  %331 = vmatprep.subr.bf16.mxu0 0
  %332 = vmatpush2.bf16.msra.mxu0 %v298
  %333 = vmatprep.subr.bf16.mxu0 0
  %334 = vmatpush2.bf16.msra.mxu0 %v297
  %335 = vmatprep.subr.bf16.mxu0 0
  %336 = vmatpush2.bf16.msra.mxu0 %v296
  %337 = vmatprep.subr.bf16.mxu0 0
  %338 = vmatpush2.bf16.msra.mxu0 %v295
  %339 = vmatprep.subr.bf16.mxu0 0
  %340 = vmatpush2.bf16.msra.mxu0 %v294
  %341 = vmatprep.subr.bf16.mxu0 0
  %342 = vmatpush2.bf16.msra.mxu0 %v293
  %343 = vmatprep.subr.bf16.mxu0 0
  %344 = vmatpush2.bf16.msra.mxu0 %v292
  %345 = vmatprep.subr.bf16.mxu0 0
  %346 = vmatpush2.bf16.msra.mxu0 %v291
  %347 = vmatprep.mubr.bf16.mxu0 %v186
  %348 = vmatmul.mubr.bf16.gmra.mxu0 %v185
  %v349 = vpop.f32.mrf.mxu0
  %v350 = vadd.f32 0.0, %v349
  %v351 = vpop.f32.mrf.mxu0
  %v352 = vpop.f32.mrf.mxu0
  %v353 = vadd.f32 0.0, %v352
  %v354 = vpop.f32.mrf.mxu0
  %355 = vdwg.mxu0
  %v356 = vadd.f32 %v27, %v350
  %v357 = vadd.f32 %v28, %v353
  %v358 = vld [vmem:[%s4] sm:$0x1]
  %v360 = vlaneseq
  %v361 = vshrl.u32 %v360, 7
  %v362 = vsub.s32 0, %v361
  %v363 = vrot.slane %v358, %v362
  %v365 = vadd.f32 %v356, %v363
  %v366 = vadd.f32 %v357, %v363
  %367 = vadd.xlane.f32.xlu0 %v365
  %v368 = vpop.xlane.xlu0 %367
  %369 = vadd.xlane.f32.xlu0 %v366
  %v370 = vpop.xlane.xlu0 %369
  %v371 = vrcp.pop 128.0
  %v372 = vmul.f32 %v368, %v371
  %v373 = vmul.f32 %v370, %v371
  %v374 = vsub.f32 %v365, %v372
  %v375 = vsub.f32 %v366, %v373
  %v376 = vmul.f32 %v374, %v374
  %v377 = vmul.f32 %v375, %v375
  %378 = vadd.xlane.f32.xlu0 %v376
  %v379 = vpop.xlane.xlu0 %378
  %380 = vadd.xlane.f32.xlu0 %v377
  %v381 = vpop.xlane.xlu0 %380
  %v382 = vmul.f32 %v379, %v371
  %v383 = vmul.f32 %v381, %v371
  %v384 = vadd.f32 %v382, 1e-05
  %v385 = vadd.f32 %v383, 1e-05
  %v386 = vrsqrt.pop %v384
  %v387 = vrsqrt.pop %v385
  %v388 = vmul.f32 %v374, %v386
  %v389 = vmul.f32 %v375, %v387
  %v390 = vld [vmem:[%s5] sm:$0x1]
  %v392 = vlaneseq
  %v393 = vshrl.u32 %v392, 7
  %v394 = vsub.s32 0, %v393
  %v395 = vrot.slane %v390, %v394
  %v397 = vmul.f32 %v388, %v395
  %v398 = vmul.f32 %v389, %v395
  %v399 = vld [vmem:[%s6] sm:$0x1]
  %v401 = vlaneseq
  %v402 = vshrl.u32 %v401, 7
  %v403 = vsub.s32 0, %v402
  %v404 = vrot.slane %v399, %v403
  %v406 = vadd.f32 %v397, %v404
  %v407 = vadd.f32 %v398, %v404
  %408 = vst [vmem:[%s7] sm:$0xff] %v406
  %409 = vst [vmem:[%s7 + $0x8] sm:$0xff] %v407
  // Predicated region
  $region30: #{transformer_clustering_forward.18} parent=0 // pred_check
    _
  $region31: #{transformer_clustering_forward.18} parent=0 // pred_check_branch
    %411 = sbr.rel (0) target = $region33
  $region32: #{transformer_clustering_forward.18} parent=0 // pred_region
    _
  $region33: #{transformer_clustering_forward.18} parent=0 // pred_fallthru
    _
  // Predicated region
  $region34: #{transformer_clustering_forward.18} parent=0 // pred_check
    _
  $region35: #{transformer_clustering_forward.18} parent=0 // pred_check_branch
    %413 = sbr.rel (0) target = $region37
  $region36: #{transformer_clustering_forward.18} parent=0 // pred_region
    _
  $region37: #{transformer_clustering_forward.18} parent=0 // pred_fallthru
    _

// kernel: transformer_clustering_forward.23
$region0: #{transformer_clustering_forward.23}
  #allocation0 [shape = 'u32[]', space=smem, size = 0x4, offset = 0x4, fixed_abs, tag = 'smem constant byte address 0x4 - core index']
  #allocation1 [shape = 'u32[144,128]{1,0:T(1,128)}', space=vmem, size = 0x12000, scoped, tag = 'internal scratch']
  %s0 = inlined_call_operand.vmem [shape: f32[2,8,128], index: 0, kind: input, shape index: {}]
  %s1 = inlined_call_operand.vmem [shape: f32[2,16,128], index: 1, kind: input, shape index: {}]
  %s2 = inlined_call_operand.vmem [shape: f32[2,8,16], index: 2, kind: output, shape index: {0}]
  %s3 = inlined_call_operand.vmem [shape: f32[2,8,1], index: 3, kind: output, shape index: {1}]
  %4 = xla_tuple %s2, %s3
  %s5 = sld [smem:[#allocation0]]
  $region49: #{transformer_clustering_forward.23} parent=0
    _
  %s7 = ssub.s32 1, %s5
  %s8 = scalar_select 0, %s7, %s5
  loop: start=0, step=1, limit=4
  $region2: #{transformer_clustering_forward.23} parent=0 // loop_pre_header
    _
  $region3: #{transformer_clustering_forward.23} parent=0 // loop_header
    %s10 = sphi 0, %s14
    %p11 = scmp.ge.s32.totalorder %s10, 4
    %s20 = sphi 0, %s22
    %s23 = sphi 0, %s20
    %s24 = sphi 0, %s23
    %s40 = sphi 0, %s24
    %s46 = sphi 0, %s48
    %s49 = sphi 0, %s46
    %s50 = sphi 0, %s49
    %s66 = sphi 0, %s50
    %s72 = sphi 0, %s74
    %s75 = sphi 0, %s72
    %s76 = sphi 0, %s75
    %s92 = sphi 0, %s76
    %s98 = sphi 0, %s100
    %s101 = sphi 0, %s98
    %s102 = sphi 0, %s101
    %s118 = sphi 0, %s102
  $region4: #{transformer_clustering_forward.23} parent=0 // loop_header_branch
    %13 = sbr.rel (%p11) target = $region8
  $region5: #{transformer_clustering_forward.23} parent=0 // loop_body
    %s15 = ssub.s32 %s10, 1
    %s16 = ssub.s32 %s10, 2
    %s17 = sadd.s32 %s10, 1
    %s18 = ssub.s32 %s10, %s17
    %p19 = scmp.eq.s32.totalorder %s18, 0
    %s21 = sadd.s32 %s20, 1
    %s22 = scalar_select %p19, %s20, %s21
    %p25 = pneg %p19
    %p26 = scmp.eq.s32.totalorder %s10, 1
    %p27 = por %p25, %p26
    %p28 = scmp.ne.s32.totalorder %s20, %s23
    %p29 = scmp.eq.s32.totalorder %s10, 0
    %p30 = por %p28, %p29
    %p31 = scmp.ne.s32.totalorder %s20, %s23
    %p32 = scmp.eq.s32.totalorder %s15, 1
    %p33 = por %p31, %p32
    %p34 = scmp.ne.s32.totalorder %s23, %s24
    %p35 = scmp.eq.s32.totalorder %s15, 0
    %p36 = por %p34, %p35
    %p37 = scmp.ne.s32.totalorder %s23, %s24
    %p38 = scmp.eq.s32.totalorder %s16, 1
    %p39 = por %p37, %p38
    %p41 = scmp.ne.s32.totalorder %s24, %s40
    %p42 = scmp.eq.s32.totalorder %s16, 0
    %p43 = por %p41, %p42
    %s44 = ssub.s32 %s10, %s17
    %p45 = scmp.eq.s32.totalorder %s44, 0
    %s47 = sadd.s32 %s46, 1
    %s48 = scalar_select %p45, %s46, %s47
    %p51 = pneg %p45
    %p52 = scmp.eq.s32.totalorder %s10, 1
    %p53 = por %p51, %p52
    %p54 = scmp.ne.s32.totalorder %s46, %s49
    %p55 = scmp.eq.s32.totalorder %s10, 0
    %p56 = por %p54, %p55
    %p57 = scmp.ne.s32.totalorder %s46, %s49
    %p58 = scmp.eq.s32.totalorder %s15, 1
    %p59 = por %p57, %p58
    %p60 = scmp.ne.s32.totalorder %s49, %s50
    %p61 = scmp.eq.s32.totalorder %s15, 0
    %p62 = por %p60, %p61
    %p63 = scmp.ne.s32.totalorder %s49, %s50
    %p64 = scmp.eq.s32.totalorder %s16, 1
    %p65 = por %p63, %p64
    %p67 = scmp.ne.s32.totalorder %s50, %s66
    %p68 = scmp.eq.s32.totalorder %s16, 0
    %p69 = por %p67, %p68
    %s70 = ssub.s32 %s10, %s17
    %p71 = scmp.eq.s32.totalorder %s70, 0
    %s73 = sadd.s32 %s72, 1
    %s74 = scalar_select %p71, %s72, %s73
    %p77 = pneg %p71
    %p78 = scmp.eq.s32.totalorder %s10, 1
    %p79 = por %p77, %p78
    %p80 = scmp.ne.s32.totalorder %s72, %s75
    %p81 = scmp.eq.s32.totalorder %s10, 0
    %p82 = por %p80, %p81
    %p83 = scmp.ne.s32.totalorder %s72, %s75
    %p84 = scmp.eq.s32.totalorder %s15, 1
    %p85 = por %p83, %p84
    %p86 = scmp.ne.s32.totalorder %s75, %s76
    %p87 = scmp.eq.s32.totalorder %s15, 0
    %p88 = por %p86, %p87
    %p89 = scmp.ne.s32.totalorder %s75, %s76
    %p90 = scmp.eq.s32.totalorder %s16, 1
    %p91 = por %p89, %p90
    %p93 = scmp.ne.s32.totalorder %s76, %s92
    %p94 = scmp.eq.s32.totalorder %s16, 0
    %p95 = por %p93, %p94
    %s96 = ssub.s32 %s10, %s17
    %p97 = scmp.eq.s32.totalorder %s96, 0
    %s99 = sadd.s32 %s98, 1
    %s100 = scalar_select %p97, %s98, %s99
    %p103 = pneg %p97
    %p104 = scmp.eq.s32.totalorder %s10, 1
    %p105 = por %p103, %p104
    %p106 = scmp.ne.s32.totalorder %s98, %s101
    %p107 = scmp.eq.s32.totalorder %s10, 0
    %p108 = por %p106, %p107
    %p109 = scmp.ne.s32.totalorder %s98, %s101
    %p110 = scmp.eq.s32.totalorder %s15, 1
    %p111 = por %p109, %p110
    %p112 = scmp.ne.s32.totalorder %s101, %s102
    %p113 = scmp.eq.s32.totalorder %s15, 0
    %p114 = por %p112, %p113
    %p115 = scmp.ne.s32.totalorder %s101, %s102
    %p116 = scmp.eq.s32.totalorder %s16, 1
    %p117 = por %p115, %p116
    %p119 = scmp.ne.s32.totalorder %s102, %s118
    %p120 = scmp.eq.s32.totalorder %s16, 0
    %p121 = por %p119, %p120
    %p122 = scmp.le.s32.totalorder 1, %s10
    %p123 = scmp.lt.s32.totalorder %s10, 3
    %p124 = pnand %p122, %p123
    %p125 = pneg %p124
    // Predicated region
    $region9: #{transformer_clustering_forward.23} parent=5 // pred_check
      _
    $region10: #{transformer_clustering_forward.23} parent=5 // pred_check_branch
      %127 = sbr.rel (%p124) target = $region12
    $region11: #{transformer_clustering_forward.23} parent=5 // pred_region
      %s128 = ssub.s32 %s10, 1
    $region12: #{transformer_clustering_forward.23} parent=5 // pred_fallthru
      _
    %p129 = scmp.lt.s32.totalorder %s10, 2
    // Predicated region
    $region13: #{transformer_clustering_forward.23} parent=5 // pred_check
      %p130 = pneg %p129
    $region14: #{transformer_clustering_forward.23} parent=5 // pred_check_branch
      %132 = sbr.rel (%p130) target = $region16
    $region15: #{transformer_clustering_forward.23} parent=5 // pred_region
      // Predicated region
      $region17: #{transformer_clustering_forward.23} parent=15 // pred_check
        %p133 = pneg %p30
      $region18: #{transformer_clustering_forward.23} parent=15 // pred_check_branch
        %135 = sbr.rel (%p133) target = $region20
      $region19: #{transformer_clustering_forward.23} parent=15 // pred_region
        %p136 = scmp.lt.s32.totalorder %s10, 1
        %s137 = scalar_select %p136, %s10, 1
        %s138 = smul.addr %s137, 8
        %s139 = scalar_lea.vmem %s0, %s138
      $region20: #{transformer_clustering_forward.23} parent=15 // pred_fallthru
        _
      // Predicated region
      $region21: #{transformer_clustering_forward.23} parent=15 // pred_check
        %p140 = pneg %p56
      $region22: #{transformer_clustering_forward.23} parent=15 // pred_check_branch
        %142 = sbr.rel (%p140) target = $region24
      $region23: #{transformer_clustering_forward.23} parent=15 // pred_region
        %p143 = scmp.lt.s32.totalorder %s10, 1
        %s144 = scalar_select %p143, %s10, 1
        %s145 = smul.addr %s144, 2
        %s146 = smul.addr %s145, 8
        %s147 = scalar_lea.vmem %s1, %s146
      $region24: #{transformer_clustering_forward.23} parent=15 // pred_fallthru
        _
    $region16: #{transformer_clustering_forward.23} parent=5 // pred_fallthru
      _
    %p148 = scmp.le.s32.totalorder 1, %s10
    %p149 = scmp.lt.s32.totalorder %s10, 3
    %p150 = pnand %p148, %p149
    %p151 = pneg %p150
    // Predicated region
    $region25: #{transformer_clustering_forward.23} parent=5 // pred_check
      _
    $region26: #{transformer_clustering_forward.23} parent=5 // pred_check_branch
      %153 = sbr.rel (%p150) target = $region28
    $region27: #{transformer_clustering_forward.23} parent=5 // pred_region
      %s154 = ssub.s32 %s10, 1
      %p155 = scmp.lt.s32.totalorder %s15, 1
      %s156 = scalar_select %p155, %s15, 1
      %s157 = smul.addr %s156, 8
      %s158 = scalar_lea.vmem %s0, %s157
      %p159 = pneg %p36
      %p160 = pneg %p33
      %p161 = scmp.lt.s32.totalorder %s15, 1
      %s162 = scalar_select %p161, %s15, 1
      %s163 = smul.addr %s162, 2
      %s164 = smul.addr %s163, 8
      %s165 = scalar_lea.vmem %s1, %s164
      %p166 = pneg %p62
      %p167 = pneg %p59
      %p168 = pneg %p88
      %p169 = pneg %p85
      %p170 = scmp.lt.s32.totalorder %s15, 1
      %s171 = scalar_select %p170, %s15, 1
      %s172 = smul.addr %s171, 8
      %s173 = scalar_lea.vmem %s2, %s172
      %p174 = pneg %p114
      %p175 = pneg %p111
      %p176 = scmp.lt.s32.totalorder %s15, 1
      %s177 = scalar_select %p176, %s15, 1
      %s178 = smul.addr %s177, 8
      %s179 = scalar_lea.vmem %s3, %s178
      %p180 = scmp.lt.s32.totalorder %s15, 1
      %s181 = scalar_select %p180, %s15, 1
      %s182 = smul.addr %s181, 8
      %s183 = scalar_lea.vmem %s0, %s182
      %p184 = scmp.lt.s32.totalorder %s15, 1
      %s185 = scalar_select %p184, %s15, 1
      %s186 = smul.addr %s185, 2
      %s187 = smul.addr %s186, 8
      %s188 = scalar_lea.vmem %s1, %s187
      %p189 = scmp.lt.s32.totalorder %s15, 1
      %s190 = scalar_select %p189, %s15, 1
      %s191 = smul.addr %s190, 8
      %s192 = scalar_lea.vmem %s2, %s191
      %p193 = scmp.lt.s32.totalorder %s15, 1
      %s194 = scalar_select %p193, %s15, 1
      %s195 = smul.addr %s194, 8
      %s196 = scalar_lea.vmem %s3, %s195
      %v198 = vld [vmem:[%s183] sm:$0xff]
      %v199 = vpack.c.bf16 %v198, %v198
      %v200 = vld [vmem:[%s188] sm:$0xff]
      %v201 = vld [vmem:[%s188 + $0x8] sm:$0xff]
      %v202 = vpack.c.bf16 %v201, %v200
      %203 = vmatprep.subr.bf16.mxu0 0
      %204 = vmatpush1.bf16.xpose.msra.mxu0 0
      %205 = vmatprep.subr.bf16.mxu0 0
      %206 = vmatpush1.bf16.xpose.msra.mxu0 0
      %207 = vmatprep.subr.bf16.mxu0 0
      %208 = vmatpush1.bf16.xpose.msra.mxu0 0
      %209 = vmatprep.subr.bf16.mxu0 0
      %210 = vmatpush1.bf16.xpose.msra.mxu0 0
      %211 = vmatprep.subr.bf16.mxu0 0
      %212 = vmatpush1.bf16.xpose.msra.mxu0 0
      %213 = vmatprep.subr.bf16.mxu0 0
      %214 = vmatpush1.bf16.xpose.msra.mxu0 0
      %215 = vmatprep.subr.bf16.mxu0 0
      %216 = vmatpush1.bf16.xpose.msra.mxu0 0
      %217 = vmatprep.subr.bf16.mxu0 0
      %218 = vmatpush1.bf16.xpose.msra.mxu0 %v202
      %219 = vmatprep.subr.bf16.mxu0 0
      %220 = vmatpush2.bf16.xpose.msra.mxu0 0
      %221 = vmatprep.subr.bf16.mxu0 0
      %222 = vmatpush2.bf16.xpose.msra.mxu0 0
      %223 = vmatprep.subr.bf16.mxu0 0
      %224 = vmatpush2.bf16.xpose.msra.mxu0 0
      %225 = vmatprep.subr.bf16.mxu0 0
      %226 = vmatpush2.bf16.xpose.msra.mxu0 0
      %227 = vmatprep.subr.bf16.mxu0 0
      %228 = vmatpush2.bf16.xpose.msra.mxu0 0
      %229 = vmatprep.subr.bf16.mxu0 0
      %230 = vmatpush2.bf16.xpose.msra.mxu0 0
      %231 = vmatprep.subr.bf16.mxu0 0
      %232 = vmatpush2.bf16.xpose.msra.mxu0 0
      %233 = vmatprep.subr.bf16.mxu0 0
      %234 = vmatpush2.bf16.xpose.msra.mxu0 0
      %235 = vmatprep.mubr.bf16.mxu0 0
      %236 = vmatmul.mubr.bf16.gmra.mxu0 %v199
      %v237 = vpop.f32.mrf.mxu0
      %v238 = vadd.f32 0.0, %v237
      %v239 = vpop.f32.mrf.mxu0
      %v240 = vpop.f32.mrf.mxu0
      %v241 = vpop.f32.mrf.mxu0
      %242 = vdwg.mxu0
      %v243 = vmul.f32 %v238, 0.088388346
      %vm244 = vcmask 130048
      %245 = vst.msk [vmem:[%s192] sm:$0xff] %vm244, %v243
      %v246 = vsel %vm244, %v243, -inf
      %247 = vmax.xlane.f32.xlu0 %v246
      %v248 = vpop.xlane.xlu0 %247
      %vm249 = vcmask 7168
      %250 = vst.msk [vmem:[%s196] sm:$0xff] %vm249, %v248
      %p251 = scmp.lt.s32.totalorder %s15, 1
      %s252 = scalar_select %p251, %s15, 1
      %s253 = smul.addr %s252, 8
      %s254 = scalar_lea.vmem %s2, %s253
      %p255 = scmp.lt.s32.totalorder %s15, 1
      %s256 = scalar_select %p255, %s15, 1
      %s257 = smul.addr %s256, 8
      %s258 = scalar_lea.vmem %s3, %s257
      // Predicated region
      $region29: #{transformer_clustering_forward.23} parent=27 // pred_check
        %p259 = pneg %p85
      $region30: #{transformer_clustering_forward.23} parent=27 // pred_check_branch
        %261 = sbr.rel (%p259) target = $region32
      $region31: #{transformer_clustering_forward.23} parent=27 // pred_region
        _
      $region32: #{transformer_clustering_forward.23} parent=27 // pred_fallthru
        _
      // Predicated region
      $region33: #{transformer_clustering_forward.23} parent=27 // pred_check
        %p262 = pneg %p111
      $region34: #{transformer_clustering_forward.23} parent=27 // pred_check_branch
        %264 = sbr.rel (%p262) target = $region36
      $region35: #{transformer_clustering_forward.23} parent=27 // pred_region
        _
      $region36: #{transformer_clustering_forward.23} parent=27 // pred_fallthru
        _
    $region28: #{transformer_clustering_forward.23} parent=5 // pred_fallthru
      _
    %p265 = scmp.le.s32.totalorder 2, %s10
    // Predicated region
    $region37: #{transformer_clustering_forward.23} parent=5 // pred_check
      %p266 = pneg %p265
    $region38: #{transformer_clustering_forward.23} parent=5 // pred_check_branch
      %268 = sbr.rel (%p266) target = $region40
    $region39: #{transformer_clustering_forward.23} parent=5 // pred_region
      %s269 = ssub.s32 %s10, 2
      // Predicated region
      $region41: #{transformer_clustering_forward.23} parent=39 // pred_check
        %p270 = pneg %p91
      $region42: #{transformer_clustering_forward.23} parent=39 // pred_check_branch
        %272 = sbr.rel (%p270) target = $region44
      $region43: #{transformer_clustering_forward.23} parent=39 // pred_region
        %p273 = scmp.lt.s32.totalorder %s16, 1
        %s274 = scalar_select %p273, %s16, 1
        %s275 = smul.addr %s274, 8
        %s276 = scalar_lea.vmem %s2, %s275
      $region44: #{transformer_clustering_forward.23} parent=39 // pred_fallthru
        _
      // Predicated region
      $region45: #{transformer_clustering_forward.23} parent=39 // pred_check
        %p277 = pneg %p117
      $region46: #{transformer_clustering_forward.23} parent=39 // pred_check_branch
        %279 = sbr.rel (%p277) target = $region48
      $region47: #{transformer_clustering_forward.23} parent=39 // pred_region
        %p280 = scmp.lt.s32.totalorder %s16, 1
        %s281 = scalar_select %p280, %s16, 1
        %s282 = smul.addr %s281, 8
        %s283 = scalar_lea.vmem %s3, %s282
      $region48: #{transformer_clustering_forward.23} parent=39 // pred_fallthru
        _
    $region40: #{transformer_clustering_forward.23} parent=5 // pred_fallthru
      _
  $region6: #{transformer_clustering_forward.23} parent=0 // loop_footer
    %s14 = sadd.s32 1, %s10
  $region7: #{transformer_clustering_forward.23} parent=0 // loop_footer_branch
    %9 = sbr.rel target = $region3
  $region8: #{transformer_clustering_forward.23} parent=0 // loop_exit
    _

// kernel: transformer_clustering_forward.22
$region0: #{transformer_clustering_forward.22}
  #allocation0 [shape = 'u32[]', space=smem, size = 0x4, offset = 0x4, fixed_abs, tag = 'smem constant byte address 0x4 - core index']
  #allocation1 [shape = 'u32[144,128]{1,0:T(1,128)}', space=vmem, size = 0x12000, scoped, tag = 'internal scratch']
  %s0 = inlined_call_operand.vmem [shape: f32[16,128], index: 0, kind: input, shape index: {}]
  %s1 = inlined_call_operand.vmem [shape: f32[1,128], index: 1, kind: input, shape index: {}]
  %s2 = inlined_call_operand.vmem [shape: f32[1,128], index: 2, kind: input, shape index: {}]
  %s3 = inlined_call_operand.vmem [shape: bf16[128,256], index: 3, kind: input, shape index: {}]
  %s4 = inlined_call_operand.vmem [shape: f32[1,256], index: 4, kind: input, shape index: {}]
  %s5 = inlined_call_operand.vmem [shape: f32[1,256], index: 5, kind: input, shape index: {}]
  %s6 = inlined_call_operand.vmem [shape: f32[16,256], index: 6, kind: output, shape index: {}]
  %s7 = sld [smem:[#allocation0]]
  $region34: #{transformer_clustering_forward.22} parent=0
    _
  %s9 = ssub.s32 1, %s7
  %s10 = scalar_select 0, %s9, %s7
  // Predicated region
  $region2: #{transformer_clustering_forward.22} parent=0 // pred_check
    _
  $region3: #{transformer_clustering_forward.22} parent=0 // pred_check_branch
    %12 = sbr.rel (0) target = $region5
  $region4: #{transformer_clustering_forward.22} parent=0 // pred_region
    _
  $region5: #{transformer_clustering_forward.22} parent=0 // pred_fallthru
    _
  // Predicated region
  $region6: #{transformer_clustering_forward.22} parent=0 // pred_check
    _
  $region7: #{transformer_clustering_forward.22} parent=0 // pred_check_branch
    %14 = sbr.rel (0) target = $region9
  $region8: #{transformer_clustering_forward.22} parent=0 // pred_region
    _
  $region9: #{transformer_clustering_forward.22} parent=0 // pred_fallthru
    _
  // Predicated region
  $region10: #{transformer_clustering_forward.22} parent=0 // pred_check
    _
  $region11: #{transformer_clustering_forward.22} parent=0 // pred_check_branch
    %16 = sbr.rel (0) target = $region13
  $region12: #{transformer_clustering_forward.22} parent=0 // pred_region
    _
  $region13: #{transformer_clustering_forward.22} parent=0 // pred_fallthru
    _
  // Predicated region
  $region14: #{transformer_clustering_forward.22} parent=0 // pred_check
    _
  $region15: #{transformer_clustering_forward.22} parent=0 // pred_check_branch
    %18 = sbr.rel (0) target = $region17
  $region16: #{transformer_clustering_forward.22} parent=0 // pred_region
    _
  $region17: #{transformer_clustering_forward.22} parent=0 // pred_fallthru
    _
  // Predicated region
  $region18: #{transformer_clustering_forward.22} parent=0 // pred_check
    _
  $region19: #{transformer_clustering_forward.22} parent=0 // pred_check_branch
    %20 = sbr.rel (0) target = $region21
  $region20: #{transformer_clustering_forward.22} parent=0 // pred_region
    _
  $region21: #{transformer_clustering_forward.22} parent=0 // pred_fallthru
    _
  // Predicated region
  $region22: #{transformer_clustering_forward.22} parent=0 // pred_check
    _
  $region23: #{transformer_clustering_forward.22} parent=0 // pred_check_branch
    %22 = sbr.rel (0) target = $region25
  $region24: #{transformer_clustering_forward.22} parent=0 // pred_region
    _
  $region25: #{transformer_clustering_forward.22} parent=0 // pred_fallthru
    _
  %v24 = vld [vmem:[%s0] sm:$0xff]
  %v25 = vld [vmem:[%s0 + $0x8] sm:$0xff]
  %26 = vadd.xlane.f32.xlu0 %v24
  %v27 = vpop.xlane.xlu0 %26
  %28 = vadd.xlane.f32.xlu0 %v25
  %v29 = vpop.xlane.xlu0 %28
  %v30 = vrcp.pop 128.0
  %v31 = vmul.f32 %v27, %v30
  %v32 = vmul.f32 %v29, %v30
  %v33 = vsub.f32 %v24, %v31
  %v34 = vsub.f32 %v25, %v32
  %v35 = vmul.f32 %v33, %v33
  %v36 = vmul.f32 %v34, %v34
  %37 = vadd.xlane.f32.xlu0 %v35
  %v38 = vpop.xlane.xlu0 %37
  %39 = vadd.xlane.f32.xlu0 %v36
  %v40 = vpop.xlane.xlu0 %39
  %v41 = vmul.f32 %v38, %v30
  %v42 = vmul.f32 %v40, %v30
  %v43 = vadd.f32 %v41, 1e-05
  %v44 = vadd.f32 %v42, 1e-05
  %v45 = vrsqrt.pop %v43
  %v46 = vrsqrt.pop %v44
  %v47 = vmul.f32 %v33, %v45
  %v48 = vmul.f32 %v34, %v46
  %v49 = vld [vmem:[%s1] sm:$0x1]
  %v51 = vlaneseq
  %v52 = vshrl.u32 %v51, 7
  %v53 = vsub.s32 0, %v52
  %v54 = vrot.slane %v49, %v53
  %v56 = vmul.f32 %v47, %v54
  %v57 = vmul.f32 %v48, %v54
  %v58 = vld [vmem:[%s2] sm:$0x1]
  %v60 = vlaneseq
  %v61 = vshrl.u32 %v60, 7
  %v62 = vsub.s32 0, %v61
  %v63 = vrot.slane %v58, %v62
  %v65 = vadd.f32 %v56, %v63
  %v66 = vadd.f32 %v57, %v63
  %v67 = vmax.f32 %v65, 0.0
  %v68 = vmax.f32 %v66, 0.0
  %v69 = vpack.c.bf16 %v68, %v67
  %v70 = vld [vmem:[%s3] sm:$0xff]
  %v71 = vld [vmem:[%s3 + $0x8] sm:$0xff]
  %v72 = vld [vmem:[%s3 + $0x10] sm:$0xff]
  %v73 = vld [vmem:[%s3 + $0x18] sm:$0xff]
  %v74 = vld [vmem:[%s3 + $0x20] sm:$0xff]
  %v75 = vld [vmem:[%s3 + $0x28] sm:$0xff]
  %v76 = vld [vmem:[%s3 + $0x30] sm:$0xff]
  %v77 = vld [vmem:[%s3 + $0x38] sm:$0xff]
  %v78 = vld [vmem:[%s3 + $0x40] sm:$0xff]
  %v79 = vld [vmem:[%s3 + $0x48] sm:$0xff]
  %v80 = vld [vmem:[%s3 + $0x50] sm:$0xff]
  %v81 = vld [vmem:[%s3 + $0x58] sm:$0xff]
  %v82 = vld [vmem:[%s3 + $0x60] sm:$0xff]
  %v83 = vld [vmem:[%s3 + $0x68] sm:$0xff]
  %v84 = vld [vmem:[%s3 + $0x70] sm:$0xff]
  %v85 = vld [vmem:[%s3 + $0x78] sm:$0xff]
  %v102 = vunpack.c.l.b16 %v70
  %v103 = vunpack.c.h.b16 %v70
  %v104 = vunpack.c.l.b16 %v71
  %v105 = vunpack.c.h.b16 %v71
  %v106 = vunpack.c.l.b16 %v72
  %v107 = vunpack.c.h.b16 %v72
  %v108 = vunpack.c.l.b16 %v73
  %v109 = vunpack.c.h.b16 %v73
  %v110 = vunpack.c.l.b16 %v74
  %v111 = vunpack.c.h.b16 %v74
  %v112 = vunpack.c.l.b16 %v75
  %v113 = vunpack.c.h.b16 %v75
  %v114 = vunpack.c.l.b16 %v76
  %v115 = vunpack.c.h.b16 %v76
  %v116 = vunpack.c.l.b16 %v77
  %v117 = vunpack.c.h.b16 %v77
  %v118 = vunpack.c.l.b16 %v78
  %v119 = vunpack.c.h.b16 %v78
  %v120 = vunpack.c.l.b16 %v79
  %v121 = vunpack.c.h.b16 %v79
  %v122 = vunpack.c.l.b16 %v80
  %v123 = vunpack.c.h.b16 %v80
  %v124 = vunpack.c.l.b16 %v81
  %v125 = vunpack.c.h.b16 %v81
  %v126 = vunpack.c.l.b16 %v82
  %v127 = vunpack.c.h.b16 %v82
  %v128 = vunpack.c.l.b16 %v83
  %v129 = vunpack.c.h.b16 %v83
  %v130 = vunpack.c.l.b16 %v84
  %v131 = vunpack.c.h.b16 %v84
  %v132 = vunpack.c.l.b16 %v85
  %v133 = vunpack.c.h.b16 %v85
  %v134 = vpack.c.b16 %v104, %v102
  %v135 = vpack.c.b16 %v105, %v103
  %v136 = vpack.c.b16 %v108, %v106
  %v137 = vpack.c.b16 %v109, %v107
  %v138 = vpack.c.b16 %v112, %v110
  %v139 = vpack.c.b16 %v113, %v111
  %v140 = vpack.c.b16 %v116, %v114
  %v141 = vpack.c.b16 %v117, %v115
  %v142 = vpack.c.b16 %v120, %v118
  %v143 = vpack.c.b16 %v121, %v119
  %v144 = vpack.c.b16 %v124, %v122
  %v145 = vpack.c.b16 %v125, %v123
  %v146 = vpack.c.b16 %v128, %v126
  %v147 = vpack.c.b16 %v129, %v127
  %v148 = vpack.c.b16 %v132, %v130
  %v149 = vpack.c.b16 %v133, %v131
  %166 = vmatprep.subr.bf16.mxu0 %v149
  %167 = vmatpush1.bf16.msra.mxu0 %v148
  %168 = vmatprep.subr.bf16.mxu0 %v147
  %169 = vmatpush1.bf16.msra.mxu0 %v146
  %170 = vmatprep.subr.bf16.mxu0 %v145
  %171 = vmatpush1.bf16.msra.mxu0 %v144
  %172 = vmatprep.subr.bf16.mxu0 %v143
  %173 = vmatpush1.bf16.msra.mxu0 %v142
  %174 = vmatprep.subr.bf16.mxu0 %v141
  %175 = vmatpush1.bf16.msra.mxu0 %v140
  %176 = vmatprep.subr.bf16.mxu0 %v139
  %177 = vmatpush1.bf16.msra.mxu0 %v138
  %178 = vmatprep.subr.bf16.mxu0 %v137
  %179 = vmatpush1.bf16.msra.mxu0 %v136
  %180 = vmatprep.subr.bf16.mxu0 %v135
  %181 = vmatpush1.bf16.msra.mxu0 %v134
  %182 = vmatprep.subr.bf16.mxu0 0
  %183 = vmatpush2.bf16.msra.mxu0 0
  %184 = vmatprep.subr.bf16.mxu0 0
  %185 = vmatpush2.bf16.msra.mxu0 0
  %186 = vmatprep.subr.bf16.mxu0 0
  %187 = vmatpush2.bf16.msra.mxu0 0
  %188 = vmatprep.subr.bf16.mxu0 0
  %189 = vmatpush2.bf16.msra.mxu0 0
  %190 = vmatprep.subr.bf16.mxu0 0
  %191 = vmatpush2.bf16.msra.mxu0 0
  %192 = vmatprep.subr.bf16.mxu0 0
  %193 = vmatpush2.bf16.msra.mxu0 0
  %194 = vmatprep.subr.bf16.mxu0 0
  %195 = vmatpush2.bf16.msra.mxu0 0
  %196 = vmatprep.subr.bf16.mxu0 0
  %197 = vmatpush2.bf16.msra.mxu0 0
  %198 = vmatprep.mubr.bf16.mxu0 0
  %199 = vmatmul.mubr.bf16.gmra.mxu0 %v69
  %v200 = vpop.f32.mrf.mxu0
  %v201 = vadd.f32 0.0, %v200
  %v202 = vpop.f32.mrf.mxu0
  %v203 = vadd.f32 0.0, %v202
  %v204 = vpop.f32.mrf.mxu0
  %v205 = vadd.f32 0.0, %v204
  %v206 = vpop.f32.mrf.mxu0
  %v207 = vadd.f32 0.0, %v206
  %208 = vdwg.mxu0
  %v209 = vld [vmem:[%s4] sm:$0x3]
  %v211 = vlaneseq
  %v212 = vshrl.u32 %v211, 7
  %v213 = vsub.s32 0, %v212
  %v214 = vrot.slane %v209, %v213
  %v215 = vlaneseq
  %v216 = vshrl.u32 %v215, 7
  %v217 = vsub.s32 1, %v216
  %v218 = vrot.slane %v209, %v217
  %v221 = vmul.f32 %v201, %v214
  %v222 = vmul.f32 %v203, %v218
  %v223 = vmul.f32 %v205, %v214
  %v224 = vmul.f32 %v207, %v218
  %v225 = vld [vmem:[%s5] sm:$0x3]
  %v227 = vlaneseq
  %v228 = vshrl.u32 %v227, 7
  %v229 = vsub.s32 0, %v228
  %v230 = vrot.slane %v225, %v229
  %v231 = vlaneseq
  %v232 = vshrl.u32 %v231, 7
  %v233 = vsub.s32 1, %v232
  %v234 = vrot.slane %v225, %v233
  %v237 = vadd.f32 %v221, %v230
  %v238 = vadd.f32 %v222, %v234
  %v239 = vadd.f32 %v223, %v230
  %v240 = vadd.f32 %v224, %v234
  %241 = vst [vmem:[%s6] sm:$0xff] %v237
  %242 = vst [vmem:[%s6 + $0x8] sm:$0xff] %v238
  %243 = vst [vmem:[%s6 + $0x10] sm:$0xff] %v239
  %244 = vst [vmem:[%s6 + $0x18] sm:$0xff] %v240
  // Predicated region
  $region26: #{transformer_clustering_forward.22} parent=0 // pred_check
    _
  $region27: #{transformer_clustering_forward.22} parent=0 // pred_check_branch
    %246 = sbr.rel (0) target = $region29
  $region28: #{transformer_clustering_forward.22} parent=0 // pred_region
    _
  $region29: #{transformer_clustering_forward.22} parent=0 // pred_fallthru
    _
  // Predicated region
  $region30: #{transformer_clustering_forward.22} parent=0 // pred_check
    _
  $region31: #{transformer_clustering_forward.22} parent=0 // pred_check_branch
    %248 = sbr.rel (0) target = $region33
  $region32: #{transformer_clustering_forward.22} parent=0 // pred_region
    _
  $region33: #{transformer_clustering_forward.22} parent=0 // pred_fallthru
    _

// kernel: transformer_clustering_forward.19
$region0: #{transformer_clustering_forward.19}
  #allocation0 [shape = 'u32[]', space=smem, size = 0x4, offset = 0x4, fixed_abs, tag = 'smem constant byte address 0x4 - core index']
  #allocation1 [shape = 'u32[144,128]{1,0:T(1,128)}', space=vmem, size = 0x12000, scoped, tag = 'internal scratch']
  %s0 = inlined_call_operand.vmem [shape: f32[2,8,128], index: 0, kind: input, shape index: {}, may-alias: {0,2}]
  %s1 = inlined_call_operand.vmem [shape: f32[2,8,128], index: 1, kind: input, shape index: {}, may-alias: {1,3}]
  %s2 = inlined_call_operand.vmem [shape: f32[2,8,128], index: 2, kind: input, shape index: {}, may-alias: {0,2}]
  %s3 = inlined_call_operand.vmem [shape: f32[2,8,128], index: 3, kind: input, shape index: {}, may-alias: {1,3}]
  %s4 = inlined_call_operand.vmem [shape: bf16[128,128], index: 4, kind: input, shape index: {}]
  %s5 = inlined_call_operand.vmem [shape: f32[1,128], index: 5, kind: input, shape index: {}]
  %s6 = inlined_call_operand.vmem [shape: bf16[128,128], index: 6, kind: input, shape index: {}]
  %s7 = inlined_call_operand.vmem [shape: f32[1,128], index: 7, kind: input, shape index: {}]
  %s8 = inlined_call_operand.vmem [shape: bf16[128,128], index: 8, kind: input, shape index: {}]
  %s9 = inlined_call_operand.vmem [shape: f32[1,128], index: 9, kind: input, shape index: {}]
  %s10 = inlined_call_operand.vmem [shape: bf16[128,128], index: 10, kind: input, shape index: {}]
  %s11 = inlined_call_operand.vmem [shape: f32[1,128], index: 11, kind: input, shape index: {}]
  %s12 = inlined_call_operand.vmem [shape: f32[1,128], index: 12, kind: input, shape index: {}]
  %s13 = inlined_call_operand.vmem [shape: f32[1,128], index: 13, kind: input, shape index: {}]
  %s14 = inlined_call_operand.vmem [shape: f32[2,8,128], index: 14, kind: output, shape index: {}]
  %s15 = sld [smem:[#allocation0]]
  $region89: #{transformer_clustering_forward.19} parent=0
    _
  %s17 = ssub.s32 1, %s15
  %s18 = scalar_select 0, %s17, %s15
  loop: start=0, step=1, limit=4
  $region2: #{transformer_clustering_forward.19} parent=0 // loop_pre_header
    _
  $region3: #{transformer_clustering_forward.19} parent=0 // loop_header
    %s20 = sphi 0, %s24
    %p21 = scmp.ge.s32.totalorder %s20, 4
    %s27 = sphi 0, %s39
    %s28 = sphi 0, %s35
    %s29 = sphi 0, %s27
    %s30 = sphi 0, %s28
    %s31 = sphi 0, %s29
    %s32 = sphi 0, %s30
    %s44 = sphi 0, %s46
    %s47 = sphi 0, %s44
    %s48 = sphi 0, %s47
    %s64 = sphi 0, %s48
    %s72 = sphi 0, %s74
    %s75 = sphi 0, %s72
    %s76 = sphi 0, %s75
    %s92 = sphi 0, %s76
    %s98 = sphi 0, %s100
    %s101 = sphi 0, %s98
    %s102 = sphi 0, %s101
    %s118 = sphi 0, %s102
    %s124 = sphi 0, %s126
    %s127 = sphi 0, %s124
    %s128 = sphi 0, %s127
    %s144 = sphi 0, %s128
    %s148 = sphi 0, %s148
    %s150 = sphi 0, %s148
    %s151 = sphi 0, %s150
    %s165 = sphi 0, %s151
    %s169 = sphi 0, %s169
    %s171 = sphi 0, %s169
    %s172 = sphi 0, %s171
    %s186 = sphi 0, %s172
    %s190 = sphi 0, %s190
    %s192 = sphi 0, %s190
    %s193 = sphi 0, %s192
    %s207 = sphi 0, %s193
    %s211 = sphi 0, %s211
    %s213 = sphi 0, %s211
    %s214 = sphi 0, %s213
    %s228 = sphi 0, %s214
    %s232 = sphi 0, %s232
    %s234 = sphi 0, %s232
    %s235 = sphi 0, %s234
    %s249 = sphi 0, %s235
    %s253 = sphi 0, %s253
    %s255 = sphi 0, %s253
    %s256 = sphi 0, %s255
    %s270 = sphi 0, %s256
    %s274 = sphi 0, %s274
    %s276 = sphi 0, %s274
    %s277 = sphi 0, %s276
    %s291 = sphi 0, %s277
    %s295 = sphi 0, %s295
    %s297 = sphi 0, %s295
    %s298 = sphi 0, %s297
    %s312 = sphi 0, %s298
    %s316 = sphi 0, %s316
    %s318 = sphi 0, %s316
    %s319 = sphi 0, %s318
    %s333 = sphi 0, %s319
    %s337 = sphi 0, %s337
    %s339 = sphi 0, %s337
    %s340 = sphi 0, %s339
    %s354 = sphi 0, %s340
    %s362 = sphi 0, %s364
    %s365 = sphi 0, %s362
    %s366 = sphi 0, %s365
    %s382 = sphi 0, %s366
  $region4: #{transformer_clustering_forward.19} parent=0 // loop_header_branch
    %23 = sbr.rel (%p21) target = $region8
  $region5: #{transformer_clustering_forward.19} parent=0 // loop_body
    %s25 = ssub.s32 %s20, 1
    %s26 = ssub.s32 %s20, 2
    %s33 = sadd.s32 1, %s28
    %p34 = scmp.ge.s32.totalorder %s33, 1
    %s35 = scalar_select %p34, 0, %s33
    %s36 = sadd.s32 1, %s27
    %s37 = scalar_select %p34, %s36, %s27
    %p38 = scmp.ge.s32.totalorder %s37, 2
    %s39 = scalar_select %p38, 0, %s37
    %s40 = ssub.s32 %s27, %s39
    %s41 = ssub.s32 %s28, %s35
    %s42 = sor.u32 %s40, %s41
    %p43 = scmp.eq.s32.totalorder %s42, 0
    %s45 = sadd.s32 %s44, 1
    %s46 = scalar_select %p43, %s44, %s45
    %p49 = pneg %p43
    %p50 = scmp.eq.s32.totalorder %s20, 1
    %p51 = por %p49, %p50
    %p52 = scmp.ne.s32.totalorder %s44, %s47
    %p53 = scmp.eq.s32.totalorder %s20, 0
    %p54 = por %p52, %p53
    %p55 = scmp.ne.s32.totalorder %s44, %s47
    %p56 = scmp.eq.s32.totalorder %s25, 1
    %p57 = por %p55, %p56
    %p58 = scmp.ne.s32.totalorder %s47, %s48
    %p59 = scmp.eq.s32.totalorder %s25, 0
    %p60 = por %p58, %p59
    %p61 = scmp.ne.s32.totalorder %s47, %s48
    %p62 = scmp.eq.s32.totalorder %s26, 1
    %p63 = por %p61, %p62
    %p65 = scmp.ne.s32.totalorder %s48, %s64
    %p66 = scmp.eq.s32.totalorder %s26, 0
    %p67 = por %p65, %p66
    %s68 = ssub.s32 %s27, %s39
    %s69 = ssub.s32 %s28, %s35
    %s70 = sor.u32 %s68, %s69
    %p71 = scmp.eq.s32.totalorder %s70, 0
    %s73 = sadd.s32 %s72, 1
    %s74 = scalar_select %p71, %s72, %s73
    %p77 = pneg %p71
    %p78 = scmp.eq.s32.totalorder %s20, 1
    %p79 = por %p77, %p78
    %p80 = scmp.ne.s32.totalorder %s72, %s75
    %p81 = scmp.eq.s32.totalorder %s20, 0
    %p82 = por %p80, %p81
    %p83 = scmp.ne.s32.totalorder %s72, %s75
    %p84 = scmp.eq.s32.totalorder %s25, 1
    %p85 = por %p83, %p84
    %p86 = scmp.ne.s32.totalorder %s75, %s76
    %p87 = scmp.eq.s32.totalorder %s25, 0
    %p88 = por %p86, %p87
    %p89 = scmp.ne.s32.totalorder %s75, %s76
    %p90 = scmp.eq.s32.totalorder %s26, 1
    %p91 = por %p89, %p90
    %p93 = scmp.ne.s32.totalorder %s76, %s92
    %p94 = scmp.eq.s32.totalorder %s26, 0
    %p95 = por %p93, %p94
    %s96 = ssub.s32 %s27, %s39
    %p97 = scmp.eq.s32.totalorder %s96, 0
    %s99 = sadd.s32 %s98, 1
    %s100 = scalar_select %p97, %s98, %s99
    %p103 = pneg %p97
    %p104 = scmp.eq.s32.totalorder %s20, 1
    %p105 = por %p103, %p104
    %p106 = scmp.ne.s32.totalorder %s98, %s101
    %p107 = scmp.eq.s32.totalorder %s20, 0
    %p108 = por %p106, %p107
    %p109 = scmp.ne.s32.totalorder %s98, %s101
    %p110 = scmp.eq.s32.totalorder %s25, 1
    %p111 = por %p109, %p110
    %p112 = scmp.ne.s32.totalorder %s101, %s102
    %p113 = scmp.eq.s32.totalorder %s25, 0
    %p114 = por %p112, %p113
    %p115 = scmp.ne.s32.totalorder %s101, %s102
    %p116 = scmp.eq.s32.totalorder %s26, 1
    %p117 = por %p115, %p116
    %p119 = scmp.ne.s32.totalorder %s102, %s118
    %p120 = scmp.eq.s32.totalorder %s26, 0
    %p121 = por %p119, %p120
    %s122 = ssub.s32 %s27, %s39
    %p123 = scmp.eq.s32.totalorder %s122, 0
    %s125 = sadd.s32 %s124, 1
    %s126 = scalar_select %p123, %s124, %s125
    %p129 = pneg %p123
    %p130 = scmp.eq.s32.totalorder %s20, 1
    %p131 = por %p129, %p130
    %p132 = scmp.ne.s32.totalorder %s124, %s127
    %p133 = scmp.eq.s32.totalorder %s20, 0
    %p134 = por %p132, %p133
    %p135 = scmp.ne.s32.totalorder %s124, %s127
    %p136 = scmp.eq.s32.totalorder %s25, 1
    %p137 = por %p135, %p136
    %p138 = scmp.ne.s32.totalorder %s127, %s128
    %p139 = scmp.eq.s32.totalorder %s25, 0
    %p140 = por %p138, %p139
    %p141 = scmp.ne.s32.totalorder %s127, %s128
    %p142 = scmp.eq.s32.totalorder %s26, 1
    %p143 = por %p141, %p142
    %p145 = scmp.ne.s32.totalorder %s128, %s144
    %p146 = scmp.eq.s32.totalorder %s26, 0
    %p147 = por %p145, %p146
    %s149 = sadd.s32 %s148, 1
    %p152 = scmp.eq.s32.totalorder %s20, 1
    %p153 = scmp.ne.s32.totalorder %s148, %s150
    %p154 = scmp.eq.s32.totalorder %s20, 0
    %p155 = por %p153, %p154
    %p156 = scmp.ne.s32.totalorder %s148, %s150
    %p157 = scmp.eq.s32.totalorder %s25, 1
    %p158 = por %p156, %p157
    %p159 = scmp.ne.s32.totalorder %s150, %s151
    %p160 = scmp.eq.s32.totalorder %s25, 0
    %p161 = por %p159, %p160
    %p162 = scmp.ne.s32.totalorder %s150, %s151
    %p163 = scmp.eq.s32.totalorder %s26, 1
    %p164 = por %p162, %p163
    %p166 = scmp.ne.s32.totalorder %s151, %s165
    %p167 = scmp.eq.s32.totalorder %s26, 0
    %p168 = por %p166, %p167
    %s170 = sadd.s32 %s169, 1
    %p173 = scmp.eq.s32.totalorder %s20, 1
    %p174 = scmp.ne.s32.totalorder %s169, %s171
    %p175 = scmp.eq.s32.totalorder %s20, 0
    %p176 = por %p174, %p175
    %p177 = scmp.ne.s32.totalorder %s169, %s171
    %p178 = scmp.eq.s32.totalorder %s25, 1
    %p179 = por %p177, %p178
    %p180 = scmp.ne.s32.totalorder %s171, %s172
    %p181 = scmp.eq.s32.totalorder %s25, 0
    %p182 = por %p180, %p181
    %p183 = scmp.ne.s32.totalorder %s171, %s172
    %p184 = scmp.eq.s32.totalorder %s26, 1
    %p185 = por %p183, %p184
    %p187 = scmp.ne.s32.totalorder %s172, %s186
    %p188 = scmp.eq.s32.totalorder %s26, 0
    %p189 = por %p187, %p188
    %s191 = sadd.s32 %s190, 1
    %p194 = scmp.eq.s32.totalorder %s20, 1
    %p195 = scmp.ne.s32.totalorder %s190, %s192
    %p196 = scmp.eq.s32.totalorder %s20, 0
    %p197 = por %p195, %p196
    %p198 = scmp.ne.s32.totalorder %s190, %s192
    %p199 = scmp.eq.s32.totalorder %s25, 1
    %p200 = por %p198, %p199
    %p201 = scmp.ne.s32.totalorder %s192, %s193
    %p202 = scmp.eq.s32.totalorder %s25, 0
    %p203 = por %p201, %p202
    %p204 = scmp.ne.s32.totalorder %s192, %s193
    %p205 = scmp.eq.s32.totalorder %s26, 1
    %p206 = por %p204, %p205
    %p208 = scmp.ne.s32.totalorder %s193, %s207
    %p209 = scmp.eq.s32.totalorder %s26, 0
    %p210 = por %p208, %p209
    %s212 = sadd.s32 %s211, 1
    %p215 = scmp.eq.s32.totalorder %s20, 1
    %p216 = scmp.ne.s32.totalorder %s211, %s213
    %p217 = scmp.eq.s32.totalorder %s20, 0
    %p218 = por %p216, %p217
    %p219 = scmp.ne.s32.totalorder %s211, %s213
    %p220 = scmp.eq.s32.totalorder %s25, 1
    %p221 = por %p219, %p220
    %p222 = scmp.ne.s32.totalorder %s213, %s214
    %p223 = scmp.eq.s32.totalorder %s25, 0
    %p224 = por %p222, %p223
    %p225 = scmp.ne.s32.totalorder %s213, %s214
    %p226 = scmp.eq.s32.totalorder %s26, 1
    %p227 = por %p225, %p226
    %p229 = scmp.ne.s32.totalorder %s214, %s228
    %p230 = scmp.eq.s32.totalorder %s26, 0
    %p231 = por %p229, %p230
    %s233 = sadd.s32 %s232, 1
    %p236 = scmp.eq.s32.totalorder %s20, 1
    %p237 = scmp.ne.s32.totalorder %s232, %s234
    %p238 = scmp.eq.s32.totalorder %s20, 0
    %p239 = por %p237, %p238
    %p240 = scmp.ne.s32.totalorder %s232, %s234
    %p241 = scmp.eq.s32.totalorder %s25, 1
    %p242 = por %p240, %p241
    %p243 = scmp.ne.s32.totalorder %s234, %s235
    %p244 = scmp.eq.s32.totalorder %s25, 0
    %p245 = por %p243, %p244
    %p246 = scmp.ne.s32.totalorder %s234, %s235
    %p247 = scmp.eq.s32.totalorder %s26, 1
    %p248 = por %p246, %p247
    %p250 = scmp.ne.s32.totalorder %s235, %s249
    %p251 = scmp.eq.s32.totalorder %s26, 0
    %p252 = por %p250, %p251
    %s254 = sadd.s32 %s253, 1
    %p257 = scmp.eq.s32.totalorder %s20, 1
    %p258 = scmp.ne.s32.totalorder %s253, %s255
    %p259 = scmp.eq.s32.totalorder %s20, 0
    %p260 = por %p258, %p259
    %p261 = scmp.ne.s32.totalorder %s253, %s255
    %p262 = scmp.eq.s32.totalorder %s25, 1
    %p263 = por %p261, %p262
    %p264 = scmp.ne.s32.totalorder %s255, %s256
    %p265 = scmp.eq.s32.totalorder %s25, 0
    %p266 = por %p264, %p265
    %p267 = scmp.ne.s32.totalorder %s255, %s256
    %p268 = scmp.eq.s32.totalorder %s26, 1
    %p269 = por %p267, %p268
    %p271 = scmp.ne.s32.totalorder %s256, %s270
    %p272 = scmp.eq.s32.totalorder %s26, 0
    %p273 = por %p271, %p272
    %s275 = sadd.s32 %s274, 1
    %p278 = scmp.eq.s32.totalorder %s20, 1
    %p279 = scmp.ne.s32.totalorder %s274, %s276
    %p280 = scmp.eq.s32.totalorder %s20, 0
    %p281 = por %p279, %p280
    %p282 = scmp.ne.s32.totalorder %s274, %s276
    %p283 = scmp.eq.s32.totalorder %s25, 1
    %p284 = por %p282, %p283
    %p285 = scmp.ne.s32.totalorder %s276, %s277
    %p286 = scmp.eq.s32.totalorder %s25, 0
    %p287 = por %p285, %p286
    %p288 = scmp.ne.s32.totalorder %s276, %s277
    %p289 = scmp.eq.s32.totalorder %s26, 1
    %p290 = por %p288, %p289
    %p292 = scmp.ne.s32.totalorder %s277, %s291
    %p293 = scmp.eq.s32.totalorder %s26, 0
    %p294 = por %p292, %p293
    %s296 = sadd.s32 %s295, 1
    %p299 = scmp.eq.s32.totalorder %s20, 1
    %p300 = scmp.ne.s32.totalorder %s295, %s297
    %p301 = scmp.eq.s32.totalorder %s20, 0
    %p302 = por %p300, %p301
    %p303 = scmp.ne.s32.totalorder %s295, %s297
    %p304 = scmp.eq.s32.totalorder %s25, 1
    %p305 = por %p303, %p304
    %p306 = scmp.ne.s32.totalorder %s297, %s298
    %p307 = scmp.eq.s32.totalorder %s25, 0
    %p308 = por %p306, %p307
    %p309 = scmp.ne.s32.totalorder %s297, %s298
    %p310 = scmp.eq.s32.totalorder %s26, 1
    %p311 = por %p309, %p310
    %p313 = scmp.ne.s32.totalorder %s298, %s312
    %p314 = scmp.eq.s32.totalorder %s26, 0
    %p315 = por %p313, %p314
    %s317 = sadd.s32 %s316, 1
    %p320 = scmp.eq.s32.totalorder %s20, 1
    %p321 = scmp.ne.s32.totalorder %s316, %s318
    %p322 = scmp.eq.s32.totalorder %s20, 0
    %p323 = por %p321, %p322
    %p324 = scmp.ne.s32.totalorder %s316, %s318
    %p325 = scmp.eq.s32.totalorder %s25, 1
    %p326 = por %p324, %p325
    %p327 = scmp.ne.s32.totalorder %s318, %s319
    %p328 = scmp.eq.s32.totalorder %s25, 0
    %p329 = por %p327, %p328
    %p330 = scmp.ne.s32.totalorder %s318, %s319
    %p331 = scmp.eq.s32.totalorder %s26, 1
    %p332 = por %p330, %p331
    %p334 = scmp.ne.s32.totalorder %s319, %s333
    %p335 = scmp.eq.s32.totalorder %s26, 0
    %p336 = por %p334, %p335
    %s338 = sadd.s32 %s337, 1
    %p341 = scmp.eq.s32.totalorder %s20, 1
    %p342 = scmp.ne.s32.totalorder %s337, %s339
    %p343 = scmp.eq.s32.totalorder %s20, 0
    %p344 = por %p342, %p343
    %p345 = scmp.ne.s32.totalorder %s337, %s339
    %p346 = scmp.eq.s32.totalorder %s25, 1
    %p347 = por %p345, %p346
    %p348 = scmp.ne.s32.totalorder %s339, %s340
    %p349 = scmp.eq.s32.totalorder %s25, 0
    %p350 = por %p348, %p349
    %p351 = scmp.ne.s32.totalorder %s339, %s340
    %p352 = scmp.eq.s32.totalorder %s26, 1
    %p353 = por %p351, %p352
    %p355 = scmp.ne.s32.totalorder %s340, %s354
    %p356 = scmp.eq.s32.totalorder %s26, 0
    %p357 = por %p355, %p356
    %s358 = ssub.s32 %s27, %s39
    %s359 = ssub.s32 %s28, %s35
    %s360 = sor.u32 %s358, %s359
    %p361 = scmp.eq.s32.totalorder %s360, 0
    %s363 = sadd.s32 %s362, 1
    %s364 = scalar_select %p361, %s362, %s363
    %p367 = pneg %p361
    %p368 = scmp.eq.s32.totalorder %s20, 1
    %p369 = por %p367, %p368
    %p370 = scmp.ne.s32.totalorder %s362, %s365
    %p371 = scmp.eq.s32.totalorder %s20, 0
    %p372 = por %p370, %p371
    %p373 = scmp.ne.s32.totalorder %s362, %s365
    %p374 = scmp.eq.s32.totalorder %s25, 1
    %p375 = por %p373, %p374
    %p376 = scmp.ne.s32.totalorder %s365, %s366
    %p377 = scmp.eq.s32.totalorder %s25, 0
    %p378 = por %p376, %p377
    %p379 = scmp.ne.s32.totalorder %s365, %s366
    %p380 = scmp.eq.s32.totalorder %s26, 1
    %p381 = por %p379, %p380
    %p383 = scmp.ne.s32.totalorder %s366, %s382
    %p384 = scmp.eq.s32.totalorder %s26, 0
    %p385 = por %p383, %p384
    %p386 = scmp.le.s32.totalorder 1, %s20
    %p387 = scmp.lt.s32.totalorder %s20, 3
    %p388 = pnand %p386, %p387
    %p389 = pneg %p388
    // Predicated region
    $region9: #{transformer_clustering_forward.19} parent=5 // pred_check
      _
    $region10: #{transformer_clustering_forward.19} parent=5 // pred_check_branch
      %391 = sbr.rel (%p388) target = $region12
    $region11: #{transformer_clustering_forward.19} parent=5 // pred_region
      %s392 = ssub.s32 %s20, 1
      // Predicated region
      $region13: #{transformer_clustering_forward.19} parent=11 // pred_check
        %p393 = pneg %p161
      $region14: #{transformer_clustering_forward.19} parent=11 // pred_check_branch
        %395 = sbr.rel (%p393) target = $region16
      $region15: #{transformer_clustering_forward.19} parent=11 // pred_region
        _
      $region16: #{transformer_clustering_forward.19} parent=11 // pred_fallthru
        _
      // Predicated region
      $region17: #{transformer_clustering_forward.19} parent=11 // pred_check
        %p396 = pneg %p182
      $region18: #{transformer_clustering_forward.19} parent=11 // pred_check_branch
        %398 = sbr.rel (%p396) target = $region20
      $region19: #{transformer_clustering_forward.19} parent=11 // pred_region
        _
      $region20: #{transformer_clustering_forward.19} parent=11 // pred_fallthru
        _
      // Predicated region
      $region21: #{transformer_clustering_forward.19} parent=11 // pred_check
        %p399 = pneg %p203
      $region22: #{transformer_clustering_forward.19} parent=11 // pred_check_branch
        %401 = sbr.rel (%p399) target = $region24
      $region23: #{transformer_clustering_forward.19} parent=11 // pred_region
        _
      $region24: #{transformer_clustering_forward.19} parent=11 // pred_fallthru
        _
      // Predicated region
      $region25: #{transformer_clustering_forward.19} parent=11 // pred_check
        %p402 = pneg %p224
      $region26: #{transformer_clustering_forward.19} parent=11 // pred_check_branch
        %404 = sbr.rel (%p402) target = $region28
      $region27: #{transformer_clustering_forward.19} parent=11 // pred_region
        _
      $region28: #{transformer_clustering_forward.19} parent=11 // pred_fallthru
        _
      // Predicated region
      $region29: #{transformer_clustering_forward.19} parent=11 // pred_check
        %p405 = pneg %p245
      $region30: #{transformer_clustering_forward.19} parent=11 // pred_check_branch
        %407 = sbr.rel (%p405) target = $region32
      $region31: #{transformer_clustering_forward.19} parent=11 // pred_region
        _
      $region32: #{transformer_clustering_forward.19} parent=11 // pred_fallthru
        _
      // Predicated region
      $region33: #{transformer_clustering_forward.19} parent=11 // pred_check
        %p408 = pneg %p266
      $region34: #{transformer_clustering_forward.19} parent=11 // pred_check_branch
        %410 = sbr.rel (%p408) target = $region36
      $region35: #{transformer_clustering_forward.19} parent=11 // pred_region
        _
      $region36: #{transformer_clustering_forward.19} parent=11 // pred_fallthru
        _
      // Predicated region
      $region37: #{transformer_clustering_forward.19} parent=11 // pred_check
        %p411 = pneg %p287
      $region38: #{transformer_clustering_forward.19} parent=11 // pred_check_branch
        %413 = sbr.rel (%p411) target = $region40
      $region39: #{transformer_clustering_forward.19} parent=11 // pred_region
        _
      $region40: #{transformer_clustering_forward.19} parent=11 // pred_fallthru
        _
      // Predicated region
      $region41: #{transformer_clustering_forward.19} parent=11 // pred_check
        %p414 = pneg %p308
      $region42: #{transformer_clustering_forward.19} parent=11 // pred_check_branch
        %416 = sbr.rel (%p414) target = $region44
      $region43: #{transformer_clustering_forward.19} parent=11 // pred_region
        _
      $region44: #{transformer_clustering_forward.19} parent=11 // pred_fallthru
        _
      // Predicated region
      $region45: #{transformer_clustering_forward.19} parent=11 // pred_check
        %p417 = pneg %p329
      $region46: #{transformer_clustering_forward.19} parent=11 // pred_check_branch
        %419 = sbr.rel (%p417) target = $region48
      $region47: #{transformer_clustering_forward.19} parent=11 // pred_region
        _
      $region48: #{transformer_clustering_forward.19} parent=11 // pred_fallthru
        _
      // Predicated region
      $region49: #{transformer_clustering_forward.19} parent=11 // pred_check
        %p420 = pneg %p350
      $region50: #{transformer_clustering_forward.19} parent=11 // pred_check_branch
        %422 = sbr.rel (%p420) target = $region52
      $region51: #{transformer_clustering_forward.19} parent=11 // pred_region
        _
      $region52: #{transformer_clustering_forward.19} parent=11 // pred_fallthru
        _
    $region12: #{transformer_clustering_forward.19} parent=5 // pred_fallthru
      _
    %p423 = scmp.lt.s32.totalorder %s20, 2
    // Predicated region
    $region53: #{transformer_clustering_forward.19} parent=5 // pred_check
      %p424 = pneg %p423
    $region54: #{transformer_clustering_forward.19} parent=5 // pred_check_branch
      %426 = sbr.rel (%p424) target = $region56
    $region55: #{transformer_clustering_forward.19} parent=5 // pred_region
      // Predicated region
      $region57: #{transformer_clustering_forward.19} parent=55 // pred_check
        %p427 = pneg %p54
      $region58: #{transformer_clustering_forward.19} parent=55 // pred_check_branch
        %429 = sbr.rel (%p427) target = $region60
      $region59: #{transformer_clustering_forward.19} parent=55 // pred_region
        %p430 = scmp.lt.s32.totalorder %s27, 1
        %s431 = scalar_select %p430, %s27, 1
        %p432 = scmp.lt.s32.totalorder %s28, 0
        %s433 = scalar_select %p432, %s28, 0
        %s434 = sadd.s32 %s433, %s431
        %s435 = smul.addr %s434, 8
        %s436 = scalar_lea.vmem %s0, %s435
      $region60: #{transformer_clustering_forward.19} parent=55 // pred_fallthru
        _
      // Predicated region
      $region61: #{transformer_clustering_forward.19} parent=55 // pred_check
        %p437 = pneg %p82
      $region62: #{transformer_clustering_forward.19} parent=55 // pred_check_branch
        %439 = sbr.rel (%p437) target = $region64
      $region63: #{transformer_clustering_forward.19} parent=55 // pred_region
        %p440 = scmp.lt.s32.totalorder %s27, 1
        %s441 = scalar_select %p440, %s27, 1
        %p442 = scmp.lt.s32.totalorder %s28, 0
        %s443 = scalar_select %p442, %s28, 0
        %s444 = sadd.s32 %s443, %s441
        %s445 = smul.addr %s444, 8
        %s446 = scalar_lea.vmem %s1, %s445
      $region64: #{transformer_clustering_forward.19} parent=55 // pred_fallthru
        _
      // Predicated region
      $region65: #{transformer_clustering_forward.19} parent=55 // pred_check
        %p447 = pneg %p108
      $region66: #{transformer_clustering_forward.19} parent=55 // pred_check_branch
        %449 = sbr.rel (%p447) target = $region68
      $region67: #{transformer_clustering_forward.19} parent=55 // pred_region
        %p450 = scmp.lt.s32.totalorder %s27, 1
        %s451 = scalar_select %p450, %s27, 1
        %s452 = smul.addr %s451, 8
        %s453 = scalar_lea.vmem %s2, %s452
      $region68: #{transformer_clustering_forward.19} parent=55 // pred_fallthru
        _
      // Predicated region
      $region69: #{transformer_clustering_forward.19} parent=55 // pred_check
        %p454 = pneg %p134
      $region70: #{transformer_clustering_forward.19} parent=55 // pred_check_branch
        %456 = sbr.rel (%p454) target = $region72
      $region71: #{transformer_clustering_forward.19} parent=55 // pred_region
        %p457 = scmp.lt.s32.totalorder %s27, 1
        %s458 = scalar_select %p457, %s27, 1
        %s459 = smul.addr %s458, 8
        %s460 = scalar_lea.vmem %s3, %s459
      $region72: #{transformer_clustering_forward.19} parent=55 // pred_fallthru
        _
    $region56: #{transformer_clustering_forward.19} parent=5 // pred_fallthru
      _
    %p461 = scmp.le.s32.totalorder 1, %s20
    %p462 = scmp.lt.s32.totalorder %s20, 3
    %p463 = pnand %p461, %p462
    %p464 = pneg %p463
    // Predicated region
    $region73: #{transformer_clustering_forward.19} parent=5 // pred_check
      _
    $region74: #{transformer_clustering_forward.19} parent=5 // pred_check_branch
      %466 = sbr.rel (%p463) target = $region76
    $region75: #{transformer_clustering_forward.19} parent=5 // pred_region
      %s467 = ssub.s32 %s20, 1
      %p468 = scmp.lt.s32.totalorder %s29, 1
      %s469 = scalar_select %p468, %s29, 1
      %p470 = scmp.lt.s32.totalorder %s30, 0
      %s471 = scalar_select %p470, %s30, 0
      %s472 = sadd.s32 %s471, %s469
      %s473 = smul.addr %s472, 8
      %s474 = scalar_lea.vmem %s0, %s473
      %p475 = pneg %p60
      %p476 = pneg %p57
      %p477 = scmp.lt.s32.totalorder %s29, 1
      %s478 = scalar_select %p477, %s29, 1
      %p479 = scmp.lt.s32.totalorder %s30, 0
      %s480 = scalar_select %p479, %s30, 0
      %s481 = sadd.s32 %s480, %s478
      %s482 = smul.addr %s481, 8
      %s483 = scalar_lea.vmem %s1, %s482
      %p484 = pneg %p88
      %p485 = pneg %p85
      %p486 = scmp.lt.s32.totalorder %s29, 1
      %s487 = scalar_select %p486, %s29, 1
      %s488 = smul.addr %s487, 8
      %s489 = scalar_lea.vmem %s2, %s488
      %p490 = pneg %p114
      %p491 = pneg %p111
      %p492 = scmp.lt.s32.totalorder %s29, 1
      %s493 = scalar_select %p492, %s29, 1
      %s494 = smul.addr %s493, 8
      %s495 = scalar_lea.vmem %s3, %s494
      %p496 = pneg %p140
      %p497 = pneg %p137
      %p498 = pneg %p161
      %p499 = pneg %p158
      %p500 = pneg %p182
      %p501 = pneg %p179
      %p502 = pneg %p203
      %p503 = pneg %p200
      %p504 = pneg %p224
      %p505 = pneg %p221
      %p506 = pneg %p245
      %p507 = pneg %p242
      %p508 = pneg %p266
      %p509 = pneg %p263
      %p510 = pneg %p287
      %p511 = pneg %p284
      %p512 = pneg %p308
      %p513 = pneg %p305
      %p514 = pneg %p329
      %p515 = pneg %p326
      %p516 = pneg %p350
      %p517 = pneg %p347
      %p518 = pneg %p378
      %p519 = pneg %p375
      %p520 = scmp.lt.s32.totalorder %s29, 1
      %s521 = scalar_select %p520, %s29, 1
      %p522 = scmp.lt.s32.totalorder %s30, 0
      %s523 = scalar_select %p522, %s30, 0
      %s524 = sadd.s32 %s523, %s521
      %s525 = smul.addr %s524, 8
      %s526 = scalar_lea.vmem %s14, %s525
      %p527 = scmp.lt.s32.totalorder %s29, 1
      %s528 = scalar_select %p527, %s29, 1
      %p529 = scmp.lt.s32.totalorder %s30, 0
      %s530 = scalar_select %p529, %s30, 0
      %s531 = sadd.s32 %s530, %s528
      %s532 = smul.addr %s531, 8
      %s533 = scalar_lea.vmem %s0, %s532
      %p534 = scmp.lt.s32.totalorder %s29, 1
      %s535 = scalar_select %p534, %s29, 1
      %p536 = scmp.lt.s32.totalorder %s30, 0
      %s537 = scalar_select %p536, %s30, 0
      %s538 = sadd.s32 %s537, %s535
      %s539 = smul.addr %s538, 8
      %s540 = scalar_lea.vmem %s1, %s539
      %p541 = scmp.lt.s32.totalorder %s29, 1
      %s542 = scalar_select %p541, %s29, 1
      %s543 = smul.addr %s542, 8
      %s544 = scalar_lea.vmem %s2, %s543
      %p545 = scmp.lt.s32.totalorder %s29, 1
      %s546 = scalar_select %p545, %s29, 1
      %s547 = smul.addr %s546, 8
      %s548 = scalar_lea.vmem %s3, %s547
      %p549 = scmp.lt.s32.totalorder %s29, 1
      %s550 = scalar_select %p549, %s29, 1
      %p551 = scmp.lt.s32.totalorder %s30, 0
      %s552 = scalar_select %p551, %s30, 0
      %s553 = sadd.s32 %s552, %s550
      %s554 = smul.addr %s553, 8
      %s555 = scalar_lea.vmem %s14, %s554
      %v557 = vld [vmem:[%s533] sm:$0xff]
      %v558 = vld [vmem:[%s540] sm:$0xff]
      %v559 = vadd.f32 %v557, %v558
      %v560 = vld [vmem:[%s544] sm:$0xff]
      %v561 = vld [vmem:[%s548] sm:$0xff]
      %v562 = vadd.f32 %v560, %v561
      %v563 = vpack.c.bf16 %v559, %v559
      %v564 = vld [vmem:[%s4] sm:$0xf]
      %v565 = vld [vmem:[%s4 + $0x4] sm:$0xf]
      %v566 = vld [vmem:[%s4 + $0x8] sm:$0xf]
      %v567 = vld [vmem:[%s4 + $0xc] sm:$0xf]
      %v568 = vld [vmem:[%s4 + $0x10] sm:$0xf]
      %v569 = vld [vmem:[%s4 + $0x14] sm:$0xf]
      %v570 = vld [vmem:[%s4 + $0x18] sm:$0xf]
      %v571 = vld [vmem:[%s4 + $0x1c] sm:$0xf]
      %v572 = vld [vmem:[%s4 + $0x20] sm:$0xf]
      %v573 = vld [vmem:[%s4 + $0x24] sm:$0xf]
      %v574 = vld [vmem:[%s4 + $0x28] sm:$0xf]
      %v575 = vld [vmem:[%s4 + $0x2c] sm:$0xf]
      %v576 = vld [vmem:[%s4 + $0x30] sm:$0xf]
      %v577 = vld [vmem:[%s4 + $0x34] sm:$0xf]
      %v578 = vld [vmem:[%s4 + $0x38] sm:$0xf]
      %v579 = vld [vmem:[%s4 + $0x3c] sm:$0xf]
      %v580 = vld [vmem:[%s5] sm:$0x1]
      %v582 = vlaneseq
      %v583 = vshrl.u32 %v582, 7
      %v584 = vsub.s32 0, %v583
      %v585 = vrot.slane %v580, %v584
      %v603 = vunpack.c.l.b16 %v564
      %v604 = vunpack.c.l.b16 %v565
      %v605 = vunpack.c.l.b16 %v566
      %v606 = vunpack.c.l.b16 %v567
      %v607 = vunpack.c.l.b16 %v568
      %v608 = vunpack.c.l.b16 %v569
      %v609 = vunpack.c.l.b16 %v570
      %v610 = vunpack.c.l.b16 %v571
      %v611 = vunpack.c.l.b16 %v572
      %v612 = vunpack.c.l.b16 %v573
      %v613 = vunpack.c.l.b16 %v574
      %v614 = vunpack.c.l.b16 %v575
      %v615 = vunpack.c.l.b16 %v576
      %v616 = vunpack.c.l.b16 %v577
      %v617 = vunpack.c.l.b16 %v578
      %v618 = vunpack.c.l.b16 %v579
      %v619 = vpack.c.b16 %v604, %v603
      %v620 = vpack.c.b16 %v606, %v605
      %v621 = vpack.c.b16 %v608, %v607
      %v622 = vpack.c.b16 %v610, %v609
      %v623 = vpack.c.b16 %v612, %v611
      %v624 = vpack.c.b16 %v614, %v613
      %v625 = vpack.c.b16 %v616, %v615
      %v626 = vpack.c.b16 %v618, %v617
      %635 = vmatprep.subr.bf16.mxu0 0
      %636 = vmatpush1.bf16.msra.mxu0 %v626
      %637 = vmatprep.subr.bf16.mxu0 0
      %638 = vmatpush1.bf16.msra.mxu0 %v625
      %639 = vmatprep.subr.bf16.mxu0 0
      %640 = vmatpush1.bf16.msra.mxu0 %v624
      %641 = vmatprep.subr.bf16.mxu0 0
      %642 = vmatpush1.bf16.msra.mxu0 %v623
      %643 = vmatprep.subr.bf16.mxu0 0
      %644 = vmatpush1.bf16.msra.mxu0 %v622
      %645 = vmatprep.subr.bf16.mxu0 0
      %646 = vmatpush1.bf16.msra.mxu0 %v621
      %647 = vmatprep.subr.bf16.mxu0 0
      %648 = vmatpush1.bf16.msra.mxu0 %v620
      %649 = vmatprep.subr.bf16.mxu0 0
      %650 = vmatpush1.bf16.msra.mxu0 %v619
      %651 = vmatprep.subr.bf16.mxu0 0
      %652 = vmatpush2.bf16.msra.mxu0 0
      %653 = vmatprep.subr.bf16.mxu0 0
      %654 = vmatpush2.bf16.msra.mxu0 0
      %655 = vmatprep.subr.bf16.mxu0 0
      %656 = vmatpush2.bf16.msra.mxu0 0
      %657 = vmatprep.subr.bf16.mxu0 0
      %658 = vmatpush2.bf16.msra.mxu0 0
      %659 = vmatprep.subr.bf16.mxu0 0
      %660 = vmatpush2.bf16.msra.mxu0 0
      %661 = vmatprep.subr.bf16.mxu0 0
      %662 = vmatpush2.bf16.msra.mxu0 0
      %663 = vmatprep.subr.bf16.mxu0 0
      %664 = vmatpush2.bf16.msra.mxu0 0
      %665 = vmatprep.subr.bf16.mxu0 0
      %666 = vmatpush2.bf16.msra.mxu0 0
      %667 = vmatprep.mubr.bf16.mxu0 0
      %668 = vmatmul.mubr.bf16.gmra.mxu0 %v563
      %v669 = vpop.f32.mrf.mxu0
      %v670 = vadd.f32 %v585, %v669
      %v671 = vpop.f32.mrf.mxu0
      %v672 = vpop.f32.mrf.mxu0
      %v673 = vpop.f32.mrf.mxu0
      %674 = vdwg.mxu0
      %v675 = vpack.c.bf16 %v562, %v562
      %v676 = vld [vmem:[%s6] sm:$0xf]
      %v677 = vld [vmem:[%s6 + $0x4] sm:$0xf]
      %v678 = vld [vmem:[%s6 + $0x8] sm:$0xf]
      %v679 = vld [vmem:[%s6 + $0xc] sm:$0xf]
      %v680 = vld [vmem:[%s6 + $0x10] sm:$0xf]
      %v681 = vld [vmem:[%s6 + $0x14] sm:$0xf]
      %v682 = vld [vmem:[%s6 + $0x18] sm:$0xf]
      %v683 = vld [vmem:[%s6 + $0x1c] sm:$0xf]
      %v684 = vld [vmem:[%s6 + $0x20] sm:$0xf]
      %v685 = vld [vmem:[%s6 + $0x24] sm:$0xf]
      %v686 = vld [vmem:[%s6 + $0x28] sm:$0xf]
      %v687 = vld [vmem:[%s6 + $0x2c] sm:$0xf]
      %v688 = vld [vmem:[%s6 + $0x30] sm:$0xf]
      %v689 = vld [vmem:[%s6 + $0x34] sm:$0xf]
      %v690 = vld [vmem:[%s6 + $0x38] sm:$0xf]
      %v691 = vld [vmem:[%s6 + $0x3c] sm:$0xf]
      %v692 = vld [vmem:[%s7] sm:$0x1]
      %v694 = vlaneseq
      %v695 = vshrl.u32 %v694, 7
      %v696 = vsub.s32 0, %v695
      %v697 = vrot.slane %v692, %v696
      %v715 = vunpack.c.l.b16 %v676
      %v716 = vunpack.c.l.b16 %v677
      %v717 = vunpack.c.l.b16 %v678
      %v718 = vunpack.c.l.b16 %v679
      %v719 = vunpack.c.l.b16 %v680
      %v720 = vunpack.c.l.b16 %v681
      %v721 = vunpack.c.l.b16 %v682
      %v722 = vunpack.c.l.b16 %v683
      %v723 = vunpack.c.l.b16 %v684
      %v724 = vunpack.c.l.b16 %v685
      %v725 = vunpack.c.l.b16 %v686
      %v726 = vunpack.c.l.b16 %v687
      %v727 = vunpack.c.l.b16 %v688
      %v728 = vunpack.c.l.b16 %v689
      %v729 = vunpack.c.l.b16 %v690
      %v730 = vunpack.c.l.b16 %v691
      %v731 = vpack.c.b16 %v716, %v715
      %v732 = vpack.c.b16 %v718, %v717
      %v733 = vpack.c.b16 %v720, %v719
      %v734 = vpack.c.b16 %v722, %v721
      %v735 = vpack.c.b16 %v724, %v723
      %v736 = vpack.c.b16 %v726, %v725
      %v737 = vpack.c.b16 %v728, %v727
      %v738 = vpack.c.b16 %v730, %v729
      %747 = vmatprep.subr.bf16.mxu0 0
      %748 = vmatpush1.bf16.msra.mxu0 %v738
      %749 = vmatprep.subr.bf16.mxu0 0
      %750 = vmatpush1.bf16.msra.mxu0 %v737
      %751 = vmatprep.subr.bf16.mxu0 0
      %752 = vmatpush1.bf16.msra.mxu0 %v736
      %753 = vmatprep.subr.bf16.mxu0 0
      %754 = vmatpush1.bf16.msra.mxu0 %v735
      %755 = vmatprep.subr.bf16.mxu0 0
      %756 = vmatpush1.bf16.msra.mxu0 %v734
      %757 = vmatprep.subr.bf16.mxu0 0
      %758 = vmatpush1.bf16.msra.mxu0 %v733
      %759 = vmatprep.subr.bf16.mxu0 0
      %760 = vmatpush1.bf16.msra.mxu0 %v732
      %761 = vmatprep.subr.bf16.mxu0 0
      %762 = vmatpush1.bf16.msra.mxu0 %v731
      %763 = vmatprep.subr.bf16.mxu0 0
      %764 = vmatpush2.bf16.msra.mxu0 0
      %765 = vmatprep.subr.bf16.mxu0 0
      %766 = vmatpush2.bf16.msra.mxu0 0
      %767 = vmatprep.subr.bf16.mxu0 0
      %768 = vmatpush2.bf16.msra.mxu0 0
      %769 = vmatprep.subr.bf16.mxu0 0
      %770 = vmatpush2.bf16.msra.mxu0 0
      %771 = vmatprep.subr.bf16.mxu0 0
      %772 = vmatpush2.bf16.msra.mxu0 0
      %773 = vmatprep.subr.bf16.mxu0 0
      %774 = vmatpush2.bf16.msra.mxu0 0
      %775 = vmatprep.subr.bf16.mxu0 0
      %776 = vmatpush2.bf16.msra.mxu0 0
      %777 = vmatprep.subr.bf16.mxu0 0
      %778 = vmatpush2.bf16.msra.mxu0 0
      %779 = vmatprep.mubr.bf16.mxu0 0
      %780 = vmatmul.mubr.bf16.gmra.mxu0 %v675
      %v781 = vpop.f32.mrf.mxu0
      %v782 = vadd.f32 %v697, %v781
      %v783 = vpop.f32.mrf.mxu0
      %v784 = vpop.f32.mrf.mxu0
      %v785 = vpop.f32.mrf.mxu0
      %786 = vdwg.mxu0
      %v787 = vpack.c.bf16 %v560, %v560
      %v788 = vld [vmem:[%s8] sm:$0xf]
      %v789 = vld [vmem:[%s8 + $0x4] sm:$0xf]
      %v790 = vld [vmem:[%s8 + $0x8] sm:$0xf]
      %v791 = vld [vmem:[%s8 + $0xc] sm:$0xf]
      %v792 = vld [vmem:[%s8 + $0x10] sm:$0xf]
      %v793 = vld [vmem:[%s8 + $0x14] sm:$0xf]
      %v794 = vld [vmem:[%s8 + $0x18] sm:$0xf]
      %v795 = vld [vmem:[%s8 + $0x1c] sm:$0xf]
      %v796 = vld [vmem:[%s8 + $0x20] sm:$0xf]
      %v797 = vld [vmem:[%s8 + $0x24] sm:$0xf]
      %v798 = vld [vmem:[%s8 + $0x28] sm:$0xf]
      %v799 = vld [vmem:[%s8 + $0x2c] sm:$0xf]
      %v800 = vld [vmem:[%s8 + $0x30] sm:$0xf]
      %v801 = vld [vmem:[%s8 + $0x34] sm:$0xf]
      %v802 = vld [vmem:[%s8 + $0x38] sm:$0xf]
      %v803 = vld [vmem:[%s8 + $0x3c] sm:$0xf]
      %v804 = vld [vmem:[%s9] sm:$0x1]
      %v806 = vlaneseq
      %v807 = vshrl.u32 %v806, 7
      %v808 = vsub.s32 0, %v807
      %v809 = vrot.slane %v804, %v808
      %v827 = vunpack.c.l.b16 %v788
      %v828 = vunpack.c.l.b16 %v789
      %v829 = vunpack.c.l.b16 %v790
      %v830 = vunpack.c.l.b16 %v791
      %v831 = vunpack.c.l.b16 %v792
      %v832 = vunpack.c.l.b16 %v793
      %v833 = vunpack.c.l.b16 %v794
      %v834 = vunpack.c.l.b16 %v795
      %v835 = vunpack.c.l.b16 %v796
      %v836 = vunpack.c.l.b16 %v797
      %v837 = vunpack.c.l.b16 %v798
      %v838 = vunpack.c.l.b16 %v799
      %v839 = vunpack.c.l.b16 %v800
      %v840 = vunpack.c.l.b16 %v801
      %v841 = vunpack.c.l.b16 %v802
      %v842 = vunpack.c.l.b16 %v803
      %v843 = vpack.c.b16 %v828, %v827
      %v844 = vpack.c.b16 %v830, %v829
      %v845 = vpack.c.b16 %v832, %v831
      %v846 = vpack.c.b16 %v834, %v833
      %v847 = vpack.c.b16 %v836, %v835
      %v848 = vpack.c.b16 %v838, %v837
      %v849 = vpack.c.b16 %v840, %v839
      %v850 = vpack.c.b16 %v842, %v841
      %859 = vmatprep.subr.bf16.mxu0 0
      %860 = vmatpush1.bf16.msra.mxu0 %v850
      %861 = vmatprep.subr.bf16.mxu0 0
      %862 = vmatpush1.bf16.msra.mxu0 %v849
      %863 = vmatprep.subr.bf16.mxu0 0
      %864 = vmatpush1.bf16.msra.mxu0 %v848
      %865 = vmatprep.subr.bf16.mxu0 0
      %866 = vmatpush1.bf16.msra.mxu0 %v847
      %867 = vmatprep.subr.bf16.mxu0 0
      %868 = vmatpush1.bf16.msra.mxu0 %v846
      %869 = vmatprep.subr.bf16.mxu0 0
      %870 = vmatpush1.bf16.msra.mxu0 %v845
      %871 = vmatprep.subr.bf16.mxu0 0
      %872 = vmatpush1.bf16.msra.mxu0 %v844
      %873 = vmatprep.subr.bf16.mxu0 0
      %874 = vmatpush1.bf16.msra.mxu0 %v843
      %875 = vmatprep.subr.bf16.mxu0 0
      %876 = vmatpush2.bf16.msra.mxu0 0
      %877 = vmatprep.subr.bf16.mxu0 0
      %878 = vmatpush2.bf16.msra.mxu0 0
      %879 = vmatprep.subr.bf16.mxu0 0
      %880 = vmatpush2.bf16.msra.mxu0 0
      %881 = vmatprep.subr.bf16.mxu0 0
      %882 = vmatpush2.bf16.msra.mxu0 0
      %883 = vmatprep.subr.bf16.mxu0 0
      %884 = vmatpush2.bf16.msra.mxu0 0
      %885 = vmatprep.subr.bf16.mxu0 0
      %886 = vmatpush2.bf16.msra.mxu0 0
      %887 = vmatprep.subr.bf16.mxu0 0
      %888 = vmatpush2.bf16.msra.mxu0 0
      %889 = vmatprep.subr.bf16.mxu0 0
      %890 = vmatpush2.bf16.msra.mxu0 0
      %891 = vmatprep.mubr.bf16.mxu0 0
      %892 = vmatmul.mubr.bf16.gmra.mxu0 %v787
      %v893 = vpop.f32.mrf.mxu0
      %v894 = vadd.f32 %v809, %v893
      %v895 = vpop.f32.mrf.mxu0
      %v896 = vpop.f32.mrf.mxu0
      %v897 = vpop.f32.mrf.mxu0
      %898 = vdwg.mxu0
      %v899 = vmul.f32 %v670, 0.17677669
      %v900 = vpack.c.bf16 %v899, %v899
      %v901 = vpack.c.bf16 %v782, %v782
      %v902 = vpack.c.bf16 %v894, %v894
      %vm903 = vcmask 261120
      %v905 = vsel %vm903, %v900, 0
      %v908 = vsel %vm903, %v901, 0
      %910 = vmatprep.subr.bf16.mxu0 0
      %911 = vmatpush1.bf16.xpose.msra.mxu0 0
      %912 = vmatprep.subr.bf16.mxu0 0
      %913 = vmatpush1.bf16.xpose.msra.mxu0 0
      %914 = vmatprep.subr.bf16.mxu0 0
      %915 = vmatpush1.bf16.xpose.msra.mxu0 0
      %916 = vmatprep.subr.bf16.mxu0 0
      %917 = vmatpush1.bf16.xpose.msra.mxu0 0
      %918 = vmatprep.subr.bf16.mxu0 0
      %919 = vmatpush1.bf16.xpose.msra.mxu0 0
      %920 = vmatprep.subr.bf16.mxu0 0
      %921 = vmatpush1.bf16.xpose.msra.mxu0 0
      %922 = vmatprep.subr.bf16.mxu0 0
      %923 = vmatpush1.bf16.xpose.msra.mxu0 0
      %924 = vmatprep.subr.bf16.mxu0 0
      %925 = vmatpush1.bf16.xpose.msra.mxu0 %v908
      %926 = vmatprep.subr.bf16.mxu0 0
      %927 = vmatpush2.bf16.xpose.msra.mxu0 0
      %928 = vmatprep.subr.bf16.mxu0 0
      %929 = vmatpush2.bf16.xpose.msra.mxu0 0
      %930 = vmatprep.subr.bf16.mxu0 0
      %931 = vmatpush2.bf16.xpose.msra.mxu0 0
      %932 = vmatprep.subr.bf16.mxu0 0
      %933 = vmatpush2.bf16.xpose.msra.mxu0 0
      %934 = vmatprep.subr.bf16.mxu0 0
      %935 = vmatpush2.bf16.xpose.msra.mxu0 0
      %936 = vmatprep.subr.bf16.mxu0 0
      %937 = vmatpush2.bf16.xpose.msra.mxu0 0
      %938 = vmatprep.subr.bf16.mxu0 0
      %939 = vmatpush2.bf16.xpose.msra.mxu0 0
      %940 = vmatprep.subr.bf16.mxu0 0
      %941 = vmatpush2.bf16.xpose.msra.mxu0 0
      %942 = vmatprep.mubr.bf16.mxu0 0
      %943 = vmatmul.mubr.bf16.gmra.mxu0 %v905
      %v944 = vpop.f32.mrf.mxu0
      %v945 = vadd.f32 0.0, %v944
      %v946 = vpop.f32.mrf.mxu0
      %v947 = vpop.f32.mrf.mxu0
      %v948 = vpop.f32.mrf.mxu0
      %949 = vdwg.mxu0
      %vm950 = vcmask 64512
      %v951 = vsel %vm950, %v945, -inf
      %952 = vmax.xlane.f32.xlu0 %v951
      %v953 = vpop.xlane.xlu0 %952
      %v954 = vsub.f32 %v945, %v953
      %v955 = vmul.f32 %v954, 1.442695
      %v956 = vpow.pop %v955
      %v957 = vsel %vm950, %v956, 0.0
      %958 = vadd.xlane.f32.xlu0 %v957
      %v959 = vpop.xlane.xlu0 %958
      %v960 = vrcp.pop %v959
      %v961 = vmul.f32 %v956, %v960
      %v962 = vpack.c.bf16 %v961, %v961
      %v964 = vsel %vm950, %v962, 0
      %vm966 = vcmask 1043456
      %v968 = vsel %vm966, %v902, 0
      %970 = vmatprep.subr.bf16.mxu0 0
      %971 = vmatpush1.bf16.msra.mxu0 0
      %972 = vmatprep.subr.bf16.mxu0 0
      %973 = vmatpush1.bf16.msra.mxu0 0
      %974 = vmatprep.subr.bf16.mxu0 0
      %975 = vmatpush1.bf16.msra.mxu0 0
      %976 = vmatprep.subr.bf16.mxu0 0
      %977 = vmatpush1.bf16.msra.mxu0 0
      %978 = vmatprep.subr.bf16.mxu0 0
      %979 = vmatpush1.bf16.msra.mxu0 0
      %980 = vmatprep.subr.bf16.mxu0 0
      %981 = vmatpush1.bf16.msra.mxu0 0
      %982 = vmatprep.subr.bf16.mxu0 0
      %983 = vmatpush1.bf16.msra.mxu0 0
      %984 = vmatprep.subr.bf16.mxu0 0
      %985 = vmatpush1.bf16.msra.mxu0 %v968
      %986 = vmatprep.subr.bf16.mxu0 0
      %987 = vmatpush2.bf16.msra.mxu0 0
      %988 = vmatprep.subr.bf16.mxu0 0
      %989 = vmatpush2.bf16.msra.mxu0 0
      %990 = vmatprep.subr.bf16.mxu0 0
      %991 = vmatpush2.bf16.msra.mxu0 0
      %992 = vmatprep.subr.bf16.mxu0 0
      %993 = vmatpush2.bf16.msra.mxu0 0
      %994 = vmatprep.subr.bf16.mxu0 0
      %995 = vmatpush2.bf16.msra.mxu0 0
      %996 = vmatprep.subr.bf16.mxu0 0
      %997 = vmatpush2.bf16.msra.mxu0 0
      %998 = vmatprep.subr.bf16.mxu0 0
      %999 = vmatpush2.bf16.msra.mxu0 0
      %1000 = vmatprep.subr.bf16.mxu0 0
      %1001 = vmatpush2.bf16.msra.mxu0 0
      %1002 = vmatprep.mubr.bf16.mxu0 0
      %1003 = vmatmul.mubr.bf16.gmra.mxu0 %v964
      %v1004 = vpop.f32.mrf.mxu0
      %v1005 = vadd.f32 0.0, %v1004
      %v1006 = vpop.f32.mrf.mxu0
      %v1007 = vpop.f32.mrf.mxu0
      %v1008 = vpop.f32.mrf.mxu0
      %1009 = vdwg.mxu0
      %1011 = vrot.lane.b32.xlu0 %v900, 96
      %v1012 = vpop.permute.xlu0 %1011
      %1014 = vrot.lane.b32.xlu0 %v901, 96
      %v1015 = vpop.permute.xlu0 %1014
      %v1017 = vsel %vm903, %v1012, 0
      %v1020 = vsel %vm903, %v1015, 0
      %1022 = vmatprep.subr.bf16.mxu0 0
      %1023 = vmatpush1.bf16.xpose.msra.mxu0 0
      %1024 = vmatprep.subr.bf16.mxu0 0
      %1025 = vmatpush1.bf16.xpose.msra.mxu0 0
      %1026 = vmatprep.subr.bf16.mxu0 0
      %1027 = vmatpush1.bf16.xpose.msra.mxu0 0
      %1028 = vmatprep.subr.bf16.mxu0 0
      %1029 = vmatpush1.bf16.xpose.msra.mxu0 0
      %1030 = vmatprep.subr.bf16.mxu0 0
      %1031 = vmatpush1.bf16.xpose.msra.mxu0 0
      %1032 = vmatprep.subr.bf16.mxu0 0
      %1033 = vmatpush1.bf16.xpose.msra.mxu0 0
      %1034 = vmatprep.subr.bf16.mxu0 0
      %1035 = vmatpush1.bf16.xpose.msra.mxu0 0
      %1036 = vmatprep.subr.bf16.mxu0 0
      %1037 = vmatpush1.bf16.xpose.msra.mxu0 %v1020
      %1038 = vmatprep.subr.bf16.mxu0 0
      %1039 = vmatpush2.bf16.xpose.msra.mxu0 0
      %1040 = vmatprep.subr.bf16.mxu0 0
      %1041 = vmatpush2.bf16.xpose.msra.mxu0 0
      %1042 = vmatprep.subr.bf16.mxu0 0
      %1043 = vmatpush2.bf16.xpose.msra.mxu0 0
      %1044 = vmatprep.subr.bf16.mxu0 0
      %1045 = vmatpush2.bf16.xpose.msra.mxu0 0
      %1046 = vmatprep.subr.bf16.mxu0 0
      %1047 = vmatpush2.bf16.xpose.msra.mxu0 0
      %1048 = vmatprep.subr.bf16.mxu0 0
      %1049 = vmatpush2.bf16.xpose.msra.mxu0 0
      %1050 = vmatprep.subr.bf16.mxu0 0
      %1051 = vmatpush2.bf16.xpose.msra.mxu0 0
      %1052 = vmatprep.subr.bf16.mxu0 0
      %1053 = vmatpush2.bf16.xpose.msra.mxu0 0
      %1054 = vmatprep.mubr.bf16.mxu0 0
      %1055 = vmatmul.mubr.bf16.gmra.mxu0 %v1017
      %v1056 = vpop.f32.mrf.mxu0
      %v1057 = vadd.f32 0.0, %v1056
      %v1058 = vpop.f32.mrf.mxu0
      %v1059 = vpop.f32.mrf.mxu0
      %v1060 = vpop.f32.mrf.mxu0
      %1061 = vdwg.mxu0
      %v1062 = vsel %vm950, %v1057, -inf
      %1063 = vmax.xlane.f32.xlu0 %v1062
      %v1064 = vpop.xlane.xlu0 %1063
      %v1065 = vsub.f32 %v1057, %v1064
      %v1066 = vmul.f32 %v1065, 1.442695
      %v1067 = vpow.pop %v1066
      %v1068 = vsel %vm950, %v1067, 0.0
      %1069 = vadd.xlane.f32.xlu0 %v1068
      %v1070 = vpop.xlane.xlu0 %1069
      %v1071 = vrcp.pop %v1070
      %v1072 = vmul.f32 %v1067, %v1071
      %v1073 = vpack.c.bf16 %v1072, %v1072
      %1075 = vrot.lane.b32.xlu0 %v902, 96
      %v1076 = vpop.permute.xlu0 %1075
      %v1078 = vsel %vm950, %v1073, 0
      %v1081 = vsel %vm966, %v1076, 0
      %1083 = vmatprep.subr.bf16.mxu0 0
      %1084 = vmatpush1.bf16.msra.mxu0 0
      %1085 = vmatprep.subr.bf16.mxu0 0
      %1086 = vmatpush1.bf16.msra.mxu0 0
      %1087 = vmatprep.subr.bf16.mxu0 0
      %1088 = vmatpush1.bf16.msra.mxu0 0
      %1089 = vmatprep.subr.bf16.mxu0 0
      %1090 = vmatpush1.bf16.msra.mxu0 0
      %1091 = vmatprep.subr.bf16.mxu0 0
      %1092 = vmatpush1.bf16.msra.mxu0 0
      %1093 = vmatprep.subr.bf16.mxu0 0
      %1094 = vmatpush1.bf16.msra.mxu0 0
      %1095 = vmatprep.subr.bf16.mxu0 0
      %1096 = vmatpush1.bf16.msra.mxu0 0
      %1097 = vmatprep.subr.bf16.mxu0 0
      %1098 = vmatpush1.bf16.msra.mxu0 %v1081
      %1099 = vmatprep.subr.bf16.mxu0 0
      %1100 = vmatpush2.bf16.msra.mxu0 0
      %1101 = vmatprep.subr.bf16.mxu0 0
      %1102 = vmatpush2.bf16.msra.mxu0 0
      %1103 = vmatprep.subr.bf16.mxu0 0
      %1104 = vmatpush2.bf16.msra.mxu0 0
      %1105 = vmatprep.subr.bf16.mxu0 0
      %1106 = vmatpush2.bf16.msra.mxu0 0
      %1107 = vmatprep.subr.bf16.mxu0 0
      %1108 = vmatpush2.bf16.msra.mxu0 0
      %1109 = vmatprep.subr.bf16.mxu0 0
      %1110 = vmatpush2.bf16.msra.mxu0 0
      %1111 = vmatprep.subr.bf16.mxu0 0
      %1112 = vmatpush2.bf16.msra.mxu0 0
      %1113 = vmatprep.subr.bf16.mxu0 0
      %1114 = vmatpush2.bf16.msra.mxu0 0
      %1115 = vmatprep.mubr.bf16.mxu0 0
      %1116 = vmatmul.mubr.bf16.gmra.mxu0 %v1078
      %v1117 = vpop.f32.mrf.mxu0
      %v1118 = vadd.f32 0.0, %v1117
      %v1119 = vpop.f32.mrf.mxu0
      %v1120 = vpop.f32.mrf.mxu0
      %v1121 = vpop.f32.mrf.mxu0
      %1122 = vdwg.mxu0
      %1123 = vrot.lane.b32.xlu0 %v900, 64
      %v1124 = vpop.permute.xlu0 %1123
      %1125 = vrot.lane.b32.xlu0 %v901, 64
      %v1126 = vpop.permute.xlu0 %1125
      %v1128 = vsel %vm903, %v1124, 0
      %v1131 = vsel %vm903, %v1126, 0
      %1133 = vmatprep.subr.bf16.mxu0 0
      %1134 = vmatpush1.bf16.xpose.msra.mxu0 0
      %1135 = vmatprep.subr.bf16.mxu0 0
      %1136 = vmatpush1.bf16.xpose.msra.mxu0 0
      %1137 = vmatprep.subr.bf16.mxu0 0
      %1138 = vmatpush1.bf16.xpose.msra.mxu0 0
      %1139 = vmatprep.subr.bf16.mxu0 0
      %1140 = vmatpush1.bf16.xpose.msra.mxu0 0
      %1141 = vmatprep.subr.bf16.mxu0 0
      %1142 = vmatpush1.bf16.xpose.msra.mxu0 0
      %1143 = vmatprep.subr.bf16.mxu0 0
      %1144 = vmatpush1.bf16.xpose.msra.mxu0 0
      %1145 = vmatprep.subr.bf16.mxu0 0
      %1146 = vmatpush1.bf16.xpose.msra.mxu0 0
      %1147 = vmatprep.subr.bf16.mxu0 0
      %1148 = vmatpush1.bf16.xpose.msra.mxu0 %v1131
      %1149 = vmatprep.subr.bf16.mxu0 0
      %1150 = vmatpush2.bf16.xpose.msra.mxu0 0
      %1151 = vmatprep.subr.bf16.mxu0 0
      %1152 = vmatpush2.bf16.xpose.msra.mxu0 0
      %1153 = vmatprep.subr.bf16.mxu0 0
      %1154 = vmatpush2.bf16.xpose.msra.mxu0 0
      %1155 = vmatprep.subr.bf16.mxu0 0
      %1156 = vmatpush2.bf16.xpose.msra.mxu0 0
      %1157 = vmatprep.subr.bf16.mxu0 0
      %1158 = vmatpush2.bf16.xpose.msra.mxu0 0
      %1159 = vmatprep.subr.bf16.mxu0 0
      %1160 = vmatpush2.bf16.xpose.msra.mxu0 0
      %1161 = vmatprep.subr.bf16.mxu0 0
      %1162 = vmatpush2.bf16.xpose.msra.mxu0 0
      %1163 = vmatprep.subr.bf16.mxu0 0
      %1164 = vmatpush2.bf16.xpose.msra.mxu0 0
      %1165 = vmatprep.mubr.bf16.mxu0 0
      %1166 = vmatmul.mubr.bf16.gmra.mxu0 %v1128
      %v1167 = vpop.f32.mrf.mxu0
      %v1168 = vadd.f32 0.0, %v1167
      %v1169 = vpop.f32.mrf.mxu0
      %v1170 = vpop.f32.mrf.mxu0
      %v1171 = vpop.f32.mrf.mxu0
      %1172 = vdwg.mxu0
      %v1173 = vsel %vm950, %v1168, -inf
      %1174 = vmax.xlane.f32.xlu0 %v1173
      %v1175 = vpop.xlane.xlu0 %1174
      %v1176 = vsub.f32 %v1168, %v1175
      %v1177 = vmul.f32 %v1176, 1.442695
      %v1178 = vpow.pop %v1177
      %v1179 = vsel %vm950, %v1178, 0.0
      %1180 = vadd.xlane.f32.xlu0 %v1179
      %v1181 = vpop.xlane.xlu0 %1180
      %v1182 = vrcp.pop %v1181
      %v1183 = vmul.f32 %v1178, %v1182
      %v1184 = vpack.c.bf16 %v1183, %v1183
      %1185 = vrot.lane.b32.xlu0 %v902, 64
      %v1186 = vpop.permute.xlu0 %1185
      %v1188 = vsel %vm950, %v1184, 0
      %v1191 = vsel %vm966, %v1186, 0
      %1193 = vmatprep.subr.bf16.mxu0 0
      %1194 = vmatpush1.bf16.msra.mxu0 0
      %1195 = vmatprep.subr.bf16.mxu0 0
      %1196 = vmatpush1.bf16.msra.mxu0 0
      %1197 = vmatprep.subr.bf16.mxu0 0
      %1198 = vmatpush1.bf16.msra.mxu0 0
      %1199 = vmatprep.subr.bf16.mxu0 0
      %1200 = vmatpush1.bf16.msra.mxu0 0
      %1201 = vmatprep.subr.bf16.mxu0 0
      %1202 = vmatpush1.bf16.msra.mxu0 0
      %1203 = vmatprep.subr.bf16.mxu0 0
      %1204 = vmatpush1.bf16.msra.mxu0 0
      %1205 = vmatprep.subr.bf16.mxu0 0
      %1206 = vmatpush1.bf16.msra.mxu0 0
      %1207 = vmatprep.subr.bf16.mxu0 0
      %1208 = vmatpush1.bf16.msra.mxu0 %v1191
      %1209 = vmatprep.subr.bf16.mxu0 0
      %1210 = vmatpush2.bf16.msra.mxu0 0
      %1211 = vmatprep.subr.bf16.mxu0 0
      %1212 = vmatpush2.bf16.msra.mxu0 0
      %1213 = vmatprep.subr.bf16.mxu0 0
      %1214 = vmatpush2.bf16.msra.mxu0 0
      %1215 = vmatprep.subr.bf16.mxu0 0
      %1216 = vmatpush2.bf16.msra.mxu0 0
      %1217 = vmatprep.subr.bf16.mxu0 0
      %1218 = vmatpush2.bf16.msra.mxu0 0
      %1219 = vmatprep.subr.bf16.mxu0 0
      %1220 = vmatpush2.bf16.msra.mxu0 0
      %1221 = vmatprep.subr.bf16.mxu0 0
      %1222 = vmatpush2.bf16.msra.mxu0 0
      %1223 = vmatprep.subr.bf16.mxu0 0
      %1224 = vmatpush2.bf16.msra.mxu0 0
      %1225 = vmatprep.mubr.bf16.mxu0 0
      %1226 = vmatmul.mubr.bf16.gmra.mxu0 %v1188
      %v1227 = vpop.f32.mrf.mxu0
      %v1228 = vadd.f32 0.0, %v1227
      %v1229 = vpop.f32.mrf.mxu0
      %v1230 = vpop.f32.mrf.mxu0
      %v1231 = vpop.f32.mrf.mxu0
      %1232 = vdwg.mxu0
      %1233 = vrot.lane.b32.xlu0 %v900, 32
      %v1234 = vpop.permute.xlu0 %1233
      %1235 = vrot.lane.b32.xlu0 %v901, 32
      %v1236 = vpop.permute.xlu0 %1235
      %v1238 = vsel %vm903, %v1234, 0
      %v1241 = vsel %vm903, %v1236, 0
      %1243 = vmatprep.subr.bf16.mxu0 0
      %1244 = vmatpush1.bf16.xpose.msra.mxu0 0
      %1245 = vmatprep.subr.bf16.mxu0 0
      %1246 = vmatpush1.bf16.xpose.msra.mxu0 0
      %1247 = vmatprep.subr.bf16.mxu0 0
      %1248 = vmatpush1.bf16.xpose.msra.mxu0 0
      %1249 = vmatprep.subr.bf16.mxu0 0
      %1250 = vmatpush1.bf16.xpose.msra.mxu0 0
      %1251 = vmatprep.subr.bf16.mxu0 0
      %1252 = vmatpush1.bf16.xpose.msra.mxu0 0
      %1253 = vmatprep.subr.bf16.mxu0 0
      %1254 = vmatpush1.bf16.xpose.msra.mxu0 0
      %1255 = vmatprep.subr.bf16.mxu0 0
      %1256 = vmatpush1.bf16.xpose.msra.mxu0 0
      %1257 = vmatprep.subr.bf16.mxu0 0
      %1258 = vmatpush1.bf16.xpose.msra.mxu0 %v1241
      %1259 = vmatprep.subr.bf16.mxu0 0
      %1260 = vmatpush2.bf16.xpose.msra.mxu0 0
      %1261 = vmatprep.subr.bf16.mxu0 0
      %1262 = vmatpush2.bf16.xpose.msra.mxu0 0
      %1263 = vmatprep.subr.bf16.mxu0 0
      %1264 = vmatpush2.bf16.xpose.msra.mxu0 0
      %1265 = vmatprep.subr.bf16.mxu0 0
      %1266 = vmatpush2.bf16.xpose.msra.mxu0 0
      %1267 = vmatprep.subr.bf16.mxu0 0
      %1268 = vmatpush2.bf16.xpose.msra.mxu0 0
      %1269 = vmatprep.subr.bf16.mxu0 0
      %1270 = vmatpush2.bf16.xpose.msra.mxu0 0
      %1271 = vmatprep.subr.bf16.mxu0 0
      %1272 = vmatpush2.bf16.xpose.msra.mxu0 0
      %1273 = vmatprep.subr.bf16.mxu0 0
      %1274 = vmatpush2.bf16.xpose.msra.mxu0 0
      %1275 = vmatprep.mubr.bf16.mxu0 0
      %1276 = vmatmul.mubr.bf16.gmra.mxu0 %v1238
      %v1277 = vpop.f32.mrf.mxu0
      %v1278 = vadd.f32 0.0, %v1277
      %v1279 = vpop.f32.mrf.mxu0
      %v1280 = vpop.f32.mrf.mxu0
      %v1281 = vpop.f32.mrf.mxu0
      %1282 = vdwg.mxu0
      %v1283 = vsel %vm950, %v1278, -inf
      %1284 = vmax.xlane.f32.xlu0 %v1283
      %v1285 = vpop.xlane.xlu0 %1284
      %v1286 = vsub.f32 %v1278, %v1285
      %v1287 = vmul.f32 %v1286, 1.442695
      %v1288 = vpow.pop %v1287
      %v1289 = vsel %vm950, %v1288, 0.0
      %1290 = vadd.xlane.f32.xlu0 %v1289
      %v1291 = vpop.xlane.xlu0 %1290
      %v1292 = vrcp.pop %v1291
      %v1293 = vmul.f32 %v1288, %v1292
      %v1294 = vpack.c.bf16 %v1293, %v1293
      %1295 = vrot.lane.b32.xlu0 %v902, 32
      %v1296 = vpop.permute.xlu0 %1295
      %v1298 = vsel %vm950, %v1294, 0
      %v1301 = vsel %vm966, %v1296, 0
      %1303 = vmatprep.subr.bf16.mxu0 0
      %1304 = vmatpush1.bf16.msra.mxu0 0
      %1305 = vmatprep.subr.bf16.mxu0 0
      %1306 = vmatpush1.bf16.msra.mxu0 0
      %1307 = vmatprep.subr.bf16.mxu0 0
      %1308 = vmatpush1.bf16.msra.mxu0 0
      %1309 = vmatprep.subr.bf16.mxu0 0
      %1310 = vmatpush1.bf16.msra.mxu0 0
      %1311 = vmatprep.subr.bf16.mxu0 0
      %1312 = vmatpush1.bf16.msra.mxu0 0
      %1313 = vmatprep.subr.bf16.mxu0 0
      %1314 = vmatpush1.bf16.msra.mxu0 0
      %1315 = vmatprep.subr.bf16.mxu0 0
      %1316 = vmatpush1.bf16.msra.mxu0 0
      %1317 = vmatprep.subr.bf16.mxu0 0
      %1318 = vmatpush1.bf16.msra.mxu0 %v1301
      %1319 = vmatprep.subr.bf16.mxu0 0
      %1320 = vmatpush2.bf16.msra.mxu0 0
      %1321 = vmatprep.subr.bf16.mxu0 0
      %1322 = vmatpush2.bf16.msra.mxu0 0
      %1323 = vmatprep.subr.bf16.mxu0 0
      %1324 = vmatpush2.bf16.msra.mxu0 0
      %1325 = vmatprep.subr.bf16.mxu0 0
      %1326 = vmatpush2.bf16.msra.mxu0 0
      %1327 = vmatprep.subr.bf16.mxu0 0
      %1328 = vmatpush2.bf16.msra.mxu0 0
      %1329 = vmatprep.subr.bf16.mxu0 0
      %1330 = vmatpush2.bf16.msra.mxu0 0
      %1331 = vmatprep.subr.bf16.mxu0 0
      %1332 = vmatpush2.bf16.msra.mxu0 0
      %1333 = vmatprep.subr.bf16.mxu0 0
      %1334 = vmatpush2.bf16.msra.mxu0 0
      %1335 = vmatprep.mubr.bf16.mxu0 0
      %1336 = vmatmul.mubr.bf16.gmra.mxu0 %v1298
      %v1337 = vpop.f32.mrf.mxu0
      %v1338 = vadd.f32 0.0, %v1337
      %v1339 = vpop.f32.mrf.mxu0
      %v1340 = vpop.f32.mrf.mxu0
      %v1341 = vpop.f32.mrf.mxu0
      %1342 = vdwg.mxu0
      %1344 = vrot.lane.b32.xlu0 %v1118, 32
      %v1345 = vpop.permute.xlu0 %1344
      %1348 = vrot.lane.b32.xlu0 %v1228, 64
      %v1349 = vpop.permute.xlu0 %1348
      %1352 = vrot.lane.b32.xlu0 %v1338, 96
      %v1353 = vpop.permute.xlu0 %1352
      %v1355 = vsel %vm903, %v1005, %v1345
      %vm1356 = vcmask 523264
      %v1357 = vsel %vm1356, %v1355, %v1349
      %vm1358 = vcmask 785408
      %v1359 = vsel %vm1358, %v1357, %v1353
      %v1360 = vpack.c.bf16 %v1359, %v1359
      %v1361 = vld [vmem:[%s10] sm:$0xf]
      %v1362 = vld [vmem:[%s10 + $0x4] sm:$0xf]
      %v1363 = vld [vmem:[%s10 + $0x8] sm:$0xf]
      %v1364 = vld [vmem:[%s10 + $0xc] sm:$0xf]
      %v1365 = vld [vmem:[%s10 + $0x10] sm:$0xf]
      %v1366 = vld [vmem:[%s10 + $0x14] sm:$0xf]
      %v1367 = vld [vmem:[%s10 + $0x18] sm:$0xf]
      %v1368 = vld [vmem:[%s10 + $0x1c] sm:$0xf]
      %v1369 = vld [vmem:[%s10 + $0x20] sm:$0xf]
      %v1370 = vld [vmem:[%s10 + $0x24] sm:$0xf]
      %v1371 = vld [vmem:[%s10 + $0x28] sm:$0xf]
      %v1372 = vld [vmem:[%s10 + $0x2c] sm:$0xf]
      %v1373 = vld [vmem:[%s10 + $0x30] sm:$0xf]
      %v1374 = vld [vmem:[%s10 + $0x34] sm:$0xf]
      %v1375 = vld [vmem:[%s10 + $0x38] sm:$0xf]
      %v1376 = vld [vmem:[%s10 + $0x3c] sm:$0xf]
      %v1377 = vld [vmem:[%s11] sm:$0x1]
      %v1379 = vlaneseq
      %v1380 = vshrl.u32 %v1379, 7
      %v1381 = vsub.s32 0, %v1380
      %v1382 = vrot.slane %v1377, %v1381
      %v1400 = vunpack.c.l.b16 %v1361
      %v1401 = vunpack.c.l.b16 %v1362
      %v1402 = vunpack.c.l.b16 %v1363
      %v1403 = vunpack.c.l.b16 %v1364
      %v1404 = vunpack.c.l.b16 %v1365
      %v1405 = vunpack.c.l.b16 %v1366
      %v1406 = vunpack.c.l.b16 %v1367
      %v1407 = vunpack.c.l.b16 %v1368
      %v1408 = vunpack.c.l.b16 %v1369
      %v1409 = vunpack.c.l.b16 %v1370
      %v1410 = vunpack.c.l.b16 %v1371
      %v1411 = vunpack.c.l.b16 %v1372
      %v1412 = vunpack.c.l.b16 %v1373
      %v1413 = vunpack.c.l.b16 %v1374
      %v1414 = vunpack.c.l.b16 %v1375
      %v1415 = vunpack.c.l.b16 %v1376
      %v1416 = vpack.c.b16 %v1401, %v1400
      %v1417 = vpack.c.b16 %v1403, %v1402
      %v1418 = vpack.c.b16 %v1405, %v1404
      %v1419 = vpack.c.b16 %v1407, %v1406
      %v1420 = vpack.c.b16 %v1409, %v1408
      %v1421 = vpack.c.b16 %v1411, %v1410
      %v1422 = vpack.c.b16 %v1413, %v1412
      %v1423 = vpack.c.b16 %v1415, %v1414
      %1432 = vmatprep.subr.bf16.mxu0 0
      %1433 = vmatpush1.bf16.msra.mxu0 %v1423
      %1434 = vmatprep.subr.bf16.mxu0 0
      %1435 = vmatpush1.bf16.msra.mxu0 %v1422
      %1436 = vmatprep.subr.bf16.mxu0 0
      %1437 = vmatpush1.bf16.msra.mxu0 %v1421
      %1438 = vmatprep.subr.bf16.mxu0 0
      %1439 = vmatpush1.bf16.msra.mxu0 %v1420
      %1440 = vmatprep.subr.bf16.mxu0 0
      %1441 = vmatpush1.bf16.msra.mxu0 %v1419
      %1442 = vmatprep.subr.bf16.mxu0 0
      %1443 = vmatpush1.bf16.msra.mxu0 %v1418
      %1444 = vmatprep.subr.bf16.mxu0 0
      %1445 = vmatpush1.bf16.msra.mxu0 %v1417
      %1446 = vmatprep.subr.bf16.mxu0 0
      %1447 = vmatpush1.bf16.msra.mxu0 %v1416
      %1448 = vmatprep.subr.bf16.mxu0 0
      %1449 = vmatpush2.bf16.msra.mxu0 0
      %1450 = vmatprep.subr.bf16.mxu0 0
      %1451 = vmatpush2.bf16.msra.mxu0 0
      %1452 = vmatprep.subr.bf16.mxu0 0
      %1453 = vmatpush2.bf16.msra.mxu0 0
      %1454 = vmatprep.subr.bf16.mxu0 0
      %1455 = vmatpush2.bf16.msra.mxu0 0
      %1456 = vmatprep.subr.bf16.mxu0 0
      %1457 = vmatpush2.bf16.msra.mxu0 0
      %1458 = vmatprep.subr.bf16.mxu0 0
      %1459 = vmatpush2.bf16.msra.mxu0 0
      %1460 = vmatprep.subr.bf16.mxu0 0
      %1461 = vmatpush2.bf16.msra.mxu0 0
      %1462 = vmatprep.subr.bf16.mxu0 0
      %1463 = vmatpush2.bf16.msra.mxu0 0
      %1464 = vmatprep.mubr.bf16.mxu0 0
      %1465 = vmatmul.mubr.bf16.gmra.mxu0 %v1360
      %v1466 = vpop.f32.mrf.mxu0
      %v1467 = vadd.f32 %v1382, %v1466
      %v1468 = vpop.f32.mrf.mxu0
      %v1469 = vpop.f32.mrf.mxu0
      %v1470 = vpop.f32.mrf.mxu0
      %1471 = vdwg.mxu0
      %v1472 = vadd.f32 %v557, %v1467
      %1473 = vadd.xlane.f32.xlu0 %v1472
      %v1474 = vpop.xlane.xlu0 %1473
      %v1475 = vrcp.pop 128.0
      %v1476 = vmul.f32 %v1474, %v1475
      %v1477 = vsub.f32 %v1472, %v1476
      %v1478 = vmul.f32 %v1477, %v1477
      %1479 = vadd.xlane.f32.xlu0 %v1478
      %v1480 = vpop.xlane.xlu0 %1479
      %v1481 = vmul.f32 %v1480, %v1475
      %v1482 = vadd.f32 %v1481, 1e-05
      %v1483 = vrsqrt.pop %v1482
      %v1484 = vmul.f32 %v1477, %v1483
      %v1485 = vld [vmem:[%s12] sm:$0x1]
      %v1487 = vlaneseq
      %v1488 = vshrl.u32 %v1487, 7
      %v1489 = vsub.s32 0, %v1488
      %v1490 = vrot.slane %v1485, %v1489
      %v1492 = vmul.f32 %v1484, %v1490
      %v1493 = vld [vmem:[%s13] sm:$0x1]
      %v1495 = vlaneseq
      %v1496 = vshrl.u32 %v1495, 7
      %v1497 = vsub.s32 0, %v1496
      %v1498 = vrot.slane %v1493, %v1497
      %v1500 = vadd.f32 %v1492, %v1498
      %1501 = vst [vmem:[%s555] sm:$0xff] %v1500
      %p1502 = scmp.lt.s32.totalorder %s29, 1
      %s1503 = scalar_select %p1502, %s29, 1
      %p1504 = scmp.lt.s32.totalorder %s30, 0
      %s1505 = scalar_select %p1504, %s30, 0
      %s1506 = sadd.s32 %s1505, %s1503
      %s1507 = smul.addr %s1506, 8
      %s1508 = scalar_lea.vmem %s14, %s1507
      // Predicated region
      $region77: #{transformer_clustering_forward.19} parent=75 // pred_check
        %p1509 = pneg %p375
      $region78: #{transformer_clustering_forward.19} parent=75 // pred_check_branch
        %1511 = sbr.rel (%p1509) target = $region80
      $region79: #{transformer_clustering_forward.19} parent=75 // pred_region
        _
      $region80: #{transformer_clustering_forward.19} parent=75 // pred_fallthru
        _
    $region76: #{transformer_clustering_forward.19} parent=5 // pred_fallthru
      _
    %p1512 = scmp.le.s32.totalorder 2, %s20
    // Predicated region
    $region81: #{transformer_clustering_forward.19} parent=5 // pred_check
      %p1513 = pneg %p1512
    $region82: #{transformer_clustering_forward.19} parent=5 // pred_check_branch
      %1515 = sbr.rel (%p1513) target = $region84
    $region83: #{transformer_clustering_forward.19} parent=5 // pred_region
      %s1516 = ssub.s32 %s20, 2
      // Predicated region
      $region85: #{transformer_clustering_forward.19} parent=83 // pred_check
        %p1517 = pneg %p381
      $region86: #{transformer_clustering_forward.19} parent=83 // pred_check_branch
        %1519 = sbr.rel (%p1517) target = $region88
      $region87: #{transformer_clustering_forward.19} parent=83 // pred_region
        %p1520 = scmp.lt.s32.totalorder %s31, 1
        %s1521 = scalar_select %p1520, %s31, 1
        %p1522 = scmp.lt.s32.totalorder %s32, 0
        %s1523 = scalar_select %p1522, %s32, 0
        %s1524 = sadd.s32 %s1523, %s1521
        %s1525 = smul.addr %s1524, 8
        %s1526 = scalar_lea.vmem %s14, %s1525
      $region88: #{transformer_clustering_forward.19} parent=83 // pred_fallthru
        _
    $region84: #{transformer_clustering_forward.19} parent=5 // pred_fallthru
      _
  $region6: #{transformer_clustering_forward.19} parent=0 // loop_footer
    %s24 = sadd.s32 1, %s20
  $region7: #{transformer_clustering_forward.19} parent=0 // loop_footer_branch
    %19 = sbr.rel target = $region3
  $region8: #{transformer_clustering_forward.19} parent=0 // loop_exit
    _

</llo_original>
